<compile_context>
chip_gen: v6e
topology: v6e:2x2x1
jax: 0.10.0
libtpu: 0.0.40
codegen_flags: <defaults>
</compile_context>

<pallas_src>
import math

import jax
import jax.numpy as jnp
from jax.experimental import pallas as pl
from jax.experimental.pallas import tpu as pltpu

# ----------------------- config (small, self-consistent) -----------------------
B = 2            # batch
S = 64           # sequence length (vision tokens)
E = 256          # hidden_size (embed_dim)
H = 2            # num_attention_heads
D = E // H       # head_dim = 128
I = 512          # intermediate_size
L = 4            # num_hidden_layers
EPS = 1e-6       # layer_norm_eps
QK_NORM = True   # config.qk_normalization
NORM_TYPE = "rms_norm"   # default norm_type in the module


def _gelu(x):
    # TODO(synk): HF InternViT 'gelu' is erf-based; tanh-approx GELU is used here (and in
    # the reference below) because exact-erf lowering on Mosaic is not guaranteed.
    return jax.nn.gelu(x, approximate=True)


# ----------------------------- Pallas kernel body ------------------------------
# One grid step == one encoder layer.  Per-layer weights arrive as squeezed (L,...)
# blocks; the hidden state lives in out_ref (same block index every step -> VMEM
# resident accumulator / carry).
def _encoder_kernel(
    x_ref,        # (B*S, E) f32   input hidden states (constant block index)
    n1w_ref,      # (1, E)   f32   norm1 weight (rms_norm)
    qkvw_ref,     # (E, 3E)  bf16  fused qkv weight (pre-transposed)
    qkvb_ref,     # (1, 3E)  f32   fused qkv bias
    qnw_ref,      # (1, E)   f32   q_norm weight
    knw_ref,      # (1, E)   f32   k_norm weight
    projw_ref,    # (E, E)   bf16  o-proj weight (pre-transposed)
    projb_ref,    # (1, E)   f32   o-proj bias
    ls1_ref,      # (1, E)   f32
    n2w_ref,      # (1, E)   f32   norm2 weight
    fc1w_ref,     # (E, I)   bf16  fc1 weight (pre-transposed)
    fc1b_ref,     # (1, I)   f32
    fc2w_ref,     # (I, E)   bf16  fc2 weight (pre-transposed)
    fc2b_ref,     # (1, E)   f32
    ls2_ref,      # (1, E)   f32
    out_ref,      # (B*S, E) f32   carried residual stream (resident across layers)
    attn_ref,     # (B*S, E) bf16  VMEM scratch: per-head attention output staging
):
    l = pl.program_id(0)

    @pl.when(l == 0)
    def _():
        out_ref[...] = x_ref[...]          # prime the carried residual stream

    x = out_ref[...].astype(jnp.float32)   # (B*S, E), resident since last layer

    def rms_norm(v, w):
        var = jnp.mean(v * v, axis=-1, keepdims=True)
        return v * jax.lax.rsqrt(var + EPS) * w

    # ---------------- attention branch: x + attn(norm1(x)) * ls1 ----------------
    xn = rms_norm(x, n1w_ref[...])
    xn_bf = xn.astype(jnp.bfloat16)        # cast once, reused for the fused qkv dot

    # single wide N=3E MXU dot, f32 accumulation, f32 bias
    qkv = jnp.dot(xn_bf, qkvw_ref[...],
                  preferred_element_type=jnp.float32) + qkvb_ref[...]   # (B*S, 3E)
    q = qkv[:, 0 * E:1 * E]                # 256-lane-aligned column slices (free)
    k = qkv[:, 1 * E:2 * E]
    v = qkv[:, 2 * E:3 * E]

    if QK_NORM:
        # single-TP path of qkv_norm(): RMSNorm over the flattened (H*D)=E axis
        q = rms_norm(q, qnw_ref[...])
        k = rms_norm(k, knw_ref[...])

    # fold the 1/sqrt(D) score scale into q (one (B*S,E) pass instead of per-(S,S) tile)
    scale = 1.0 / math.sqrt(D)
    q_bf = (q * scale).astype(jnp.bfloat16)
    k_bf = k.astype(jnp.bfloat16)
    v_bf = v.astype(jnp.bfloat16)

    # static loops over (batch, head); all slice offsets are 8/128-aligned so the
    # scratch stores below are unmasked.  Head outputs go straight to bf16 scratch
    # (no concatenates, no extra f32 copies, proj input already bf16).
    for bi in range(B):
        r0 = bi * S
        for hi in range(H):
            c0 = hi * D
            qh = q_bf[r0:r0 + S, c0:c0 + D]            # (S, D) bf16
            kh = k_bf[r0:r0 + S, c0:c0 + D]
            vh = v_bf[r0:r0 + S, c0:c0 + D]
            # s = qh @ kh.T via dot_general (no explicit transpose materialized)
            s = jax.lax.dot_general(qh, kh, (((1,), (1,)), ((), ())),
                                    preferred_element_type=jnp.float32)   # (S, S) f32
            m = jnp.max(s, axis=-1, keepdims=True)
            p = jnp.exp(s - m)
            p = p * pl.reciprocal(jnp.sum(p, axis=-1, keepdims=True), approx=True)
            o = jnp.dot(p.astype(jnp.bfloat16), vh,
                        preferred_element_type=jnp.float32)               # (S, D) f32
            attn_ref[r0:r0 + S, c0:c0 + D] = o.astype(jnp.bfloat16)

    attn = jnp.dot(attn_ref[...], projw_ref[...],
                   preferred_element_type=jnp.float32) + projb_ref[...]
    h1 = x + attn * ls1_ref[...]

    # ------------------- mlp branch: h1 + mlp(norm2(h1)) * ls2 ------------------
    xn2 = rms_norm(h1, n2w_ref[...])
    f = jnp.dot(xn2.astype(jnp.bfloat16), fc1w_ref[...],
                preferred_element_type=jnp.float32) + fc1b_ref[...]       # (B*S, I)
    f = _gelu(f)
    f = jnp.dot(f.astype(jnp.bfloat16), fc2w_ref[...],
                preferred_element_type=jnp.float32) + fc2b_ref[...]       # (B*S, E)
    h2 = h1 + f * ls2_ref[...]

    # write the carried residual stream; HBM writeback happens once (constant block
    # index across the layer grid axis).
    out_ref[...] = h2.astype(out_ref.dtype)


# ---------------------- one-time weight preparation (model load) ----------------
def prepare_params(layer_params):
    """Stack per-layer params to (L, ...); transpose (out,in)->(in,out); keep qkv fused;
    cast matmul weights to bf16.  Done ONCE at model-load time.  Norm weights, biases
    and layer-scales stay f32 (elementwise math stays f32)."""
    bf = jnp.bfloat16
    row = lambda a: a.reshape(1, -1).astype(jnp.float32)
    stack = lambda fn: jnp.stack([fn(p) for p in layer_params], axis=0)
    return {
        "n1w":    stack(lambda p: row(p["norm1_w"])),            # (L, 1, E)
        "qkv_w":  stack(lambda p: p["qkv_w"].T.astype(bf)),      # (L, E, 3E)
        "qkv_b":  stack(lambda p: row(p["qkv_b"])),              # (L, 1, 3E)
        "qnw":    stack(lambda p: row(p["q_norm_w"])),
        "knw":    stack(lambda p: row(p["k_norm_w"])),
        "proj_w": stack(lambda p: p["proj_w"].T.astype(bf)),     # (L, E, E)
        "proj_b": stack(lambda p: row(p["proj_b"])),
        "ls1":    stack(lambda p: row(p["ls1"])),
        "n2w":    stack(lambda p: row(p["norm2_w"])),
        "fc1_w":  stack(lambda p: p["fc1_w"].T.astype(bf)),      # (L, E, I)
        "fc1_b":  stack(lambda p: row(p["fc1_b"])),
        "fc2_w":  stack(lambda p: p["fc2_w"].T.astype(bf)),      # (L, I, E)
        "fc2_b":  stack(lambda p: row(p["fc2_b"])),
        "ls2":    stack(lambda p: row(p["ls2"])),
    }


# ------------------------------- wrapper (glue) ---------------------------------
def intern_vision_encoder(inputs_embeds, prep):
    """inputs_embeds: (B, S, E) f32. prep: output of prepare_params(). Runs all L layers."""
    b, s, e = inputs_embeds.shape
    assert (b, s, e) == (B, S, E)
    assert inputs_embeds.dtype == jnp.float32  # carried in-VMEM in f32

    # Fuse batch into the M dimension of every linear: the kernel processes the whole
    # (B*S, E) slab per layer.  grid=(L,) streams stacked per-layer weights.
    x2d = inputs_embeds.reshape(b * s, e)

    # per-layer-weight specs: leading L axis is squeezed (None); index_map selects layer l
    def mat_spec(m, n):
        return pl.BlockSpec((None, m, n), lambda l: (l, 0, 0))

    def row_spec(n):
        return pl.BlockSpec((None, 1, n), lambda l: (l, 0, 0))

    const_spec = pl.BlockSpec((b * s, e), lambda l: (0, 0))   # resident across layers

    in_specs = [
        const_spec,          # x
        row_spec(E),         # n1w
        mat_spec(E, 3 * E),  # qkv_w
        row_spec(3 * E),     # qkv_b
        row_spec(E),         # qnw
        row_spec(E),         # knw
        mat_spec(E, E),      # proj_w
        row_spec(E),         # proj_b
        row_spec(E),         # ls1
        row_spec(E),         # n2w
        mat_spec(E, I),      # fc1_w
        row_spec(I),         # fc1_b
        mat_spec(I, E),      # fc2_w
        row_spec(E),         # fc2_b
        row_spec(E),         # ls2
    ]

    args = (
        x2d,
        prep["n1w"],
        prep["qkv_w"], prep["qkv_b"],
        prep["qnw"], prep["knw"],
        prep["proj_w"], prep["proj_b"],
        prep["ls1"],
        prep["n2w"],
        prep["fc1_w"], prep["fc1_b"],
        prep["fc2_w"], prep["fc2_b"],
        prep["ls2"],
    )

    # advisory cost estimate for XLA scheduling around the custom call
    flops_per_layer = (2 * (B * S) * E * (3 * E)      # qkv
                       + 4 * B * H * S * S * D        # scores + pv
                       + 2 * (B * S) * E * E          # o-proj
                       + 4 * (B * S) * E * I)         # fc1 + fc2
    transc_per_layer = B * H * S * S + (B * S) * I + 8 * (B * S)
    wbytes_per_layer = 2 * (E * 3 * E + E * E + 2 * E * I) + 4 * (10 * E + 3 * E + I)
    cost = pl.CostEstimate(
        flops=L * flops_per_layer,
        transcendentals=L * transc_per_layer,
        bytes_accessed=L * wbytes_per_layer + 2 * 4 * (B * S) * E,
    )

    out2d = pl.pallas_call(
        _encoder_kernel,
        out_shape=jax.ShapeDtypeStruct((b * s, e), inputs_embeds.dtype),
        grid_spec=pltpu.PrefetchScalarGridSpec(
            num_scalar_prefetch=0,
            grid=(L,),
            in_specs=in_specs,
            out_specs=const_spec,
            scratch_shapes=[pltpu.VMEM((b * s, e), jnp.bfloat16)],   # attn staging
        ),
        compiler_params=pltpu.CompilerParams(
            dimension_semantics=("arbitrary",),       # layer axis is sequential
            vmem_limit_bytes=32 * 1024 * 1024,        # double-buffered weights ≈2 MiB; v7x-safe
        ),
        cost_estimate=cost,
    )(*args)
    return out2d.reshape(b, s, e)


# --------------------------- plain-JAX reference ---------------------------------
def reference(inputs_embeds, layer_params):
    x = inputs_embeds.astype(jnp.float32)

    def rms_norm(v, w):
        var = jnp.mean(v * v, axis=-1, keepdims=True)
        return v * jax.lax.rsqrt(var + EPS) * w

    for p in layer_params:
        xn = rms_norm(x, p["norm1_w"])
        qkv = xn @ p["qkv_w"].T + p["qkv_b"]
        q, k, v = jnp.split(qkv, 3, axis=-1)
        if QK_NORM:
            q = rms_norm(q, p["q_norm_w"])
            k = rms_norm(k, p["k_norm_w"])
        qh = q.reshape(B, S, H, D).transpose(0, 2, 1, 3)
        kh = k.reshape(B, S, H, D).transpose(0, 2, 1, 3)
        vh = v.reshape(B, S, H, D).transpose(0, 2, 1, 3)
        s = jnp.einsum("bhqd,bhkd->bhqk", qh, kh) / math.sqrt(D)
        pattn = jax.nn.softmax(s, axis=-1)
        o = jnp.einsum("bhqk,bhkd->bhqd", pattn, vh).transpose(0, 2, 1, 3).reshape(B, S, E)
        attn = o @ p["proj_w"].T + p["proj_b"]
        h1 = x + attn * p["ls1"]
        xn2 = rms_norm(h1, p["norm2_w"])
        f = _gelu(xn2 @ p["fc1_w"].T + p["fc1_b"])
        f = f @ p["fc2_w"].T + p["fc2_b"]
        x = h1 + f * p["ls2"]
    return x


# ------------------------------------ main ---------------------------------------
def _init_layer_params(key):
    ks = jax.random.split(key, 16)
    n = lambda k, shape, sc=0.02: (jax.random.normal(k, shape, jnp.float32) * sc)
    return {
        "norm1_w": jnp.ones((E,), jnp.float32) + n(ks[0], (E,), 0.01),
        "qkv_w": n(ks[1], (3 * E, E)),
        "qkv_b": n(ks[2], (3 * E,), 0.01),
        "q_norm_w": jnp.ones((E,), jnp.float32) + n(ks[3], (E,), 0.01),
        "k_norm_w": jnp.ones((E,), jnp.float32) + n(ks[4], (E,), 0.01),
        "proj_w": n(ks[5], (E, E)),
        "proj_b": n(ks[6], (E,), 0.01),
        "ls1": n(ks[7], (E,), 0.1),
        "norm2_w": jnp.ones((E,), jnp.float32) + n(ks[8], (E,), 0.01),
        "fc1_w": n(ks[9], (I, E)),
        "fc1_b": n(ks[10], (I,), 0.01),
        "fc2_w": n(ks[11], (E, I)),
        "fc2_b": n(ks[12], (E,), 0.01),
        "ls2": n(ks[13], (E,), 0.1),
    }


if __name__ == "__main__":
    key = jax.random.PRNGKey(0)
    xkey, *lkeys = jax.random.split(key, L + 1)
    layer_params = [_init_layer_params(k) for k in lkeys]
    inputs_embeds = jax.random.normal(xkey, (B, S, E), jnp.float32)

    prep = jax.tree_util.tree_map(jax.block_until_ready, prepare_params(layer_params))

    out = intern_vision_encoder(inputs_embeds, prep)
    out = jax.block_until_ready(out)

    ref = jax.block_until_ready(reference(inputs_embeds, layer_params))
    assert out.shape == (B, S, E)
    # bf16 MXU operands + approx reciprocal in softmax, compounded over L layers
    max_err = float(jnp.max(jnp.abs(out - ref)))
    assert jnp.allclose(out, ref, atol=5e-2, rtol=5e-2), max_err

    print("KERNEL_OK")
</pallas_src>

<mosaic_0001>
module attributes {stable_mosaic.version = 11 : i64} {
  func.func @_encoder_kernel(%arg0: i32, %arg1: memref<128x256xf32, #tpu.memory_space<vmem>>, %arg2: memref<1x1x256xf32, #tpu.memory_space<vmem>>, %arg3: memref<1x256x768xbf16, #tpu.memory_space<vmem>>, %arg4: memref<1x1x768xf32, #tpu.memory_space<vmem>>, %arg5: memref<1x1x256xf32, #tpu.memory_space<vmem>>, %arg6: memref<1x1x256xf32, #tpu.memory_space<vmem>>, %arg7: memref<1x256x256xbf16, #tpu.memory_space<vmem>>, %arg8: memref<1x1x256xf32, #tpu.memory_space<vmem>>, %arg9: memref<1x1x256xf32, #tpu.memory_space<vmem>>, %arg10: memref<1x1x256xf32, #tpu.memory_space<vmem>>, %arg11: memref<1x256x512xbf16, #tpu.memory_space<vmem>>, %arg12: memref<1x1x512xf32, #tpu.memory_space<vmem>>, %arg13: memref<1x512x256xbf16, #tpu.memory_space<vmem>>, %arg14: memref<1x1x256xf32, #tpu.memory_space<vmem>>, %arg15: memref<1x1x256xf32, #tpu.memory_space<vmem>>, %arg16: memref<128x256xf32, #tpu.memory_space<vmem>>, %arg17: memref<128x256xbf16, #tpu.memory_space<vmem>>) attributes {dimension_semantics = [#tpu.dimension_semantics<arbitrary>], iteration_bounds = array<i64: 4>, scalar_prefetch = 0 : i64, scratch_operands = 1 : i64, tpu.core_type = #tpu.core_type<tc>, window_params = [{pipeline_mode = #tpu.pipeline_mode<synchronous>, transform_indices = @transform_0, window_bounds = array<i64: 128, 256>}, {transform_indices = @transform_1, window_bounds = array<i64: 1, 1, 256>}, {transform_indices = @transform_2, window_bounds = array<i64: 1, 256, 768>}, {transform_indices = @transform_3, window_bounds = array<i64: 1, 1, 768>}, {transform_indices = @transform_4, window_bounds = array<i64: 1, 1, 256>}, {transform_indices = @transform_5, window_bounds = array<i64: 1, 1, 256>}, {transform_indices = @transform_6, window_bounds = array<i64: 1, 256, 256>}, {transform_indices = @transform_7, window_bounds = array<i64: 1, 1, 256>}, {transform_indices = @transform_8, window_bounds = array<i64: 1, 1, 256>}, {transform_indices = @transform_9, window_bounds = array<i64: 1, 1, 256>}, {transform_indices = @transform_10, window_bounds = array<i64: 1, 256, 512>}, {transform_indices = @transform_11, window_bounds = array<i64: 1, 1, 512>}, {transform_indices = @transform_12, window_bounds = array<i64: 1, 512, 256>}, {transform_indices = @transform_13, window_bounds = array<i64: 1, 1, 256>}, {transform_indices = @transform_14, window_bounds = array<i64: 1, 1, 256>}, {pipeline_mode = #tpu.pipeline_mode<synchronous>, transform_indices = @transform_15, window_bounds = array<i64: 128, 256>}]} {
    %c0_i32 = arith.constant 0 : i32
    %0 = arith.cmpi eq, %arg0, %c0_i32 : i32
    %1 = arith.extui %0 : i1 to i32
    %c0_i32_0 = arith.constant 0 : i32
    %2 = arith.cmpi ne, %1, %c0_i32_0 : i32
    scf.if %2 {
      %c0_90 = arith.constant 0 : index
      %c0_91 = arith.constant 0 : index
      %196 = vector.load %arg1[%c0_90, %c0_91] : memref<128x256xf32, #tpu.memory_space<vmem>>, vector<128x256xf32>
      %c0_92 = arith.constant 0 : index
      %c0_93 = arith.constant 0 : index
      %197 = vector.load %arg16[%c0_92, %c0_93] : memref<128x256xf32, #tpu.memory_space<vmem>>, vector<128x256xf32>
      tpu.vector_store %arg16[%c0_92, %c0_93], %196 {strides = array<i32>} : memref<128x256xf32, #tpu.memory_space<vmem>>, vector<128x256xf32>,
    } else {
    }
    %c0 = arith.constant 0 : index
    %c0_1 = arith.constant 0 : index
    %3 = vector.load %arg16[%c0, %c0_1] : memref<128x256xf32, #tpu.memory_space<vmem>>, vector<128x256xf32>
    %c0_2 = arith.constant 0 : index
    %c0_3 = arith.constant 0 : index
    %c0_4 = arith.constant 0 : index
    %4 = vector.load %arg2[%c0_2, %c0_3, %c0_4] : memref<1x1x256xf32, #tpu.memory_space<vmem>>, vector<1x1x256xf32>
    %5 = vector.shape_cast %4 : vector<1x1x256xf32> to vector<1x256xf32>
    %6 = arith.mulf %3, %3 : vector<128x256xf32>
    %cst = arith.constant dense<0.000000e+00> : vector<128xf32>
    %7 = vector.multi_reduction <add>, %6, %cst [1] : vector<128x256xf32> to vector<128xf32>
    %8 = vector.shape_cast %7 : vector<128xf32> to vector<128x1xf32>
    %cst_5 = arith.constant 2.560000e+02 : f32
    %9 = vector.broadcast %cst_5 : f32 to vector<128x1xf32>
    %10 = arith.divf %8, %9 : vector<128x1xf32>
    %cst_6 = arith.constant 9.99999997E-7 : f32
    %11 = vector.broadcast %cst_6 : f32 to vector<128x1xf32>
    %12 = arith.addf %10, %11 : vector<128x1xf32>
    %13 = math.rsqrt %12 : vector<128x1xf32>
    %14 = vector.broadcast %13 : vector<128x1xf32> to vector<128x256xf32>
    %15 = arith.mulf %3, %14 : vector<128x256xf32>
    %16 = vector.broadcast %5 : vector<1x256xf32> to vector<128x256xf32>
    %17 = arith.mulf %15, %16 : vector<128x256xf32>
    %18 = arith.truncf %17 : vector<128x256xf32> to vector<128x256xbf16>
    %c0_7 = arith.constant 0 : index
    %c0_8 = arith.constant 0 : index
    %c0_9 = arith.constant 0 : index
    %19 = vector.load %arg3[%c0_7, %c0_8, %c0_9] : memref<1x256x768xbf16, #tpu.memory_space<vmem>>, vector<1x256x768xbf16>
    %20 = vector.shape_cast %19 : vector<1x256x768xbf16> to vector<256x768xbf16>
    %cst_10 = arith.constant dense<0.000000e+00> : vector<128x768xf32>
    %21 = tpu.matmul %18, %20, %cst_10 {dimension_numbers = #tpu.dot_dimension_numbers<[1], [0], [0], [1], [0, 0, 1, 1], [], []>} : vector<128x256xbf16>, vector<256x768xbf16>, vector<128x768xf32> -> vector<128x768xf32>
    %c0_11 = arith.constant 0 : index
    %c0_12 = arith.constant 0 : index
    %c0_13 = arith.constant 0 : index
    %22 = vector.load %arg4[%c0_11, %c0_12, %c0_13] : memref<1x1x768xf32, #tpu.memory_space<vmem>>, vector<1x1x768xf32>
    %23 = vector.shape_cast %22 : vector<1x1x768xf32> to vector<1x768xf32>
    %24 = vector.broadcast %23 : vector<1x768xf32> to vector<128x768xf32>
    %25 = arith.addf %21, %24 : vector<128x768xf32>
    %26 = vector.extract_strided_slice %25 {offsets = [0, 0], sizes = [128, 256], strides = [1, 1]} : vector<128x768xf32> to vector<128x256xf32>
    %27 = vector.extract_strided_slice %25 {offsets = [0, 256], sizes = [128, 256], strides = [1, 1]} : vector<128x768xf32> to vector<128x256xf32>
    %28 = vector.extract_strided_slice %25 {offsets = [0, 512], sizes = [128, 256], strides = [1, 1]} : vector<128x768xf32> to vector<128x256xf32>
    %c0_14 = arith.constant 0 : index
    %c0_15 = arith.constant 0 : index
    %c0_16 = arith.constant 0 : index
    %29 = vector.load %arg5[%c0_14, %c0_15, %c0_16] : memref<1x1x256xf32, #tpu.memory_space<vmem>>, vector<1x1x256xf32>
    %30 = vector.shape_cast %29 : vector<1x1x256xf32> to vector<1x256xf32>
    %31 = arith.mulf %26, %26 : vector<128x256xf32>
    %cst_17 = arith.constant dense<0.000000e+00> : vector<128xf32>
    %32 = vector.multi_reduction <add>, %31, %cst_17 [1] : vector<128x256xf32> to vector<128xf32>
    %33 = vector.shape_cast %32 : vector<128xf32> to vector<128x1xf32>
    %cst_18 = arith.constant 2.560000e+02 : f32
    %34 = vector.broadcast %cst_18 : f32 to vector<128x1xf32>
    %35 = arith.divf %33, %34 : vector<128x1xf32>
    %cst_19 = arith.constant 9.99999997E-7 : f32
    %36 = vector.broadcast %cst_19 : f32 to vector<128x1xf32>
    %37 = arith.addf %35, %36 : vector<128x1xf32>
    %38 = math.rsqrt %37 : vector<128x1xf32>
    %39 = vector.broadcast %38 : vector<128x1xf32> to vector<128x256xf32>
    %40 = arith.mulf %26, %39 : vector<128x256xf32>
    %41 = vector.broadcast %30 : vector<1x256xf32> to vector<128x256xf32>
    %42 = arith.mulf %40, %41 : vector<128x256xf32>
    %c0_20 = arith.constant 0 : index
    %c0_21 = arith.constant 0 : index
    %c0_22 = arith.constant 0 : index
    %43 = vector.load %arg6[%c0_20, %c0_21, %c0_22] : memref<1x1x256xf32, #tpu.memory_space<vmem>>, vector<1x1x256xf32>
    %44 = vector.shape_cast %43 : vector<1x1x256xf32> to vector<1x256xf32>
    %45 = arith.mulf %27, %27 : vector<128x256xf32>
    %cst_23 = arith.constant dense<0.000000e+00> : vector<128xf32>
    %46 = vector.multi_reduction <add>, %45, %cst_23 [1] : vector<128x256xf32> to vector<128xf32>
    %47 = vector.shape_cast %46 : vector<128xf32> to vector<128x1xf32>
    %cst_24 = arith.constant 2.560000e+02 : f32
    %48 = vector.broadcast %cst_24 : f32 to vector<128x1xf32>
    %49 = arith.divf %47, %48 : vector<128x1xf32>
    %cst_25 = arith.constant 9.99999997E-7 : f32
    %50 = vector.broadcast %cst_25 : f32 to vector<128x1xf32>
    %51 = arith.addf %49, %50 : vector<128x1xf32>
    %52 = math.rsqrt %51 : vector<128x1xf32>
    %53 = vector.broadcast %52 : vector<128x1xf32> to vector<128x256xf32>
    %54 = arith.mulf %27, %53 : vector<128x256xf32>
    %55 = vector.broadcast %44 : vector<1x256xf32> to vector<128x256xf32>
    %56 = arith.mulf %54, %55 : vector<128x256xf32>
    %cst_26 = arith.constant 0.0883883461 : f32
    %57 = vector.broadcast %cst_26 : f32 to vector<128x256xf32>
    %58 = arith.mulf %42, %57 : vector<128x256xf32>
    %59 = arith.truncf %58 : vector<128x256xf32> to vector<128x256xbf16>
    %60 = arith.truncf %56 : vector<128x256xf32> to vector<128x256xbf16>
    %61 = arith.truncf %28 : vector<128x256xf32> to vector<128x256xbf16>
    %62 = vector.extract_strided_slice %59 {offsets = [0, 0], sizes = [64, 128], strides = [1, 1]} : vector<128x256xbf16> to vector<64x128xbf16>
    %63 = vector.extract_strided_slice %60 {offsets = [0, 0], sizes = [64, 128], strides = [1, 1]} : vector<128x256xbf16> to vector<64x128xbf16>
    %64 = vector.extract_strided_slice %61 {offsets = [0, 0], sizes = [64, 128], strides = [1, 1]} : vector<128x256xbf16> to vector<64x128xbf16>
    %cst_27 = arith.constant dense<0.000000e+00> : vector<64x64xf32>
    %65 = tpu.matmul %62, %63, %cst_27 {dimension_numbers = #tpu.dot_dimension_numbers<[1], [1], [0], [0], [0, 0, 1, 0], [], []>} : vector<64x128xbf16>, vector<64x128xbf16>, vector<64x64xf32> -> vector<64x64xf32>
    %cst_28 = arith.constant dense<0xFF800000> : vector<64xf32>
    %66 = vector.multi_reduction <maximumf>, %65, %cst_28 [1] : vector<64x64xf32> to vector<64xf32>
    %67 = vector.shape_cast %66 : vector<64xf32> to vector<64x1xf32>
    %68 = vector.broadcast %67 : vector<64x1xf32> to vector<64x64xf32>
    %69 = arith.subf %65, %68 : vector<64x64xf32>
    %70 = math.exp %69 : vector<64x64xf32>
    %cst_29 = arith.constant dense<0.000000e+00> : vector<64xf32>
    %71 = vector.multi_reduction <add>, %70, %cst_29 [1] : vector<64x64xf32> to vector<64xf32>
    %72 = vector.shape_cast %71 : vector<64xf32> to vector<64x1xf32>
    %73 = tpu.reciprocal %72 {approx = true} : vector<64x1xf32> -> vector<64x1xf32>
    %74 = vector.broadcast %73 : vector<64x1xf32> to vector<64x64xf32>
    %75 = arith.mulf %70, %74 : vector<64x64xf32>
    %76 = arith.truncf %75 : vector<64x64xf32> to vector<64x64xbf16>
    %cst_30 = arith.constant dense<0.000000e+00> : vector<64x128xf32>
    %77 = tpu.matmul %76, %64, %cst_30 {dimension_numbers = #tpu.dot_dimension_numbers<[1], [0], [0], [1], [0, 0, 1, 1], [], []>} : vector<64x64xbf16>, vector<64x128xbf16>, vector<64x128xf32> -> vector<64x128xf32>
    %78 = arith.truncf %77 : vector<64x128xf32> to vector<64x128xbf16>
    %c0_31 = arith.constant 0 : index
    %c0_32 = arith.constant 0 : index
    %79 = vector.load %arg17[%c0_31, %c0_32] : memref<128x256xbf16, #tpu.memory_space<vmem>>, vector<64x128xbf16>
    tpu.vector_store %arg17[%c0_31, %c0_32], %78 {strides = array<i32>} : memref<128x256xbf16, #tpu.memory_space<vmem>>, vector<64x128xbf16>,
    %80 = vector.extract_strided_slice %59 {offsets = [0, 128], sizes = [64, 128], strides = [1, 1]} : vector<128x256xbf16> to vector<64x128xbf16>
    %81 = vector.extract_strided_slice %60 {offsets = [0, 128], sizes = [64, 128], strides = [1, 1]} : vector<128x256xbf16> to vector<64x128xbf16>
    %82 = vector.extract_strided_slice %61 {offsets = [0, 128], sizes = [64, 128], strides = [1, 1]} : vector<128x256xbf16> to vector<64x128xbf16>
    %cst_33 = arith.constant dense<0.000000e+00> : vector<64x64xf32>
    %83 = tpu.matmul %80, %81, %cst_33 {dimension_numbers = #tpu.dot_dimension_numbers<[1], [1], [0], [0], [0, 0, 1, 0], [], []>} : vector<64x128xbf16>, vector<64x128xbf16>, vector<64x64xf32> -> vector<64x64xf32>
    %cst_34 = arith.constant dense<0xFF800000> : vector<64xf32>
    %84 = vector.multi_reduction <maximumf>, %83, %cst_34 [1] : vector<64x64xf32> to vector<64xf32>
    %85 = vector.shape_cast %84 : vector<64xf32> to vector<64x1xf32>
    %86 = vector.broadcast %85 : vector<64x1xf32> to vector<64x64xf32>
    %87 = arith.subf %83, %86 : vector<64x64xf32>
    %88 = math.exp %87 : vector<64x64xf32>
    %cst_35 = arith.constant dense<0.000000e+00> : vector<64xf32>
    %89 = vector.multi_reduction <add>, %88, %cst_35 [1] : vector<64x64xf32> to vector<64xf32>
    %90 = vector.shape_cast %89 : vector<64xf32> to vector<64x1xf32>
    %91 = tpu.reciprocal %90 {approx = true} : vector<64x1xf32> -> vector<64x1xf32>
    %92 = vector.broadcast %91 : vector<64x1xf32> to vector<64x64xf32>
    %93 = arith.mulf %88, %92 : vector<64x64xf32>
    %94 = arith.truncf %93 : vector<64x64xf32> to vector<64x64xbf16>
    %cst_36 = arith.constant dense<0.000000e+00> : vector<64x128xf32>
    %95 = tpu.matmul %94, %82, %cst_36 {dimension_numbers = #tpu.dot_dimension_numbers<[1], [0], [0], [1], [0, 0, 1, 1], [], []>} : vector<64x64xbf16>, vector<64x128xbf16>, vector<64x128xf32> -> vector<64x128xf32>
    %96 = arith.truncf %95 : vector<64x128xf32> to vector<64x128xbf16>
    %c0_37 = arith.constant 0 : index
    %c128 = arith.constant 128 : index
    %97 = vector.load %arg17[%c0_37, %c128] : memref<128x256xbf16, #tpu.memory_space<vmem>>, vector<64x128xbf16>
    tpu.vector_store %arg17[%c0_37, %c128], %96 {strides = array<i32>} : memref<128x256xbf16, #tpu.memory_space<vmem>>, vector<64x128xbf16>,
    %98 = vector.extract_strided_slice %59 {offsets = [64, 0], sizes = [64, 128], strides = [1, 1]} : vector<128x256xbf16> to vector<64x128xbf16>
    %99 = vector.extract_strided_slice %60 {offsets = [64, 0], sizes = [64, 128], strides = [1, 1]} : vector<128x256xbf16> to vector<64x128xbf16>
    %100 = vector.extract_strided_slice %61 {offsets = [64, 0], sizes = [64, 128], strides = [1, 1]} : vector<128x256xbf16> to vector<64x128xbf16>
    %cst_38 = arith.constant dense<0.000000e+00> : vector<64x64xf32>
    %101 = tpu.matmul %98, %99, %cst_38 {dimension_numbers = #tpu.dot_dimension_numbers<[1], [1], [0], [0], [0, 0, 1, 0], [], []>} : vector<64x128xbf16>, vector<64x128xbf16>, vector<64x64xf32> -> vector<64x64xf32>
    %cst_39 = arith.constant dense<0xFF800000> : vector<64xf32>
    %102 = vector.multi_reduction <maximumf>, %101, %cst_39 [1] : vector<64x64xf32> to vector<64xf32>
    %103 = vector.shape_cast %102 : vector<64xf32> to vector<64x1xf32>
    %104 = vector.broadcast %103 : vector<64x1xf32> to vector<64x64xf32>
    %105 = arith.subf %101, %104 : vector<64x64xf32>
    %106 = math.exp %105 : vector<64x64xf32>
    %cst_40 = arith.constant dense<0.000000e+00> : vector<64xf32>
    %107 = vector.multi_reduction <add>, %106, %cst_40 [1] : vector<64x64xf32> to vector<64xf32>
    %108 = vector.shape_cast %107 : vector<64xf32> to vector<64x1xf32>
    %109 = tpu.reciprocal %108 {approx = true} : vector<64x1xf32> -> vector<64x1xf32>
    %110 = vector.broadcast %109 : vector<64x1xf32> to vector<64x64xf32>
    %111 = arith.mulf %106, %110 : vector<64x64xf32>
    %112 = arith.truncf %111 : vector<64x64xf32> to vector<64x64xbf16>
    %cst_41 = arith.constant dense<0.000000e+00> : vector<64x128xf32>
    %113 = tpu.matmul %112, %100, %cst_41 {dimension_numbers = #tpu.dot_dimension_numbers<[1], [0], [0], [1], [0, 0, 1, 1], [], []>} : vector<64x64xbf16>, vector<64x128xbf16>, vector<64x128xf32> -> vector<64x128xf32>
    %114 = arith.truncf %113 : vector<64x128xf32> to vector<64x128xbf16>
    %c64 = arith.constant 64 : index
    %c0_42 = arith.constant 0 : index
    %115 = vector.load %arg17[%c64, %c0_42] : memref<128x256xbf16, #tpu.memory_space<vmem>>, vector<64x128xbf16>
    tpu.vector_store %arg17[%c64, %c0_42], %114 {strides = array<i32>} : memref<128x256xbf16, #tpu.memory_space<vmem>>, vector<64x128xbf16>,
    %116 = vector.extract_strided_slice %59 {offsets = [64, 128], sizes = [64, 128], strides = [1, 1]} : vector<128x256xbf16> to vector<64x128xbf16>
    %117 = vector.extract_strided_slice %60 {offsets = [64, 128], sizes = [64, 128], strides = [1, 1]} : vector<128x256xbf16> to vector<64x128xbf16>
    %118 = vector.extract_strided_slice %61 {offsets = [64, 128], sizes = [64, 128], strides = [1, 1]} : vector<128x256xbf16> to vector<64x128xbf16>
    %cst_43 = arith.constant dense<0.000000e+00> : vector<64x64xf32>
    %119 = tpu.matmul %116, %117, %cst_43 {dimension_numbers = #tpu.dot_dimension_numbers<[1], [1], [0], [0], [0, 0, 1, 0], [], []>} : vector<64x128xbf16>, vector<64x128xbf16>, vector<64x64xf32> -> vector<64x64xf32>
    %cst_44 = arith.constant dense<0xFF800000> : vector<64xf32>
    %120 = vector.multi_reduction <maximumf>, %119, %cst_44 [1] : vector<64x64xf32> to vector<64xf32>
    %121 = vector.shape_cast %120 : vector<64xf32> to vector<64x1xf32>
    %122 = vector.broadcast %121 : vector<64x1xf32> to vector<64x64xf32>
    %123 = arith.subf %119, %122 : vector<64x64xf32>
    %124 = math.exp %123 : vector<64x64xf32>
    %cst_45 = arith.constant dense<0.000000e+00> : vector<64xf32>
    %125 = vector.multi_reduction <add>, %124, %cst_45 [1] : vector<64x64xf32> to vector<64xf32>
    %126 = vector.shape_cast %125 : vector<64xf32> to vector<64x1xf32>
    %127 = tpu.reciprocal %126 {approx = true} : vector<64x1xf32> -> vector<64x1xf32>
    %128 = vector.broadcast %127 : vector<64x1xf32> to vector<64x64xf32>
    %129 = arith.mulf %124, %128 : vector<64x64xf32>
    %130 = arith.truncf %129 : vector<64x64xf32> to vector<64x64xbf16>
    %cst_46 = arith.constant dense<0.000000e+00> : vector<64x128xf32>
    %131 = tpu.matmul %130, %118, %cst_46 {dimension_numbers = #tpu.dot_dimension_numbers<[1], [0], [0], [1], [0, 0, 1, 1], [], []>} : vector<64x64xbf16>, vector<64x128xbf16>, vector<64x128xf32> -> vector<64x128xf32>
    %132 = arith.truncf %131 : vector<64x128xf32> to vector<64x128xbf16>
    %c64_47 = arith.constant 64 : index
    %c128_48 = arith.constant 128 : index
    %133 = vector.load %arg17[%c64_47, %c128_48] : memref<128x256xbf16, #tpu.memory_space<vmem>>, vector<64x128xbf16>
    tpu.vector_store %arg17[%c64_47, %c128_48], %132 {strides = array<i32>} : memref<128x256xbf16, #tpu.memory_space<vmem>>, vector<64x128xbf16>,
    %c0_49 = arith.constant 0 : index
    %c0_50 = arith.constant 0 : index
    %134 = vector.load %arg17[%c0_49, %c0_50] : memref<128x256xbf16, #tpu.memory_space<vmem>>, vector<128x256xbf16>
    %c0_51 = arith.constant 0 : index
    %c0_52 = arith.constant 0 : index
    %c0_53 = arith.constant 0 : index
    %135 = vector.load %arg7[%c0_51, %c0_52, %c0_53] : memref<1x256x256xbf16, #tpu.memory_space<vmem>>, vector<1x256x256xbf16>
    %136 = vector.shape_cast %135 : vector<1x256x256xbf16> to vector<256x256xbf16>
    %cst_54 = arith.constant dense<0.000000e+00> : vector<128x256xf32>
    %137 = tpu.matmul %134, %136, %cst_54 {dimension_numbers = #tpu.dot_dimension_numbers<[1], [0], [0], [1], [0, 0, 1, 1], [], []>} : vector<128x256xbf16>, vector<256x256xbf16>, vector<128x256xf32> -> vector<128x256xf32>
    %c0_55 = arith.constant 0 : index
    %c0_56 = arith.constant 0 : index
    %c0_57 = arith.constant 0 : index
    %138 = vector.load %arg8[%c0_55, %c0_56, %c0_57] : memref<1x1x256xf32, #tpu.memory_space<vmem>>, vector<1x1x256xf32>
    %139 = vector.shape_cast %138 : vector<1x1x256xf32> to vector<1x256xf32>
    %140 = vector.broadcast %139 : vector<1x256xf32> to vector<128x256xf32>
    %141 = arith.addf %137, %140 : vector<128x256xf32>
    %c0_58 = arith.constant 0 : index
    %c0_59 = arith.constant 0 : index
    %c0_60 = arith.constant 0 : index
    %142 = vector.load %arg9[%c0_58, %c0_59, %c0_60] : memref<1x1x256xf32, #tpu.memory_space<vmem>>, vector<1x1x256xf32>
    %143 = vector.shape_cast %142 : vector<1x1x256xf32> to vector<1x256xf32>
    %144 = vector.broadcast %143 : vector<1x256xf32> to vector<128x256xf32>
    %145 = arith.mulf %141, %144 : vector<128x256xf32>
    %146 = arith.addf %3, %145 : vector<128x256xf32>
    %c0_61 = arith.constant 0 : index
    %c0_62 = arith.constant 0 : index
    %c0_63 = arith.constant 0 : index
    %147 = vector.load %arg10[%c0_61, %c0_62, %c0_63] : memref<1x1x256xf32, #tpu.memory_space<vmem>>, vector<1x1x256xf32>
    %148 = vector.shape_cast %147 : vector<1x1x256xf32> to vector<1x256xf32>
    %149 = arith.mulf %146, %146 : vector<128x256xf32>
    %cst_64 = arith.constant dense<0.000000e+00> : vector<128xf32>
    %150 = vector.multi_reduction <add>, %149, %cst_64 [1] : vector<128x256xf32> to vector<128xf32>
    %151 = vector.shape_cast %150 : vector<128xf32> to vector<128x1xf32>
    %cst_65 = arith.constant 2.560000e+02 : f32
    %152 = vector.broadcast %cst_65 : f32 to vector<128x1xf32>
    %153 = arith.divf %151, %152 : vector<128x1xf32>
    %cst_66 = arith.constant 9.99999997E-7 : f32
    %154 = vector.broadcast %cst_66 : f32 to vector<128x1xf32>
    %155 = arith.addf %153, %154 : vector<128x1xf32>
    %156 = math.rsqrt %155 : vector<128x1xf32>
    %157 = vector.broadcast %156 : vector<128x1xf32> to vector<128x256xf32>
    %158 = arith.mulf %146, %157 : vector<128x256xf32>
    %159 = vector.broadcast %148 : vector<1x256xf32> to vector<128x256xf32>
    %160 = arith.mulf %158, %159 : vector<128x256xf32>
    %161 = arith.truncf %160 : vector<128x256xf32> to vector<128x256xbf16>
    %c0_67 = arith.constant 0 : index
    %c0_68 = arith.constant 0 : index
    %c0_69 = arith.constant 0 : index
    %162 = vector.load %arg11[%c0_67, %c0_68, %c0_69] : memref<1x256x512xbf16, #tpu.memory_space<vmem>>, vector<1x256x512xbf16>
    %163 = vector.shape_cast %162 : vector<1x256x512xbf16> to vector<256x512xbf16>
    %cst_70 = arith.constant dense<0.000000e+00> : vector<128x512xf32>
    %164 = tpu.matmul %161, %163, %cst_70 {dimension_numbers = #tpu.dot_dimension_numbers<[1], [0], [0], [1], [0, 0, 1, 1], [], []>} : vector<128x256xbf16>, vector<256x512xbf16>, vector<128x512xf32> -> vector<128x512xf32>
    %c0_71 = arith.constant 0 : index
    %c0_72 = arith.constant 0 : index
    %c0_73 = arith.constant 0 : index
    %165 = vector.load %arg12[%c0_71, %c0_72, %c0_73] : memref<1x1x512xf32, #tpu.memory_space<vmem>>, vector<1x1x512xf32>
    %166 = vector.shape_cast %165 : vector<1x1x512xf32> to vector<1x512xf32>
    %167 = vector.broadcast %166 : vector<1x512xf32> to vector<128x512xf32>
    %168 = arith.addf %164, %167 : vector<128x512xf32>
    %169 = arith.mulf %168, %168 : vector<128x512xf32>
    %170 = arith.mulf %168, %169 : vector<128x512xf32>
    %cst_74 = arith.constant 4.471500e-02 : f32
    %171 = vector.broadcast %cst_74 : f32 to vector<128x512xf32>
    %172 = arith.mulf %171, %170 : vector<128x512xf32>
    %173 = arith.addf %168, %172 : vector<128x512xf32>
    %cst_75 = arith.constant 0.797884583 : f32
    %174 = vector.broadcast %cst_75 : f32 to vector<128x512xf32>
    %175 = arith.mulf %174, %173 : vector<128x512xf32>
    %176 = math.tanh %175 : vector<128x512xf32>
    %cst_76 = arith.constant 1.000000e+00 : f32
    %177 = vector.broadcast %cst_76 : f32 to vector<128x512xf32>
    %178 = arith.addf %177, %176 : vector<128x512xf32>
    %cst_77 = arith.constant 5.000000e-01 : f32
    %179 = vector.broadcast %cst_77 : f32 to vector<128x512xf32>
    %180 = arith.mulf %179, %178 : vector<128x512xf32>
    %181 = arith.mulf %168, %180 : vector<128x512xf32>
    %182 = arith.truncf %181 : vector<128x512xf32> to vector<128x512xbf16>
    %c0_78 = arith.constant 0 : index
    %c0_79 = arith.constant 0 : index
    %c0_80 = arith.constant 0 : index
    %183 = vector.load %arg13[%c0_78, %c0_79, %c0_80] : memref<1x512x256xbf16, #tpu.memory_space<vmem>>, vector<1x512x256xbf16>
    %184 = vector.shape_cast %183 : vector<1x512x256xbf16> to vector<512x256xbf16>
    %cst_81 = arith.constant dense<0.000000e+00> : vector<128x256xf32>
    %185 = tpu.matmul %182, %184, %cst_81 {dimension_numbers = #tpu.dot_dimension_numbers<[1], [0], [0], [1], [0, 0, 1, 1], [], []>} : vector<128x512xbf16>, vector<512x256xbf16>, vector<128x256xf32> -> vector<128x256xf32>
    %c0_82 = arith.constant 0 : index
    %c0_83 = arith.constant 0 : index
    %c0_84 = arith.constant 0 : index
    %186 = vector.load %arg14[%c0_82, %c0_83, %c0_84] : memref<1x1x256xf32, #tpu.memory_space<vmem>>, vector<1x1x256xf32>
    %187 = vector.shape_cast %186 : vector<1x1x256xf32> to vector<1x256xf32>
    %188 = vector.broadcast %187 : vector<1x256xf32> to vector<128x256xf32>
    %189 = arith.addf %185, %188 : vector<128x256xf32>
    %c0_85 = arith.constant 0 : index
    %c0_86 = arith.constant 0 : index
    %c0_87 = arith.constant 0 : index
    %190 = vector.load %arg15[%c0_85, %c0_86, %c0_87] : memref<1x1x256xf32, #tpu.memory_space<vmem>>, vector<1x1x256xf32>
    %191 = vector.shape_cast %190 : vector<1x1x256xf32> to vector<1x256xf32>
    %192 = vector.broadcast %191 : vector<1x256xf32> to vector<128x256xf32>
    %193 = arith.mulf %189, %192 : vector<128x256xf32>
    %194 = arith.addf %146, %193 : vector<128x256xf32>
    %c0_88 = arith.constant 0 : index
    %c0_89 = arith.constant 0 : index
    %195 = vector.load %arg16[%c0_88, %c0_89] : memref<128x256xf32, #tpu.memory_space<vmem>>, vector<128x256xf32>
    tpu.vector_store %arg16[%c0_88, %c0_89], %194 {strides = array<i32>} : memref<128x256xf32, #tpu.memory_space<vmem>>, vector<128x256xf32>,
    return
  }
  func.func @transform_0(%arg0: i32) -> (i32, i32) {
    %c0_i32 = arith.constant 0 : i32
    %c0_i32_0 = arith.constant 0 : i32
    %c0_i32_1 = arith.constant 0 : i32
    return %c0_i32, %c0_i32_0 : i32, i32
  }
  func.func @transform_1(%arg0: i32) -> (i32, i32, i32) {
    %c0_i32 = arith.constant 0 : i32
    %c0_i32_0 = arith.constant 0 : i32
    %c0_i32_1 = arith.constant 0 : i32
    return %arg0, %c0_i32, %c0_i32_0 : i32, i32, i32
  }
  func.func @transform_2(%arg0: i32) -> (i32, i32, i32) {
    %c0_i32 = arith.constant 0 : i32
    %c0_i32_0 = arith.constant 0 : i32
    %c0_i32_1 = arith.constant 0 : i32
    return %arg0, %c0_i32, %c0_i32_0 : i32, i32, i32
  }
  func.func @transform_3(%arg0: i32) -> (i32, i32, i32) {
    %c0_i32 = arith.constant 0 : i32
    %c0_i32_0 = arith.constant 0 : i32
    %c0_i32_1 = arith.constant 0 : i32
    return %arg0, %c0_i32, %c0_i32_0 : i32, i32, i32
  }
  func.func @transform_4(%arg0: i32) -> (i32, i32, i32) {
    %c0_i32 = arith.constant 0 : i32
    %c0_i32_0 = arith.constant 0 : i32
    %c0_i32_1 = arith.constant 0 : i32
    return %arg0, %c0_i32, %c0_i32_0 : i32, i32, i32
  }
  func.func @transform_5(%arg0: i32) -> (i32, i32, i32) {
    %c0_i32 = arith.constant 0 : i32
    %c0_i32_0 = arith.constant 0 : i32
    %c0_i32_1 = arith.constant 0 : i32
    return %arg0, %c0_i32, %c0_i32_0 : i32, i32, i32
  }
  func.func @transform_6(%arg0: i32) -> (i32, i32, i32) {
    %c0_i32 = arith.constant 0 : i32
    %c0_i32_0 = arith.constant 0 : i32
    %c0_i32_1 = arith.constant 0 : i32
    return %arg0, %c0_i32, %c0_i32_0 : i32, i32, i32
  }
  func.func @transform_7(%arg0: i32) -> (i32, i32, i32) {
    %c0_i32 = arith.constant 0 : i32
    %c0_i32_0 = arith.constant 0 : i32
    %c0_i32_1 = arith.constant 0 : i32
    return %arg0, %c0_i32, %c0_i32_0 : i32, i32, i32
  }
  func.func @transform_8(%arg0: i32) -> (i32, i32, i32) {
    %c0_i32 = arith.constant 0 : i32
    %c0_i32_0 = arith.constant 0 : i32
    %c0_i32_1 = arith.constant 0 : i32
    return %arg0, %c0_i32, %c0_i32_0 : i32, i32, i32
  }
  func.func @transform_9(%arg0: i32) -> (i32, i32, i32) {
    %c0_i32 = arith.constant 0 : i32
    %c0_i32_0 = arith.constant 0 : i32
    %c0_i32_1 = arith.constant 0 : i32
    return %arg0, %c0_i32, %c0_i32_0 : i32, i32, i32
  }
  func.func @transform_10(%arg0: i32) -> (i32, i32, i32) {
    %c0_i32 = arith.constant 0 : i32
    %c0_i32_0 = arith.constant 0 : i32
    %c0_i32_1 = arith.constant 0 : i32
    return %arg0, %c0_i32, %c0_i32_0 : i32, i32, i32
  }
  func.func @transform_11(%arg0: i32) -> (i32, i32, i32) {
    %c0_i32 = arith.constant 0 : i32
    %c0_i32_0 = arith.constant 0 : i32
    %c0_i32_1 = arith.constant 0 : i32
    return %arg0, %c0_i32, %c0_i32_0 : i32, i32, i32
  }
  func.func @transform_12(%arg0: i32) -> (i32, i32, i32) {
    %c0_i32 = arith.constant 0 : i32
    %c0_i32_0 = arith.constant 0 : i32
    %c0_i32_1 = arith.constant 0 : i32
    return %arg0, %c0_i32, %c0_i32_0 : i32, i32, i32
  }
  func.func @transform_13(%arg0: i32) -> (i32, i32, i32) {
    %c0_i32 = arith.constant 0 : i32
    %c0_i32_0 = arith.constant 0 : i32
    %c0_i32_1 = arith.constant 0 : i32
    return %arg0, %c0_i32, %c0_i32_0 : i32, i32, i32
  }
  func.func @transform_14(%arg0: i32) -> (i32, i32, i32) {
    %c0_i32 = arith.constant 0 : i32
    %c0_i32_0 = arith.constant 0 : i32
    %c0_i32_1 = arith.constant 0 : i32
    return %arg0, %c0_i32, %c0_i32_0 : i32, i32, i32
  }
  func.func @transform_15(%arg0: i32) -> (i32, i32) {
    %c0_i32 = arith.constant 0 : i32
    %c0_i32_0 = arith.constant 0 : i32
    %c0_i32_1 = arith.constant 0 : i32
    return %c0_i32, %c0_i32_0 : i32, i32
  }
}

</mosaic_0001>

<llo_original>
// kernel: tpu_custom_call.1
$region0: #{tpu_custom_call.1}
  #allocation0 [shape = 'u32[]', space=smem, size = 0x4, offset = 0x4, fixed_abs, tag = 'smem constant byte address 0x4 - core index']
  #allocation1 [shape = 'u32[144,128]{1,0:T(1,128)}', space=vmem, size = 0x12000, scoped, tag = 'internal scratch']
  #allocation2 [shape = 'bf16[128,256]{1,0:T(8,128)(2,1)}', space=vmem, size = 0x10000, scoped, tag = 'scratch operand']
  %s0 = inlined_call_operand.hbm [shape: f32[128,256], index: 0, kind: input, shape index: {}]
  %s1 = inlined_call_operand.hbm [shape: f32[4,1,256], index: 1, kind: input, shape index: {}]
  %s2 = inlined_call_operand.hbm [shape: bf16[4,256,768], index: 2, kind: input, shape index: {}]
  %s3 = inlined_call_operand.hbm [shape: f32[4,1,768], index: 3, kind: input, shape index: {}]
  %s4 = inlined_call_operand.hbm [shape: f32[4,1,256], index: 4, kind: input, shape index: {}]
  %s5 = inlined_call_operand.hbm [shape: f32[4,1,256], index: 5, kind: input, shape index: {}]
  %s6 = inlined_call_operand.hbm [shape: bf16[4,256,256], index: 6, kind: input, shape index: {}]
  %s7 = inlined_call_operand.hbm [shape: f32[4,1,256], index: 7, kind: input, shape index: {}]
  %s8 = inlined_call_operand.hbm [shape: f32[4,1,256], index: 8, kind: input, shape index: {}]
  %s9 = inlined_call_operand.hbm [shape: f32[4,1,256], index: 9, kind: input, shape index: {}]
  %s10 = inlined_call_operand.hbm [shape: bf16[4,256,512], index: 10, kind: input, shape index: {}]
  %s11 = inlined_call_operand.hbm [shape: f32[4,1,512], index: 11, kind: input, shape index: {}]
  %s12 = inlined_call_operand.hbm [shape: bf16[4,512,256], index: 12, kind: input, shape index: {}]
  %s13 = inlined_call_operand.hbm [shape: f32[4,1,256], index: 13, kind: input, shape index: {}]
  %s14 = inlined_call_operand.hbm [shape: f32[4,1,256], index: 14, kind: input, shape index: {}]
  %s15 = inlined_call_operand.hbm [shape: f32[128,256], index: 15, kind: output, shape index: {}]
  %s16 = sld [smem:[#allocation0]]
  $region157: #{tpu_custom_call.1} parent=0
    _
  %s18 = ssub.s32 1, %s16
  %s19 = scalar_select 0, %s18, %s16
  $region1: #{tpu_custom_call.1} parent=0
    #allocation3 [shape = 'u8[131072]{0}', space=vmem, size = 0x20000, scoped, tag = 'input window, operand 0, single buffered']
    #allocation4 [shape = 's32[2]{0}', space=sflag, size = 0x8, scoped, tag = 'scoped memory for tpu_custom_call.1']
    #allocation5 [shape = 's32[2]{0}', space=sflag, size = 0x8, scoped, tag = 'scoped memory for tpu_custom_call.1']
    #allocation6 [shape = 'u8[2048]{0}', space=vmem, size = 0x800, scoped, tag = 'input window, operand 1']
    #allocation7 [shape = 's32[2]{0}', space=sflag, size = 0x8, scoped, tag = 'scoped memory for tpu_custom_call.1']
    #allocation8 [shape = 'u8[786432]{0}', space=vmem, size = 0xc0000, scoped, tag = 'input window, operand 2']
    #allocation9 [shape = 'u8[6144]{0}', space=vmem, size = 0x1800, scoped, tag = 'input window, operand 3']
    #allocation10 [shape = 's32[2]{0}', space=sflag, size = 0x8, scoped, tag = 'scoped memory for tpu_custom_call.1']
    #allocation11 [shape = 'u8[2048]{0}', space=vmem, size = 0x800, scoped, tag = 'input window, operand 4']
    #allocation12 [shape = 'u8[2048]{0}', space=vmem, size = 0x800, scoped, tag = 'input window, operand 5']
    #allocation13 [shape = 's32[2]{0}', space=sflag, size = 0x8, scoped, tag = 'scoped memory for tpu_custom_call.1']
    #allocation14 [shape = 'u8[262144]{0}', space=vmem, size = 0x40000, scoped, tag = 'input window, operand 6']
    #allocation15 [shape = 'u8[2048]{0}', space=vmem, size = 0x800, scoped, tag = 'input window, operand 7']
    #allocation16 [shape = 's32[2]{0}', space=sflag, size = 0x8, scoped, tag = 'scoped memory for tpu_custom_call.1']
    #allocation17 [shape = 'u8[2048]{0}', space=vmem, size = 0x800, scoped, tag = 'input window, operand 8']
    #allocation18 [shape = 'u8[2048]{0}', space=vmem, size = 0x800, scoped, tag = 'input window, operand 9']
    #allocation19 [shape = 's32[2]{0}', space=sflag, size = 0x8, scoped, tag = 'scoped memory for tpu_custom_call.1']
    #allocation20 [shape = 'u8[524288]{0}', space=vmem, size = 0x80000, scoped, tag = 'input window, operand 10']
    #allocation21 [shape = 'u8[4096]{0}', space=vmem, size = 0x1000, scoped, tag = 'input window, operand 11']
    #allocation22 [shape = 's32[2]{0}', space=sflag, size = 0x8, scoped, tag = 'scoped memory for tpu_custom_call.1']
    #allocation23 [shape = 'u8[524288]{0}', space=vmem, size = 0x80000, scoped, tag = 'input window, operand 12']
    #allocation24 [shape = 'u8[2048]{0}', space=vmem, size = 0x800, scoped, tag = 'input window, operand 13']
    #allocation25 [shape = 's32[2]{0}', space=sflag, size = 0x8, scoped, tag = 'scoped memory for tpu_custom_call.1']
    #allocation26 [shape = 'u8[2048]{0}', space=vmem, size = 0x800, scoped, tag = 'input window, operand 14']
    #allocation27 [shape = 'u8[131072]{0}', space=vmem, size = 0x20000, scoped, tag = 'output window, operand 0, single buffered']
    %20 = vsyncpa [#allocation4], 0
    %21 = vsyncpa [#allocation7], 0
    %s22 = scalar_lea.sflag [#allocation7], 1
    %23 = vsyncpa %s22, 0
    %24 = vsyncpa [#allocation10], 0
    %s25 = scalar_lea.sflag [#allocation10], 1
    %26 = vsyncpa %s25, 0
    %27 = vsyncpa [#allocation13], 0
    %s28 = scalar_lea.sflag [#allocation13], 1
    %29 = vsyncpa %s28, 0
    %30 = vsyncpa [#allocation16], 0
    %s31 = scalar_lea.sflag [#allocation16], 1
    %32 = vsyncpa %s31, 0
    %33 = vsyncpa [#allocation19], 0
    %s34 = scalar_lea.sflag [#allocation19], 1
    %35 = vsyncpa %s34, 0
    %36 = vsyncpa [#allocation22], 0
    %s37 = scalar_lea.sflag [#allocation22], 1
    %38 = vsyncpa %s37, 0
    %39 = vsyncpa [#allocation25], 0
    %s40 = scalar_lea.sflag [#allocation25], 1
    %41 = vsyncpa %s40, 0
    %42 = vsyncpa [#allocation5], 0
    loop: start=0, step=1, limit=6
    $region2: #{tpu_custom_call.1} parent=1 // loop_pre_header
      _
    $region3: #{tpu_custom_call.1} parent=1 // loop_header
      %s44 = sphi 0, %s48
      %p45 = scmp.ge.s32.totalorder %s44, 6
      %s52 = sphi 0, %s52
      %s54 = sphi 0, %s52
      %s55 = sphi 0, %s54
      %s69 = sphi 0, %s55
      %s75 = sphi 0, %s77
      %s78 = sphi 0, %s75
      %s79 = sphi 0, %s78
      %s95 = sphi 0, %s79
      %s101 = sphi 0, %s103
      %s104 = sphi 0, %s101
      %s105 = sphi 0, %s104
      %s121 = sphi 0, %s105
      %s127 = sphi 0, %s129
      %s130 = sphi 0, %s127
      %s131 = sphi 0, %s130
      %s147 = sphi 0, %s131
      %s153 = sphi 0, %s155
      %s156 = sphi 0, %s153
      %s157 = sphi 0, %s156
      %s173 = sphi 0, %s157
      %s179 = sphi 0, %s181
      %s182 = sphi 0, %s179
      %s183 = sphi 0, %s182
      %s199 = sphi 0, %s183
      %s205 = sphi 0, %s207
      %s208 = sphi 0, %s205
      %s209 = sphi 0, %s208
      %s225 = sphi 0, %s209
      %s231 = sphi 0, %s233
      %s234 = sphi 0, %s231
      %s235 = sphi 0, %s234
      %s251 = sphi 0, %s235
      %s257 = sphi 0, %s259
      %s260 = sphi 0, %s257
      %s261 = sphi 0, %s260
      %s277 = sphi 0, %s261
      %s283 = sphi 0, %s285
      %s286 = sphi 0, %s283
      %s287 = sphi 0, %s286
      %s303 = sphi 0, %s287
      %s309 = sphi 0, %s311
      %s312 = sphi 0, %s309
      %s313 = sphi 0, %s312
      %s329 = sphi 0, %s313
      %s335 = sphi 0, %s337
      %s338 = sphi 0, %s335
      %s339 = sphi 0, %s338
      %s355 = sphi 0, %s339
      %s361 = sphi 0, %s363
      %s364 = sphi 0, %s361
      %s365 = sphi 0, %s364
      %s381 = sphi 0, %s365
      %s387 = sphi 0, %s389
      %s390 = sphi 0, %s387
      %s391 = sphi 0, %s390
      %s407 = sphi 0, %s391
      %s413 = sphi 0, %s415
      %s416 = sphi 0, %s413
      %s417 = sphi 0, %s416
      %s433 = sphi 0, %s417
      %s437 = sphi 0, %s437
      %s439 = sphi 0, %s437
      %s440 = sphi 0, %s439
      %s454 = sphi 0, %s440
    $region4: #{tpu_custom_call.1} parent=1 // loop_header_branch
      %47 = sbr.rel (%p45) target = $region8
    $region5: #{tpu_custom_call.1} parent=1 // loop_body
      %s49 = ssub.s32 %s44, 1
      %s50 = ssub.s32 %s44, 2
      %s51 = sadd.s32 %s44, 1
      %s53 = sadd.s32 %s52, 1
      %p56 = scmp.eq.s32.totalorder %s44, 3
      %p57 = scmp.ne.s32.totalorder %s52, %s54
      %p58 = scmp.eq.s32.totalorder %s44, 0
      %p59 = por %p57, %p58
      %p60 = scmp.ne.s32.totalorder %s52, %s54
      %p61 = scmp.eq.s32.totalorder %s49, 3
      %p62 = por %p60, %p61
      %p63 = scmp.ne.s32.totalorder %s54, %s55
      %p64 = scmp.eq.s32.totalorder %s49, 0
      %p65 = por %p63, %p64
      %p66 = scmp.ne.s32.totalorder %s54, %s55
      %p67 = scmp.eq.s32.totalorder %s50, 3
      %p68 = por %p66, %p67
      %p70 = scmp.ne.s32.totalorder %s55, %s69
      %p71 = scmp.eq.s32.totalorder %s50, 0
      %p72 = por %p70, %p71
      %s73 = ssub.s32 %s44, %s51
      %p74 = scmp.eq.s32.totalorder %s73, 0
      %s76 = sadd.s32 %s75, 1
      %s77 = scalar_select %p74, %s75, %s76
      %p80 = pneg %p74
      %p81 = scmp.eq.s32.totalorder %s44, 3
      %p82 = por %p80, %p81
      %p83 = scmp.ne.s32.totalorder %s75, %s78
      %p84 = scmp.eq.s32.totalorder %s44, 0
      %p85 = por %p83, %p84
      %p86 = scmp.ne.s32.totalorder %s75, %s78
      %p87 = scmp.eq.s32.totalorder %s49, 3
      %p88 = por %p86, %p87
      %p89 = scmp.ne.s32.totalorder %s78, %s79
      %p90 = scmp.eq.s32.totalorder %s49, 0
      %p91 = por %p89, %p90
      %p92 = scmp.ne.s32.totalorder %s78, %s79
      %p93 = scmp.eq.s32.totalorder %s50, 3
      %p94 = por %p92, %p93
      %p96 = scmp.ne.s32.totalorder %s79, %s95
      %p97 = scmp.eq.s32.totalorder %s50, 0
      %p98 = por %p96, %p97
      %s99 = ssub.s32 %s44, %s51
      %p100 = scmp.eq.s32.totalorder %s99, 0
      %s102 = sadd.s32 %s101, 1
      %s103 = scalar_select %p100, %s101, %s102
      %p106 = pneg %p100
      %p107 = scmp.eq.s32.totalorder %s44, 3
      %p108 = por %p106, %p107
      %p109 = scmp.ne.s32.totalorder %s101, %s104
      %p110 = scmp.eq.s32.totalorder %s44, 0
      %p111 = por %p109, %p110
      %p112 = scmp.ne.s32.totalorder %s101, %s104
      %p113 = scmp.eq.s32.totalorder %s49, 3
      %p114 = por %p112, %p113
      %p115 = scmp.ne.s32.totalorder %s104, %s105
      %p116 = scmp.eq.s32.totalorder %s49, 0
      %p117 = por %p115, %p116
      %p118 = scmp.ne.s32.totalorder %s104, %s105
      %p119 = scmp.eq.s32.totalorder %s50, 3
      %p120 = por %p118, %p119
      %p122 = scmp.ne.s32.totalorder %s105, %s121
      %p123 = scmp.eq.s32.totalorder %s50, 0
      %p124 = por %p122, %p123
      %s125 = ssub.s32 %s44, %s51
      %p126 = scmp.eq.s32.totalorder %s125, 0
      %s128 = sadd.s32 %s127, 1
      %s129 = scalar_select %p126, %s127, %s128
      %p132 = pneg %p126
      %p133 = scmp.eq.s32.totalorder %s44, 3
      %p134 = por %p132, %p133
      %p135 = scmp.ne.s32.totalorder %s127, %s130
      %p136 = scmp.eq.s32.totalorder %s44, 0
      %p137 = por %p135, %p136
      %p138 = scmp.ne.s32.totalorder %s127, %s130
      %p139 = scmp.eq.s32.totalorder %s49, 3
      %p140 = por %p138, %p139
      %p141 = scmp.ne.s32.totalorder %s130, %s131
      %p142 = scmp.eq.s32.totalorder %s49, 0
      %p143 = por %p141, %p142
      %p144 = scmp.ne.s32.totalorder %s130, %s131
      %p145 = scmp.eq.s32.totalorder %s50, 3
      %p146 = por %p144, %p145
      %p148 = scmp.ne.s32.totalorder %s131, %s147
      %p149 = scmp.eq.s32.totalorder %s50, 0
      %p150 = por %p148, %p149
      %s151 = ssub.s32 %s44, %s51
      %p152 = scmp.eq.s32.totalorder %s151, 0
      %s154 = sadd.s32 %s153, 1
      %s155 = scalar_select %p152, %s153, %s154
      %p158 = pneg %p152
      %p159 = scmp.eq.s32.totalorder %s44, 3
      %p160 = por %p158, %p159
      %p161 = scmp.ne.s32.totalorder %s153, %s156
      %p162 = scmp.eq.s32.totalorder %s44, 0
      %p163 = por %p161, %p162
      %p164 = scmp.ne.s32.totalorder %s153, %s156
      %p165 = scmp.eq.s32.totalorder %s49, 3
      %p166 = por %p164, %p165
      %p167 = scmp.ne.s32.totalorder %s156, %s157
      %p168 = scmp.eq.s32.totalorder %s49, 0
      %p169 = por %p167, %p168
      %p170 = scmp.ne.s32.totalorder %s156, %s157
      %p171 = scmp.eq.s32.totalorder %s50, 3
      %p172 = por %p170, %p171
      %p174 = scmp.ne.s32.totalorder %s157, %s173
      %p175 = scmp.eq.s32.totalorder %s50, 0
      %p176 = por %p174, %p175
      %s177 = ssub.s32 %s44, %s51
      %p178 = scmp.eq.s32.totalorder %s177, 0
      %s180 = sadd.s32 %s179, 1
      %s181 = scalar_select %p178, %s179, %s180
      %p184 = pneg %p178
      %p185 = scmp.eq.s32.totalorder %s44, 3
      %p186 = por %p184, %p185
      %p187 = scmp.ne.s32.totalorder %s179, %s182
      %p188 = scmp.eq.s32.totalorder %s44, 0
      %p189 = por %p187, %p188
      %p190 = scmp.ne.s32.totalorder %s179, %s182
      %p191 = scmp.eq.s32.totalorder %s49, 3
      %p192 = por %p190, %p191
      %p193 = scmp.ne.s32.totalorder %s182, %s183
      %p194 = scmp.eq.s32.totalorder %s49, 0
      %p195 = por %p193, %p194
      %p196 = scmp.ne.s32.totalorder %s182, %s183
      %p197 = scmp.eq.s32.totalorder %s50, 3
      %p198 = por %p196, %p197
      %p200 = scmp.ne.s32.totalorder %s183, %s199
      %p201 = scmp.eq.s32.totalorder %s50, 0
      %p202 = por %p200, %p201
      %s203 = ssub.s32 %s44, %s51
      %p204 = scmp.eq.s32.totalorder %s203, 0
      %s206 = sadd.s32 %s205, 1
      %s207 = scalar_select %p204, %s205, %s206
      %p210 = pneg %p204
      %p211 = scmp.eq.s32.totalorder %s44, 3
      %p212 = por %p210, %p211
      %p213 = scmp.ne.s32.totalorder %s205, %s208
      %p214 = scmp.eq.s32.totalorder %s44, 0
      %p215 = por %p213, %p214
      %p216 = scmp.ne.s32.totalorder %s205, %s208
      %p217 = scmp.eq.s32.totalorder %s49, 3
      %p218 = por %p216, %p217
      %p219 = scmp.ne.s32.totalorder %s208, %s209
      %p220 = scmp.eq.s32.totalorder %s49, 0
      %p221 = por %p219, %p220
      %p222 = scmp.ne.s32.totalorder %s208, %s209
      %p223 = scmp.eq.s32.totalorder %s50, 3
      %p224 = por %p222, %p223
      %p226 = scmp.ne.s32.totalorder %s209, %s225
      %p227 = scmp.eq.s32.totalorder %s50, 0
      %p228 = por %p226, %p227
      %s229 = ssub.s32 %s44, %s51
      %p230 = scmp.eq.s32.totalorder %s229, 0
      %s232 = sadd.s32 %s231, 1
      %s233 = scalar_select %p230, %s231, %s232
      %p236 = pneg %p230
      %p237 = scmp.eq.s32.totalorder %s44, 3
      %p238 = por %p236, %p237
      %p239 = scmp.ne.s32.totalorder %s231, %s234
      %p240 = scmp.eq.s32.totalorder %s44, 0
      %p241 = por %p239, %p240
      %p242 = scmp.ne.s32.totalorder %s231, %s234
      %p243 = scmp.eq.s32.totalorder %s49, 3
      %p244 = por %p242, %p243
      %p245 = scmp.ne.s32.totalorder %s234, %s235
      %p246 = scmp.eq.s32.totalorder %s49, 0
      %p247 = por %p245, %p246
      %p248 = scmp.ne.s32.totalorder %s234, %s235
      %p249 = scmp.eq.s32.totalorder %s50, 3
      %p250 = por %p248, %p249
      %p252 = scmp.ne.s32.totalorder %s235, %s251
      %p253 = scmp.eq.s32.totalorder %s50, 0
      %p254 = por %p252, %p253
      %s255 = ssub.s32 %s44, %s51
      %p256 = scmp.eq.s32.totalorder %s255, 0
      %s258 = sadd.s32 %s257, 1
      %s259 = scalar_select %p256, %s257, %s258
      %p262 = pneg %p256
      %p263 = scmp.eq.s32.totalorder %s44, 3
      %p264 = por %p262, %p263
      %p265 = scmp.ne.s32.totalorder %s257, %s260
      %p266 = scmp.eq.s32.totalorder %s44, 0
      %p267 = por %p265, %p266
      %p268 = scmp.ne.s32.totalorder %s257, %s260
      %p269 = scmp.eq.s32.totalorder %s49, 3
      %p270 = por %p268, %p269
      %p271 = scmp.ne.s32.totalorder %s260, %s261
      %p272 = scmp.eq.s32.totalorder %s49, 0
      %p273 = por %p271, %p272
      %p274 = scmp.ne.s32.totalorder %s260, %s261
      %p275 = scmp.eq.s32.totalorder %s50, 3
      %p276 = por %p274, %p275
      %p278 = scmp.ne.s32.totalorder %s261, %s277
      %p279 = scmp.eq.s32.totalorder %s50, 0
      %p280 = por %p278, %p279
      %s281 = ssub.s32 %s44, %s51
      %p282 = scmp.eq.s32.totalorder %s281, 0
      %s284 = sadd.s32 %s283, 1
      %s285 = scalar_select %p282, %s283, %s284
      %p288 = pneg %p282
      %p289 = scmp.eq.s32.totalorder %s44, 3
      %p290 = por %p288, %p289
      %p291 = scmp.ne.s32.totalorder %s283, %s286
      %p292 = scmp.eq.s32.totalorder %s44, 0
      %p293 = por %p291, %p292
      %p294 = scmp.ne.s32.totalorder %s283, %s286
      %p295 = scmp.eq.s32.totalorder %s49, 3
      %p296 = por %p294, %p295
      %p297 = scmp.ne.s32.totalorder %s286, %s287
      %p298 = scmp.eq.s32.totalorder %s49, 0
      %p299 = por %p297, %p298
      %p300 = scmp.ne.s32.totalorder %s286, %s287
      %p301 = scmp.eq.s32.totalorder %s50, 3
      %p302 = por %p300, %p301
      %p304 = scmp.ne.s32.totalorder %s287, %s303
      %p305 = scmp.eq.s32.totalorder %s50, 0
      %p306 = por %p304, %p305
      %s307 = ssub.s32 %s44, %s51
      %p308 = scmp.eq.s32.totalorder %s307, 0
      %s310 = sadd.s32 %s309, 1
      %s311 = scalar_select %p308, %s309, %s310
      %p314 = pneg %p308
      %p315 = scmp.eq.s32.totalorder %s44, 3
      %p316 = por %p314, %p315
      %p317 = scmp.ne.s32.totalorder %s309, %s312
      %p318 = scmp.eq.s32.totalorder %s44, 0
      %p319 = por %p317, %p318
      %p320 = scmp.ne.s32.totalorder %s309, %s312
      %p321 = scmp.eq.s32.totalorder %s49, 3
      %p322 = por %p320, %p321
      %p323 = scmp.ne.s32.totalorder %s312, %s313
      %p324 = scmp.eq.s32.totalorder %s49, 0
      %p325 = por %p323, %p324
      %p326 = scmp.ne.s32.totalorder %s312, %s313
      %p327 = scmp.eq.s32.totalorder %s50, 3
      %p328 = por %p326, %p327
      %p330 = scmp.ne.s32.totalorder %s313, %s329
      %p331 = scmp.eq.s32.totalorder %s50, 0
      %p332 = por %p330, %p331
      %s333 = ssub.s32 %s44, %s51
      %p334 = scmp.eq.s32.totalorder %s333, 0
      %s336 = sadd.s32 %s335, 1
      %s337 = scalar_select %p334, %s335, %s336
      %p340 = pneg %p334
      %p341 = scmp.eq.s32.totalorder %s44, 3
      %p342 = por %p340, %p341
      %p343 = scmp.ne.s32.totalorder %s335, %s338
      %p344 = scmp.eq.s32.totalorder %s44, 0
      %p345 = por %p343, %p344
      %p346 = scmp.ne.s32.totalorder %s335, %s338
      %p347 = scmp.eq.s32.totalorder %s49, 3
      %p348 = por %p346, %p347
      %p349 = scmp.ne.s32.totalorder %s338, %s339
      %p350 = scmp.eq.s32.totalorder %s49, 0
      %p351 = por %p349, %p350
      %p352 = scmp.ne.s32.totalorder %s338, %s339
      %p353 = scmp.eq.s32.totalorder %s50, 3
      %p354 = por %p352, %p353
      %p356 = scmp.ne.s32.totalorder %s339, %s355
      %p357 = scmp.eq.s32.totalorder %s50, 0
      %p358 = por %p356, %p357
      %s359 = ssub.s32 %s44, %s51
      %p360 = scmp.eq.s32.totalorder %s359, 0
      %s362 = sadd.s32 %s361, 1
      %s363 = scalar_select %p360, %s361, %s362
      %p366 = pneg %p360
      %p367 = scmp.eq.s32.totalorder %s44, 3
      %p368 = por %p366, %p367
      %p369 = scmp.ne.s32.totalorder %s361, %s364
      %p370 = scmp.eq.s32.totalorder %s44, 0
      %p371 = por %p369, %p370
      %p372 = scmp.ne.s32.totalorder %s361, %s364
      %p373 = scmp.eq.s32.totalorder %s49, 3
      %p374 = por %p372, %p373
      %p375 = scmp.ne.s32.totalorder %s364, %s365
      %p376 = scmp.eq.s32.totalorder %s49, 0
      %p377 = por %p375, %p376
      %p378 = scmp.ne.s32.totalorder %s364, %s365
      %p379 = scmp.eq.s32.totalorder %s50, 3
      %p380 = por %p378, %p379
      %p382 = scmp.ne.s32.totalorder %s365, %s381
      %p383 = scmp.eq.s32.totalorder %s50, 0
      %p384 = por %p382, %p383
      %s385 = ssub.s32 %s44, %s51
      %p386 = scmp.eq.s32.totalorder %s385, 0
      %s388 = sadd.s32 %s387, 1
      %s389 = scalar_select %p386, %s387, %s388
      %p392 = pneg %p386
      %p393 = scmp.eq.s32.totalorder %s44, 3
      %p394 = por %p392, %p393
      %p395 = scmp.ne.s32.totalorder %s387, %s390
      %p396 = scmp.eq.s32.totalorder %s44, 0
      %p397 = por %p395, %p396
      %p398 = scmp.ne.s32.totalorder %s387, %s390
      %p399 = scmp.eq.s32.totalorder %s49, 3
      %p400 = por %p398, %p399
      %p401 = scmp.ne.s32.totalorder %s390, %s391
      %p402 = scmp.eq.s32.totalorder %s49, 0
      %p403 = por %p401, %p402
      %p404 = scmp.ne.s32.totalorder %s390, %s391
      %p405 = scmp.eq.s32.totalorder %s50, 3
      %p406 = por %p404, %p405
      %p408 = scmp.ne.s32.totalorder %s391, %s407
      %p409 = scmp.eq.s32.totalorder %s50, 0
      %p410 = por %p408, %p409
      %s411 = ssub.s32 %s44, %s51
      %p412 = scmp.eq.s32.totalorder %s411, 0
      %s414 = sadd.s32 %s413, 1
      %s415 = scalar_select %p412, %s413, %s414
      %p418 = pneg %p412
      %p419 = scmp.eq.s32.totalorder %s44, 3
      %p420 = por %p418, %p419
      %p421 = scmp.ne.s32.totalorder %s413, %s416
      %p422 = scmp.eq.s32.totalorder %s44, 0
      %p423 = por %p421, %p422
      %p424 = scmp.ne.s32.totalorder %s413, %s416
      %p425 = scmp.eq.s32.totalorder %s49, 3
      %p426 = por %p424, %p425
      %p427 = scmp.ne.s32.totalorder %s416, %s417
      %p428 = scmp.eq.s32.totalorder %s49, 0
      %p429 = por %p427, %p428
      %p430 = scmp.ne.s32.totalorder %s416, %s417
      %p431 = scmp.eq.s32.totalorder %s50, 3
      %p432 = por %p430, %p431
      %p434 = scmp.ne.s32.totalorder %s417, %s433
      %p435 = scmp.eq.s32.totalorder %s50, 0
      %p436 = por %p434, %p435
      %s438 = sadd.s32 %s437, 1
      %p441 = scmp.eq.s32.totalorder %s44, 3
      %p442 = scmp.ne.s32.totalorder %s437, %s439
      %p443 = scmp.eq.s32.totalorder %s44, 0
      %p444 = por %p442, %p443
      %p445 = scmp.ne.s32.totalorder %s437, %s439
      %p446 = scmp.eq.s32.totalorder %s49, 3
      %p447 = por %p445, %p446
      %p448 = scmp.ne.s32.totalorder %s439, %s440
      %p449 = scmp.eq.s32.totalorder %s49, 0
      %p450 = por %p448, %p449
      %p451 = scmp.ne.s32.totalorder %s439, %s440
      %p452 = scmp.eq.s32.totalorder %s50, 3
      %p453 = por %p451, %p452
      %p455 = scmp.ne.s32.totalorder %s440, %s454
      %p456 = scmp.eq.s32.totalorder %s50, 0
      %p457 = por %p455, %p456
      %p458 = scmp.le.s32.totalorder 1, %s44
      %p459 = scmp.lt.s32.totalorder %s44, 5
      %p460 = pnand %p458, %p459
      %p461 = pneg %p460
      // Predicated region
      $region9: #{tpu_custom_call.1} parent=5 // pred_check
        _
      $region10: #{tpu_custom_call.1} parent=5 // pred_check_branch
        %463 = sbr.rel (%p460) target = $region12
      $region11: #{tpu_custom_call.1} parent=5 // pred_region
        %s464 = ssub.s32 %s44, 1
        // Predicated region
        $region13: #{tpu_custom_call.1} parent=11 // pred_check
          %p465 = pneg %p65
        $region14: #{tpu_custom_call.1} parent=11 // pred_check_branch
          %467 = sbr.rel (%p465) target = $region16
        $region15: #{tpu_custom_call.1} parent=11 // pred_region
          %s469 = ssub.s32 4096, 4096
          %470 = vsyncadd [#allocation4], %s469
          %s471 = sshll.u32 [#allocation3], 4
          %s472 = int_to_ptr.vmem [resolvable:$true] %s471
          %477 = dma.hbm_to_vmem [thread:$0]  %s0, 4096, %s472, [#allocation4], 256, 256, 16
        $region16: #{tpu_custom_call.1} parent=11 // pred_fallthru
          _
      $region12: #{tpu_custom_call.1} parent=5 // pred_fallthru
        _
      %p478 = scmp.lt.s32.totalorder %s44, 4
      // Predicated region
      $region17: #{tpu_custom_call.1} parent=5 // pred_check
        %p479 = pneg %p478
      $region18: #{tpu_custom_call.1} parent=5 // pred_check_branch
        %481 = sbr.rel (%p479) target = $region20
      $region19: #{tpu_custom_call.1} parent=5 // pred_region
        // Predicated region
        $region21: #{tpu_custom_call.1} parent=19 // pred_check
          %p482 = pneg %p85
        $region22: #{tpu_custom_call.1} parent=19 // pred_check_branch
          %484 = sbr.rel (%p482) target = $region24
        $region23: #{tpu_custom_call.1} parent=19 // pred_region
          %s485 = sand.u32 %s44, 1
          %s486 = scalar_lea.sflag [#allocation7], %s485
          %s487 = sand.u32 %s75, 1
          %s488 = smul.addr %s487, 2
          %s489 = scalar_lea.vmem [#allocation6], %s488
          %s491 = ssub.s32 32, 32
          %492 = vsyncadd %s486, %s491
          %s493 = smul.addr %s44, 2
          %s494 = smul.addr %s493, 16
          %s495 = scalar_lea.hbm %s1, %s494
          %s497 = sshll.u32 %s489, 4
          %s498 = int_to_ptr.vmem [resolvable:$true] %s497
          %500 = dma.hbm_to_vmem [thread:$0]  %s495, 32, %s498, %s486
        $region24: #{tpu_custom_call.1} parent=19 // pred_fallthru
          _
        // Predicated region
        $region25: #{tpu_custom_call.1} parent=19 // pred_check
          %p501 = pneg %p111
        $region26: #{tpu_custom_call.1} parent=19 // pred_check_branch
          %503 = sbr.rel (%p501) target = $region28
        $region27: #{tpu_custom_call.1} parent=19 // pred_region
          %s504 = sand.u32 %s44, 1
          %s505 = scalar_lea.sflag [#allocation7], %s504
          %s506 = sand.u32 %s101, 1
          %s507 = smul.addr %s506, 768
          %s508 = scalar_lea.vmem [#allocation8], %s507
          %s510 = ssub.s32 12288, 12288
          %511 = vsyncadd %s505, %s510
          %s512 = smul.addr %s44, 192
          %s513 = smul.addr %s512, 64
          %s514 = scalar_lea.hbm %s2, %s513
          %s515 = sshll.u32 %s508, 4
          %s516 = int_to_ptr.vmem [resolvable:$true] %s515
          %521 = dma.hbm_to_vmem [thread:$0]  %s514, 12288, %s516, %s505, 384, 384, 24
        $region28: #{tpu_custom_call.1} parent=19 // pred_fallthru
          _
        // Predicated region
        $region29: #{tpu_custom_call.1} parent=19 // pred_check
          %p522 = pneg %p137
        $region30: #{tpu_custom_call.1} parent=19 // pred_check_branch
          %524 = sbr.rel (%p522) target = $region32
        $region31: #{tpu_custom_call.1} parent=19 // pred_region
          %s525 = sand.u32 %s44, 1
          %s526 = scalar_lea.sflag [#allocation10], %s525
          %s527 = sand.u32 %s127, 1
          %s528 = smul.addr %s527, 6
          %s529 = scalar_lea.vmem [#allocation9], %s528
          %s531 = ssub.s32 96, 96
          %532 = vsyncadd %s526, %s531
          %s533 = smul.addr %s44, 6
          %s534 = smul.addr %s533, 16
          %s535 = scalar_lea.hbm %s3, %s534
          %s537 = sshll.u32 %s529, 4
          %s538 = int_to_ptr.vmem [resolvable:$true] %s537
          %540 = dma.hbm_to_vmem [thread:$0]  %s535, 96, %s538, %s526
        $region32: #{tpu_custom_call.1} parent=19 // pred_fallthru
          _
        // Predicated region
        $region33: #{tpu_custom_call.1} parent=19 // pred_check
          %p541 = pneg %p163
        $region34: #{tpu_custom_call.1} parent=19 // pred_check_branch
          %543 = sbr.rel (%p541) target = $region36
        $region35: #{tpu_custom_call.1} parent=19 // pred_region
          %s544 = sand.u32 %s44, 1
          %s545 = scalar_lea.sflag [#allocation10], %s544
          %s546 = sand.u32 %s153, 1
          %s547 = smul.addr %s546, 2
          %s548 = scalar_lea.vmem [#allocation11], %s547
          %s550 = ssub.s32 32, 32
          %551 = vsyncadd %s545, %s550
          %s552 = smul.addr %s44, 2
          %s553 = smul.addr %s552, 16
          %s554 = scalar_lea.hbm %s4, %s553
          %s556 = sshll.u32 %s548, 4
          %s557 = int_to_ptr.vmem [resolvable:$true] %s556
          %559 = dma.hbm_to_vmem [thread:$0]  %s554, 32, %s557, %s545
        $region36: #{tpu_custom_call.1} parent=19 // pred_fallthru
          _
        // Predicated region
        $region37: #{tpu_custom_call.1} parent=19 // pred_check
          %p560 = pneg %p189
        $region38: #{tpu_custom_call.1} parent=19 // pred_check_branch
          %562 = sbr.rel (%p560) target = $region40
        $region39: #{tpu_custom_call.1} parent=19 // pred_region
          %s563 = sand.u32 %s44, 1
          %s564 = scalar_lea.sflag [#allocation13], %s563
          %s565 = sand.u32 %s179, 1
          %s566 = smul.addr %s565, 2
          %s567 = scalar_lea.vmem [#allocation12], %s566
          %s569 = ssub.s32 32, 32
          %570 = vsyncadd %s564, %s569
          %s571 = smul.addr %s44, 2
          %s572 = smul.addr %s571, 16
          %s573 = scalar_lea.hbm %s5, %s572
          %s575 = sshll.u32 %s567, 4
          %s576 = int_to_ptr.vmem [resolvable:$true] %s575
          %578 = dma.hbm_to_vmem [thread:$0]  %s573, 32, %s576, %s564
        $region40: #{tpu_custom_call.1} parent=19 // pred_fallthru
          _
        // Predicated region
        $region41: #{tpu_custom_call.1} parent=19 // pred_check
          %p579 = pneg %p215
        $region42: #{tpu_custom_call.1} parent=19 // pred_check_branch
          %581 = sbr.rel (%p579) target = $region44
        $region43: #{tpu_custom_call.1} parent=19 // pred_region
          %s582 = sand.u32 %s44, 1
          %s583 = scalar_lea.sflag [#allocation13], %s582
          %s584 = sand.u32 %s205, 1
          %s585 = smul.addr %s584, 256
          %s586 = scalar_lea.vmem [#allocation14], %s585
          %s588 = ssub.s32 4096, 4096
          %589 = vsyncadd %s583, %s588
          %s590 = smul.addr %s44, 64
          %s591 = smul.addr %s590, 64
          %s592 = scalar_lea.hbm %s6, %s591
          %s593 = sshll.u32 %s586, 4
          %s594 = int_to_ptr.vmem [resolvable:$true] %s593
          %599 = dma.hbm_to_vmem [thread:$0]  %s592, 4096, %s594, %s583, 128, 128, 8
        $region44: #{tpu_custom_call.1} parent=19 // pred_fallthru
          _
        // Predicated region
        $region45: #{tpu_custom_call.1} parent=19 // pred_check
          %p600 = pneg %p241
        $region46: #{tpu_custom_call.1} parent=19 // pred_check_branch
          %602 = sbr.rel (%p600) target = $region48
        $region47: #{tpu_custom_call.1} parent=19 // pred_region
          %s603 = sand.u32 %s44, 1
          %s604 = scalar_lea.sflag [#allocation16], %s603
          %s605 = sand.u32 %s231, 1
          %s606 = smul.addr %s605, 2
          %s607 = scalar_lea.vmem [#allocation15], %s606
          %s609 = ssub.s32 32, 32
          %610 = vsyncadd %s604, %s609
          %s611 = smul.addr %s44, 2
          %s612 = smul.addr %s611, 16
          %s613 = scalar_lea.hbm %s7, %s612
          %s615 = sshll.u32 %s607, 4
          %s616 = int_to_ptr.vmem [resolvable:$true] %s615
          %618 = dma.hbm_to_vmem [thread:$0]  %s613, 32, %s616, %s604
        $region48: #{tpu_custom_call.1} parent=19 // pred_fallthru
          _
        // Predicated region
        $region49: #{tpu_custom_call.1} parent=19 // pred_check
          %p619 = pneg %p267
        $region50: #{tpu_custom_call.1} parent=19 // pred_check_branch
          %621 = sbr.rel (%p619) target = $region52
        $region51: #{tpu_custom_call.1} parent=19 // pred_region
          %s622 = sand.u32 %s44, 1
          %s623 = scalar_lea.sflag [#allocation16], %s622
          %s624 = sand.u32 %s257, 1
          %s625 = smul.addr %s624, 2
          %s626 = scalar_lea.vmem [#allocation17], %s625
          %s628 = ssub.s32 32, 32
          %629 = vsyncadd %s623, %s628
          %s630 = smul.addr %s44, 2
          %s631 = smul.addr %s630, 16
          %s632 = scalar_lea.hbm %s8, %s631
          %s634 = sshll.u32 %s626, 4
          %s635 = int_to_ptr.vmem [resolvable:$true] %s634
          %637 = dma.hbm_to_vmem [thread:$0]  %s632, 32, %s635, %s623
        $region52: #{tpu_custom_call.1} parent=19 // pred_fallthru
          _
        // Predicated region
        $region53: #{tpu_custom_call.1} parent=19 // pred_check
          %p638 = pneg %p293
        $region54: #{tpu_custom_call.1} parent=19 // pred_check_branch
          %640 = sbr.rel (%p638) target = $region56
        $region55: #{tpu_custom_call.1} parent=19 // pred_region
          %s641 = sand.u32 %s44, 1
          %s642 = scalar_lea.sflag [#allocation19], %s641
          %s643 = sand.u32 %s283, 1
          %s644 = smul.addr %s643, 2
          %s645 = scalar_lea.vmem [#allocation18], %s644
          %s647 = ssub.s32 32, 32
          %648 = vsyncadd %s642, %s647
          %s649 = smul.addr %s44, 2
          %s650 = smul.addr %s649, 16
          %s651 = scalar_lea.hbm %s9, %s650
          %s653 = sshll.u32 %s645, 4
          %s654 = int_to_ptr.vmem [resolvable:$true] %s653
          %656 = dma.hbm_to_vmem [thread:$0]  %s651, 32, %s654, %s642
        $region56: #{tpu_custom_call.1} parent=19 // pred_fallthru
          _
        // Predicated region
        $region57: #{tpu_custom_call.1} parent=19 // pred_check
          %p657 = pneg %p319
        $region58: #{tpu_custom_call.1} parent=19 // pred_check_branch
          %659 = sbr.rel (%p657) target = $region60
        $region59: #{tpu_custom_call.1} parent=19 // pred_region
          %s660 = sand.u32 %s44, 1
          %s661 = scalar_lea.sflag [#allocation19], %s660
          %s662 = sand.u32 %s309, 1
          %s663 = smul.addr %s662, 512
          %s664 = scalar_lea.vmem [#allocation20], %s663
          %s666 = ssub.s32 8192, 8192
          %667 = vsyncadd %s661, %s666
          %s668 = smul.addr %s44, 128
          %s669 = smul.addr %s668, 64
          %s670 = scalar_lea.hbm %s10, %s669
          %s671 = sshll.u32 %s664, 4
          %s672 = int_to_ptr.vmem [resolvable:$true] %s671
          %677 = dma.hbm_to_vmem [thread:$0]  %s670, 8192, %s672, %s661, 256, 256, 16
        $region60: #{tpu_custom_call.1} parent=19 // pred_fallthru
          _
        // Predicated region
        $region61: #{tpu_custom_call.1} parent=19 // pred_check
          %p678 = pneg %p345
        $region62: #{tpu_custom_call.1} parent=19 // pred_check_branch
          %680 = sbr.rel (%p678) target = $region64
        $region63: #{tpu_custom_call.1} parent=19 // pred_region
          %s681 = sand.u32 %s44, 1
          %s682 = scalar_lea.sflag [#allocation22], %s681
          %s683 = sand.u32 %s335, 1
          %s684 = smul.addr %s683, 4
          %s685 = scalar_lea.vmem [#allocation21], %s684
          %s687 = ssub.s32 64, 64
          %688 = vsyncadd %s682, %s687
          %s689 = smul.addr %s44, 4
          %s690 = smul.addr %s689, 16
          %s691 = scalar_lea.hbm %s11, %s690
          %s693 = sshll.u32 %s685, 4
          %s694 = int_to_ptr.vmem [resolvable:$true] %s693
          %696 = dma.hbm_to_vmem [thread:$0]  %s691, 64, %s694, %s682
        $region64: #{tpu_custom_call.1} parent=19 // pred_fallthru
          _
        // Predicated region
        $region65: #{tpu_custom_call.1} parent=19 // pred_check
          %p697 = pneg %p371
        $region66: #{tpu_custom_call.1} parent=19 // pred_check_branch
          %699 = sbr.rel (%p697) target = $region68
        $region67: #{tpu_custom_call.1} parent=19 // pred_region
          %s700 = sand.u32 %s44, 1
          %s701 = scalar_lea.sflag [#allocation22], %s700
          %s702 = sand.u32 %s361, 1
          %s703 = smul.addr %s702, 512
          %s704 = scalar_lea.vmem [#allocation23], %s703
          %s706 = ssub.s32 8192, 8192
          %707 = vsyncadd %s701, %s706
          %s708 = smul.addr %s44, 128
          %s709 = smul.addr %s708, 64
          %s710 = scalar_lea.hbm %s12, %s709
          %s711 = sshll.u32 %s704, 4
          %s712 = int_to_ptr.vmem [resolvable:$true] %s711
          %717 = dma.hbm_to_vmem [thread:$0]  %s710, 8192, %s712, %s701, 128, 128, 8
        $region68: #{tpu_custom_call.1} parent=19 // pred_fallthru
          _
        // Predicated region
        $region69: #{tpu_custom_call.1} parent=19 // pred_check
          %p718 = pneg %p397
        $region70: #{tpu_custom_call.1} parent=19 // pred_check_branch
          %720 = sbr.rel (%p718) target = $region72
        $region71: #{tpu_custom_call.1} parent=19 // pred_region
          %s721 = sand.u32 %s44, 1
          %s722 = scalar_lea.sflag [#allocation25], %s721
          %s723 = sand.u32 %s387, 1
          %s724 = smul.addr %s723, 2
          %s725 = scalar_lea.vmem [#allocation24], %s724
          %s727 = ssub.s32 32, 32
          %728 = vsyncadd %s722, %s727
          %s729 = smul.addr %s44, 2
          %s730 = smul.addr %s729, 16
          %s731 = scalar_lea.hbm %s13, %s730
          %s733 = sshll.u32 %s725, 4
          %s734 = int_to_ptr.vmem [resolvable:$true] %s733
          %736 = dma.hbm_to_vmem [thread:$0]  %s731, 32, %s734, %s722
        $region72: #{tpu_custom_call.1} parent=19 // pred_fallthru
          _
        // Predicated region
        $region73: #{tpu_custom_call.1} parent=19 // pred_check
          %p737 = pneg %p423
        $region74: #{tpu_custom_call.1} parent=19 // pred_check_branch
          %739 = sbr.rel (%p737) target = $region76
        $region75: #{tpu_custom_call.1} parent=19 // pred_region
          %s740 = sand.u32 %s44, 1
          %s741 = scalar_lea.sflag [#allocation25], %s740
          %s742 = sand.u32 %s413, 1
          %s743 = smul.addr %s742, 2
          %s744 = scalar_lea.vmem [#allocation26], %s743
          %s746 = ssub.s32 32, 32
          %747 = vsyncadd %s741, %s746
          %s748 = smul.addr %s44, 2
          %s749 = smul.addr %s748, 16
          %s750 = scalar_lea.hbm %s14, %s749
          %s752 = sshll.u32 %s744, 4
          %s753 = int_to_ptr.vmem [resolvable:$true] %s752
          %755 = dma.hbm_to_vmem [thread:$0]  %s750, 32, %s753, %s741
        $region76: #{tpu_custom_call.1} parent=19 // pred_fallthru
          _
      $region20: #{tpu_custom_call.1} parent=5 // pred_fallthru
        _
      %p756 = scmp.le.s32.totalorder 1, %s44
      %p757 = scmp.lt.s32.totalorder %s44, 5
      %p758 = pnand %p756, %p757
      %p759 = pneg %p758
      // Predicated region
      $region77: #{tpu_custom_call.1} parent=5 // pred_check
        _
      $region78: #{tpu_custom_call.1} parent=5 // pred_check_branch
        %761 = sbr.rel (%p758) target = $region80
      $region79: #{tpu_custom_call.1} parent=5 // pred_region
        %s762 = ssub.s32 %s44, 1
        // Predicated region
        $region81: #{tpu_custom_call.1} parent=79 // pred_check
          %p763 = pneg %p65
        $region82: #{tpu_custom_call.1} parent=79 // pred_check_branch
          %765 = sbr.rel (%p763) target = $region84
        $region83: #{tpu_custom_call.1} parent=79 // pred_region
          %766 = dma.done [#allocation4], 4096
        $region84: #{tpu_custom_call.1} parent=79 // pred_fallthru
          _
        %s767 = sand.u32 %s49, 1
        %s768 = scalar_lea.sflag [#allocation7], %s767
        %s769 = sand.u32 %s78, 1
        %s770 = smul.addr %s769, 2
        %s771 = scalar_lea.vmem [#allocation6], %s770
        // Predicated region
        $region85: #{tpu_custom_call.1} parent=79 // pred_check
          %p772 = pneg %p91
        $region86: #{tpu_custom_call.1} parent=79 // pred_check_branch
          %774 = sbr.rel (%p772) target = $region88
        $region87: #{tpu_custom_call.1} parent=79 // pred_region
          %775 = dma.done %s768, 32
        $region88: #{tpu_custom_call.1} parent=79 // pred_fallthru
          _
        %s776 = sand.u32 %s49, 1
        %s777 = scalar_lea.sflag [#allocation7], %s776
        %s778 = sand.u32 %s104, 1
        %s779 = smul.addr %s778, 768
        %s780 = scalar_lea.vmem [#allocation8], %s779
        // Predicated region
        $region89: #{tpu_custom_call.1} parent=79 // pred_check
          %p781 = pneg %p117
        $region90: #{tpu_custom_call.1} parent=79 // pred_check_branch
          %783 = sbr.rel (%p781) target = $region92
        $region91: #{tpu_custom_call.1} parent=79 // pred_region
          %784 = dma.done %s777, 12288
        $region92: #{tpu_custom_call.1} parent=79 // pred_fallthru
          _
        %s785 = sand.u32 %s49, 1
        %s786 = scalar_lea.sflag [#allocation10], %s785
        %s787 = sand.u32 %s130, 1
        %s788 = smul.addr %s787, 6
        %s789 = scalar_lea.vmem [#allocation9], %s788
        // Predicated region
        $region93: #{tpu_custom_call.1} parent=79 // pred_check
          %p790 = pneg %p143
        $region94: #{tpu_custom_call.1} parent=79 // pred_check_branch
          %792 = sbr.rel (%p790) target = $region96
        $region95: #{tpu_custom_call.1} parent=79 // pred_region
          %793 = dma.done %s786, 96
        $region96: #{tpu_custom_call.1} parent=79 // pred_fallthru
          _
        %s794 = sand.u32 %s49, 1
        %s795 = scalar_lea.sflag [#allocation10], %s794
        %s796 = sand.u32 %s156, 1
        %s797 = smul.addr %s796, 2
        %s798 = scalar_lea.vmem [#allocation11], %s797
        // Predicated region
        $region97: #{tpu_custom_call.1} parent=79 // pred_check
          %p799 = pneg %p169
        $region98: #{tpu_custom_call.1} parent=79 // pred_check_branch
          %801 = sbr.rel (%p799) target = $region100
        $region99: #{tpu_custom_call.1} parent=79 // pred_region
          %802 = dma.done %s795, 32
        $region100: #{tpu_custom_call.1} parent=79 // pred_fallthru
          _
        %s803 = sand.u32 %s49, 1
        %s804 = scalar_lea.sflag [#allocation13], %s803
        %s805 = sand.u32 %s182, 1
        %s806 = smul.addr %s805, 2
        %s807 = scalar_lea.vmem [#allocation12], %s806
        // Predicated region
        $region101: #{tpu_custom_call.1} parent=79 // pred_check
          %p808 = pneg %p195
        $region102: #{tpu_custom_call.1} parent=79 // pred_check_branch
          %810 = sbr.rel (%p808) target = $region104
        $region103: #{tpu_custom_call.1} parent=79 // pred_region
          %811 = dma.done %s804, 32
        $region104: #{tpu_custom_call.1} parent=79 // pred_fallthru
          _
        %s812 = sand.u32 %s49, 1
        %s813 = scalar_lea.sflag [#allocation13], %s812
        %s814 = sand.u32 %s208, 1
        %s815 = smul.addr %s814, 256
        %s816 = scalar_lea.vmem [#allocation14], %s815
        // Predicated region
        $region105: #{tpu_custom_call.1} parent=79 // pred_check
          %p817 = pneg %p221
        $region106: #{tpu_custom_call.1} parent=79 // pred_check_branch
          %819 = sbr.rel (%p817) target = $region108
        $region107: #{tpu_custom_call.1} parent=79 // pred_region
          %820 = dma.done %s813, 4096
        $region108: #{tpu_custom_call.1} parent=79 // pred_fallthru
          _
        %s821 = sand.u32 %s49, 1
        %s822 = scalar_lea.sflag [#allocation16], %s821
        %s823 = sand.u32 %s234, 1
        %s824 = smul.addr %s823, 2
        %s825 = scalar_lea.vmem [#allocation15], %s824
        // Predicated region
        $region109: #{tpu_custom_call.1} parent=79 // pred_check
          %p826 = pneg %p247
        $region110: #{tpu_custom_call.1} parent=79 // pred_check_branch
          %828 = sbr.rel (%p826) target = $region112
        $region111: #{tpu_custom_call.1} parent=79 // pred_region
          %829 = dma.done %s822, 32
        $region112: #{tpu_custom_call.1} parent=79 // pred_fallthru
          _
        %s830 = sand.u32 %s49, 1
        %s831 = scalar_lea.sflag [#allocation16], %s830
        %s832 = sand.u32 %s260, 1
        %s833 = smul.addr %s832, 2
        %s834 = scalar_lea.vmem [#allocation17], %s833
        // Predicated region
        $region113: #{tpu_custom_call.1} parent=79 // pred_check
          %p835 = pneg %p273
        $region114: #{tpu_custom_call.1} parent=79 // pred_check_branch
          %837 = sbr.rel (%p835) target = $region116
        $region115: #{tpu_custom_call.1} parent=79 // pred_region
          %838 = dma.done %s831, 32
        $region116: #{tpu_custom_call.1} parent=79 // pred_fallthru
          _
        %s839 = sand.u32 %s49, 1
        %s840 = scalar_lea.sflag [#allocation19], %s839
        %s841 = sand.u32 %s286, 1
        %s842 = smul.addr %s841, 2
        %s843 = scalar_lea.vmem [#allocation18], %s842
        // Predicated region
        $region117: #{tpu_custom_call.1} parent=79 // pred_check
          %p844 = pneg %p299
        $region118: #{tpu_custom_call.1} parent=79 // pred_check_branch
          %846 = sbr.rel (%p844) target = $region120
        $region119: #{tpu_custom_call.1} parent=79 // pred_region
          %847 = dma.done %s840, 32
        $region120: #{tpu_custom_call.1} parent=79 // pred_fallthru
          _
        %s848 = sand.u32 %s49, 1
        %s849 = scalar_lea.sflag [#allocation19], %s848
        %s850 = sand.u32 %s312, 1
        %s851 = smul.addr %s850, 512
        %s852 = scalar_lea.vmem [#allocation20], %s851
        // Predicated region
        $region121: #{tpu_custom_call.1} parent=79 // pred_check
          %p853 = pneg %p325
        $region122: #{tpu_custom_call.1} parent=79 // pred_check_branch
          %855 = sbr.rel (%p853) target = $region124
        $region123: #{tpu_custom_call.1} parent=79 // pred_region
          %856 = dma.done %s849, 8192
        $region124: #{tpu_custom_call.1} parent=79 // pred_fallthru
          _
        %s857 = sand.u32 %s49, 1
        %s858 = scalar_lea.sflag [#allocation22], %s857
        %s859 = sand.u32 %s338, 1
        %s860 = smul.addr %s859, 4
        %s861 = scalar_lea.vmem [#allocation21], %s860
        // Predicated region
        $region125: #{tpu_custom_call.1} parent=79 // pred_check
          %p862 = pneg %p351
        $region126: #{tpu_custom_call.1} parent=79 // pred_check_branch
          %864 = sbr.rel (%p862) target = $region128
        $region127: #{tpu_custom_call.1} parent=79 // pred_region
          %865 = dma.done %s858, 64
        $region128: #{tpu_custom_call.1} parent=79 // pred_fallthru
          _
        %s866 = sand.u32 %s49, 1
        %s867 = scalar_lea.sflag [#allocation22], %s866
        %s868 = sand.u32 %s364, 1
        %s869 = smul.addr %s868, 512
        %s870 = scalar_lea.vmem [#allocation23], %s869
        // Predicated region
        $region129: #{tpu_custom_call.1} parent=79 // pred_check
          %p871 = pneg %p377
        $region130: #{tpu_custom_call.1} parent=79 // pred_check_branch
          %873 = sbr.rel (%p871) target = $region132
        $region131: #{tpu_custom_call.1} parent=79 // pred_region
          %874 = dma.done %s867, 8192
        $region132: #{tpu_custom_call.1} parent=79 // pred_fallthru
          _
        %s875 = sand.u32 %s49, 1
        %s876 = scalar_lea.sflag [#allocation25], %s875
        %s877 = sand.u32 %s390, 1
        %s878 = smul.addr %s877, 2
        %s879 = scalar_lea.vmem [#allocation24], %s878
        // Predicated region
        $region133: #{tpu_custom_call.1} parent=79 // pred_check
          %p880 = pneg %p403
        $region134: #{tpu_custom_call.1} parent=79 // pred_check_branch
          %882 = sbr.rel (%p880) target = $region136
        $region135: #{tpu_custom_call.1} parent=79 // pred_region
          %883 = dma.done %s876, 32
        $region136: #{tpu_custom_call.1} parent=79 // pred_fallthru
          _
        %s884 = sand.u32 %s49, 1
        %s885 = scalar_lea.sflag [#allocation25], %s884
        %s886 = sand.u32 %s416, 1
        %s887 = smul.addr %s886, 2
        %s888 = scalar_lea.vmem [#allocation26], %s887
        // Predicated region
        $region137: #{tpu_custom_call.1} parent=79 // pred_check
          %p889 = pneg %p429
        $region138: #{tpu_custom_call.1} parent=79 // pred_check_branch
          %891 = sbr.rel (%p889) target = $region140
        $region139: #{tpu_custom_call.1} parent=79 // pred_region
          %892 = dma.done %s885, 32
        $region140: #{tpu_custom_call.1} parent=79 // pred_fallthru
          _
        %p893 = pneg %p65
        %p894 = pneg %p62
        %s895 = sand.u32 %s49, 1
        %s896 = scalar_lea.sflag [#allocation7], %s895
        %s897 = sand.u32 %s78, 1
        %s898 = smul.addr %s897, 2
        %s899 = scalar_lea.vmem [#allocation6], %s898
        %p900 = pneg %p91
        %p901 = pneg %p88
        %s902 = sand.u32 %s49, 1
        %s903 = scalar_lea.sflag [#allocation7], %s902
        %s904 = sand.u32 %s104, 1
        %s905 = smul.addr %s904, 768
        %s906 = scalar_lea.vmem [#allocation8], %s905
        %p907 = pneg %p117
        %p908 = pneg %p114
        %s909 = sand.u32 %s49, 1
        %s910 = scalar_lea.sflag [#allocation10], %s909
        %s911 = sand.u32 %s130, 1
        %s912 = smul.addr %s911, 6
        %s913 = scalar_lea.vmem [#allocation9], %s912
        %p914 = pneg %p143
        %p915 = pneg %p140
        %s916 = sand.u32 %s49, 1
        %s917 = scalar_lea.sflag [#allocation10], %s916
        %s918 = sand.u32 %s156, 1
        %s919 = smul.addr %s918, 2
        %s920 = scalar_lea.vmem [#allocation11], %s919
        %p921 = pneg %p169
        %p922 = pneg %p166
        %s923 = sand.u32 %s49, 1
        %s924 = scalar_lea.sflag [#allocation13], %s923
        %s925 = sand.u32 %s182, 1
        %s926 = smul.addr %s925, 2
        %s927 = scalar_lea.vmem [#allocation12], %s926
        %p928 = pneg %p195
        %p929 = pneg %p192
        %s930 = sand.u32 %s49, 1
        %s931 = scalar_lea.sflag [#allocation13], %s930
        %s932 = sand.u32 %s208, 1
        %s933 = smul.addr %s932, 256
        %s934 = scalar_lea.vmem [#allocation14], %s933
        %p935 = pneg %p221
        %p936 = pneg %p218
        %s937 = sand.u32 %s49, 1
        %s938 = scalar_lea.sflag [#allocation16], %s937
        %s939 = sand.u32 %s234, 1
        %s940 = smul.addr %s939, 2
        %s941 = scalar_lea.vmem [#allocation15], %s940
        %p942 = pneg %p247
        %p943 = pneg %p244
        %s944 = sand.u32 %s49, 1
        %s945 = scalar_lea.sflag [#allocation16], %s944
        %s946 = sand.u32 %s260, 1
        %s947 = smul.addr %s946, 2
        %s948 = scalar_lea.vmem [#allocation17], %s947
        %p949 = pneg %p273
        %p950 = pneg %p270
        %s951 = sand.u32 %s49, 1
        %s952 = scalar_lea.sflag [#allocation19], %s951
        %s953 = sand.u32 %s286, 1
        %s954 = smul.addr %s953, 2
        %s955 = scalar_lea.vmem [#allocation18], %s954
        %p956 = pneg %p299
        %p957 = pneg %p296
        %s958 = sand.u32 %s49, 1
        %s959 = scalar_lea.sflag [#allocation19], %s958
        %s960 = sand.u32 %s312, 1
        %s961 = smul.addr %s960, 512
        %s962 = scalar_lea.vmem [#allocation20], %s961
        %p963 = pneg %p325
        %p964 = pneg %p322
        %s965 = sand.u32 %s49, 1
        %s966 = scalar_lea.sflag [#allocation22], %s965
        %s967 = sand.u32 %s338, 1
        %s968 = smul.addr %s967, 4
        %s969 = scalar_lea.vmem [#allocation21], %s968
        %p970 = pneg %p351
        %p971 = pneg %p348
        %s972 = sand.u32 %s49, 1
        %s973 = scalar_lea.sflag [#allocation22], %s972
        %s974 = sand.u32 %s364, 1
        %s975 = smul.addr %s974, 512
        %s976 = scalar_lea.vmem [#allocation23], %s975
        %p977 = pneg %p377
        %p978 = pneg %p374
        %s979 = sand.u32 %s49, 1
        %s980 = scalar_lea.sflag [#allocation25], %s979
        %s981 = sand.u32 %s390, 1
        %s982 = smul.addr %s981, 2
        %s983 = scalar_lea.vmem [#allocation24], %s982
        %p984 = pneg %p403
        %p985 = pneg %p400
        %s986 = sand.u32 %s49, 1
        %s987 = scalar_lea.sflag [#allocation25], %s986
        %s988 = sand.u32 %s416, 1
        %s989 = smul.addr %s988, 2
        %s990 = scalar_lea.vmem [#allocation26], %s989
        %p991 = pneg %p429
        %p992 = pneg %p426
        %p993 = pneg %p450
        %p994 = pneg %p447
        %p996 = scmp.eq.s32.totalorder %s49, 0
        // Predicated region
        $region141: #{tpu_custom_call.1} parent=79 // pred_check
          %p997 = pneg %p996
        $region142: #{tpu_custom_call.1} parent=79 // pred_check_branch
          %999 = sbr.rel (%p997) target = $region144
        $region143: #{tpu_custom_call.1} parent=79 // pred_region
          %v1000 = vld [vmem:[#allocation3] sm:$0xff]
          %v1001 = vld [vmem:[#allocation3 + $0x8] sm:$0xff]
          %v1002 = vld [vmem:[#allocation3 + $0x10] sm:$0xff]
          %v1003 = vld [vmem:[#allocation3 + $0x18] sm:$0xff]
          %v1004 = vld [vmem:[#allocation3 + $0x20] sm:$0xff]
          %v1005 = vld [vmem:[#allocation3 + $0x28] sm:$0xff]
          %v1006 = vld [vmem:[#allocation3 + $0x30] sm:$0xff]
          %v1007 = vld [vmem:[#allocation3 + $0x38] sm:$0xff]
          %v1008 = vld [vmem:[#allocation3 + $0x40] sm:$0xff]
          %v1009 = vld [vmem:[#allocation3 + $0x48] sm:$0xff]
          %v1010 = vld [vmem:[#allocation3 + $0x50] sm:$0xff]
          %v1011 = vld [vmem:[#allocation3 + $0x58] sm:$0xff]
          %v1012 = vld [vmem:[#allocation3 + $0x60] sm:$0xff]
          %v1013 = vld [vmem:[#allocation3 + $0x68] sm:$0xff]
          %v1014 = vld [vmem:[#allocation3 + $0x70] sm:$0xff]
          %v1015 = vld [vmem:[#allocation3 + $0x78] sm:$0xff]
          %v1016 = vld [vmem:[#allocation3 + $0x80] sm:$0xff]
          %v1017 = vld [vmem:[#allocation3 + $0x88] sm:$0xff]
          %v1018 = vld [vmem:[#allocation3 + $0x90] sm:$0xff]
          %v1019 = vld [vmem:[#allocation3 + $0x98] sm:$0xff]
          %v1020 = vld [vmem:[#allocation3 + $0xa0] sm:$0xff]
          %v1021 = vld [vmem:[#allocation3 + $0xa8] sm:$0xff]
          %v1022 = vld [vmem:[#allocation3 + $0xb0] sm:$0xff]
          %v1023 = vld [vmem:[#allocation3 + $0xb8] sm:$0xff]
          %v1024 = vld [vmem:[#allocation3 + $0xc0] sm:$0xff]
          %v1025 = vld [vmem:[#allocation3 + $0xc8] sm:$0xff]
          %v1026 = vld [vmem:[#allocation3 + $0xd0] sm:$0xff]
          %v1027 = vld [vmem:[#allocation3 + $0xd8] sm:$0xff]
          %v1028 = vld [vmem:[#allocation3 + $0xe0] sm:$0xff]
          %v1029 = vld [vmem:[#allocation3 + $0xe8] sm:$0xff]
          %v1030 = vld [vmem:[#allocation3 + $0xf0] sm:$0xff]
          %v1031 = vld [vmem:[#allocation3 + $0xf8] sm:$0xff]
          %1032 = vst [vmem:[#allocation27] sm:$0xff] %v1000
          %1033 = vst [vmem:[#allocation27 + $0x8] sm:$0xff] %v1001
          %1034 = vst [vmem:[#allocation27 + $0x10] sm:$0xff] %v1002
          %1035 = vst [vmem:[#allocation27 + $0x18] sm:$0xff] %v1003
          %1036 = vst [vmem:[#allocation27 + $0x20] sm:$0xff] %v1004
          %1037 = vst [vmem:[#allocation27 + $0x28] sm:$0xff] %v1005
          %1038 = vst [vmem:[#allocation27 + $0x30] sm:$0xff] %v1006
          %1039 = vst [vmem:[#allocation27 + $0x38] sm:$0xff] %v1007
          %1040 = vst [vmem:[#allocation27 + $0x40] sm:$0xff] %v1008
          %1041 = vst [vmem:[#allocation27 + $0x48] sm:$0xff] %v1009
          %1042 = vst [vmem:[#allocation27 + $0x50] sm:$0xff] %v1010
          %1043 = vst [vmem:[#allocation27 + $0x58] sm:$0xff] %v1011
          %1044 = vst [vmem:[#allocation27 + $0x60] sm:$0xff] %v1012
          %1045 = vst [vmem:[#allocation27 + $0x68] sm:$0xff] %v1013
          %1046 = vst [vmem:[#allocation27 + $0x70] sm:$0xff] %v1014
          %1047 = vst [vmem:[#allocation27 + $0x78] sm:$0xff] %v1015
          %1048 = vst [vmem:[#allocation27 + $0x80] sm:$0xff] %v1016
          %1049 = vst [vmem:[#allocation27 + $0x88] sm:$0xff] %v1017
          %1050 = vst [vmem:[#allocation27 + $0x90] sm:$0xff] %v1018
          %1051 = vst [vmem:[#allocation27 + $0x98] sm:$0xff] %v1019
          %1052 = vst [vmem:[#allocation27 + $0xa0] sm:$0xff] %v1020
          %1053 = vst [vmem:[#allocation27 + $0xa8] sm:$0xff] %v1021
          %1054 = vst [vmem:[#allocation27 + $0xb0] sm:$0xff] %v1022
          %1055 = vst [vmem:[#allocation27 + $0xb8] sm:$0xff] %v1023
          %1056 = vst [vmem:[#allocation27 + $0xc0] sm:$0xff] %v1024
          %1057 = vst [vmem:[#allocation27 + $0xc8] sm:$0xff] %v1025
          %1058 = vst [vmem:[#allocation27 + $0xd0] sm:$0xff] %v1026
          %1059 = vst [vmem:[#allocation27 + $0xd8] sm:$0xff] %v1027
          %1060 = vst [vmem:[#allocation27 + $0xe0] sm:$0xff] %v1028
          %1061 = vst [vmem:[#allocation27 + $0xe8] sm:$0xff] %v1029
          %1062 = vst [vmem:[#allocation27 + $0xf0] sm:$0xff] %v1030
          %1063 = vst [vmem:[#allocation27 + $0xf8] sm:$0xff] %v1031
        $region144: #{tpu_custom_call.1} parent=79 // pred_fallthru
          _
        %v1064 = vld [vmem:[#allocation27] sm:$0xff]
        %v1065 = vld [vmem:[#allocation27 + $0x8] sm:$0xff]
        %v1066 = vld [vmem:[#allocation27 + $0x10] sm:$0xff]
        %v1067 = vld [vmem:[#allocation27 + $0x18] sm:$0xff]
        %v1068 = vld [vmem:[#allocation27 + $0x20] sm:$0xff]
        %v1069 = vld [vmem:[#allocation27 + $0x28] sm:$0xff]
        %v1070 = vld [vmem:[#allocation27 + $0x30] sm:$0xff]
        %v1071 = vld [vmem:[#allocation27 + $0x38] sm:$0xff]
        %v1072 = vld [vmem:[#allocation27 + $0x40] sm:$0xff]
        %v1073 = vld [vmem:[#allocation27 + $0x48] sm:$0xff]
        %v1074 = vld [vmem:[#allocation27 + $0x50] sm:$0xff]
        %v1075 = vld [vmem:[#allocation27 + $0x58] sm:$0xff]
        %v1076 = vld [vmem:[#allocation27 + $0x60] sm:$0xff]
        %v1077 = vld [vmem:[#allocation27 + $0x68] sm:$0xff]
        %v1078 = vld [vmem:[#allocation27 + $0x70] sm:$0xff]
        %v1079 = vld [vmem:[#allocation27 + $0x78] sm:$0xff]
        %v1080 = vld [vmem:[#allocation27 + $0x80] sm:$0xff]
        %v1081 = vld [vmem:[#allocation27 + $0x88] sm:$0xff]
        %v1082 = vld [vmem:[#allocation27 + $0x90] sm:$0xff]
        %v1083 = vld [vmem:[#allocation27 + $0x98] sm:$0xff]
        %v1084 = vld [vmem:[#allocation27 + $0xa0] sm:$0xff]
        %v1085 = vld [vmem:[#allocation27 + $0xa8] sm:$0xff]
        %v1086 = vld [vmem:[#allocation27 + $0xb0] sm:$0xff]
        %v1087 = vld [vmem:[#allocation27 + $0xb8] sm:$0xff]
        %v1088 = vld [vmem:[#allocation27 + $0xc0] sm:$0xff]
        %v1089 = vld [vmem:[#allocation27 + $0xc8] sm:$0xff]
        %v1090 = vld [vmem:[#allocation27 + $0xd0] sm:$0xff]
        %v1091 = vld [vmem:[#allocation27 + $0xd8] sm:$0xff]
        %v1092 = vld [vmem:[#allocation27 + $0xe0] sm:$0xff]
        %v1093 = vld [vmem:[#allocation27 + $0xe8] sm:$0xff]
        %v1094 = vld [vmem:[#allocation27 + $0xf0] sm:$0xff]
        %v1095 = vld [vmem:[#allocation27 + $0xf8] sm:$0xff]
        %v1096 = vld [vmem:[%s771] sm:$0x3]
        %v1097 = vmul.f32 %v1064, %v1064
        %v1098 = vmul.f32 %v1065, %v1065
        %v1099 = vmul.f32 %v1066, %v1066
        %v1100 = vmul.f32 %v1067, %v1067
        %v1101 = vmul.f32 %v1068, %v1068
        %v1102 = vmul.f32 %v1069, %v1069
        %v1103 = vmul.f32 %v1070, %v1070
        %v1104 = vmul.f32 %v1071, %v1071
        %v1105 = vmul.f32 %v1072, %v1072
        %v1106 = vmul.f32 %v1073, %v1073
        %v1107 = vmul.f32 %v1074, %v1074
        %v1108 = vmul.f32 %v1075, %v1075
        %v1109 = vmul.f32 %v1076, %v1076
        %v1110 = vmul.f32 %v1077, %v1077
        %v1111 = vmul.f32 %v1078, %v1078
        %v1112 = vmul.f32 %v1079, %v1079
        %v1113 = vmul.f32 %v1080, %v1080
        %v1114 = vmul.f32 %v1081, %v1081
        %v1115 = vmul.f32 %v1082, %v1082
        %v1116 = vmul.f32 %v1083, %v1083
        %v1117 = vmul.f32 %v1084, %v1084
        %v1118 = vmul.f32 %v1085, %v1085
        %v1119 = vmul.f32 %v1086, %v1086
        %v1120 = vmul.f32 %v1087, %v1087
        %v1121 = vmul.f32 %v1088, %v1088
        %v1122 = vmul.f32 %v1089, %v1089
        %v1123 = vmul.f32 %v1090, %v1090
        %v1124 = vmul.f32 %v1091, %v1091
        %v1125 = vmul.f32 %v1092, %v1092
        %v1126 = vmul.f32 %v1093, %v1093
        %v1127 = vmul.f32 %v1094, %v1094
        %v1128 = vmul.f32 %v1095, %v1095
        %v1129 = vadd.f32 %v1097, %v1098
        %1130 = vadd.xlane.f32.xlu0 %v1129
        %v1131 = vpop.xlane.xlu0 %1130
        %v1132 = vadd.f32 %v1099, %v1100
        %1133 = vadd.xlane.f32.xlu0 %v1132
        %v1134 = vpop.xlane.xlu0 %1133
        %v1135 = vadd.f32 %v1101, %v1102
        %1136 = vadd.xlane.f32.xlu0 %v1135
        %v1137 = vpop.xlane.xlu0 %1136
        %v1138 = vadd.f32 %v1103, %v1104
        %1139 = vadd.xlane.f32.xlu0 %v1138
        %v1140 = vpop.xlane.xlu0 %1139
        %v1141 = vadd.f32 %v1105, %v1106
        %1142 = vadd.xlane.f32.xlu0 %v1141
        %v1143 = vpop.xlane.xlu0 %1142
        %v1144 = vadd.f32 %v1107, %v1108
        %1145 = vadd.xlane.f32.xlu0 %v1144
        %v1146 = vpop.xlane.xlu0 %1145
        %v1147 = vadd.f32 %v1109, %v1110
        %1148 = vadd.xlane.f32.xlu0 %v1147
        %v1149 = vpop.xlane.xlu0 %1148
        %v1150 = vadd.f32 %v1111, %v1112
        %1151 = vadd.xlane.f32.xlu0 %v1150
        %v1152 = vpop.xlane.xlu0 %1151
        %v1153 = vadd.f32 %v1113, %v1114
        %1154 = vadd.xlane.f32.xlu0 %v1153
        %v1155 = vpop.xlane.xlu0 %1154
        %v1156 = vadd.f32 %v1115, %v1116
        %1157 = vadd.xlane.f32.xlu0 %v1156
        %v1158 = vpop.xlane.xlu0 %1157
        %v1159 = vadd.f32 %v1117, %v1118
        %1160 = vadd.xlane.f32.xlu0 %v1159
        %v1161 = vpop.xlane.xlu0 %1160
        %v1162 = vadd.f32 %v1119, %v1120
        %1163 = vadd.xlane.f32.xlu0 %v1162
        %v1164 = vpop.xlane.xlu0 %1163
        %v1165 = vadd.f32 %v1121, %v1122
        %1166 = vadd.xlane.f32.xlu0 %v1165
        %v1167 = vpop.xlane.xlu0 %1166
        %v1168 = vadd.f32 %v1123, %v1124
        %1169 = vadd.xlane.f32.xlu0 %v1168
        %v1170 = vpop.xlane.xlu0 %1169
        %v1171 = vadd.f32 %v1125, %v1126
        %1172 = vadd.xlane.f32.xlu0 %v1171
        %v1173 = vpop.xlane.xlu0 %1172
        %v1174 = vadd.f32 %v1127, %v1128
        %1175 = vadd.xlane.f32.xlu0 %v1174
        %v1176 = vpop.xlane.xlu0 %1175
        %v1177 = vrcp.pop 256.0
        %v1178 = vmul.f32 %v1131, %v1177
        %v1179 = vmul.f32 %v1134, %v1177
        %v1180 = vmul.f32 %v1137, %v1177
        %v1181 = vmul.f32 %v1140, %v1177
        %v1182 = vmul.f32 %v1143, %v1177
        %v1183 = vmul.f32 %v1146, %v1177
        %v1184 = vmul.f32 %v1149, %v1177
        %v1185 = vmul.f32 %v1152, %v1177
        %v1186 = vmul.f32 %v1155, %v1177
        %v1187 = vmul.f32 %v1158, %v1177
        %v1188 = vmul.f32 %v1161, %v1177
        %v1189 = vmul.f32 %v1164, %v1177
        %v1190 = vmul.f32 %v1167, %v1177
        %v1191 = vmul.f32 %v1170, %v1177
        %v1192 = vmul.f32 %v1173, %v1177
        %v1193 = vmul.f32 %v1176, %v1177
        %v1194 = vadd.f32 %v1178, 1e-06
        %v1195 = vadd.f32 %v1179, 1e-06
        %v1196 = vadd.f32 %v1180, 1e-06
        %v1197 = vadd.f32 %v1181, 1e-06
        %v1198 = vadd.f32 %v1182, 1e-06
        %v1199 = vadd.f32 %v1183, 1e-06
        %v1200 = vadd.f32 %v1184, 1e-06
        %v1201 = vadd.f32 %v1185, 1e-06
        %v1202 = vadd.f32 %v1186, 1e-06
        %v1203 = vadd.f32 %v1187, 1e-06
        %v1204 = vadd.f32 %v1188, 1e-06
        %v1205 = vadd.f32 %v1189, 1e-06
        %v1206 = vadd.f32 %v1190, 1e-06
        %v1207 = vadd.f32 %v1191, 1e-06
        %v1208 = vadd.f32 %v1192, 1e-06
        %v1209 = vadd.f32 %v1193, 1e-06
        %v1210 = vrsqrt.pop %v1194
        %v1211 = vrsqrt.pop %v1195
        %v1212 = vrsqrt.pop %v1196
        %v1213 = vrsqrt.pop %v1197
        %v1214 = vrsqrt.pop %v1198
        %v1215 = vrsqrt.pop %v1199
        %v1216 = vrsqrt.pop %v1200
        %v1217 = vrsqrt.pop %v1201
        %v1218 = vrsqrt.pop %v1202
        %v1219 = vrsqrt.pop %v1203
        %v1220 = vrsqrt.pop %v1204
        %v1221 = vrsqrt.pop %v1205
        %v1222 = vrsqrt.pop %v1206
        %v1223 = vrsqrt.pop %v1207
        %v1224 = vrsqrt.pop %v1208
        %v1225 = vrsqrt.pop %v1209
        %v1226 = vmul.f32 %v1064, %v1210
        %v1227 = vmul.f32 %v1065, %v1210
        %v1228 = vmul.f32 %v1066, %v1211
        %v1229 = vmul.f32 %v1067, %v1211
        %v1230 = vmul.f32 %v1068, %v1212
        %v1231 = vmul.f32 %v1069, %v1212
        %v1232 = vmul.f32 %v1070, %v1213
        %v1233 = vmul.f32 %v1071, %v1213
        %v1234 = vmul.f32 %v1072, %v1214
        %v1235 = vmul.f32 %v1073, %v1214
        %v1236 = vmul.f32 %v1074, %v1215
        %v1237 = vmul.f32 %v1075, %v1215
        %v1238 = vmul.f32 %v1076, %v1216
        %v1239 = vmul.f32 %v1077, %v1216
        %v1240 = vmul.f32 %v1078, %v1217
        %v1241 = vmul.f32 %v1079, %v1217
        %v1242 = vmul.f32 %v1080, %v1218
        %v1243 = vmul.f32 %v1081, %v1218
        %v1244 = vmul.f32 %v1082, %v1219
        %v1245 = vmul.f32 %v1083, %v1219
        %v1246 = vmul.f32 %v1084, %v1220
        %v1247 = vmul.f32 %v1085, %v1220
        %v1248 = vmul.f32 %v1086, %v1221
        %v1249 = vmul.f32 %v1087, %v1221
        %v1250 = vmul.f32 %v1088, %v1222
        %v1251 = vmul.f32 %v1089, %v1222
        %v1252 = vmul.f32 %v1090, %v1223
        %v1253 = vmul.f32 %v1091, %v1223
        %v1254 = vmul.f32 %v1092, %v1224
        %v1255 = vmul.f32 %v1093, %v1224
        %v1256 = vmul.f32 %v1094, %v1225
        %v1257 = vmul.f32 %v1095, %v1225
        %v1259 = vlaneseq
        %v1260 = vshrl.u32 %v1259, 7
        %v1261 = vsub.s32 0, %v1260
        %v1262 = vrot.slane %v1096, %v1261
        %v1263 = vlaneseq
        %v1264 = vshrl.u32 %v1263, 7
        %v1265 = vsub.s32 1, %v1264
        %v1266 = vrot.slane %v1096, %v1265
        %v1269 = vmul.f32 %v1226, %v1262
        %v1270 = vmul.f32 %v1227, %v1266
        %v1271 = vmul.f32 %v1228, %v1262
        %v1272 = vmul.f32 %v1229, %v1266
        %v1273 = vmul.f32 %v1230, %v1262
        %v1274 = vmul.f32 %v1231, %v1266
        %v1275 = vmul.f32 %v1232, %v1262
        %v1276 = vmul.f32 %v1233, %v1266
        %v1277 = vmul.f32 %v1234, %v1262
        %v1278 = vmul.f32 %v1235, %v1266
        %v1279 = vmul.f32 %v1236, %v1262
        %v1280 = vmul.f32 %v1237, %v1266
        %v1281 = vmul.f32 %v1238, %v1262
        %v1282 = vmul.f32 %v1239, %v1266
        %v1283 = vmul.f32 %v1240, %v1262
        %v1284 = vmul.f32 %v1241, %v1266
        %v1285 = vmul.f32 %v1242, %v1262
        %v1286 = vmul.f32 %v1243, %v1266
        %v1287 = vmul.f32 %v1244, %v1262
        %v1288 = vmul.f32 %v1245, %v1266
        %v1289 = vmul.f32 %v1246, %v1262
        %v1290 = vmul.f32 %v1247, %v1266
        %v1291 = vmul.f32 %v1248, %v1262
        %v1292 = vmul.f32 %v1249, %v1266
        %v1293 = vmul.f32 %v1250, %v1262
        %v1294 = vmul.f32 %v1251, %v1266
        %v1295 = vmul.f32 %v1252, %v1262
        %v1296 = vmul.f32 %v1253, %v1266
        %v1297 = vmul.f32 %v1254, %v1262
        %v1298 = vmul.f32 %v1255, %v1266
        %v1299 = vmul.f32 %v1256, %v1262
        %v1300 = vmul.f32 %v1257, %v1266
        %v1301 = vpack.c.bf16 %v1271, %v1269
        %v1302 = vpack.c.bf16 %v1272, %v1270
        %v1303 = vpack.c.bf16 %v1275, %v1273
        %v1304 = vpack.c.bf16 %v1276, %v1274
        %v1305 = vpack.c.bf16 %v1279, %v1277
        %v1306 = vpack.c.bf16 %v1280, %v1278
        %v1307 = vpack.c.bf16 %v1283, %v1281
        %v1308 = vpack.c.bf16 %v1284, %v1282
        %v1309 = vpack.c.bf16 %v1287, %v1285
        %v1310 = vpack.c.bf16 %v1288, %v1286
        %v1311 = vpack.c.bf16 %v1291, %v1289
        %v1312 = vpack.c.bf16 %v1292, %v1290
        %v1313 = vpack.c.bf16 %v1295, %v1293
        %v1314 = vpack.c.bf16 %v1296, %v1294
        %v1315 = vpack.c.bf16 %v1299, %v1297
        %v1316 = vpack.c.bf16 %v1300, %v1298
        %v1317 = vld [vmem:[%s780] sm:$0xff]
        %v1318 = vld [vmem:[%s780 + $0x8] sm:$0xff]
        %v1319 = vld [vmem:[%s780 + $0x10] sm:$0xff]
        %v1320 = vld [vmem:[%s780 + $0x18] sm:$0xff]
        %v1321 = vld [vmem:[%s780 + $0x20] sm:$0xff]
        %v1322 = vld [vmem:[%s780 + $0x28] sm:$0xff]
        %v1323 = vld [vmem:[%s780 + $0x30] sm:$0xff]
        %v1324 = vld [vmem:[%s780 + $0x38] sm:$0xff]
        %v1325 = vld [vmem:[%s780 + $0x40] sm:$0xff]
        %v1326 = vld [vmem:[%s780 + $0x48] sm:$0xff]
        %v1327 = vld [vmem:[%s780 + $0x50] sm:$0xff]
        %v1328 = vld [vmem:[%s780 + $0x58] sm:$0xff]
        %v1329 = vld [vmem:[%s780 + $0x60] sm:$0xff]
        %v1330 = vld [vmem:[%s780 + $0x68] sm:$0xff]
        %v1331 = vld [vmem:[%s780 + $0x70] sm:$0xff]
        %v1332 = vld [vmem:[%s780 + $0x78] sm:$0xff]
        %v1333 = vld [vmem:[%s780 + $0x80] sm:$0xff]
        %v1334 = vld [vmem:[%s780 + $0x88] sm:$0xff]
        %v1335 = vld [vmem:[%s780 + $0x90] sm:$0xff]
        %v1336 = vld [vmem:[%s780 + $0x98] sm:$0xff]
        %v1337 = vld [vmem:[%s780 + $0xa0] sm:$0xff]
        %v1338 = vld [vmem:[%s780 + $0xa8] sm:$0xff]
        %v1339 = vld [vmem:[%s780 + $0xb0] sm:$0xff]
        %v1340 = vld [vmem:[%s780 + $0xb8] sm:$0xff]
        %v1341 = vld [vmem:[%s780 + $0xc0] sm:$0xff]
        %v1342 = vld [vmem:[%s780 + $0xc8] sm:$0xff]
        %v1343 = vld [vmem:[%s780 + $0xd0] sm:$0xff]
        %v1344 = vld [vmem:[%s780 + $0xd8] sm:$0xff]
        %v1345 = vld [vmem:[%s780 + $0xe0] sm:$0xff]
        %v1346 = vld [vmem:[%s780 + $0xe8] sm:$0xff]
        %v1347 = vld [vmem:[%s780 + $0xf0] sm:$0xff]
        %v1348 = vld [vmem:[%s780 + $0xf8] sm:$0xff]
        %v1349 = vld [vmem:[%s780 + $0x100] sm:$0xff]
        %v1350 = vld [vmem:[%s780 + $0x108] sm:$0xff]
        %v1351 = vld [vmem:[%s780 + $0x110] sm:$0xff]
        %v1352 = vld [vmem:[%s780 + $0x118] sm:$0xff]
        %v1353 = vld [vmem:[%s780 + $0x120] sm:$0xff]
        %v1354 = vld [vmem:[%s780 + $0x128] sm:$0xff]
        %v1355 = vld [vmem:[%s780 + $0x130] sm:$0xff]
        %v1356 = vld [vmem:[%s780 + $0x138] sm:$0xff]
        %v1357 = vld [vmem:[%s780 + $0x140] sm:$0xff]
        %v1358 = vld [vmem:[%s780 + $0x148] sm:$0xff]
        %v1359 = vld [vmem:[%s780 + $0x150] sm:$0xff]
        %v1360 = vld [vmem:[%s780 + $0x158] sm:$0xff]
        %v1361 = vld [vmem:[%s780 + $0x160] sm:$0xff]
        %v1362 = vld [vmem:[%s780 + $0x168] sm:$0xff]
        %v1363 = vld [vmem:[%s780 + $0x170] sm:$0xff]
        %v1364 = vld [vmem:[%s780 + $0x178] sm:$0xff]
        %v1365 = vld [vmem:[%s780 + $0x180] sm:$0xff]
        %v1366 = vld [vmem:[%s780 + $0x188] sm:$0xff]
        %v1367 = vld [vmem:[%s780 + $0x190] sm:$0xff]
        %v1368 = vld [vmem:[%s780 + $0x198] sm:$0xff]
        %v1369 = vld [vmem:[%s780 + $0x1a0] sm:$0xff]
        %v1370 = vld [vmem:[%s780 + $0x1a8] sm:$0xff]
        %v1371 = vld [vmem:[%s780 + $0x1b0] sm:$0xff]
        %v1372 = vld [vmem:[%s780 + $0x1b8] sm:$0xff]
        %v1373 = vld [vmem:[%s780 + $0x1c0] sm:$0xff]
        %v1374 = vld [vmem:[%s780 + $0x1c8] sm:$0xff]
        %v1375 = vld [vmem:[%s780 + $0x1d0] sm:$0xff]
        %v1376 = vld [vmem:[%s780 + $0x1d8] sm:$0xff]
        %v1377 = vld [vmem:[%s780 + $0x1e0] sm:$0xff]
        %v1378 = vld [vmem:[%s780 + $0x1e8] sm:$0xff]
        %v1379 = vld [vmem:[%s780 + $0x1f0] sm:$0xff]
        %v1380 = vld [vmem:[%s780 + $0x1f8] sm:$0xff]
        %v1381 = vld [vmem:[%s780 + $0x200] sm:$0xff]
        %v1382 = vld [vmem:[%s780 + $0x208] sm:$0xff]
        %v1383 = vld [vmem:[%s780 + $0x210] sm:$0xff]
        %v1384 = vld [vmem:[%s780 + $0x218] sm:$0xff]
        %v1385 = vld [vmem:[%s780 + $0x220] sm:$0xff]
        %v1386 = vld [vmem:[%s780 + $0x228] sm:$0xff]
        %v1387 = vld [vmem:[%s780 + $0x230] sm:$0xff]
        %v1388 = vld [vmem:[%s780 + $0x238] sm:$0xff]
        %v1389 = vld [vmem:[%s780 + $0x240] sm:$0xff]
        %v1390 = vld [vmem:[%s780 + $0x248] sm:$0xff]
        %v1391 = vld [vmem:[%s780 + $0x250] sm:$0xff]
        %v1392 = vld [vmem:[%s780 + $0x258] sm:$0xff]
        %v1393 = vld [vmem:[%s780 + $0x260] sm:$0xff]
        %v1394 = vld [vmem:[%s780 + $0x268] sm:$0xff]
        %v1395 = vld [vmem:[%s780 + $0x270] sm:$0xff]
        %v1396 = vld [vmem:[%s780 + $0x278] sm:$0xff]
        %v1397 = vld [vmem:[%s780 + $0x280] sm:$0xff]
        %v1398 = vld [vmem:[%s780 + $0x288] sm:$0xff]
        %v1399 = vld [vmem:[%s780 + $0x290] sm:$0xff]
        %v1400 = vld [vmem:[%s780 + $0x298] sm:$0xff]
        %v1401 = vld [vmem:[%s780 + $0x2a0] sm:$0xff]
        %v1402 = vld [vmem:[%s780 + $0x2a8] sm:$0xff]
        %v1403 = vld [vmem:[%s780 + $0x2b0] sm:$0xff]
        %v1404 = vld [vmem:[%s780 + $0x2b8] sm:$0xff]
        %v1405 = vld [vmem:[%s780 + $0x2c0] sm:$0xff]
        %v1406 = vld [vmem:[%s780 + $0x2c8] sm:$0xff]
        %v1407 = vld [vmem:[%s780 + $0x2d0] sm:$0xff]
        %v1408 = vld [vmem:[%s780 + $0x2d8] sm:$0xff]
        %v1409 = vld [vmem:[%s780 + $0x2e0] sm:$0xff]
        %v1410 = vld [vmem:[%s780 + $0x2e8] sm:$0xff]
        %v1411 = vld [vmem:[%s780 + $0x2f0] sm:$0xff]
        %v1412 = vld [vmem:[%s780 + $0x2f8] sm:$0xff]
        %v1413 = vld [vmem:[%s789] sm:$0x3f]
        %v1415 = vlaneseq
        %v1416 = vshrl.u32 %v1415, 7
        %v1417 = vsub.s32 0, %v1416
        %v1418 = vrot.slane %v1413, %v1417
        %v1419 = vlaneseq
        %v1420 = vshrl.u32 %v1419, 7
        %v1421 = vsub.s32 1, %v1420
        %v1422 = vrot.slane %v1413, %v1421
        %v1423 = vlaneseq
        %v1424 = vshrl.u32 %v1423, 7
        %v1425 = vsub.s32 2, %v1424
        %v1426 = vrot.slane %v1413, %v1425
        %v1427 = vlaneseq
        %v1428 = vshrl.u32 %v1427, 7
        %v1429 = vsub.s32 3, %v1428
        %v1430 = vrot.slane %v1413, %v1429
        %v1431 = vlaneseq
        %v1432 = vshrl.u32 %v1431, 7
        %v1433 = vsub.s32 4, %v1432
        %v1434 = vrot.slane %v1413, %v1433
        %v1435 = vlaneseq
        %v1436 = vshrl.u32 %v1435, 7
        %v1437 = vsub.s32 5, %v1436
        %v1438 = vrot.slane %v1413, %v1437
        %v1541 = vunpack.c.l.b16 %v1317
        %v1542 = vunpack.c.h.b16 %v1317
        %v1543 = vunpack.c.l.b16 %v1318
        %v1544 = vunpack.c.h.b16 %v1318
        %v1545 = vunpack.c.l.b16 %v1319
        %v1546 = vunpack.c.h.b16 %v1319
        %v1547 = vunpack.c.l.b16 %v1320
        %v1548 = vunpack.c.h.b16 %v1320
        %v1549 = vunpack.c.l.b16 %v1321
        %v1550 = vunpack.c.h.b16 %v1321
        %v1551 = vunpack.c.l.b16 %v1322
        %v1552 = vunpack.c.h.b16 %v1322
        %v1553 = vunpack.c.l.b16 %v1323
        %v1554 = vunpack.c.h.b16 %v1323
        %v1555 = vunpack.c.l.b16 %v1324
        %v1556 = vunpack.c.h.b16 %v1324
        %v1557 = vunpack.c.l.b16 %v1325
        %v1558 = vunpack.c.h.b16 %v1325
        %v1559 = vunpack.c.l.b16 %v1326
        %v1560 = vunpack.c.h.b16 %v1326
        %v1561 = vunpack.c.l.b16 %v1327
        %v1562 = vunpack.c.h.b16 %v1327
        %v1563 = vunpack.c.l.b16 %v1328
        %v1564 = vunpack.c.h.b16 %v1328
        %v1565 = vunpack.c.l.b16 %v1329
        %v1566 = vunpack.c.h.b16 %v1329
        %v1567 = vunpack.c.l.b16 %v1330
        %v1568 = vunpack.c.h.b16 %v1330
        %v1569 = vunpack.c.l.b16 %v1331
        %v1570 = vunpack.c.h.b16 %v1331
        %v1571 = vunpack.c.l.b16 %v1332
        %v1572 = vunpack.c.h.b16 %v1332
        %v1573 = vunpack.c.l.b16 %v1333
        %v1574 = vunpack.c.h.b16 %v1333
        %v1575 = vunpack.c.l.b16 %v1334
        %v1576 = vunpack.c.h.b16 %v1334
        %v1577 = vunpack.c.l.b16 %v1335
        %v1578 = vunpack.c.h.b16 %v1335
        %v1579 = vunpack.c.l.b16 %v1336
        %v1580 = vunpack.c.h.b16 %v1336
        %v1581 = vunpack.c.l.b16 %v1337
        %v1582 = vunpack.c.h.b16 %v1337
        %v1583 = vunpack.c.l.b16 %v1338
        %v1584 = vunpack.c.h.b16 %v1338
        %v1585 = vunpack.c.l.b16 %v1339
        %v1586 = vunpack.c.h.b16 %v1339
        %v1587 = vunpack.c.l.b16 %v1340
        %v1588 = vunpack.c.h.b16 %v1340
        %v1589 = vunpack.c.l.b16 %v1341
        %v1590 = vunpack.c.h.b16 %v1341
        %v1591 = vunpack.c.l.b16 %v1342
        %v1592 = vunpack.c.h.b16 %v1342
        %v1593 = vunpack.c.l.b16 %v1343
        %v1594 = vunpack.c.h.b16 %v1343
        %v1595 = vunpack.c.l.b16 %v1344
        %v1596 = vunpack.c.h.b16 %v1344
        %v1597 = vunpack.c.l.b16 %v1345
        %v1598 = vunpack.c.h.b16 %v1345
        %v1599 = vunpack.c.l.b16 %v1346
        %v1600 = vunpack.c.h.b16 %v1346
        %v1601 = vunpack.c.l.b16 %v1347
        %v1602 = vunpack.c.h.b16 %v1347
        %v1603 = vunpack.c.l.b16 %v1348
        %v1604 = vunpack.c.h.b16 %v1348
        %v1605 = vunpack.c.l.b16 %v1349
        %v1606 = vunpack.c.h.b16 %v1349
        %v1607 = vunpack.c.l.b16 %v1350
        %v1608 = vunpack.c.h.b16 %v1350
        %v1609 = vunpack.c.l.b16 %v1351
        %v1610 = vunpack.c.h.b16 %v1351
        %v1611 = vunpack.c.l.b16 %v1352
        %v1612 = vunpack.c.h.b16 %v1352
        %v1613 = vunpack.c.l.b16 %v1353
        %v1614 = vunpack.c.h.b16 %v1353
        %v1615 = vunpack.c.l.b16 %v1354
        %v1616 = vunpack.c.h.b16 %v1354
        %v1617 = vunpack.c.l.b16 %v1355
        %v1618 = vunpack.c.h.b16 %v1355
        %v1619 = vunpack.c.l.b16 %v1356
        %v1620 = vunpack.c.h.b16 %v1356
        %v1621 = vunpack.c.l.b16 %v1357
        %v1622 = vunpack.c.h.b16 %v1357
        %v1623 = vunpack.c.l.b16 %v1358
        %v1624 = vunpack.c.h.b16 %v1358
        %v1625 = vunpack.c.l.b16 %v1359
        %v1626 = vunpack.c.h.b16 %v1359
        %v1627 = vunpack.c.l.b16 %v1360
        %v1628 = vunpack.c.h.b16 %v1360
        %v1629 = vunpack.c.l.b16 %v1361
        %v1630 = vunpack.c.h.b16 %v1361
        %v1631 = vunpack.c.l.b16 %v1362
        %v1632 = vunpack.c.h.b16 %v1362
        %v1633 = vunpack.c.l.b16 %v1363
        %v1634 = vunpack.c.h.b16 %v1363
        %v1635 = vunpack.c.l.b16 %v1364
        %v1636 = vunpack.c.h.b16 %v1364
        %v1637 = vunpack.c.l.b16 %v1365
        %v1638 = vunpack.c.h.b16 %v1365
        %v1639 = vunpack.c.l.b16 %v1366
        %v1640 = vunpack.c.h.b16 %v1366
        %v1641 = vunpack.c.l.b16 %v1367
        %v1642 = vunpack.c.h.b16 %v1367
        %v1643 = vunpack.c.l.b16 %v1368
        %v1644 = vunpack.c.h.b16 %v1368
        %v1645 = vunpack.c.l.b16 %v1369
        %v1646 = vunpack.c.h.b16 %v1369
        %v1647 = vunpack.c.l.b16 %v1370
        %v1648 = vunpack.c.h.b16 %v1370
        %v1649 = vunpack.c.l.b16 %v1371
        %v1650 = vunpack.c.h.b16 %v1371
        %v1651 = vunpack.c.l.b16 %v1372
        %v1652 = vunpack.c.h.b16 %v1372
        %v1653 = vunpack.c.l.b16 %v1373
        %v1654 = vunpack.c.h.b16 %v1373
        %v1655 = vunpack.c.l.b16 %v1374
        %v1656 = vunpack.c.h.b16 %v1374
        %v1657 = vunpack.c.l.b16 %v1375
        %v1658 = vunpack.c.h.b16 %v1375
        %v1659 = vunpack.c.l.b16 %v1376
        %v1660 = vunpack.c.h.b16 %v1376
        %v1661 = vunpack.c.l.b16 %v1377
        %v1662 = vunpack.c.h.b16 %v1377
        %v1663 = vunpack.c.l.b16 %v1378
        %v1664 = vunpack.c.h.b16 %v1378
        %v1665 = vunpack.c.l.b16 %v1379
        %v1666 = vunpack.c.h.b16 %v1379
        %v1667 = vunpack.c.l.b16 %v1380
        %v1668 = vunpack.c.h.b16 %v1380
        %v1669 = vunpack.c.l.b16 %v1381
        %v1670 = vunpack.c.h.b16 %v1381
        %v1671 = vunpack.c.l.b16 %v1382
        %v1672 = vunpack.c.h.b16 %v1382
        %v1673 = vunpack.c.l.b16 %v1383
        %v1674 = vunpack.c.h.b16 %v1383
        %v1675 = vunpack.c.l.b16 %v1384
        %v1676 = vunpack.c.h.b16 %v1384
        %v1677 = vunpack.c.l.b16 %v1385
        %v1678 = vunpack.c.h.b16 %v1385
        %v1679 = vunpack.c.l.b16 %v1386
        %v1680 = vunpack.c.h.b16 %v1386
        %v1681 = vunpack.c.l.b16 %v1387
        %v1682 = vunpack.c.h.b16 %v1387
        %v1683 = vunpack.c.l.b16 %v1388
        %v1684 = vunpack.c.h.b16 %v1388
        %v1685 = vunpack.c.l.b16 %v1389
        %v1686 = vunpack.c.h.b16 %v1389
        %v1687 = vunpack.c.l.b16 %v1390
        %v1688 = vunpack.c.h.b16 %v1390
        %v1689 = vunpack.c.l.b16 %v1391
        %v1690 = vunpack.c.h.b16 %v1391
        %v1691 = vunpack.c.l.b16 %v1392
        %v1692 = vunpack.c.h.b16 %v1392
        %v1693 = vunpack.c.l.b16 %v1393
        %v1694 = vunpack.c.h.b16 %v1393
        %v1695 = vunpack.c.l.b16 %v1394
        %v1696 = vunpack.c.h.b16 %v1394
        %v1697 = vunpack.c.l.b16 %v1395
        %v1698 = vunpack.c.h.b16 %v1395
        %v1699 = vunpack.c.l.b16 %v1396
        %v1700 = vunpack.c.h.b16 %v1396
        %v1701 = vunpack.c.l.b16 %v1397
        %v1702 = vunpack.c.h.b16 %v1397
        %v1703 = vunpack.c.l.b16 %v1398
        %v1704 = vunpack.c.h.b16 %v1398
        %v1705 = vunpack.c.l.b16 %v1399
        %v1706 = vunpack.c.h.b16 %v1399
        %v1707 = vunpack.c.l.b16 %v1400
        %v1708 = vunpack.c.h.b16 %v1400
        %v1709 = vunpack.c.l.b16 %v1401
        %v1710 = vunpack.c.h.b16 %v1401
        %v1711 = vunpack.c.l.b16 %v1402
        %v1712 = vunpack.c.h.b16 %v1402
        %v1713 = vunpack.c.l.b16 %v1403
        %v1714 = vunpack.c.h.b16 %v1403
        %v1715 = vunpack.c.l.b16 %v1404
        %v1716 = vunpack.c.h.b16 %v1404
        %v1717 = vunpack.c.l.b16 %v1405
        %v1718 = vunpack.c.h.b16 %v1405
        %v1719 = vunpack.c.l.b16 %v1406
        %v1720 = vunpack.c.h.b16 %v1406
        %v1721 = vunpack.c.l.b16 %v1407
        %v1722 = vunpack.c.h.b16 %v1407
        %v1723 = vunpack.c.l.b16 %v1408
        %v1724 = vunpack.c.h.b16 %v1408
        %v1725 = vunpack.c.l.b16 %v1409
        %v1726 = vunpack.c.h.b16 %v1409
        %v1727 = vunpack.c.l.b16 %v1410
        %v1728 = vunpack.c.h.b16 %v1410
        %v1729 = vunpack.c.l.b16 %v1411
        %v1730 = vunpack.c.h.b16 %v1411
        %v1731 = vunpack.c.l.b16 %v1412
        %v1732 = vunpack.c.h.b16 %v1412
        %v1733 = vpack.c.b16 %v1547, %v1541
        %v1734 = vpack.c.b16 %v1548, %v1542
        %v1735 = vpack.c.b16 %v1549, %v1543
        %v1736 = vpack.c.b16 %v1550, %v1544
        %v1737 = vpack.c.b16 %v1551, %v1545
        %v1738 = vpack.c.b16 %v1552, %v1546
        %v1739 = vpack.c.b16 %v1559, %v1553
        %v1740 = vpack.c.b16 %v1560, %v1554
        %v1741 = vpack.c.b16 %v1561, %v1555
        %v1742 = vpack.c.b16 %v1562, %v1556
        %v1743 = vpack.c.b16 %v1563, %v1557
        %v1744 = vpack.c.b16 %v1564, %v1558
        %v1745 = vpack.c.b16 %v1571, %v1565
        %v1746 = vpack.c.b16 %v1572, %v1566
        %v1747 = vpack.c.b16 %v1573, %v1567
        %v1748 = vpack.c.b16 %v1574, %v1568
        %v1749 = vpack.c.b16 %v1575, %v1569
        %v1750 = vpack.c.b16 %v1576, %v1570
        %v1751 = vpack.c.b16 %v1583, %v1577
        %v1752 = vpack.c.b16 %v1584, %v1578
        %v1753 = vpack.c.b16 %v1585, %v1579
        %v1754 = vpack.c.b16 %v1586, %v1580
        %v1755 = vpack.c.b16 %v1587, %v1581
        %v1756 = vpack.c.b16 %v1588, %v1582
        %v1757 = vpack.c.b16 %v1595, %v1589
        %v1758 = vpack.c.b16 %v1596, %v1590
        %v1759 = vpack.c.b16 %v1597, %v1591
        %v1760 = vpack.c.b16 %v1598, %v1592
        %v1761 = vpack.c.b16 %v1599, %v1593
        %v1762 = vpack.c.b16 %v1600, %v1594
        %v1763 = vpack.c.b16 %v1607, %v1601
        %v1764 = vpack.c.b16 %v1608, %v1602
        %v1765 = vpack.c.b16 %v1609, %v1603
        %v1766 = vpack.c.b16 %v1610, %v1604
        %v1767 = vpack.c.b16 %v1611, %v1605
        %v1768 = vpack.c.b16 %v1612, %v1606
        %v1769 = vpack.c.b16 %v1619, %v1613
        %v1770 = vpack.c.b16 %v1620, %v1614
        %v1771 = vpack.c.b16 %v1621, %v1615
        %v1772 = vpack.c.b16 %v1622, %v1616
        %v1773 = vpack.c.b16 %v1623, %v1617
        %v1774 = vpack.c.b16 %v1624, %v1618
        %v1775 = vpack.c.b16 %v1631, %v1625
        %v1776 = vpack.c.b16 %v1632, %v1626
        %v1777 = vpack.c.b16 %v1633, %v1627
        %v1778 = vpack.c.b16 %v1634, %v1628
        %v1779 = vpack.c.b16 %v1635, %v1629
        %v1780 = vpack.c.b16 %v1636, %v1630
        %v1781 = vpack.c.b16 %v1643, %v1637
        %v1782 = vpack.c.b16 %v1644, %v1638
        %v1783 = vpack.c.b16 %v1645, %v1639
        %v1784 = vpack.c.b16 %v1646, %v1640
        %v1785 = vpack.c.b16 %v1647, %v1641
        %v1786 = vpack.c.b16 %v1648, %v1642
        %v1787 = vpack.c.b16 %v1655, %v1649
        %v1788 = vpack.c.b16 %v1656, %v1650
        %v1789 = vpack.c.b16 %v1657, %v1651
        %v1790 = vpack.c.b16 %v1658, %v1652
        %v1791 = vpack.c.b16 %v1659, %v1653
        %v1792 = vpack.c.b16 %v1660, %v1654
        %v1793 = vpack.c.b16 %v1667, %v1661
        %v1794 = vpack.c.b16 %v1668, %v1662
        %v1795 = vpack.c.b16 %v1669, %v1663
        %v1796 = vpack.c.b16 %v1670, %v1664
        %v1797 = vpack.c.b16 %v1671, %v1665
        %v1798 = vpack.c.b16 %v1672, %v1666
        %v1799 = vpack.c.b16 %v1679, %v1673
        %v1800 = vpack.c.b16 %v1680, %v1674
        %v1801 = vpack.c.b16 %v1681, %v1675
        %v1802 = vpack.c.b16 %v1682, %v1676
        %v1803 = vpack.c.b16 %v1683, %v1677
        %v1804 = vpack.c.b16 %v1684, %v1678
        %v1805 = vpack.c.b16 %v1691, %v1685
        %v1806 = vpack.c.b16 %v1692, %v1686
        %v1807 = vpack.c.b16 %v1693, %v1687
        %v1808 = vpack.c.b16 %v1694, %v1688
        %v1809 = vpack.c.b16 %v1695, %v1689
        %v1810 = vpack.c.b16 %v1696, %v1690
        %v1811 = vpack.c.b16 %v1703, %v1697
        %v1812 = vpack.c.b16 %v1704, %v1698
        %v1813 = vpack.c.b16 %v1705, %v1699
        %v1814 = vpack.c.b16 %v1706, %v1700
        %v1815 = vpack.c.b16 %v1707, %v1701
        %v1816 = vpack.c.b16 %v1708, %v1702
        %v1817 = vpack.c.b16 %v1715, %v1709
        %v1818 = vpack.c.b16 %v1716, %v1710
        %v1819 = vpack.c.b16 %v1717, %v1711
        %v1820 = vpack.c.b16 %v1718, %v1712
        %v1821 = vpack.c.b16 %v1719, %v1713
        %v1822 = vpack.c.b16 %v1720, %v1714
        %v1823 = vpack.c.b16 %v1727, %v1721
        %v1824 = vpack.c.b16 %v1728, %v1722
        %v1825 = vpack.c.b16 %v1729, %v1723
        %v1826 = vpack.c.b16 %v1730, %v1724
        %v1827 = vpack.c.b16 %v1731, %v1725
        %v1828 = vpack.c.b16 %v1732, %v1726
        %1925 = vmatprep.subr.bf16.mxu0 %v1776
        %1926 = vmatpush1.bf16.msra.mxu0 %v1775
        %1927 = vmatprep.subr.bf16.mxu0 %v1770
        %1928 = vmatpush1.bf16.msra.mxu0 %v1769
        %1929 = vmatprep.subr.bf16.mxu0 %v1764
        %1930 = vmatpush1.bf16.msra.mxu0 %v1763
        %1931 = vmatprep.subr.bf16.mxu0 %v1758
        %1932 = vmatpush1.bf16.msra.mxu0 %v1757
        %1933 = vmatprep.subr.bf16.mxu0 %v1752
        %1934 = vmatpush1.bf16.msra.mxu0 %v1751
        %1935 = vmatprep.subr.bf16.mxu0 %v1746
        %1936 = vmatpush1.bf16.msra.mxu0 %v1745
        %1937 = vmatprep.subr.bf16.mxu0 %v1740
        %1938 = vmatpush1.bf16.msra.mxu0 %v1739
        %1939 = vmatprep.subr.bf16.mxu0 %v1734
        %1940 = vmatpush1.bf16.msra.mxu0 %v1733
        %1941 = vmatprep.subr.bf16.mxu0 %v1824
        %1942 = vmatpush2.bf16.msra.mxu0 %v1823
        %1943 = vmatprep.subr.bf16.mxu0 %v1818
        %1944 = vmatpush2.bf16.msra.mxu0 %v1817
        %1945 = vmatprep.subr.bf16.mxu0 %v1812
        %1946 = vmatpush2.bf16.msra.mxu0 %v1811
        %1947 = vmatprep.subr.bf16.mxu0 %v1806
        %1948 = vmatpush2.bf16.msra.mxu0 %v1805
        %1949 = vmatprep.subr.bf16.mxu0 %v1800
        %1950 = vmatpush2.bf16.msra.mxu0 %v1799
        %1951 = vmatprep.subr.bf16.mxu0 %v1794
        %1952 = vmatpush2.bf16.msra.mxu0 %v1793
        %1953 = vmatprep.subr.bf16.mxu0 %v1788
        %1954 = vmatpush2.bf16.msra.mxu0 %v1787
        %1955 = vmatprep.subr.bf16.mxu0 %v1782
        %1956 = vmatpush2.bf16.msra.mxu0 %v1781
        %1957 = vmatprep.mubr.bf16.mxu0 %v1302
        %1958 = vmatmul.mubr.bf16.gmra.mxu0 %v1301
        %v1959 = vpop.f32.mrf.mxu0
        %v1960 = vadd.f32 %v1418, %v1959
        %v1961 = vpop.f32.mrf.mxu0
        %v1962 = vadd.f32 %v1422, %v1961
        %v1963 = vpop.f32.mrf.mxu0
        %v1964 = vadd.f32 %v1418, %v1963
        %v1965 = vpop.f32.mrf.mxu0
        %v1966 = vadd.f32 %v1422, %v1965
        %1967 = vmatprep.mubr.bf16.mxu0 %v1304
        %1968 = vmatmul.mubr.bf16.gmra.mxu0 %v1303
        %v1969 = vpop.f32.mrf.mxu0
        %v1970 = vadd.f32 %v1418, %v1969
        %v1971 = vpop.f32.mrf.mxu0
        %v1972 = vadd.f32 %v1422, %v1971
        %v1973 = vpop.f32.mrf.mxu0
        %v1974 = vadd.f32 %v1418, %v1973
        %v1975 = vpop.f32.mrf.mxu0
        %v1976 = vadd.f32 %v1422, %v1975
        %1977 = vmatprep.mubr.bf16.mxu0 %v1306
        %1978 = vmatmul.mubr.bf16.gmra.mxu0 %v1305
        %v1979 = vpop.f32.mrf.mxu0
        %v1980 = vadd.f32 %v1418, %v1979
        %v1981 = vpop.f32.mrf.mxu0
        %v1982 = vadd.f32 %v1422, %v1981
        %v1983 = vpop.f32.mrf.mxu0
        %v1984 = vadd.f32 %v1418, %v1983
        %v1985 = vpop.f32.mrf.mxu0
        %v1986 = vadd.f32 %v1422, %v1985
        %1987 = vmatprep.mubr.bf16.mxu0 %v1308
        %1988 = vmatmul.mubr.bf16.gmra.mxu0 %v1307
        %v1989 = vpop.f32.mrf.mxu0
        %v1990 = vadd.f32 %v1418, %v1989
        %v1991 = vpop.f32.mrf.mxu0
        %v1992 = vadd.f32 %v1422, %v1991
        %v1993 = vpop.f32.mrf.mxu0
        %v1994 = vadd.f32 %v1418, %v1993
        %v1995 = vpop.f32.mrf.mxu0
        %v1996 = vadd.f32 %v1422, %v1995
        %1997 = vmatprep.mubr.bf16.mxu0 %v1310
        %1998 = vmatmul.mubr.bf16.gmra.mxu0 %v1309
        %v1999 = vpop.f32.mrf.mxu0
        %v2000 = vadd.f32 %v1418, %v1999
        %v2001 = vpop.f32.mrf.mxu0
        %v2002 = vadd.f32 %v1422, %v2001
        %v2003 = vpop.f32.mrf.mxu0
        %v2004 = vadd.f32 %v1418, %v2003
        %v2005 = vpop.f32.mrf.mxu0
        %v2006 = vadd.f32 %v1422, %v2005
        %2007 = vmatprep.mubr.bf16.mxu0 %v1312
        %2008 = vmatmul.mubr.bf16.gmra.mxu0 %v1311
        %v2009 = vpop.f32.mrf.mxu0
        %v2010 = vadd.f32 %v1418, %v2009
        %v2011 = vpop.f32.mrf.mxu0
        %v2012 = vadd.f32 %v1422, %v2011
        %v2013 = vpop.f32.mrf.mxu0
        %v2014 = vadd.f32 %v1418, %v2013
        %v2015 = vpop.f32.mrf.mxu0
        %v2016 = vadd.f32 %v1422, %v2015
        %2017 = vmatprep.mubr.bf16.mxu0 %v1314
        %2018 = vmatmul.mubr.bf16.gmra.mxu0 %v1313
        %v2019 = vpop.f32.mrf.mxu0
        %v2020 = vadd.f32 %v1418, %v2019
        %v2021 = vpop.f32.mrf.mxu0
        %v2022 = vadd.f32 %v1422, %v2021
        %v2023 = vpop.f32.mrf.mxu0
        %v2024 = vadd.f32 %v1418, %v2023
        %v2025 = vpop.f32.mrf.mxu0
        %v2026 = vadd.f32 %v1422, %v2025
        %2027 = vmatprep.mubr.bf16.mxu0 %v1316
        %2028 = vmatmul.mubr.bf16.gmra.mxu0 %v1315
        %v2029 = vpop.f32.mrf.mxu0
        %v2030 = vadd.f32 %v1418, %v2029
        %v2031 = vpop.f32.mrf.mxu0
        %v2032 = vadd.f32 %v1422, %v2031
        %v2033 = vpop.f32.mrf.mxu0
        %v2034 = vadd.f32 %v1418, %v2033
        %v2035 = vpop.f32.mrf.mxu0
        %v2036 = vadd.f32 %v1422, %v2035
        %2037 = vdwg.mxu0
        %2038 = vmatprep.subr.bf16.mxu0 %v1778
        %2039 = vmatpush1.bf16.msra.mxu0 %v1777
        %2040 = vmatprep.subr.bf16.mxu0 %v1772
        %2041 = vmatpush1.bf16.msra.mxu0 %v1771
        %2042 = vmatprep.subr.bf16.mxu0 %v1766
        %2043 = vmatpush1.bf16.msra.mxu0 %v1765
        %2044 = vmatprep.subr.bf16.mxu0 %v1760
        %2045 = vmatpush1.bf16.msra.mxu0 %v1759
        %2046 = vmatprep.subr.bf16.mxu0 %v1754
        %2047 = vmatpush1.bf16.msra.mxu0 %v1753
        %2048 = vmatprep.subr.bf16.mxu0 %v1748
        %2049 = vmatpush1.bf16.msra.mxu0 %v1747
        %2050 = vmatprep.subr.bf16.mxu0 %v1742
        %2051 = vmatpush1.bf16.msra.mxu0 %v1741
        %2052 = vmatprep.subr.bf16.mxu0 %v1736
        %2053 = vmatpush1.bf16.msra.mxu0 %v1735
        %2054 = vmatprep.subr.bf16.mxu0 %v1826
        %2055 = vmatpush2.bf16.msra.mxu0 %v1825
        %2056 = vmatprep.subr.bf16.mxu0 %v1820
        %2057 = vmatpush2.bf16.msra.mxu0 %v1819
        %2058 = vmatprep.subr.bf16.mxu0 %v1814
        %2059 = vmatpush2.bf16.msra.mxu0 %v1813
        %2060 = vmatprep.subr.bf16.mxu0 %v1808
        %2061 = vmatpush2.bf16.msra.mxu0 %v1807
        %2062 = vmatprep.subr.bf16.mxu0 %v1802
        %2063 = vmatpush2.bf16.msra.mxu0 %v1801
        %2064 = vmatprep.subr.bf16.mxu0 %v1796
        %2065 = vmatpush2.bf16.msra.mxu0 %v1795
        %2066 = vmatprep.subr.bf16.mxu0 %v1790
        %2067 = vmatpush2.bf16.msra.mxu0 %v1789
        %2068 = vmatprep.subr.bf16.mxu0 %v1784
        %2069 = vmatpush2.bf16.msra.mxu0 %v1783
        %2070 = vmatprep.mubr.bf16.mxu0 %v1302
        %2071 = vmatmul.mubr.bf16.gmra.mxu0 %v1301
        %v2072 = vpop.f32.mrf.mxu0
        %v2073 = vadd.f32 %v1426, %v2072
        %v2074 = vpop.f32.mrf.mxu0
        %v2075 = vadd.f32 %v1430, %v2074
        %v2076 = vpop.f32.mrf.mxu0
        %v2077 = vadd.f32 %v1426, %v2076
        %v2078 = vpop.f32.mrf.mxu0
        %v2079 = vadd.f32 %v1430, %v2078
        %2080 = vmatprep.mubr.bf16.mxu0 %v1304
        %2081 = vmatmul.mubr.bf16.gmra.mxu0 %v1303
        %v2082 = vpop.f32.mrf.mxu0
        %v2083 = vadd.f32 %v1426, %v2082
        %v2084 = vpop.f32.mrf.mxu0
        %v2085 = vadd.f32 %v1430, %v2084
        %v2086 = vpop.f32.mrf.mxu0
        %v2087 = vadd.f32 %v1426, %v2086
        %v2088 = vpop.f32.mrf.mxu0
        %v2089 = vadd.f32 %v1430, %v2088
        %2090 = vmatprep.mubr.bf16.mxu0 %v1306
        %2091 = vmatmul.mubr.bf16.gmra.mxu0 %v1305
        %v2092 = vpop.f32.mrf.mxu0
        %v2093 = vadd.f32 %v1426, %v2092
        %v2094 = vpop.f32.mrf.mxu0
        %v2095 = vadd.f32 %v1430, %v2094
        %v2096 = vpop.f32.mrf.mxu0
        %v2097 = vadd.f32 %v1426, %v2096
        %v2098 = vpop.f32.mrf.mxu0
        %v2099 = vadd.f32 %v1430, %v2098
        %2100 = vmatprep.mubr.bf16.mxu0 %v1308
        %2101 = vmatmul.mubr.bf16.gmra.mxu0 %v1307
        %v2102 = vpop.f32.mrf.mxu0
        %v2103 = vadd.f32 %v1426, %v2102
        %v2104 = vpop.f32.mrf.mxu0
        %v2105 = vadd.f32 %v1430, %v2104
        %v2106 = vpop.f32.mrf.mxu0
        %v2107 = vadd.f32 %v1426, %v2106
        %v2108 = vpop.f32.mrf.mxu0
        %v2109 = vadd.f32 %v1430, %v2108
        %2110 = vmatprep.mubr.bf16.mxu0 %v1310
        %2111 = vmatmul.mubr.bf16.gmra.mxu0 %v1309
        %v2112 = vpop.f32.mrf.mxu0
        %v2113 = vadd.f32 %v1426, %v2112
        %v2114 = vpop.f32.mrf.mxu0
        %v2115 = vadd.f32 %v1430, %v2114
        %v2116 = vpop.f32.mrf.mxu0
        %v2117 = vadd.f32 %v1426, %v2116
        %v2118 = vpop.f32.mrf.mxu0
        %v2119 = vadd.f32 %v1430, %v2118
        %2120 = vmatprep.mubr.bf16.mxu0 %v1312
        %2121 = vmatmul.mubr.bf16.gmra.mxu0 %v1311
        %v2122 = vpop.f32.mrf.mxu0
        %v2123 = vadd.f32 %v1426, %v2122
        %v2124 = vpop.f32.mrf.mxu0
        %v2125 = vadd.f32 %v1430, %v2124
        %v2126 = vpop.f32.mrf.mxu0
        %v2127 = vadd.f32 %v1426, %v2126
        %v2128 = vpop.f32.mrf.mxu0
        %v2129 = vadd.f32 %v1430, %v2128
        %2130 = vmatprep.mubr.bf16.mxu0 %v1314
        %2131 = vmatmul.mubr.bf16.gmra.mxu0 %v1313
        %v2132 = vpop.f32.mrf.mxu0
        %v2133 = vadd.f32 %v1426, %v2132
        %v2134 = vpop.f32.mrf.mxu0
        %v2135 = vadd.f32 %v1430, %v2134
        %v2136 = vpop.f32.mrf.mxu0
        %v2137 = vadd.f32 %v1426, %v2136
        %v2138 = vpop.f32.mrf.mxu0
        %v2139 = vadd.f32 %v1430, %v2138
        %2140 = vmatprep.mubr.bf16.mxu0 %v1316
        %2141 = vmatmul.mubr.bf16.gmra.mxu0 %v1315
        %v2142 = vpop.f32.mrf.mxu0
        %v2143 = vadd.f32 %v1426, %v2142
        %v2144 = vpop.f32.mrf.mxu0
        %v2145 = vadd.f32 %v1430, %v2144
        %v2146 = vpop.f32.mrf.mxu0
        %v2147 = vadd.f32 %v1426, %v2146
        %v2148 = vpop.f32.mrf.mxu0
        %v2149 = vadd.f32 %v1430, %v2148
        %2150 = vdwg.mxu0
        %2151 = vmatprep.subr.bf16.mxu0 %v1780
        %2152 = vmatpush1.bf16.msra.mxu0 %v1779
        %2153 = vmatprep.subr.bf16.mxu0 %v1774
        %2154 = vmatpush1.bf16.msra.mxu0 %v1773
        %2155 = vmatprep.subr.bf16.mxu0 %v1768
        %2156 = vmatpush1.bf16.msra.mxu0 %v1767
        %2157 = vmatprep.subr.bf16.mxu0 %v1762
        %2158 = vmatpush1.bf16.msra.mxu0 %v1761
        %2159 = vmatprep.subr.bf16.mxu0 %v1756
        %2160 = vmatpush1.bf16.msra.mxu0 %v1755
        %2161 = vmatprep.subr.bf16.mxu0 %v1750
        %2162 = vmatpush1.bf16.msra.mxu0 %v1749
        %2163 = vmatprep.subr.bf16.mxu0 %v1744
        %2164 = vmatpush1.bf16.msra.mxu0 %v1743
        %2165 = vmatprep.subr.bf16.mxu0 %v1738
        %2166 = vmatpush1.bf16.msra.mxu0 %v1737
        %2167 = vmatprep.subr.bf16.mxu0 %v1828
        %2168 = vmatpush2.bf16.msra.mxu0 %v1827
        %2169 = vmatprep.subr.bf16.mxu0 %v1822
        %2170 = vmatpush2.bf16.msra.mxu0 %v1821
        %2171 = vmatprep.subr.bf16.mxu0 %v1816
        %2172 = vmatpush2.bf16.msra.mxu0 %v1815
        %2173 = vmatprep.subr.bf16.mxu0 %v1810
        %2174 = vmatpush2.bf16.msra.mxu0 %v1809
        %2175 = vmatprep.subr.bf16.mxu0 %v1804
        %2176 = vmatpush2.bf16.msra.mxu0 %v1803
        %2177 = vmatprep.subr.bf16.mxu0 %v1798
        %2178 = vmatpush2.bf16.msra.mxu0 %v1797
        %2179 = vmatprep.subr.bf16.mxu0 %v1792
        %2180 = vmatpush2.bf16.msra.mxu0 %v1791
        %2181 = vmatprep.subr.bf16.mxu0 %v1786
        %2182 = vmatpush2.bf16.msra.mxu0 %v1785
        %2183 = vmatprep.mubr.bf16.mxu0 %v1302
        %2184 = vmatmul.mubr.bf16.gmra.mxu0 %v1301
        %v2185 = vpop.f32.mrf.mxu0
        %v2186 = vadd.f32 %v1434, %v2185
        %v2187 = vpop.f32.mrf.mxu0
        %v2188 = vadd.f32 %v1438, %v2187
        %v2189 = vpop.f32.mrf.mxu0
        %v2190 = vadd.f32 %v1434, %v2189
        %v2191 = vpop.f32.mrf.mxu0
        %v2192 = vadd.f32 %v1438, %v2191
        %2193 = vmatprep.mubr.bf16.mxu0 %v1304
        %2194 = vmatmul.mubr.bf16.gmra.mxu0 %v1303
        %v2195 = vpop.f32.mrf.mxu0
        %v2196 = vadd.f32 %v1434, %v2195
        %v2197 = vpop.f32.mrf.mxu0
        %v2198 = vadd.f32 %v1438, %v2197
        %v2199 = vpop.f32.mrf.mxu0
        %v2200 = vadd.f32 %v1434, %v2199
        %v2201 = vpop.f32.mrf.mxu0
        %v2202 = vadd.f32 %v1438, %v2201
        %2203 = vmatprep.mubr.bf16.mxu0 %v1306
        %2204 = vmatmul.mubr.bf16.gmra.mxu0 %v1305
        %v2205 = vpop.f32.mrf.mxu0
        %v2206 = vadd.f32 %v1434, %v2205
        %v2207 = vpop.f32.mrf.mxu0
        %v2208 = vadd.f32 %v1438, %v2207
        %v2209 = vpop.f32.mrf.mxu0
        %v2210 = vadd.f32 %v1434, %v2209
        %v2211 = vpop.f32.mrf.mxu0
        %v2212 = vadd.f32 %v1438, %v2211
        %2213 = vmatprep.mubr.bf16.mxu0 %v1308
        %2214 = vmatmul.mubr.bf16.gmra.mxu0 %v1307
        %v2215 = vpop.f32.mrf.mxu0
        %v2216 = vadd.f32 %v1434, %v2215
        %v2217 = vpop.f32.mrf.mxu0
        %v2218 = vadd.f32 %v1438, %v2217
        %v2219 = vpop.f32.mrf.mxu0
        %v2220 = vadd.f32 %v1434, %v2219
        %v2221 = vpop.f32.mrf.mxu0
        %v2222 = vadd.f32 %v1438, %v2221
        %2223 = vmatprep.mubr.bf16.mxu0 %v1310
        %2224 = vmatmul.mubr.bf16.gmra.mxu0 %v1309
        %v2225 = vpop.f32.mrf.mxu0
        %v2226 = vadd.f32 %v1434, %v2225
        %v2227 = vpop.f32.mrf.mxu0
        %v2228 = vadd.f32 %v1438, %v2227
        %v2229 = vpop.f32.mrf.mxu0
        %v2230 = vadd.f32 %v1434, %v2229
        %v2231 = vpop.f32.mrf.mxu0
        %v2232 = vadd.f32 %v1438, %v2231
        %2233 = vmatprep.mubr.bf16.mxu0 %v1312
        %2234 = vmatmul.mubr.bf16.gmra.mxu0 %v1311
        %v2235 = vpop.f32.mrf.mxu0
        %v2236 = vadd.f32 %v1434, %v2235
        %v2237 = vpop.f32.mrf.mxu0
        %v2238 = vadd.f32 %v1438, %v2237
        %v2239 = vpop.f32.mrf.mxu0
        %v2240 = vadd.f32 %v1434, %v2239
        %v2241 = vpop.f32.mrf.mxu0
        %v2242 = vadd.f32 %v1438, %v2241
        %2243 = vmatprep.mubr.bf16.mxu0 %v1314
        %2244 = vmatmul.mubr.bf16.gmra.mxu0 %v1313
        %v2245 = vpop.f32.mrf.mxu0
        %v2246 = vadd.f32 %v1434, %v2245
        %v2247 = vpop.f32.mrf.mxu0
        %v2248 = vadd.f32 %v1438, %v2247
        %v2249 = vpop.f32.mrf.mxu0
        %v2250 = vadd.f32 %v1434, %v2249
        %v2251 = vpop.f32.mrf.mxu0
        %v2252 = vadd.f32 %v1438, %v2251
        %2253 = vmatprep.mubr.bf16.mxu0 %v1316
        %2254 = vmatmul.mubr.bf16.gmra.mxu0 %v1315
        %v2255 = vpop.f32.mrf.mxu0
        %v2256 = vadd.f32 %v1434, %v2255
        %v2257 = vpop.f32.mrf.mxu0
        %v2258 = vadd.f32 %v1438, %v2257
        %v2259 = vpop.f32.mrf.mxu0
        %v2260 = vadd.f32 %v1434, %v2259
        %v2261 = vpop.f32.mrf.mxu0
        %v2262 = vadd.f32 %v1438, %v2261
        %2263 = vdwg.mxu0
        %v2264 = vld [vmem:[%s798] sm:$0x3]
        %v2265 = vmul.f32 %v1960, %v1960
        %v2266 = vmul.f32 %v1962, %v1962
        %v2267 = vmul.f32 %v1964, %v1964
        %v2268 = vmul.f32 %v1966, %v1966
        %v2269 = vmul.f32 %v1970, %v1970
        %v2270 = vmul.f32 %v1972, %v1972
        %v2271 = vmul.f32 %v1974, %v1974
        %v2272 = vmul.f32 %v1976, %v1976
        %v2273 = vmul.f32 %v1980, %v1980
        %v2274 = vmul.f32 %v1982, %v1982
        %v2275 = vmul.f32 %v1984, %v1984
        %v2276 = vmul.f32 %v1986, %v1986
        %v2277 = vmul.f32 %v1990, %v1990
        %v2278 = vmul.f32 %v1992, %v1992
        %v2279 = vmul.f32 %v1994, %v1994
        %v2280 = vmul.f32 %v1996, %v1996
        %v2281 = vmul.f32 %v2000, %v2000
        %v2282 = vmul.f32 %v2002, %v2002
        %v2283 = vmul.f32 %v2004, %v2004
        %v2284 = vmul.f32 %v2006, %v2006
        %v2285 = vmul.f32 %v2010, %v2010
        %v2286 = vmul.f32 %v2012, %v2012
        %v2287 = vmul.f32 %v2014, %v2014
        %v2288 = vmul.f32 %v2016, %v2016
        %v2289 = vmul.f32 %v2020, %v2020
        %v2290 = vmul.f32 %v2022, %v2022
        %v2291 = vmul.f32 %v2024, %v2024
        %v2292 = vmul.f32 %v2026, %v2026
        %v2293 = vmul.f32 %v2030, %v2030
        %v2294 = vmul.f32 %v2032, %v2032
        %v2295 = vmul.f32 %v2034, %v2034
        %v2296 = vmul.f32 %v2036, %v2036
        %v2297 = vadd.f32 %v2265, %v2266
        %2298 = vadd.xlane.f32.xlu0 %v2297
        %v2299 = vpop.xlane.xlu0 %2298
        %v2300 = vadd.f32 %v2267, %v2268
        %2301 = vadd.xlane.f32.xlu0 %v2300
        %v2302 = vpop.xlane.xlu0 %2301
        %v2303 = vadd.f32 %v2269, %v2270
        %2304 = vadd.xlane.f32.xlu0 %v2303
        %v2305 = vpop.xlane.xlu0 %2304
        %v2306 = vadd.f32 %v2271, %v2272
        %2307 = vadd.xlane.f32.xlu0 %v2306
        %v2308 = vpop.xlane.xlu0 %2307
        %v2309 = vadd.f32 %v2273, %v2274
        %2310 = vadd.xlane.f32.xlu0 %v2309
        %v2311 = vpop.xlane.xlu0 %2310
        %v2312 = vadd.f32 %v2275, %v2276
        %2313 = vadd.xlane.f32.xlu0 %v2312
        %v2314 = vpop.xlane.xlu0 %2313
        %v2315 = vadd.f32 %v2277, %v2278
        %2316 = vadd.xlane.f32.xlu0 %v2315
        %v2317 = vpop.xlane.xlu0 %2316
        %v2318 = vadd.f32 %v2279, %v2280
        %2319 = vadd.xlane.f32.xlu0 %v2318
        %v2320 = vpop.xlane.xlu0 %2319
        %v2321 = vadd.f32 %v2281, %v2282
        %2322 = vadd.xlane.f32.xlu0 %v2321
        %v2323 = vpop.xlane.xlu0 %2322
        %v2324 = vadd.f32 %v2283, %v2284
        %2325 = vadd.xlane.f32.xlu0 %v2324
        %v2326 = vpop.xlane.xlu0 %2325
        %v2327 = vadd.f32 %v2285, %v2286
        %2328 = vadd.xlane.f32.xlu0 %v2327
        %v2329 = vpop.xlane.xlu0 %2328
        %v2330 = vadd.f32 %v2287, %v2288
        %2331 = vadd.xlane.f32.xlu0 %v2330
        %v2332 = vpop.xlane.xlu0 %2331
        %v2333 = vadd.f32 %v2289, %v2290
        %2334 = vadd.xlane.f32.xlu0 %v2333
        %v2335 = vpop.xlane.xlu0 %2334
        %v2336 = vadd.f32 %v2291, %v2292
        %2337 = vadd.xlane.f32.xlu0 %v2336
        %v2338 = vpop.xlane.xlu0 %2337
        %v2339 = vadd.f32 %v2293, %v2294
        %2340 = vadd.xlane.f32.xlu0 %v2339
        %v2341 = vpop.xlane.xlu0 %2340
        %v2342 = vadd.f32 %v2295, %v2296
        %2343 = vadd.xlane.f32.xlu0 %v2342
        %v2344 = vpop.xlane.xlu0 %2343
        %v2345 = vmul.f32 %v2299, %v1177
        %v2346 = vmul.f32 %v2302, %v1177
        %v2347 = vmul.f32 %v2305, %v1177
        %v2348 = vmul.f32 %v2308, %v1177
        %v2349 = vmul.f32 %v2311, %v1177
        %v2350 = vmul.f32 %v2314, %v1177
        %v2351 = vmul.f32 %v2317, %v1177
        %v2352 = vmul.f32 %v2320, %v1177
        %v2353 = vmul.f32 %v2323, %v1177
        %v2354 = vmul.f32 %v2326, %v1177
        %v2355 = vmul.f32 %v2329, %v1177
        %v2356 = vmul.f32 %v2332, %v1177
        %v2357 = vmul.f32 %v2335, %v1177
        %v2358 = vmul.f32 %v2338, %v1177
        %v2359 = vmul.f32 %v2341, %v1177
        %v2360 = vmul.f32 %v2344, %v1177
        %v2361 = vadd.f32 %v2345, 1e-06
        %v2362 = vadd.f32 %v2346, 1e-06
        %v2363 = vadd.f32 %v2347, 1e-06
        %v2364 = vadd.f32 %v2348, 1e-06
        %v2365 = vadd.f32 %v2349, 1e-06
        %v2366 = vadd.f32 %v2350, 1e-06
        %v2367 = vadd.f32 %v2351, 1e-06
        %v2368 = vadd.f32 %v2352, 1e-06
        %v2369 = vadd.f32 %v2353, 1e-06
        %v2370 = vadd.f32 %v2354, 1e-06
        %v2371 = vadd.f32 %v2355, 1e-06
        %v2372 = vadd.f32 %v2356, 1e-06
        %v2373 = vadd.f32 %v2357, 1e-06
        %v2374 = vadd.f32 %v2358, 1e-06
        %v2375 = vadd.f32 %v2359, 1e-06
        %v2376 = vadd.f32 %v2360, 1e-06
        %v2377 = vrsqrt.pop %v2361
        %v2378 = vrsqrt.pop %v2362
        %v2379 = vrsqrt.pop %v2363
        %v2380 = vrsqrt.pop %v2364
        %v2381 = vrsqrt.pop %v2365
        %v2382 = vrsqrt.pop %v2366
        %v2383 = vrsqrt.pop %v2367
        %v2384 = vrsqrt.pop %v2368
        %v2385 = vrsqrt.pop %v2369
        %v2386 = vrsqrt.pop %v2370
        %v2387 = vrsqrt.pop %v2371
        %v2388 = vrsqrt.pop %v2372
        %v2389 = vrsqrt.pop %v2373
        %v2390 = vrsqrt.pop %v2374
        %v2391 = vrsqrt.pop %v2375
        %v2392 = vrsqrt.pop %v2376
        %v2393 = vmul.f32 %v1960, %v2377
        %v2394 = vmul.f32 %v1962, %v2377
        %v2395 = vmul.f32 %v1964, %v2378
        %v2396 = vmul.f32 %v1966, %v2378
        %v2397 = vmul.f32 %v1970, %v2379
        %v2398 = vmul.f32 %v1972, %v2379
        %v2399 = vmul.f32 %v1974, %v2380
        %v2400 = vmul.f32 %v1976, %v2380
        %v2401 = vmul.f32 %v1980, %v2381
        %v2402 = vmul.f32 %v1982, %v2381
        %v2403 = vmul.f32 %v1984, %v2382
        %v2404 = vmul.f32 %v1986, %v2382
        %v2405 = vmul.f32 %v1990, %v2383
        %v2406 = vmul.f32 %v1992, %v2383
        %v2407 = vmul.f32 %v1994, %v2384
        %v2408 = vmul.f32 %v1996, %v2384
        %v2409 = vmul.f32 %v2000, %v2385
        %v2410 = vmul.f32 %v2002, %v2385
        %v2411 = vmul.f32 %v2004, %v2386
        %v2412 = vmul.f32 %v2006, %v2386
        %v2413 = vmul.f32 %v2010, %v2387
        %v2414 = vmul.f32 %v2012, %v2387
        %v2415 = vmul.f32 %v2014, %v2388
        %v2416 = vmul.f32 %v2016, %v2388
        %v2417 = vmul.f32 %v2020, %v2389
        %v2418 = vmul.f32 %v2022, %v2389
        %v2419 = vmul.f32 %v2024, %v2390
        %v2420 = vmul.f32 %v2026, %v2390
        %v2421 = vmul.f32 %v2030, %v2391
        %v2422 = vmul.f32 %v2032, %v2391
        %v2423 = vmul.f32 %v2034, %v2392
        %v2424 = vmul.f32 %v2036, %v2392
        %v2426 = vlaneseq
        %v2427 = vshrl.u32 %v2426, 7
        %v2428 = vsub.s32 0, %v2427
        %v2429 = vrot.slane %v2264, %v2428
        %v2430 = vlaneseq
        %v2431 = vshrl.u32 %v2430, 7
        %v2432 = vsub.s32 1, %v2431
        %v2433 = vrot.slane %v2264, %v2432
        %v2436 = vmul.f32 %v2393, %v2429
        %v2437 = vmul.f32 %v2394, %v2433
        %v2438 = vmul.f32 %v2395, %v2429
        %v2439 = vmul.f32 %v2396, %v2433
        %v2440 = vmul.f32 %v2397, %v2429
        %v2441 = vmul.f32 %v2398, %v2433
        %v2442 = vmul.f32 %v2399, %v2429
        %v2443 = vmul.f32 %v2400, %v2433
        %v2444 = vmul.f32 %v2401, %v2429
        %v2445 = vmul.f32 %v2402, %v2433
        %v2446 = vmul.f32 %v2403, %v2429
        %v2447 = vmul.f32 %v2404, %v2433
        %v2448 = vmul.f32 %v2405, %v2429
        %v2449 = vmul.f32 %v2406, %v2433
        %v2450 = vmul.f32 %v2407, %v2429
        %v2451 = vmul.f32 %v2408, %v2433
        %v2452 = vmul.f32 %v2409, %v2429
        %v2453 = vmul.f32 %v2410, %v2433
        %v2454 = vmul.f32 %v2411, %v2429
        %v2455 = vmul.f32 %v2412, %v2433
        %v2456 = vmul.f32 %v2413, %v2429
        %v2457 = vmul.f32 %v2414, %v2433
        %v2458 = vmul.f32 %v2415, %v2429
        %v2459 = vmul.f32 %v2416, %v2433
        %v2460 = vmul.f32 %v2417, %v2429
        %v2461 = vmul.f32 %v2418, %v2433
        %v2462 = vmul.f32 %v2419, %v2429
        %v2463 = vmul.f32 %v2420, %v2433
        %v2464 = vmul.f32 %v2421, %v2429
        %v2465 = vmul.f32 %v2422, %v2433
        %v2466 = vmul.f32 %v2423, %v2429
        %v2467 = vmul.f32 %v2424, %v2433
        %v2468 = vld [vmem:[%s807] sm:$0x3]
        %v2469 = vmul.f32 %v2073, %v2073
        %v2470 = vmul.f32 %v2075, %v2075
        %v2471 = vmul.f32 %v2077, %v2077
        %v2472 = vmul.f32 %v2079, %v2079
        %v2473 = vmul.f32 %v2083, %v2083
        %v2474 = vmul.f32 %v2085, %v2085
        %v2475 = vmul.f32 %v2087, %v2087
        %v2476 = vmul.f32 %v2089, %v2089
        %v2477 = vmul.f32 %v2093, %v2093
        %v2478 = vmul.f32 %v2095, %v2095
        %v2479 = vmul.f32 %v2097, %v2097
        %v2480 = vmul.f32 %v2099, %v2099
        %v2481 = vmul.f32 %v2103, %v2103
        %v2482 = vmul.f32 %v2105, %v2105
        %v2483 = vmul.f32 %v2107, %v2107
        %v2484 = vmul.f32 %v2109, %v2109
        %v2485 = vmul.f32 %v2113, %v2113
        %v2486 = vmul.f32 %v2115, %v2115
        %v2487 = vmul.f32 %v2117, %v2117
        %v2488 = vmul.f32 %v2119, %v2119
        %v2489 = vmul.f32 %v2123, %v2123
        %v2490 = vmul.f32 %v2125, %v2125
        %v2491 = vmul.f32 %v2127, %v2127
        %v2492 = vmul.f32 %v2129, %v2129
        %v2493 = vmul.f32 %v2133, %v2133
        %v2494 = vmul.f32 %v2135, %v2135
        %v2495 = vmul.f32 %v2137, %v2137
        %v2496 = vmul.f32 %v2139, %v2139
        %v2497 = vmul.f32 %v2143, %v2143
        %v2498 = vmul.f32 %v2145, %v2145
        %v2499 = vmul.f32 %v2147, %v2147
        %v2500 = vmul.f32 %v2149, %v2149
        %v2501 = vadd.f32 %v2469, %v2470
        %2502 = vadd.xlane.f32.xlu0 %v2501
        %v2503 = vpop.xlane.xlu0 %2502
        %v2504 = vadd.f32 %v2471, %v2472
        %2505 = vadd.xlane.f32.xlu0 %v2504
        %v2506 = vpop.xlane.xlu0 %2505
        %v2507 = vadd.f32 %v2473, %v2474
        %2508 = vadd.xlane.f32.xlu0 %v2507
        %v2509 = vpop.xlane.xlu0 %2508
        %v2510 = vadd.f32 %v2475, %v2476
        %2511 = vadd.xlane.f32.xlu0 %v2510
        %v2512 = vpop.xlane.xlu0 %2511
        %v2513 = vadd.f32 %v2477, %v2478
        %2514 = vadd.xlane.f32.xlu0 %v2513
        %v2515 = vpop.xlane.xlu0 %2514
        %v2516 = vadd.f32 %v2479, %v2480
        %2517 = vadd.xlane.f32.xlu0 %v2516
        %v2518 = vpop.xlane.xlu0 %2517
        %v2519 = vadd.f32 %v2481, %v2482
        %2520 = vadd.xlane.f32.xlu0 %v2519
        %v2521 = vpop.xlane.xlu0 %2520
        %v2522 = vadd.f32 %v2483, %v2484
        %2523 = vadd.xlane.f32.xlu0 %v2522
        %v2524 = vpop.xlane.xlu0 %2523
        %v2525 = vadd.f32 %v2485, %v2486
        %2526 = vadd.xlane.f32.xlu0 %v2525
        %v2527 = vpop.xlane.xlu0 %2526
        %v2528 = vadd.f32 %v2487, %v2488
        %2529 = vadd.xlane.f32.xlu0 %v2528
        %v2530 = vpop.xlane.xlu0 %2529
        %v2531 = vadd.f32 %v2489, %v2490
        %2532 = vadd.xlane.f32.xlu0 %v2531
        %v2533 = vpop.xlane.xlu0 %2532
        %v2534 = vadd.f32 %v2491, %v2492
        %2535 = vadd.xlane.f32.xlu0 %v2534
        %v2536 = vpop.xlane.xlu0 %2535
        %v2537 = vadd.f32 %v2493, %v2494
        %2538 = vadd.xlane.f32.xlu0 %v2537
        %v2539 = vpop.xlane.xlu0 %2538
        %v2540 = vadd.f32 %v2495, %v2496
        %2541 = vadd.xlane.f32.xlu0 %v2540
        %v2542 = vpop.xlane.xlu0 %2541
        %v2543 = vadd.f32 %v2497, %v2498
        %2544 = vadd.xlane.f32.xlu0 %v2543
        %v2545 = vpop.xlane.xlu0 %2544
        %v2546 = vadd.f32 %v2499, %v2500
        %2547 = vadd.xlane.f32.xlu0 %v2546
        %v2548 = vpop.xlane.xlu0 %2547
        %v2549 = vmul.f32 %v2503, %v1177
        %v2550 = vmul.f32 %v2506, %v1177
        %v2551 = vmul.f32 %v2509, %v1177
        %v2552 = vmul.f32 %v2512, %v1177
        %v2553 = vmul.f32 %v2515, %v1177
        %v2554 = vmul.f32 %v2518, %v1177
        %v2555 = vmul.f32 %v2521, %v1177
        %v2556 = vmul.f32 %v2524, %v1177
        %v2557 = vmul.f32 %v2527, %v1177
        %v2558 = vmul.f32 %v2530, %v1177
        %v2559 = vmul.f32 %v2533, %v1177
        %v2560 = vmul.f32 %v2536, %v1177
        %v2561 = vmul.f32 %v2539, %v1177
        %v2562 = vmul.f32 %v2542, %v1177
        %v2563 = vmul.f32 %v2545, %v1177
        %v2564 = vmul.f32 %v2548, %v1177
        %v2565 = vadd.f32 %v2549, 1e-06
        %v2566 = vadd.f32 %v2550, 1e-06
        %v2567 = vadd.f32 %v2551, 1e-06
        %v2568 = vadd.f32 %v2552, 1e-06
        %v2569 = vadd.f32 %v2553, 1e-06
        %v2570 = vadd.f32 %v2554, 1e-06
        %v2571 = vadd.f32 %v2555, 1e-06
        %v2572 = vadd.f32 %v2556, 1e-06
        %v2573 = vadd.f32 %v2557, 1e-06
        %v2574 = vadd.f32 %v2558, 1e-06
        %v2575 = vadd.f32 %v2559, 1e-06
        %v2576 = vadd.f32 %v2560, 1e-06
        %v2577 = vadd.f32 %v2561, 1e-06
        %v2578 = vadd.f32 %v2562, 1e-06
        %v2579 = vadd.f32 %v2563, 1e-06
        %v2580 = vadd.f32 %v2564, 1e-06
        %v2581 = vrsqrt.pop %v2565
        %v2582 = vrsqrt.pop %v2566
        %v2583 = vrsqrt.pop %v2567
        %v2584 = vrsqrt.pop %v2568
        %v2585 = vrsqrt.pop %v2569
        %v2586 = vrsqrt.pop %v2570
        %v2587 = vrsqrt.pop %v2571
        %v2588 = vrsqrt.pop %v2572
        %v2589 = vrsqrt.pop %v2573
        %v2590 = vrsqrt.pop %v2574
        %v2591 = vrsqrt.pop %v2575
        %v2592 = vrsqrt.pop %v2576
        %v2593 = vrsqrt.pop %v2577
        %v2594 = vrsqrt.pop %v2578
        %v2595 = vrsqrt.pop %v2579
        %v2596 = vrsqrt.pop %v2580
        %v2597 = vmul.f32 %v2073, %v2581
        %v2598 = vmul.f32 %v2075, %v2581
        %v2599 = vmul.f32 %v2077, %v2582
        %v2600 = vmul.f32 %v2079, %v2582
        %v2601 = vmul.f32 %v2083, %v2583
        %v2602 = vmul.f32 %v2085, %v2583
        %v2603 = vmul.f32 %v2087, %v2584
        %v2604 = vmul.f32 %v2089, %v2584
        %v2605 = vmul.f32 %v2093, %v2585
        %v2606 = vmul.f32 %v2095, %v2585
        %v2607 = vmul.f32 %v2097, %v2586
        %v2608 = vmul.f32 %v2099, %v2586
        %v2609 = vmul.f32 %v2103, %v2587
        %v2610 = vmul.f32 %v2105, %v2587
        %v2611 = vmul.f32 %v2107, %v2588
        %v2612 = vmul.f32 %v2109, %v2588
        %v2613 = vmul.f32 %v2113, %v2589
        %v2614 = vmul.f32 %v2115, %v2589
        %v2615 = vmul.f32 %v2117, %v2590
        %v2616 = vmul.f32 %v2119, %v2590
        %v2617 = vmul.f32 %v2123, %v2591
        %v2618 = vmul.f32 %v2125, %v2591
        %v2619 = vmul.f32 %v2127, %v2592
        %v2620 = vmul.f32 %v2129, %v2592
        %v2621 = vmul.f32 %v2133, %v2593
        %v2622 = vmul.f32 %v2135, %v2593
        %v2623 = vmul.f32 %v2137, %v2594
        %v2624 = vmul.f32 %v2139, %v2594
        %v2625 = vmul.f32 %v2143, %v2595
        %v2626 = vmul.f32 %v2145, %v2595
        %v2627 = vmul.f32 %v2147, %v2596
        %v2628 = vmul.f32 %v2149, %v2596
        %v2630 = vlaneseq
        %v2631 = vshrl.u32 %v2630, 7
        %v2632 = vsub.s32 0, %v2631
        %v2633 = vrot.slane %v2468, %v2632
        %v2634 = vlaneseq
        %v2635 = vshrl.u32 %v2634, 7
        %v2636 = vsub.s32 1, %v2635
        %v2637 = vrot.slane %v2468, %v2636
        %v2640 = vmul.f32 %v2597, %v2633
        %v2641 = vmul.f32 %v2598, %v2637
        %v2642 = vmul.f32 %v2599, %v2633
        %v2643 = vmul.f32 %v2600, %v2637
        %v2644 = vmul.f32 %v2601, %v2633
        %v2645 = vmul.f32 %v2602, %v2637
        %v2646 = vmul.f32 %v2603, %v2633
        %v2647 = vmul.f32 %v2604, %v2637
        %v2648 = vmul.f32 %v2605, %v2633
        %v2649 = vmul.f32 %v2606, %v2637
        %v2650 = vmul.f32 %v2607, %v2633
        %v2651 = vmul.f32 %v2608, %v2637
        %v2652 = vmul.f32 %v2609, %v2633
        %v2653 = vmul.f32 %v2610, %v2637
        %v2654 = vmul.f32 %v2611, %v2633
        %v2655 = vmul.f32 %v2612, %v2637
        %v2656 = vmul.f32 %v2613, %v2633
        %v2657 = vmul.f32 %v2614, %v2637
        %v2658 = vmul.f32 %v2615, %v2633
        %v2659 = vmul.f32 %v2616, %v2637
        %v2660 = vmul.f32 %v2617, %v2633
        %v2661 = vmul.f32 %v2618, %v2637
        %v2662 = vmul.f32 %v2619, %v2633
        %v2663 = vmul.f32 %v2620, %v2637
        %v2664 = vmul.f32 %v2621, %v2633
        %v2665 = vmul.f32 %v2622, %v2637
        %v2666 = vmul.f32 %v2623, %v2633
        %v2667 = vmul.f32 %v2624, %v2637
        %v2668 = vmul.f32 %v2625, %v2633
        %v2669 = vmul.f32 %v2626, %v2637
        %v2670 = vmul.f32 %v2627, %v2633
        %v2671 = vmul.f32 %v2628, %v2637
        %v2672 = vmul.f32 %v2436, 0.088388346
        %v2673 = vmul.f32 %v2437, 0.088388346
        %v2674 = vmul.f32 %v2438, 0.088388346
        %v2675 = vmul.f32 %v2439, 0.088388346
        %v2676 = vmul.f32 %v2440, 0.088388346
        %v2677 = vmul.f32 %v2441, 0.088388346
        %v2678 = vmul.f32 %v2442, 0.088388346
        %v2679 = vmul.f32 %v2443, 0.088388346
        %v2680 = vmul.f32 %v2444, 0.088388346
        %v2681 = vmul.f32 %v2445, 0.088388346
        %v2682 = vmul.f32 %v2446, 0.088388346
        %v2683 = vmul.f32 %v2447, 0.088388346
        %v2684 = vmul.f32 %v2448, 0.088388346
        %v2685 = vmul.f32 %v2449, 0.088388346
        %v2686 = vmul.f32 %v2450, 0.088388346
        %v2687 = vmul.f32 %v2451, 0.088388346
        %v2688 = vmul.f32 %v2452, 0.088388346
        %v2689 = vmul.f32 %v2453, 0.088388346
        %v2690 = vmul.f32 %v2454, 0.088388346
        %v2691 = vmul.f32 %v2455, 0.088388346
        %v2692 = vmul.f32 %v2456, 0.088388346
        %v2693 = vmul.f32 %v2457, 0.088388346
        %v2694 = vmul.f32 %v2458, 0.088388346
        %v2695 = vmul.f32 %v2459, 0.088388346
        %v2696 = vmul.f32 %v2460, 0.088388346
        %v2697 = vmul.f32 %v2461, 0.088388346
        %v2698 = vmul.f32 %v2462, 0.088388346
        %v2699 = vmul.f32 %v2463, 0.088388346
        %v2700 = vmul.f32 %v2464, 0.088388346
        %v2701 = vmul.f32 %v2465, 0.088388346
        %v2702 = vmul.f32 %v2466, 0.088388346
        %v2703 = vmul.f32 %v2467, 0.088388346
        %v2704 = vpack.c.bf16 %v2674, %v2672
        %v2705 = vpack.c.bf16 %v2675, %v2673
        %v2706 = vpack.c.bf16 %v2678, %v2676
        %v2707 = vpack.c.bf16 %v2679, %v2677
        %v2708 = vpack.c.bf16 %v2682, %v2680
        %v2709 = vpack.c.bf16 %v2683, %v2681
        %v2710 = vpack.c.bf16 %v2686, %v2684
        %v2711 = vpack.c.bf16 %v2687, %v2685
        %v2712 = vpack.c.bf16 %v2690, %v2688
        %v2713 = vpack.c.bf16 %v2691, %v2689
        %v2714 = vpack.c.bf16 %v2694, %v2692
        %v2715 = vpack.c.bf16 %v2695, %v2693
        %v2716 = vpack.c.bf16 %v2698, %v2696
        %v2717 = vpack.c.bf16 %v2699, %v2697
        %v2718 = vpack.c.bf16 %v2702, %v2700
        %v2719 = vpack.c.bf16 %v2703, %v2701
        %v2720 = vpack.c.bf16 %v2642, %v2640
        %v2721 = vpack.c.bf16 %v2643, %v2641
        %v2722 = vpack.c.bf16 %v2646, %v2644
        %v2723 = vpack.c.bf16 %v2647, %v2645
        %v2724 = vpack.c.bf16 %v2650, %v2648
        %v2725 = vpack.c.bf16 %v2651, %v2649
        %v2726 = vpack.c.bf16 %v2654, %v2652
        %v2727 = vpack.c.bf16 %v2655, %v2653
        %v2728 = vpack.c.bf16 %v2658, %v2656
        %v2729 = vpack.c.bf16 %v2659, %v2657
        %v2730 = vpack.c.bf16 %v2662, %v2660
        %v2731 = vpack.c.bf16 %v2663, %v2661
        %v2732 = vpack.c.bf16 %v2666, %v2664
        %v2733 = vpack.c.bf16 %v2667, %v2665
        %v2734 = vpack.c.bf16 %v2670, %v2668
        %v2735 = vpack.c.bf16 %v2671, %v2669
        %v2736 = vpack.c.bf16 %v2190, %v2186
        %v2737 = vpack.c.bf16 %v2192, %v2188
        %v2738 = vpack.c.bf16 %v2200, %v2196
        %v2739 = vpack.c.bf16 %v2202, %v2198
        %v2740 = vpack.c.bf16 %v2210, %v2206
        %v2741 = vpack.c.bf16 %v2212, %v2208
        %v2742 = vpack.c.bf16 %v2220, %v2216
        %v2743 = vpack.c.bf16 %v2222, %v2218
        %v2744 = vpack.c.bf16 %v2230, %v2226
        %v2745 = vpack.c.bf16 %v2232, %v2228
        %v2746 = vpack.c.bf16 %v2240, %v2236
        %v2747 = vpack.c.bf16 %v2242, %v2238
        %v2748 = vpack.c.bf16 %v2250, %v2246
        %v2749 = vpack.c.bf16 %v2252, %v2248
        %v2750 = vpack.c.bf16 %v2260, %v2256
        %v2751 = vpack.c.bf16 %v2262, %v2258
        %2752 = vmatprep.subr.bf16.mxu0 0
        %2753 = vmatpush1.bf16.xpose.msra.mxu0 0
        %2754 = vmatprep.subr.bf16.mxu0 0
        %2755 = vmatpush1.bf16.xpose.msra.mxu0 0
        %2756 = vmatprep.subr.bf16.mxu0 0
        %2757 = vmatpush1.bf16.xpose.msra.mxu0 0
        %2758 = vmatprep.subr.bf16.mxu0 0
        %2759 = vmatpush1.bf16.xpose.msra.mxu0 0
        %2760 = vmatprep.subr.bf16.mxu0 0
        %2761 = vmatpush1.bf16.xpose.msra.mxu0 %v2726
        %2762 = vmatprep.subr.bf16.mxu0 0
        %2763 = vmatpush1.bf16.xpose.msra.mxu0 %v2724
        %2764 = vmatprep.subr.bf16.mxu0 0
        %2765 = vmatpush1.bf16.xpose.msra.mxu0 %v2722
        %2766 = vmatprep.subr.bf16.mxu0 0
        %2767 = vmatpush1.bf16.xpose.msra.mxu0 %v2720
        %2768 = vmatprep.subr.bf16.mxu0 0
        %2769 = vmatpush2.bf16.xpose.msra.mxu0 0
        %2770 = vmatprep.subr.bf16.mxu0 0
        %2771 = vmatpush2.bf16.xpose.msra.mxu0 0
        %2772 = vmatprep.subr.bf16.mxu0 0
        %2773 = vmatpush2.bf16.xpose.msra.mxu0 0
        %2774 = vmatprep.subr.bf16.mxu0 0
        %2775 = vmatpush2.bf16.xpose.msra.mxu0 0
        %2776 = vmatprep.subr.bf16.mxu0 0
        %2777 = vmatpush2.bf16.xpose.msra.mxu0 0
        %2778 = vmatprep.subr.bf16.mxu0 0
        %2779 = vmatpush2.bf16.xpose.msra.mxu0 0
        %2780 = vmatprep.subr.bf16.mxu0 0
        %2781 = vmatpush2.bf16.xpose.msra.mxu0 0
        %2782 = vmatprep.subr.bf16.mxu0 0
        %2783 = vmatpush2.bf16.xpose.msra.mxu0 0
        %2784 = vmatprep.mubr.bf16.mxu0 0
        %2785 = vmatmul.mubr.bf16.gmra.mxu0 %v2704
        %v2786 = vpop.f32.mrf.mxu0
        %v2787 = vadd.f32 0.0, %v2786
        %v2788 = vpop.f32.mrf.mxu0
        %v2789 = vpop.f32.mrf.mxu0
        %v2790 = vadd.f32 0.0, %v2789
        %v2791 = vpop.f32.mrf.mxu0
        %2792 = vmatprep.mubr.bf16.mxu0 0
        %2793 = vmatmul.mubr.bf16.gmra.mxu0 %v2706
        %v2794 = vpop.f32.mrf.mxu0
        %v2795 = vadd.f32 0.0, %v2794
        %v2796 = vpop.f32.mrf.mxu0
        %v2797 = vpop.f32.mrf.mxu0
        %v2798 = vadd.f32 0.0, %v2797
        %v2799 = vpop.f32.mrf.mxu0
        %2800 = vmatprep.mubr.bf16.mxu0 0
        %2801 = vmatmul.mubr.bf16.gmra.mxu0 %v2708
        %v2802 = vpop.f32.mrf.mxu0
        %v2803 = vadd.f32 0.0, %v2802
        %v2804 = vpop.f32.mrf.mxu0
        %v2805 = vpop.f32.mrf.mxu0
        %v2806 = vadd.f32 0.0, %v2805
        %v2807 = vpop.f32.mrf.mxu0
        %2808 = vmatprep.mubr.bf16.mxu0 0
        %2809 = vmatmul.mubr.bf16.gmra.mxu0 %v2710
        %v2810 = vpop.f32.mrf.mxu0
        %v2811 = vadd.f32 0.0, %v2810
        %v2812 = vpop.f32.mrf.mxu0
        %v2813 = vpop.f32.mrf.mxu0
        %v2814 = vadd.f32 0.0, %v2813
        %v2815 = vpop.f32.mrf.mxu0
        %2816 = vdwg.mxu0
        %vm2817 = vcmask 523264
        %v2818 = vsel %vm2817, %v2787, -inf
        %2819 = vmax.xlane.f32.xlu0 %v2818
        %v2820 = vpop.xlane.xlu0 %2819
        %v2821 = vsel %vm2817, %v2790, -inf
        %2822 = vmax.xlane.f32.xlu0 %v2821
        %v2823 = vpop.xlane.xlu0 %2822
        %v2824 = vsel %vm2817, %v2795, -inf
        %2825 = vmax.xlane.f32.xlu0 %v2824
        %v2826 = vpop.xlane.xlu0 %2825
        %v2827 = vsel %vm2817, %v2798, -inf
        %2828 = vmax.xlane.f32.xlu0 %v2827
        %v2829 = vpop.xlane.xlu0 %2828
        %v2830 = vsel %vm2817, %v2803, -inf
        %2831 = vmax.xlane.f32.xlu0 %v2830
        %v2832 = vpop.xlane.xlu0 %2831
        %v2833 = vsel %vm2817, %v2806, -inf
        %2834 = vmax.xlane.f32.xlu0 %v2833
        %v2835 = vpop.xlane.xlu0 %2834
        %v2836 = vsel %vm2817, %v2811, -inf
        %2837 = vmax.xlane.f32.xlu0 %v2836
        %v2838 = vpop.xlane.xlu0 %2837
        %v2839 = vsel %vm2817, %v2814, -inf
        %2840 = vmax.xlane.f32.xlu0 %v2839
        %v2841 = vpop.xlane.xlu0 %2840
        %v2842 = vsub.f32 %v2787, %v2820
        %v2843 = vsub.f32 %v2790, %v2823
        %v2844 = vsub.f32 %v2795, %v2826
        %v2845 = vsub.f32 %v2798, %v2829
        %v2846 = vsub.f32 %v2803, %v2832
        %v2847 = vsub.f32 %v2806, %v2835
        %v2848 = vsub.f32 %v2811, %v2838
        %v2849 = vsub.f32 %v2814, %v2841
        %v2850 = vmul.f32 %v2842, 1.442695
        %v2851 = vpow.pop %v2850
        %v2852 = vmul.f32 %v2843, 1.442695
        %v2853 = vpow.pop %v2852
        %v2854 = vmul.f32 %v2844, 1.442695
        %v2855 = vpow.pop %v2854
        %v2856 = vmul.f32 %v2845, 1.442695
        %v2857 = vpow.pop %v2856
        %v2858 = vmul.f32 %v2846, 1.442695
        %v2859 = vpow.pop %v2858
        %v2860 = vmul.f32 %v2847, 1.442695
        %v2861 = vpow.pop %v2860
        %v2862 = vmul.f32 %v2848, 1.442695
        %v2863 = vpow.pop %v2862
        %v2864 = vmul.f32 %v2849, 1.442695
        %v2865 = vpow.pop %v2864
        %v2866 = vsel %vm2817, %v2851, 0.0
        %2867 = vadd.xlane.f32.xlu0 %v2866
        %v2868 = vpop.xlane.xlu0 %2867
        %v2869 = vsel %vm2817, %v2853, 0.0
        %2870 = vadd.xlane.f32.xlu0 %v2869
        %v2871 = vpop.xlane.xlu0 %2870
        %v2872 = vsel %vm2817, %v2855, 0.0
        %2873 = vadd.xlane.f32.xlu0 %v2872
        %v2874 = vpop.xlane.xlu0 %2873
        %v2875 = vsel %vm2817, %v2857, 0.0
        %2876 = vadd.xlane.f32.xlu0 %v2875
        %v2877 = vpop.xlane.xlu0 %2876
        %v2878 = vsel %vm2817, %v2859, 0.0
        %2879 = vadd.xlane.f32.xlu0 %v2878
        %v2880 = vpop.xlane.xlu0 %2879
        %v2881 = vsel %vm2817, %v2861, 0.0
        %2882 = vadd.xlane.f32.xlu0 %v2881
        %v2883 = vpop.xlane.xlu0 %2882
        %v2884 = vsel %vm2817, %v2863, 0.0
        %2885 = vadd.xlane.f32.xlu0 %v2884
        %v2886 = vpop.xlane.xlu0 %2885
        %v2887 = vsel %vm2817, %v2865, 0.0
        %2888 = vadd.xlane.f32.xlu0 %v2887
        %v2889 = vpop.xlane.xlu0 %2888
        %v2890 = vrcp.pop %v2868
        %v2891 = vrcp.pop %v2871
        %v2892 = vrcp.pop %v2874
        %v2893 = vrcp.pop %v2877
        %v2894 = vrcp.pop %v2880
        %v2895 = vrcp.pop %v2883
        %v2896 = vrcp.pop %v2886
        %v2897 = vrcp.pop %v2889
        %v2898 = vmul.f32 %v2851, %v2890
        %v2899 = vmul.f32 %v2853, %v2891
        %v2900 = vmul.f32 %v2855, %v2892
        %v2901 = vmul.f32 %v2857, %v2893
        %v2902 = vmul.f32 %v2859, %v2894
        %v2903 = vmul.f32 %v2861, %v2895
        %v2904 = vmul.f32 %v2863, %v2896
        %v2905 = vmul.f32 %v2865, %v2897
        %v2906 = vpack.c.bf16 %v2899, %v2898
        %v2907 = vpack.c.bf16 %v2901, %v2900
        %v2908 = vpack.c.bf16 %v2903, %v2902
        %v2909 = vpack.c.bf16 %v2905, %v2904
        %v2911 = vsel %vm2817, %v2906, 0
        %v2914 = vsel %vm2817, %v2907, 0
        %v2917 = vsel %vm2817, %v2908, 0
        %v2920 = vsel %vm2817, %v2909, 0
        %2922 = vmatprep.subr.bf16.mxu0 0
        %2923 = vmatpush1.bf16.msra.mxu0 0
        %2924 = vmatprep.subr.bf16.mxu0 0
        %2925 = vmatpush1.bf16.msra.mxu0 0
        %2926 = vmatprep.subr.bf16.mxu0 0
        %2927 = vmatpush1.bf16.msra.mxu0 0
        %2928 = vmatprep.subr.bf16.mxu0 0
        %2929 = vmatpush1.bf16.msra.mxu0 0
        %2930 = vmatprep.subr.bf16.mxu0 0
        %2931 = vmatpush1.bf16.msra.mxu0 %v2742
        %2932 = vmatprep.subr.bf16.mxu0 0
        %2933 = vmatpush1.bf16.msra.mxu0 %v2740
        %2934 = vmatprep.subr.bf16.mxu0 0
        %2935 = vmatpush1.bf16.msra.mxu0 %v2738
        %2936 = vmatprep.subr.bf16.mxu0 0
        %2937 = vmatpush1.bf16.msra.mxu0 %v2736
        %2938 = vmatprep.subr.bf16.mxu0 0
        %2939 = vmatpush2.bf16.msra.mxu0 0
        %2940 = vmatprep.subr.bf16.mxu0 0
        %2941 = vmatpush2.bf16.msra.mxu0 0
        %2942 = vmatprep.subr.bf16.mxu0 0
        %2943 = vmatpush2.bf16.msra.mxu0 0
        %2944 = vmatprep.subr.bf16.mxu0 0
        %2945 = vmatpush2.bf16.msra.mxu0 0
        %2946 = vmatprep.subr.bf16.mxu0 0
        %2947 = vmatpush2.bf16.msra.mxu0 0
        %2948 = vmatprep.subr.bf16.mxu0 0
        %2949 = vmatpush2.bf16.msra.mxu0 0
        %2950 = vmatprep.subr.bf16.mxu0 0
        %2951 = vmatpush2.bf16.msra.mxu0 0
        %2952 = vmatprep.subr.bf16.mxu0 0
        %2953 = vmatpush2.bf16.msra.mxu0 0
        %2954 = vmatprep.mubr.bf16.mxu0 0
        %2955 = vmatmul.mubr.bf16.gmra.mxu0 %v2911
        %v2956 = vpop.f32.mrf.mxu0
        %v2957 = vadd.f32 0.0, %v2956
        %v2958 = vpop.f32.mrf.mxu0
        %v2959 = vpop.f32.mrf.mxu0
        %v2960 = vadd.f32 0.0, %v2959
        %v2961 = vpop.f32.mrf.mxu0
        %2962 = vmatprep.mubr.bf16.mxu0 0
        %2963 = vmatmul.mubr.bf16.gmra.mxu0 %v2914
        %v2964 = vpop.f32.mrf.mxu0
        %v2965 = vadd.f32 0.0, %v2964
        %v2966 = vpop.f32.mrf.mxu0
        %v2967 = vpop.f32.mrf.mxu0
        %v2968 = vadd.f32 0.0, %v2967
        %v2969 = vpop.f32.mrf.mxu0
        %2970 = vmatprep.mubr.bf16.mxu0 0
        %2971 = vmatmul.mubr.bf16.gmra.mxu0 %v2917
        %v2972 = vpop.f32.mrf.mxu0
        %v2973 = vadd.f32 0.0, %v2972
        %v2974 = vpop.f32.mrf.mxu0
        %v2975 = vpop.f32.mrf.mxu0
        %v2976 = vadd.f32 0.0, %v2975
        %v2977 = vpop.f32.mrf.mxu0
        %2978 = vmatprep.mubr.bf16.mxu0 0
        %2979 = vmatmul.mubr.bf16.gmra.mxu0 %v2920
        %v2980 = vpop.f32.mrf.mxu0
        %v2981 = vadd.f32 0.0, %v2980
        %v2982 = vpop.f32.mrf.mxu0
        %v2983 = vpop.f32.mrf.mxu0
        %v2984 = vadd.f32 0.0, %v2983
        %v2985 = vpop.f32.mrf.mxu0
        %2986 = vdwg.mxu0
        %v2987 = vpack.c.bf16 %v2960, %v2957
        %v2988 = vpack.c.bf16 %v2968, %v2965
        %v2989 = vpack.c.bf16 %v2976, %v2973
        %v2990 = vpack.c.bf16 %v2984, %v2981
        %v2995 = vunpack.c.l.b16 %v2987
        %v2996 = vunpack.c.h.b16 %v2987
        %v2997 = vunpack.c.l.b16 %v2988
        %v2998 = vunpack.c.h.b16 %v2988
        %v2999 = vunpack.c.l.b16 %v2989
        %v3000 = vunpack.c.h.b16 %v2989
        %v3001 = vunpack.c.l.b16 %v2990
        %v3002 = vunpack.c.h.b16 %v2990
        %v3003 = vpack.c.b16 %v2995, %v2995
        %v3004 = vpack.c.b16 %v2996, %v2996
        %v3005 = vpack.c.b16 %v2997, %v2997
        %v3006 = vpack.c.b16 %v2998, %v2998
        %v3007 = vpack.c.b16 %v2999, %v2999
        %v3008 = vpack.c.b16 %v3000, %v3000
        %v3009 = vpack.c.b16 %v3001, %v3001
        %v3010 = vpack.c.b16 %v3002, %v3002
        %3019 = vst [vmem:[#allocation2] sm:$0xf] %v3003
        %3020 = vst [vmem:[#allocation2 + $0x8] sm:$0xf] %v3004
        %3021 = vst [vmem:[#allocation2 + $0x10] sm:$0xf] %v3005
        %3022 = vst [vmem:[#allocation2 + $0x18] sm:$0xf] %v3006
        %3023 = vst [vmem:[#allocation2 + $0x20] sm:$0xf] %v3007
        %3024 = vst [vmem:[#allocation2 + $0x28] sm:$0xf] %v3008
        %3025 = vst [vmem:[#allocation2 + $0x30] sm:$0xf] %v3009
        %3026 = vst [vmem:[#allocation2 + $0x38] sm:$0xf] %v3010
        %3027 = vmatprep.subr.bf16.mxu0 0
        %3028 = vmatpush1.bf16.xpose.msra.mxu0 0
        %3029 = vmatprep.subr.bf16.mxu0 0
        %3030 = vmatpush1.bf16.xpose.msra.mxu0 0
        %3031 = vmatprep.subr.bf16.mxu0 0
        %3032 = vmatpush1.bf16.xpose.msra.mxu0 0
        %3033 = vmatprep.subr.bf16.mxu0 0
        %3034 = vmatpush1.bf16.xpose.msra.mxu0 0
        %3035 = vmatprep.subr.bf16.mxu0 0
        %3036 = vmatpush1.bf16.xpose.msra.mxu0 %v2727
        %3037 = vmatprep.subr.bf16.mxu0 0
        %3038 = vmatpush1.bf16.xpose.msra.mxu0 %v2725
        %3039 = vmatprep.subr.bf16.mxu0 0
        %3040 = vmatpush1.bf16.xpose.msra.mxu0 %v2723
        %3041 = vmatprep.subr.bf16.mxu0 0
        %3042 = vmatpush1.bf16.xpose.msra.mxu0 %v2721
        %3043 = vmatprep.subr.bf16.mxu0 0
        %3044 = vmatpush2.bf16.xpose.msra.mxu0 0
        %3045 = vmatprep.subr.bf16.mxu0 0
        %3046 = vmatpush2.bf16.xpose.msra.mxu0 0
        %3047 = vmatprep.subr.bf16.mxu0 0
        %3048 = vmatpush2.bf16.xpose.msra.mxu0 0
        %3049 = vmatprep.subr.bf16.mxu0 0
        %3050 = vmatpush2.bf16.xpose.msra.mxu0 0
        %3051 = vmatprep.subr.bf16.mxu0 0
        %3052 = vmatpush2.bf16.xpose.msra.mxu0 0
        %3053 = vmatprep.subr.bf16.mxu0 0
        %3054 = vmatpush2.bf16.xpose.msra.mxu0 0
        %3055 = vmatprep.subr.bf16.mxu0 0
        %3056 = vmatpush2.bf16.xpose.msra.mxu0 0
        %3057 = vmatprep.subr.bf16.mxu0 0
        %3058 = vmatpush2.bf16.xpose.msra.mxu0 0
        %3059 = vmatprep.mubr.bf16.mxu0 0
        %3060 = vmatmul.mubr.bf16.gmra.mxu0 %v2705
        %v3061 = vpop.f32.mrf.mxu0
        %v3062 = vadd.f32 0.0, %v3061
        %v3063 = vpop.f32.mrf.mxu0
        %v3064 = vpop.f32.mrf.mxu0
        %v3065 = vadd.f32 0.0, %v3064
        %v3066 = vpop.f32.mrf.mxu0
        %3067 = vmatprep.mubr.bf16.mxu0 0
        %3068 = vmatmul.mubr.bf16.gmra.mxu0 %v2707
        %v3069 = vpop.f32.mrf.mxu0
        %v3070 = vadd.f32 0.0, %v3069
        %v3071 = vpop.f32.mrf.mxu0
        %v3072 = vpop.f32.mrf.mxu0
        %v3073 = vadd.f32 0.0, %v3072
        %v3074 = vpop.f32.mrf.mxu0
        %3075 = vmatprep.mubr.bf16.mxu0 0
        %3076 = vmatmul.mubr.bf16.gmra.mxu0 %v2709
        %v3077 = vpop.f32.mrf.mxu0
        %v3078 = vadd.f32 0.0, %v3077
        %v3079 = vpop.f32.mrf.mxu0
        %v3080 = vpop.f32.mrf.mxu0
        %v3081 = vadd.f32 0.0, %v3080
        %v3082 = vpop.f32.mrf.mxu0
        %3083 = vmatprep.mubr.bf16.mxu0 0
        %3084 = vmatmul.mubr.bf16.gmra.mxu0 %v2711
        %v3085 = vpop.f32.mrf.mxu0
        %v3086 = vadd.f32 0.0, %v3085
        %v3087 = vpop.f32.mrf.mxu0
        %v3088 = vpop.f32.mrf.mxu0
        %v3089 = vadd.f32 0.0, %v3088
        %v3090 = vpop.f32.mrf.mxu0
        %3091 = vdwg.mxu0
        %v3092 = vsel %vm2817, %v3062, -inf
        %3093 = vmax.xlane.f32.xlu0 %v3092
        %v3094 = vpop.xlane.xlu0 %3093
        %v3095 = vsel %vm2817, %v3065, -inf
        %3096 = vmax.xlane.f32.xlu0 %v3095
        %v3097 = vpop.xlane.xlu0 %3096
        %v3098 = vsel %vm2817, %v3070, -inf
        %3099 = vmax.xlane.f32.xlu0 %v3098
        %v3100 = vpop.xlane.xlu0 %3099
        %v3101 = vsel %vm2817, %v3073, -inf
        %3102 = vmax.xlane.f32.xlu0 %v3101
        %v3103 = vpop.xlane.xlu0 %3102
        %v3104 = vsel %vm2817, %v3078, -inf
        %3105 = vmax.xlane.f32.xlu0 %v3104
        %v3106 = vpop.xlane.xlu0 %3105
        %v3107 = vsel %vm2817, %v3081, -inf
        %3108 = vmax.xlane.f32.xlu0 %v3107
        %v3109 = vpop.xlane.xlu0 %3108
        %v3110 = vsel %vm2817, %v3086, -inf
        %3111 = vmax.xlane.f32.xlu0 %v3110
        %v3112 = vpop.xlane.xlu0 %3111
        %v3113 = vsel %vm2817, %v3089, -inf
        %3114 = vmax.xlane.f32.xlu0 %v3113
        %v3115 = vpop.xlane.xlu0 %3114
        %v3116 = vsub.f32 %v3062, %v3094
        %v3117 = vsub.f32 %v3065, %v3097
        %v3118 = vsub.f32 %v3070, %v3100
        %v3119 = vsub.f32 %v3073, %v3103
        %v3120 = vsub.f32 %v3078, %v3106
        %v3121 = vsub.f32 %v3081, %v3109
        %v3122 = vsub.f32 %v3086, %v3112
        %v3123 = vsub.f32 %v3089, %v3115
        %v3124 = vmul.f32 %v3116, 1.442695
        %v3125 = vpow.pop %v3124
        %v3126 = vmul.f32 %v3117, 1.442695
        %v3127 = vpow.pop %v3126
        %v3128 = vmul.f32 %v3118, 1.442695
        %v3129 = vpow.pop %v3128
        %v3130 = vmul.f32 %v3119, 1.442695
        %v3131 = vpow.pop %v3130
        %v3132 = vmul.f32 %v3120, 1.442695
        %v3133 = vpow.pop %v3132
        %v3134 = vmul.f32 %v3121, 1.442695
        %v3135 = vpow.pop %v3134
        %v3136 = vmul.f32 %v3122, 1.442695
        %v3137 = vpow.pop %v3136
        %v3138 = vmul.f32 %v3123, 1.442695
        %v3139 = vpow.pop %v3138
        %v3140 = vsel %vm2817, %v3125, 0.0
        %3141 = vadd.xlane.f32.xlu0 %v3140
        %v3142 = vpop.xlane.xlu0 %3141
        %v3143 = vsel %vm2817, %v3127, 0.0
        %3144 = vadd.xlane.f32.xlu0 %v3143
        %v3145 = vpop.xlane.xlu0 %3144
        %v3146 = vsel %vm2817, %v3129, 0.0
        %3147 = vadd.xlane.f32.xlu0 %v3146
        %v3148 = vpop.xlane.xlu0 %3147
        %v3149 = vsel %vm2817, %v3131, 0.0
        %3150 = vadd.xlane.f32.xlu0 %v3149
        %v3151 = vpop.xlane.xlu0 %3150
        %v3152 = vsel %vm2817, %v3133, 0.0
        %3153 = vadd.xlane.f32.xlu0 %v3152
        %v3154 = vpop.xlane.xlu0 %3153
        %v3155 = vsel %vm2817, %v3135, 0.0
        %3156 = vadd.xlane.f32.xlu0 %v3155
        %v3157 = vpop.xlane.xlu0 %3156
        %v3158 = vsel %vm2817, %v3137, 0.0
        %3159 = vadd.xlane.f32.xlu0 %v3158
        %v3160 = vpop.xlane.xlu0 %3159
        %v3161 = vsel %vm2817, %v3139, 0.0
        %3162 = vadd.xlane.f32.xlu0 %v3161
        %v3163 = vpop.xlane.xlu0 %3162
        %v3164 = vrcp.pop %v3142
        %v3165 = vrcp.pop %v3145
        %v3166 = vrcp.pop %v3148
        %v3167 = vrcp.pop %v3151
        %v3168 = vrcp.pop %v3154
        %v3169 = vrcp.pop %v3157
        %v3170 = vrcp.pop %v3160
        %v3171 = vrcp.pop %v3163
        %v3172 = vmul.f32 %v3125, %v3164
        %v3173 = vmul.f32 %v3127, %v3165
        %v3174 = vmul.f32 %v3129, %v3166
        %v3175 = vmul.f32 %v3131, %v3167
        %v3176 = vmul.f32 %v3133, %v3168
        %v3177 = vmul.f32 %v3135, %v3169
        %v3178 = vmul.f32 %v3137, %v3170
        %v3179 = vmul.f32 %v3139, %v3171
        %v3180 = vpack.c.bf16 %v3173, %v3172
        %v3181 = vpack.c.bf16 %v3175, %v3174
        %v3182 = vpack.c.bf16 %v3177, %v3176
        %v3183 = vpack.c.bf16 %v3179, %v3178
        %v3185 = vsel %vm2817, %v3180, 0
        %v3188 = vsel %vm2817, %v3181, 0
        %v3191 = vsel %vm2817, %v3182, 0
        %v3194 = vsel %vm2817, %v3183, 0
        %3196 = vmatprep.subr.bf16.mxu0 0
        %3197 = vmatpush1.bf16.msra.mxu0 0
        %3198 = vmatprep.subr.bf16.mxu0 0
        %3199 = vmatpush1.bf16.msra.mxu0 0
        %3200 = vmatprep.subr.bf16.mxu0 0
        %3201 = vmatpush1.bf16.msra.mxu0 0
        %3202 = vmatprep.subr.bf16.mxu0 0
        %3203 = vmatpush1.bf16.msra.mxu0 0
        %3204 = vmatprep.subr.bf16.mxu0 0
        %3205 = vmatpush1.bf16.msra.mxu0 %v2743
        %3206 = vmatprep.subr.bf16.mxu0 0
        %3207 = vmatpush1.bf16.msra.mxu0 %v2741
        %3208 = vmatprep.subr.bf16.mxu0 0
        %3209 = vmatpush1.bf16.msra.mxu0 %v2739
        %3210 = vmatprep.subr.bf16.mxu0 0
        %3211 = vmatpush1.bf16.msra.mxu0 %v2737
        %3212 = vmatprep.subr.bf16.mxu0 0
        %3213 = vmatpush2.bf16.msra.mxu0 0
        %3214 = vmatprep.subr.bf16.mxu0 0
        %3215 = vmatpush2.bf16.msra.mxu0 0
        %3216 = vmatprep.subr.bf16.mxu0 0
        %3217 = vmatpush2.bf16.msra.mxu0 0
        %3218 = vmatprep.subr.bf16.mxu0 0
        %3219 = vmatpush2.bf16.msra.mxu0 0
        %3220 = vmatprep.subr.bf16.mxu0 0
        %3221 = vmatpush2.bf16.msra.mxu0 0
        %3222 = vmatprep.subr.bf16.mxu0 0
        %3223 = vmatpush2.bf16.msra.mxu0 0
        %3224 = vmatprep.subr.bf16.mxu0 0
        %3225 = vmatpush2.bf16.msra.mxu0 0
        %3226 = vmatprep.subr.bf16.mxu0 0
        %3227 = vmatpush2.bf16.msra.mxu0 0
        %3228 = vmatprep.mubr.bf16.mxu0 0
        %3229 = vmatmul.mubr.bf16.gmra.mxu0 %v3185
        %v3230 = vpop.f32.mrf.mxu0
        %v3231 = vadd.f32 0.0, %v3230
        %v3232 = vpop.f32.mrf.mxu0
        %v3233 = vpop.f32.mrf.mxu0
        %v3234 = vadd.f32 0.0, %v3233
        %v3235 = vpop.f32.mrf.mxu0
        %3236 = vmatprep.mubr.bf16.mxu0 0
        %3237 = vmatmul.mubr.bf16.gmra.mxu0 %v3188
        %v3238 = vpop.f32.mrf.mxu0
        %v3239 = vadd.f32 0.0, %v3238
        %v3240 = vpop.f32.mrf.mxu0
        %v3241 = vpop.f32.mrf.mxu0
        %v3242 = vadd.f32 0.0, %v3241
        %v3243 = vpop.f32.mrf.mxu0
        %3244 = vmatprep.mubr.bf16.mxu0 0
        %3245 = vmatmul.mubr.bf16.gmra.mxu0 %v3191
        %v3246 = vpop.f32.mrf.mxu0
        %v3247 = vadd.f32 0.0, %v3246
        %v3248 = vpop.f32.mrf.mxu0
        %v3249 = vpop.f32.mrf.mxu0
        %v3250 = vadd.f32 0.0, %v3249
        %v3251 = vpop.f32.mrf.mxu0
        %3252 = vmatprep.mubr.bf16.mxu0 0
        %3253 = vmatmul.mubr.bf16.gmra.mxu0 %v3194
        %v3254 = vpop.f32.mrf.mxu0
        %v3255 = vadd.f32 0.0, %v3254
        %v3256 = vpop.f32.mrf.mxu0
        %v3257 = vpop.f32.mrf.mxu0
        %v3258 = vadd.f32 0.0, %v3257
        %v3259 = vpop.f32.mrf.mxu0
        %3260 = vdwg.mxu0
        %v3261 = vpack.c.bf16 %v3234, %v3231
        %v3262 = vpack.c.bf16 %v3242, %v3239
        %v3263 = vpack.c.bf16 %v3250, %v3247
        %v3264 = vpack.c.bf16 %v3258, %v3255
        %v3269 = vunpack.c.l.b16 %v3261
        %v3270 = vunpack.c.h.b16 %v3261
        %v3271 = vunpack.c.l.b16 %v3262
        %v3272 = vunpack.c.h.b16 %v3262
        %v3273 = vunpack.c.l.b16 %v3263
        %v3274 = vunpack.c.h.b16 %v3263
        %v3275 = vunpack.c.l.b16 %v3264
        %v3276 = vunpack.c.h.b16 %v3264
        %v3277 = vpack.c.b16 %v3269, %v3269
        %v3278 = vpack.c.b16 %v3270, %v3270
        %v3279 = vpack.c.b16 %v3271, %v3271
        %v3280 = vpack.c.b16 %v3272, %v3272
        %v3281 = vpack.c.b16 %v3273, %v3273
        %v3282 = vpack.c.b16 %v3274, %v3274
        %v3283 = vpack.c.b16 %v3275, %v3275
        %v3284 = vpack.c.b16 %v3276, %v3276
        %3293 = vst [vmem:[#allocation2 + $0x4] sm:$0xf] %v3277
        %3294 = vst [vmem:[#allocation2 + $0xc] sm:$0xf] %v3278
        %3295 = vst [vmem:[#allocation2 + $0x14] sm:$0xf] %v3279
        %3296 = vst [vmem:[#allocation2 + $0x1c] sm:$0xf] %v3280
        %3297 = vst [vmem:[#allocation2 + $0x24] sm:$0xf] %v3281
        %3298 = vst [vmem:[#allocation2 + $0x2c] sm:$0xf] %v3282
        %3299 = vst [vmem:[#allocation2 + $0x34] sm:$0xf] %v3283
        %3300 = vst [vmem:[#allocation2 + $0x3c] sm:$0xf] %v3284
        %3301 = vmatprep.subr.bf16.mxu0 0
        %3302 = vmatpush1.bf16.xpose.msra.mxu0 0
        %3303 = vmatprep.subr.bf16.mxu0 0
        %3304 = vmatpush1.bf16.xpose.msra.mxu0 0
        %3305 = vmatprep.subr.bf16.mxu0 0
        %3306 = vmatpush1.bf16.xpose.msra.mxu0 0
        %3307 = vmatprep.subr.bf16.mxu0 0
        %3308 = vmatpush1.bf16.xpose.msra.mxu0 0
        %3309 = vmatprep.subr.bf16.mxu0 0
        %3310 = vmatpush1.bf16.xpose.msra.mxu0 %v2734
        %3311 = vmatprep.subr.bf16.mxu0 0
        %3312 = vmatpush1.bf16.xpose.msra.mxu0 %v2732
        %3313 = vmatprep.subr.bf16.mxu0 0
        %3314 = vmatpush1.bf16.xpose.msra.mxu0 %v2730
        %3315 = vmatprep.subr.bf16.mxu0 0
        %3316 = vmatpush1.bf16.xpose.msra.mxu0 %v2728
        %3317 = vmatprep.subr.bf16.mxu0 0
        %3318 = vmatpush2.bf16.xpose.msra.mxu0 0
        %3319 = vmatprep.subr.bf16.mxu0 0
        %3320 = vmatpush2.bf16.xpose.msra.mxu0 0
        %3321 = vmatprep.subr.bf16.mxu0 0
        %3322 = vmatpush2.bf16.xpose.msra.mxu0 0
        %3323 = vmatprep.subr.bf16.mxu0 0
        %3324 = vmatpush2.bf16.xpose.msra.mxu0 0
        %3325 = vmatprep.subr.bf16.mxu0 0
        %3326 = vmatpush2.bf16.xpose.msra.mxu0 0
        %3327 = vmatprep.subr.bf16.mxu0 0
        %3328 = vmatpush2.bf16.xpose.msra.mxu0 0
        %3329 = vmatprep.subr.bf16.mxu0 0
        %3330 = vmatpush2.bf16.xpose.msra.mxu0 0
        %3331 = vmatprep.subr.bf16.mxu0 0
        %3332 = vmatpush2.bf16.xpose.msra.mxu0 0
        %3333 = vmatprep.mubr.bf16.mxu0 0
        %3334 = vmatmul.mubr.bf16.gmra.mxu0 %v2712
        %v3335 = vpop.f32.mrf.mxu0
        %v3336 = vadd.f32 0.0, %v3335
        %v3337 = vpop.f32.mrf.mxu0
        %v3338 = vpop.f32.mrf.mxu0
        %v3339 = vadd.f32 0.0, %v3338
        %v3340 = vpop.f32.mrf.mxu0
        %3341 = vmatprep.mubr.bf16.mxu0 0
        %3342 = vmatmul.mubr.bf16.gmra.mxu0 %v2714
        %v3343 = vpop.f32.mrf.mxu0
        %v3344 = vadd.f32 0.0, %v3343
        %v3345 = vpop.f32.mrf.mxu0
        %v3346 = vpop.f32.mrf.mxu0
        %v3347 = vadd.f32 0.0, %v3346
        %v3348 = vpop.f32.mrf.mxu0
        %3349 = vmatprep.mubr.bf16.mxu0 0
        %3350 = vmatmul.mubr.bf16.gmra.mxu0 %v2716
        %v3351 = vpop.f32.mrf.mxu0
        %v3352 = vadd.f32 0.0, %v3351
        %v3353 = vpop.f32.mrf.mxu0
        %v3354 = vpop.f32.mrf.mxu0
        %v3355 = vadd.f32 0.0, %v3354
        %v3356 = vpop.f32.mrf.mxu0
        %3357 = vmatprep.mubr.bf16.mxu0 0
        %3358 = vmatmul.mubr.bf16.gmra.mxu0 %v2718
        %v3359 = vpop.f32.mrf.mxu0
        %v3360 = vadd.f32 0.0, %v3359
        %v3361 = vpop.f32.mrf.mxu0
        %v3362 = vpop.f32.mrf.mxu0
        %v3363 = vadd.f32 0.0, %v3362
        %v3364 = vpop.f32.mrf.mxu0
        %3365 = vdwg.mxu0
        %v3366 = vsel %vm2817, %v3336, -inf
        %3367 = vmax.xlane.f32.xlu0 %v3366
        %v3368 = vpop.xlane.xlu0 %3367
        %v3369 = vsel %vm2817, %v3339, -inf
        %3370 = vmax.xlane.f32.xlu0 %v3369
        %v3371 = vpop.xlane.xlu0 %3370
        %v3372 = vsel %vm2817, %v3344, -inf
        %3373 = vmax.xlane.f32.xlu0 %v3372
        %v3374 = vpop.xlane.xlu0 %3373
        %v3375 = vsel %vm2817, %v3347, -inf
        %3376 = vmax.xlane.f32.xlu0 %v3375
        %v3377 = vpop.xlane.xlu0 %3376
        %v3378 = vsel %vm2817, %v3352, -inf
        %3379 = vmax.xlane.f32.xlu0 %v3378
        %v3380 = vpop.xlane.xlu0 %3379
        %v3381 = vsel %vm2817, %v3355, -inf
        %3382 = vmax.xlane.f32.xlu0 %v3381
        %v3383 = vpop.xlane.xlu0 %3382
        %v3384 = vsel %vm2817, %v3360, -inf
        %3385 = vmax.xlane.f32.xlu0 %v3384
        %v3386 = vpop.xlane.xlu0 %3385
        %v3387 = vsel %vm2817, %v3363, -inf
        %3388 = vmax.xlane.f32.xlu0 %v3387
        %v3389 = vpop.xlane.xlu0 %3388
        %v3390 = vsub.f32 %v3336, %v3368
        %v3391 = vsub.f32 %v3339, %v3371
        %v3392 = vsub.f32 %v3344, %v3374
        %v3393 = vsub.f32 %v3347, %v3377
        %v3394 = vsub.f32 %v3352, %v3380
        %v3395 = vsub.f32 %v3355, %v3383
        %v3396 = vsub.f32 %v3360, %v3386
        %v3397 = vsub.f32 %v3363, %v3389
        %v3398 = vmul.f32 %v3390, 1.442695
        %v3399 = vpow.pop %v3398
        %v3400 = vmul.f32 %v3391, 1.442695
        %v3401 = vpow.pop %v3400
        %v3402 = vmul.f32 %v3392, 1.442695
        %v3403 = vpow.pop %v3402
        %v3404 = vmul.f32 %v3393, 1.442695
        %v3405 = vpow.pop %v3404
        %v3406 = vmul.f32 %v3394, 1.442695
        %v3407 = vpow.pop %v3406
        %v3408 = vmul.f32 %v3395, 1.442695
        %v3409 = vpow.pop %v3408
        %v3410 = vmul.f32 %v3396, 1.442695
        %v3411 = vpow.pop %v3410
        %v3412 = vmul.f32 %v3397, 1.442695
        %v3413 = vpow.pop %v3412
        %v3414 = vsel %vm2817, %v3399, 0.0
        %3415 = vadd.xlane.f32.xlu0 %v3414
        %v3416 = vpop.xlane.xlu0 %3415
        %v3417 = vsel %vm2817, %v3401, 0.0
        %3418 = vadd.xlane.f32.xlu0 %v3417
        %v3419 = vpop.xlane.xlu0 %3418
        %v3420 = vsel %vm2817, %v3403, 0.0
        %3421 = vadd.xlane.f32.xlu0 %v3420
        %v3422 = vpop.xlane.xlu0 %3421
        %v3423 = vsel %vm2817, %v3405, 0.0
        %3424 = vadd.xlane.f32.xlu0 %v3423
        %v3425 = vpop.xlane.xlu0 %3424
        %v3426 = vsel %vm2817, %v3407, 0.0
        %3427 = vadd.xlane.f32.xlu0 %v3426
        %v3428 = vpop.xlane.xlu0 %3427
        %v3429 = vsel %vm2817, %v3409, 0.0
        %3430 = vadd.xlane.f32.xlu0 %v3429
        %v3431 = vpop.xlane.xlu0 %3430
        %v3432 = vsel %vm2817, %v3411, 0.0
        %3433 = vadd.xlane.f32.xlu0 %v3432
        %v3434 = vpop.xlane.xlu0 %3433
        %v3435 = vsel %vm2817, %v3413, 0.0
        %3436 = vadd.xlane.f32.xlu0 %v3435
        %v3437 = vpop.xlane.xlu0 %3436
        %v3438 = vrcp.pop %v3416
        %v3439 = vrcp.pop %v3419
        %v3440 = vrcp.pop %v3422
        %v3441 = vrcp.pop %v3425
        %v3442 = vrcp.pop %v3428
        %v3443 = vrcp.pop %v3431
        %v3444 = vrcp.pop %v3434
        %v3445 = vrcp.pop %v3437
        %v3446 = vmul.f32 %v3399, %v3438
        %v3447 = vmul.f32 %v3401, %v3439
        %v3448 = vmul.f32 %v3403, %v3440
        %v3449 = vmul.f32 %v3405, %v3441
        %v3450 = vmul.f32 %v3407, %v3442
        %v3451 = vmul.f32 %v3409, %v3443
        %v3452 = vmul.f32 %v3411, %v3444
        %v3453 = vmul.f32 %v3413, %v3445
        %v3454 = vpack.c.bf16 %v3447, %v3446
        %v3455 = vpack.c.bf16 %v3449, %v3448
        %v3456 = vpack.c.bf16 %v3451, %v3450
        %v3457 = vpack.c.bf16 %v3453, %v3452
        %v3459 = vsel %vm2817, %v3454, 0
        %v3462 = vsel %vm2817, %v3455, 0
        %v3465 = vsel %vm2817, %v3456, 0
        %v3468 = vsel %vm2817, %v3457, 0
        %3470 = vmatprep.subr.bf16.mxu0 0
        %3471 = vmatpush1.bf16.msra.mxu0 0
        %3472 = vmatprep.subr.bf16.mxu0 0
        %3473 = vmatpush1.bf16.msra.mxu0 0
        %3474 = vmatprep.subr.bf16.mxu0 0
        %3475 = vmatpush1.bf16.msra.mxu0 0
        %3476 = vmatprep.subr.bf16.mxu0 0
        %3477 = vmatpush1.bf16.msra.mxu0 0
        %3478 = vmatprep.subr.bf16.mxu0 0
        %3479 = vmatpush1.bf16.msra.mxu0 %v2750
        %3480 = vmatprep.subr.bf16.mxu0 0
        %3481 = vmatpush1.bf16.msra.mxu0 %v2748
        %3482 = vmatprep.subr.bf16.mxu0 0
        %3483 = vmatpush1.bf16.msra.mxu0 %v2746
        %3484 = vmatprep.subr.bf16.mxu0 0
        %3485 = vmatpush1.bf16.msra.mxu0 %v2744
        %3486 = vmatprep.subr.bf16.mxu0 0
        %3487 = vmatpush2.bf16.msra.mxu0 0
        %3488 = vmatprep.subr.bf16.mxu0 0
        %3489 = vmatpush2.bf16.msra.mxu0 0
        %3490 = vmatprep.subr.bf16.mxu0 0
        %3491 = vmatpush2.bf16.msra.mxu0 0
        %3492 = vmatprep.subr.bf16.mxu0 0
        %3493 = vmatpush2.bf16.msra.mxu0 0
        %3494 = vmatprep.subr.bf16.mxu0 0
        %3495 = vmatpush2.bf16.msra.mxu0 0
        %3496 = vmatprep.subr.bf16.mxu0 0
        %3497 = vmatpush2.bf16.msra.mxu0 0
        %3498 = vmatprep.subr.bf16.mxu0 0
        %3499 = vmatpush2.bf16.msra.mxu0 0
        %3500 = vmatprep.subr.bf16.mxu0 0
        %3501 = vmatpush2.bf16.msra.mxu0 0
        %3502 = vmatprep.mubr.bf16.mxu0 0
        %3503 = vmatmul.mubr.bf16.gmra.mxu0 %v3459
        %v3504 = vpop.f32.mrf.mxu0
        %v3505 = vadd.f32 0.0, %v3504
        %v3506 = vpop.f32.mrf.mxu0
        %v3507 = vpop.f32.mrf.mxu0
        %v3508 = vadd.f32 0.0, %v3507
        %v3509 = vpop.f32.mrf.mxu0
        %3510 = vmatprep.mubr.bf16.mxu0 0
        %3511 = vmatmul.mubr.bf16.gmra.mxu0 %v3462
        %v3512 = vpop.f32.mrf.mxu0
        %v3513 = vadd.f32 0.0, %v3512
        %v3514 = vpop.f32.mrf.mxu0
        %v3515 = vpop.f32.mrf.mxu0
        %v3516 = vadd.f32 0.0, %v3515
        %v3517 = vpop.f32.mrf.mxu0
        %3518 = vmatprep.mubr.bf16.mxu0 0
        %3519 = vmatmul.mubr.bf16.gmra.mxu0 %v3465
        %v3520 = vpop.f32.mrf.mxu0
        %v3521 = vadd.f32 0.0, %v3520
        %v3522 = vpop.f32.mrf.mxu0
        %v3523 = vpop.f32.mrf.mxu0
        %v3524 = vadd.f32 0.0, %v3523
        %v3525 = vpop.f32.mrf.mxu0
        %3526 = vmatprep.mubr.bf16.mxu0 0
        %3527 = vmatmul.mubr.bf16.gmra.mxu0 %v3468
        %v3528 = vpop.f32.mrf.mxu0
        %v3529 = vadd.f32 0.0, %v3528
        %v3530 = vpop.f32.mrf.mxu0
        %v3531 = vpop.f32.mrf.mxu0
        %v3532 = vadd.f32 0.0, %v3531
        %v3533 = vpop.f32.mrf.mxu0
        %3534 = vdwg.mxu0
        %v3535 = vpack.c.bf16 %v3508, %v3505
        %v3536 = vpack.c.bf16 %v3516, %v3513
        %v3537 = vpack.c.bf16 %v3524, %v3521
        %v3538 = vpack.c.bf16 %v3532, %v3529
        %v3543 = vunpack.c.l.b16 %v3535
        %v3544 = vunpack.c.h.b16 %v3535
        %v3545 = vunpack.c.l.b16 %v3536
        %v3546 = vunpack.c.h.b16 %v3536
        %v3547 = vunpack.c.l.b16 %v3537
        %v3548 = vunpack.c.h.b16 %v3537
        %v3549 = vunpack.c.l.b16 %v3538
        %v3550 = vunpack.c.h.b16 %v3538
        %v3551 = vpack.c.b16 %v3543, %v3543
        %v3552 = vpack.c.b16 %v3544, %v3544
        %v3553 = vpack.c.b16 %v3545, %v3545
        %v3554 = vpack.c.b16 %v3546, %v3546
        %v3555 = vpack.c.b16 %v3547, %v3547
        %v3556 = vpack.c.b16 %v3548, %v3548
        %v3557 = vpack.c.b16 %v3549, %v3549
        %v3558 = vpack.c.b16 %v3550, %v3550
        %3567 = vst [vmem:[#allocation2 + $0x40] sm:$0xf] %v3551
        %3568 = vst [vmem:[#allocation2 + $0x48] sm:$0xf] %v3552
        %3569 = vst [vmem:[#allocation2 + $0x50] sm:$0xf] %v3553
        %3570 = vst [vmem:[#allocation2 + $0x58] sm:$0xf] %v3554
        %3571 = vst [vmem:[#allocation2 + $0x60] sm:$0xf] %v3555
        %3572 = vst [vmem:[#allocation2 + $0x68] sm:$0xf] %v3556
        %3573 = vst [vmem:[#allocation2 + $0x70] sm:$0xf] %v3557
        %3574 = vst [vmem:[#allocation2 + $0x78] sm:$0xf] %v3558
        %3575 = vmatprep.subr.bf16.mxu0 0
        %3576 = vmatpush1.bf16.xpose.msra.mxu0 0
        %3577 = vmatprep.subr.bf16.mxu0 0
        %3578 = vmatpush1.bf16.xpose.msra.mxu0 0
        %3579 = vmatprep.subr.bf16.mxu0 0
        %3580 = vmatpush1.bf16.xpose.msra.mxu0 0
        %3581 = vmatprep.subr.bf16.mxu0 0
        %3582 = vmatpush1.bf16.xpose.msra.mxu0 0
        %3583 = vmatprep.subr.bf16.mxu0 0
        %3584 = vmatpush1.bf16.xpose.msra.mxu0 %v2735
        %3585 = vmatprep.subr.bf16.mxu0 0
        %3586 = vmatpush1.bf16.xpose.msra.mxu0 %v2733
        %3587 = vmatprep.subr.bf16.mxu0 0
        %3588 = vmatpush1.bf16.xpose.msra.mxu0 %v2731
        %3589 = vmatprep.subr.bf16.mxu0 0
        %3590 = vmatpush1.bf16.xpose.msra.mxu0 %v2729
        %3591 = vmatprep.subr.bf16.mxu0 0
        %3592 = vmatpush2.bf16.xpose.msra.mxu0 0
        %3593 = vmatprep.subr.bf16.mxu0 0
        %3594 = vmatpush2.bf16.xpose.msra.mxu0 0
        %3595 = vmatprep.subr.bf16.mxu0 0
        %3596 = vmatpush2.bf16.xpose.msra.mxu0 0
        %3597 = vmatprep.subr.bf16.mxu0 0
        %3598 = vmatpush2.bf16.xpose.msra.mxu0 0
        %3599 = vmatprep.subr.bf16.mxu0 0
        %3600 = vmatpush2.bf16.xpose.msra.mxu0 0
        %3601 = vmatprep.subr.bf16.mxu0 0
        %3602 = vmatpush2.bf16.xpose.msra.mxu0 0
        %3603 = vmatprep.subr.bf16.mxu0 0
        %3604 = vmatpush2.bf16.xpose.msra.mxu0 0
        %3605 = vmatprep.subr.bf16.mxu0 0
        %3606 = vmatpush2.bf16.xpose.msra.mxu0 0
        %3607 = vmatprep.mubr.bf16.mxu0 0
        %3608 = vmatmul.mubr.bf16.gmra.mxu0 %v2713
        %v3609 = vpop.f32.mrf.mxu0
        %v3610 = vadd.f32 0.0, %v3609
        %v3611 = vpop.f32.mrf.mxu0
        %v3612 = vpop.f32.mrf.mxu0
        %v3613 = vadd.f32 0.0, %v3612
        %v3614 = vpop.f32.mrf.mxu0
        %3615 = vmatprep.mubr.bf16.mxu0 0
        %3616 = vmatmul.mubr.bf16.gmra.mxu0 %v2715
        %v3617 = vpop.f32.mrf.mxu0
        %v3618 = vadd.f32 0.0, %v3617
        %v3619 = vpop.f32.mrf.mxu0
        %v3620 = vpop.f32.mrf.mxu0
        %v3621 = vadd.f32 0.0, %v3620
        %v3622 = vpop.f32.mrf.mxu0
        %3623 = vmatprep.mubr.bf16.mxu0 0
        %3624 = vmatmul.mubr.bf16.gmra.mxu0 %v2717
        %v3625 = vpop.f32.mrf.mxu0
        %v3626 = vadd.f32 0.0, %v3625
        %v3627 = vpop.f32.mrf.mxu0
        %v3628 = vpop.f32.mrf.mxu0
        %v3629 = vadd.f32 0.0, %v3628
        %v3630 = vpop.f32.mrf.mxu0
        %3631 = vmatprep.mubr.bf16.mxu0 0
        %3632 = vmatmul.mubr.bf16.gmra.mxu0 %v2719
        %v3633 = vpop.f32.mrf.mxu0
        %v3634 = vadd.f32 0.0, %v3633
        %v3635 = vpop.f32.mrf.mxu0
        %v3636 = vpop.f32.mrf.mxu0
        %v3637 = vadd.f32 0.0, %v3636
        %v3638 = vpop.f32.mrf.mxu0
        %3639 = vdwg.mxu0
        %v3640 = vsel %vm2817, %v3610, -inf
        %3641 = vmax.xlane.f32.xlu0 %v3640
        %v3642 = vpop.xlane.xlu0 %3641
        %v3643 = vsel %vm2817, %v3613, -inf
        %3644 = vmax.xlane.f32.xlu0 %v3643
        %v3645 = vpop.xlane.xlu0 %3644
        %v3646 = vsel %vm2817, %v3618, -inf
        %3647 = vmax.xlane.f32.xlu0 %v3646
        %v3648 = vpop.xlane.xlu0 %3647
        %v3649 = vsel %vm2817, %v3621, -inf
        %3650 = vmax.xlane.f32.xlu0 %v3649
        %v3651 = vpop.xlane.xlu0 %3650
        %v3652 = vsel %vm2817, %v3626, -inf
        %3653 = vmax.xlane.f32.xlu0 %v3652
        %v3654 = vpop.xlane.xlu0 %3653
        %v3655 = vsel %vm2817, %v3629, -inf
        %3656 = vmax.xlane.f32.xlu0 %v3655
        %v3657 = vpop.xlane.xlu0 %3656
        %v3658 = vsel %vm2817, %v3634, -inf
        %3659 = vmax.xlane.f32.xlu0 %v3658
        %v3660 = vpop.xlane.xlu0 %3659
        %v3661 = vsel %vm2817, %v3637, -inf
        %3662 = vmax.xlane.f32.xlu0 %v3661
        %v3663 = vpop.xlane.xlu0 %3662
        %v3664 = vsub.f32 %v3610, %v3642
        %v3665 = vsub.f32 %v3613, %v3645
        %v3666 = vsub.f32 %v3618, %v3648
        %v3667 = vsub.f32 %v3621, %v3651
        %v3668 = vsub.f32 %v3626, %v3654
        %v3669 = vsub.f32 %v3629, %v3657
        %v3670 = vsub.f32 %v3634, %v3660
        %v3671 = vsub.f32 %v3637, %v3663
        %v3672 = vmul.f32 %v3664, 1.442695
        %v3673 = vpow.pop %v3672
        %v3674 = vmul.f32 %v3665, 1.442695
        %v3675 = vpow.pop %v3674
        %v3676 = vmul.f32 %v3666, 1.442695
        %v3677 = vpow.pop %v3676
        %v3678 = vmul.f32 %v3667, 1.442695
        %v3679 = vpow.pop %v3678
        %v3680 = vmul.f32 %v3668, 1.442695
        %v3681 = vpow.pop %v3680
        %v3682 = vmul.f32 %v3669, 1.442695
        %v3683 = vpow.pop %v3682
        %v3684 = vmul.f32 %v3670, 1.442695
        %v3685 = vpow.pop %v3684
        %v3686 = vmul.f32 %v3671, 1.442695
        %v3687 = vpow.pop %v3686
        %v3688 = vsel %vm2817, %v3673, 0.0
        %3689 = vadd.xlane.f32.xlu0 %v3688
        %v3690 = vpop.xlane.xlu0 %3689
        %v3691 = vsel %vm2817, %v3675, 0.0
        %3692 = vadd.xlane.f32.xlu0 %v3691
        %v3693 = vpop.xlane.xlu0 %3692
        %v3694 = vsel %vm2817, %v3677, 0.0
        %3695 = vadd.xlane.f32.xlu0 %v3694
        %v3696 = vpop.xlane.xlu0 %3695
        %v3697 = vsel %vm2817, %v3679, 0.0
        %3698 = vadd.xlane.f32.xlu0 %v3697
        %v3699 = vpop.xlane.xlu0 %3698
        %v3700 = vsel %vm2817, %v3681, 0.0
        %3701 = vadd.xlane.f32.xlu0 %v3700
        %v3702 = vpop.xlane.xlu0 %3701
        %v3703 = vsel %vm2817, %v3683, 0.0
        %3704 = vadd.xlane.f32.xlu0 %v3703
        %v3705 = vpop.xlane.xlu0 %3704
        %v3706 = vsel %vm2817, %v3685, 0.0
        %3707 = vadd.xlane.f32.xlu0 %v3706
        %v3708 = vpop.xlane.xlu0 %3707
        %v3709 = vsel %vm2817, %v3687, 0.0
        %3710 = vadd.xlane.f32.xlu0 %v3709
        %v3711 = vpop.xlane.xlu0 %3710
        %v3712 = vrcp.pop %v3690
        %v3713 = vrcp.pop %v3693
        %v3714 = vrcp.pop %v3696
        %v3715 = vrcp.pop %v3699
        %v3716 = vrcp.pop %v3702
        %v3717 = vrcp.pop %v3705
        %v3718 = vrcp.pop %v3708
        %v3719 = vrcp.pop %v3711
        %v3720 = vmul.f32 %v3673, %v3712
        %v3721 = vmul.f32 %v3675, %v3713
        %v3722 = vmul.f32 %v3677, %v3714
        %v3723 = vmul.f32 %v3679, %v3715
        %v3724 = vmul.f32 %v3681, %v3716
        %v3725 = vmul.f32 %v3683, %v3717
        %v3726 = vmul.f32 %v3685, %v3718
        %v3727 = vmul.f32 %v3687, %v3719
        %v3728 = vpack.c.bf16 %v3721, %v3720
        %v3729 = vpack.c.bf16 %v3723, %v3722
        %v3730 = vpack.c.bf16 %v3725, %v3724
        %v3731 = vpack.c.bf16 %v3727, %v3726
        %v3733 = vsel %vm2817, %v3728, 0
        %v3736 = vsel %vm2817, %v3729, 0
        %v3739 = vsel %vm2817, %v3730, 0
        %v3742 = vsel %vm2817, %v3731, 0
        %3744 = vmatprep.subr.bf16.mxu0 0
        %3745 = vmatpush1.bf16.msra.mxu0 0
        %3746 = vmatprep.subr.bf16.mxu0 0
        %3747 = vmatpush1.bf16.msra.mxu0 0
        %3748 = vmatprep.subr.bf16.mxu0 0
        %3749 = vmatpush1.bf16.msra.mxu0 0
        %3750 = vmatprep.subr.bf16.mxu0 0
        %3751 = vmatpush1.bf16.msra.mxu0 0
        %3752 = vmatprep.subr.bf16.mxu0 0
        %3753 = vmatpush1.bf16.msra.mxu0 %v2751
        %3754 = vmatprep.subr.bf16.mxu0 0
        %3755 = vmatpush1.bf16.msra.mxu0 %v2749
        %3756 = vmatprep.subr.bf16.mxu0 0
        %3757 = vmatpush1.bf16.msra.mxu0 %v2747
        %3758 = vmatprep.subr.bf16.mxu0 0
        %3759 = vmatpush1.bf16.msra.mxu0 %v2745
        %3760 = vmatprep.subr.bf16.mxu0 0
        %3761 = vmatpush2.bf16.msra.mxu0 0
        %3762 = vmatprep.subr.bf16.mxu0 0
        %3763 = vmatpush2.bf16.msra.mxu0 0
        %3764 = vmatprep.subr.bf16.mxu0 0
        %3765 = vmatpush2.bf16.msra.mxu0 0
        %3766 = vmatprep.subr.bf16.mxu0 0
        %3767 = vmatpush2.bf16.msra.mxu0 0
        %3768 = vmatprep.subr.bf16.mxu0 0
        %3769 = vmatpush2.bf16.msra.mxu0 0
        %3770 = vmatprep.subr.bf16.mxu0 0
        %3771 = vmatpush2.bf16.msra.mxu0 0
        %3772 = vmatprep.subr.bf16.mxu0 0
        %3773 = vmatpush2.bf16.msra.mxu0 0
        %3774 = vmatprep.subr.bf16.mxu0 0
        %3775 = vmatpush2.bf16.msra.mxu0 0
        %3776 = vmatprep.mubr.bf16.mxu0 0
        %3777 = vmatmul.mubr.bf16.gmra.mxu0 %v3733
        %v3778 = vpop.f32.mrf.mxu0
        %v3779 = vadd.f32 0.0, %v3778
        %v3780 = vpop.f32.mrf.mxu0
        %v3781 = vpop.f32.mrf.mxu0
        %v3782 = vadd.f32 0.0, %v3781
        %v3783 = vpop.f32.mrf.mxu0
        %3784 = vmatprep.mubr.bf16.mxu0 0
        %3785 = vmatmul.mubr.bf16.gmra.mxu0 %v3736
        %v3786 = vpop.f32.mrf.mxu0
        %v3787 = vadd.f32 0.0, %v3786
        %v3788 = vpop.f32.mrf.mxu0
        %v3789 = vpop.f32.mrf.mxu0
        %v3790 = vadd.f32 0.0, %v3789
        %v3791 = vpop.f32.mrf.mxu0
        %3792 = vmatprep.mubr.bf16.mxu0 0
        %3793 = vmatmul.mubr.bf16.gmra.mxu0 %v3739
        %v3794 = vpop.f32.mrf.mxu0
        %v3795 = vadd.f32 0.0, %v3794
        %v3796 = vpop.f32.mrf.mxu0
        %v3797 = vpop.f32.mrf.mxu0
        %v3798 = vadd.f32 0.0, %v3797
        %v3799 = vpop.f32.mrf.mxu0
        %3800 = vmatprep.mubr.bf16.mxu0 0
        %3801 = vmatmul.mubr.bf16.gmra.mxu0 %v3742
        %v3802 = vpop.f32.mrf.mxu0
        %v3803 = vadd.f32 0.0, %v3802
        %v3804 = vpop.f32.mrf.mxu0
        %v3805 = vpop.f32.mrf.mxu0
        %v3806 = vadd.f32 0.0, %v3805
        %v3807 = vpop.f32.mrf.mxu0
        %3808 = vdwg.mxu0
        %v3809 = vpack.c.bf16 %v3782, %v3779
        %v3810 = vpack.c.bf16 %v3790, %v3787
        %v3811 = vpack.c.bf16 %v3798, %v3795
        %v3812 = vpack.c.bf16 %v3806, %v3803
        %v3817 = vunpack.c.l.b16 %v3809
        %v3818 = vunpack.c.h.b16 %v3809
        %v3819 = vunpack.c.l.b16 %v3810
        %v3820 = vunpack.c.h.b16 %v3810
        %v3821 = vunpack.c.l.b16 %v3811
        %v3822 = vunpack.c.h.b16 %v3811
        %v3823 = vunpack.c.l.b16 %v3812
        %v3824 = vunpack.c.h.b16 %v3812
        %v3825 = vpack.c.b16 %v3817, %v3817
        %v3826 = vpack.c.b16 %v3818, %v3818
        %v3827 = vpack.c.b16 %v3819, %v3819
        %v3828 = vpack.c.b16 %v3820, %v3820
        %v3829 = vpack.c.b16 %v3821, %v3821
        %v3830 = vpack.c.b16 %v3822, %v3822
        %v3831 = vpack.c.b16 %v3823, %v3823
        %v3832 = vpack.c.b16 %v3824, %v3824
        %3841 = vst [vmem:[#allocation2 + $0x44] sm:$0xf] %v3825
        %3842 = vst [vmem:[#allocation2 + $0x4c] sm:$0xf] %v3826
        %3843 = vst [vmem:[#allocation2 + $0x54] sm:$0xf] %v3827
        %3844 = vst [vmem:[#allocation2 + $0x5c] sm:$0xf] %v3828
        %3845 = vst [vmem:[#allocation2 + $0x64] sm:$0xf] %v3829
        %3846 = vst [vmem:[#allocation2 + $0x6c] sm:$0xf] %v3830
        %3847 = vst [vmem:[#allocation2 + $0x74] sm:$0xf] %v3831
        %3848 = vst [vmem:[#allocation2 + $0x7c] sm:$0xf] %v3832
        %v3849 = vld [vmem:[#allocation2] sm:$0xff]
        %v3850 = vld [vmem:[#allocation2 + $0x8] sm:$0xff]
        %v3851 = vld [vmem:[#allocation2 + $0x10] sm:$0xff]
        %v3852 = vld [vmem:[#allocation2 + $0x18] sm:$0xff]
        %v3853 = vld [vmem:[#allocation2 + $0x20] sm:$0xff]
        %v3854 = vld [vmem:[#allocation2 + $0x28] sm:$0xff]
        %v3855 = vld [vmem:[#allocation2 + $0x30] sm:$0xff]
        %v3856 = vld [vmem:[#allocation2 + $0x38] sm:$0xff]
        %v3857 = vld [vmem:[#allocation2 + $0x40] sm:$0xff]
        %v3858 = vld [vmem:[#allocation2 + $0x48] sm:$0xff]
        %v3859 = vld [vmem:[#allocation2 + $0x50] sm:$0xff]
        %v3860 = vld [vmem:[#allocation2 + $0x58] sm:$0xff]
        %v3861 = vld [vmem:[#allocation2 + $0x60] sm:$0xff]
        %v3862 = vld [vmem:[#allocation2 + $0x68] sm:$0xff]
        %v3863 = vld [vmem:[#allocation2 + $0x70] sm:$0xff]
        %v3864 = vld [vmem:[#allocation2 + $0x78] sm:$0xff]
        %v3865 = vld [vmem:[%s816] sm:$0xff]
        %v3866 = vld [vmem:[%s816 + $0x8] sm:$0xff]
        %v3867 = vld [vmem:[%s816 + $0x10] sm:$0xff]
        %v3868 = vld [vmem:[%s816 + $0x18] sm:$0xff]
        %v3869 = vld [vmem:[%s816 + $0x20] sm:$0xff]
        %v3870 = vld [vmem:[%s816 + $0x28] sm:$0xff]
        %v3871 = vld [vmem:[%s816 + $0x30] sm:$0xff]
        %v3872 = vld [vmem:[%s816 + $0x38] sm:$0xff]
        %v3873 = vld [vmem:[%s816 + $0x40] sm:$0xff]
        %v3874 = vld [vmem:[%s816 + $0x48] sm:$0xff]
        %v3875 = vld [vmem:[%s816 + $0x50] sm:$0xff]
        %v3876 = vld [vmem:[%s816 + $0x58] sm:$0xff]
        %v3877 = vld [vmem:[%s816 + $0x60] sm:$0xff]
        %v3878 = vld [vmem:[%s816 + $0x68] sm:$0xff]
        %v3879 = vld [vmem:[%s816 + $0x70] sm:$0xff]
        %v3880 = vld [vmem:[%s816 + $0x78] sm:$0xff]
        %v3881 = vld [vmem:[%s816 + $0x80] sm:$0xff]
        %v3882 = vld [vmem:[%s816 + $0x88] sm:$0xff]
        %v3883 = vld [vmem:[%s816 + $0x90] sm:$0xff]
        %v3884 = vld [vmem:[%s816 + $0x98] sm:$0xff]
        %v3885 = vld [vmem:[%s816 + $0xa0] sm:$0xff]
        %v3886 = vld [vmem:[%s816 + $0xa8] sm:$0xff]
        %v3887 = vld [vmem:[%s816 + $0xb0] sm:$0xff]
        %v3888 = vld [vmem:[%s816 + $0xb8] sm:$0xff]
        %v3889 = vld [vmem:[%s816 + $0xc0] sm:$0xff]
        %v3890 = vld [vmem:[%s816 + $0xc8] sm:$0xff]
        %v3891 = vld [vmem:[%s816 + $0xd0] sm:$0xff]
        %v3892 = vld [vmem:[%s816 + $0xd8] sm:$0xff]
        %v3893 = vld [vmem:[%s816 + $0xe0] sm:$0xff]
        %v3894 = vld [vmem:[%s816 + $0xe8] sm:$0xff]
        %v3895 = vld [vmem:[%s816 + $0xf0] sm:$0xff]
        %v3896 = vld [vmem:[%s816 + $0xf8] sm:$0xff]
        %v3897 = vld [vmem:[%s825] sm:$0x3]
        %v3899 = vlaneseq
        %v3900 = vshrl.u32 %v3899, 7
        %v3901 = vsub.s32 0, %v3900
        %v3902 = vrot.slane %v3897, %v3901
        %v3903 = vlaneseq
        %v3904 = vshrl.u32 %v3903, 7
        %v3905 = vsub.s32 1, %v3904
        %v3906 = vrot.slane %v3897, %v3905
        %v3925 = vunpack.c.l.b16 %v3849
        %v3926 = vunpack.c.h.b16 %v3849
        %v3927 = vunpack.c.l.b16 %v3850
        %v3928 = vunpack.c.h.b16 %v3850
        %v3929 = vunpack.c.l.b16 %v3851
        %v3930 = vunpack.c.h.b16 %v3851
        %v3931 = vunpack.c.l.b16 %v3852
        %v3932 = vunpack.c.h.b16 %v3852
        %v3933 = vunpack.c.l.b16 %v3853
        %v3934 = vunpack.c.h.b16 %v3853
        %v3935 = vunpack.c.l.b16 %v3854
        %v3936 = vunpack.c.h.b16 %v3854
        %v3937 = vunpack.c.l.b16 %v3855
        %v3938 = vunpack.c.h.b16 %v3855
        %v3939 = vunpack.c.l.b16 %v3856
        %v3940 = vunpack.c.h.b16 %v3856
        %v3941 = vunpack.c.l.b16 %v3857
        %v3942 = vunpack.c.h.b16 %v3857
        %v3943 = vunpack.c.l.b16 %v3858
        %v3944 = vunpack.c.h.b16 %v3858
        %v3945 = vunpack.c.l.b16 %v3859
        %v3946 = vunpack.c.h.b16 %v3859
        %v3947 = vunpack.c.l.b16 %v3860
        %v3948 = vunpack.c.h.b16 %v3860
        %v3949 = vunpack.c.l.b16 %v3861
        %v3950 = vunpack.c.h.b16 %v3861
        %v3951 = vunpack.c.l.b16 %v3862
        %v3952 = vunpack.c.h.b16 %v3862
        %v3953 = vunpack.c.l.b16 %v3863
        %v3954 = vunpack.c.h.b16 %v3863
        %v3955 = vunpack.c.l.b16 %v3864
        %v3956 = vunpack.c.h.b16 %v3864
        %v3957 = vpack.c.b16 %v3927, %v3925
        %v3958 = vpack.c.b16 %v3928, %v3926
        %v3959 = vpack.c.b16 %v3931, %v3929
        %v3960 = vpack.c.b16 %v3932, %v3930
        %v3961 = vpack.c.b16 %v3935, %v3933
        %v3962 = vpack.c.b16 %v3936, %v3934
        %v3963 = vpack.c.b16 %v3939, %v3937
        %v3964 = vpack.c.b16 %v3940, %v3938
        %v3965 = vpack.c.b16 %v3943, %v3941
        %v3966 = vpack.c.b16 %v3944, %v3942
        %v3967 = vpack.c.b16 %v3947, %v3945
        %v3968 = vpack.c.b16 %v3948, %v3946
        %v3969 = vpack.c.b16 %v3951, %v3949
        %v3970 = vpack.c.b16 %v3952, %v3950
        %v3971 = vpack.c.b16 %v3955, %v3953
        %v3972 = vpack.c.b16 %v3956, %v3954
        %v4021 = vunpack.c.l.b16 %v3865
        %v4022 = vunpack.c.h.b16 %v3865
        %v4023 = vunpack.c.l.b16 %v3866
        %v4024 = vunpack.c.h.b16 %v3866
        %v4025 = vunpack.c.l.b16 %v3867
        %v4026 = vunpack.c.h.b16 %v3867
        %v4027 = vunpack.c.l.b16 %v3868
        %v4028 = vunpack.c.h.b16 %v3868
        %v4029 = vunpack.c.l.b16 %v3869
        %v4030 = vunpack.c.h.b16 %v3869
        %v4031 = vunpack.c.l.b16 %v3870
        %v4032 = vunpack.c.h.b16 %v3870
        %v4033 = vunpack.c.l.b16 %v3871
        %v4034 = vunpack.c.h.b16 %v3871
        %v4035 = vunpack.c.l.b16 %v3872
        %v4036 = vunpack.c.h.b16 %v3872
        %v4037 = vunpack.c.l.b16 %v3873
        %v4038 = vunpack.c.h.b16 %v3873
        %v4039 = vunpack.c.l.b16 %v3874
        %v4040 = vunpack.c.h.b16 %v3874
        %v4041 = vunpack.c.l.b16 %v3875
        %v4042 = vunpack.c.h.b16 %v3875
        %v4043 = vunpack.c.l.b16 %v3876
        %v4044 = vunpack.c.h.b16 %v3876
        %v4045 = vunpack.c.l.b16 %v3877
        %v4046 = vunpack.c.h.b16 %v3877
        %v4047 = vunpack.c.l.b16 %v3878
        %v4048 = vunpack.c.h.b16 %v3878
        %v4049 = vunpack.c.l.b16 %v3879
        %v4050 = vunpack.c.h.b16 %v3879
        %v4051 = vunpack.c.l.b16 %v3880
        %v4052 = vunpack.c.h.b16 %v3880
        %v4053 = vunpack.c.l.b16 %v3881
        %v4054 = vunpack.c.h.b16 %v3881
        %v4055 = vunpack.c.l.b16 %v3882
        %v4056 = vunpack.c.h.b16 %v3882
        %v4057 = vunpack.c.l.b16 %v3883
        %v4058 = vunpack.c.h.b16 %v3883
        %v4059 = vunpack.c.l.b16 %v3884
        %v4060 = vunpack.c.h.b16 %v3884
        %v4061 = vunpack.c.l.b16 %v3885
        %v4062 = vunpack.c.h.b16 %v3885
        %v4063 = vunpack.c.l.b16 %v3886
        %v4064 = vunpack.c.h.b16 %v3886
        %v4065 = vunpack.c.l.b16 %v3887
        %v4066 = vunpack.c.h.b16 %v3887
        %v4067 = vunpack.c.l.b16 %v3888
        %v4068 = vunpack.c.h.b16 %v3888
        %v4069 = vunpack.c.l.b16 %v3889
        %v4070 = vunpack.c.h.b16 %v3889
        %v4071 = vunpack.c.l.b16 %v3890
        %v4072 = vunpack.c.h.b16 %v3890
        %v4073 = vunpack.c.l.b16 %v3891
        %v4074 = vunpack.c.h.b16 %v3891
        %v4075 = vunpack.c.l.b16 %v3892
        %v4076 = vunpack.c.h.b16 %v3892
        %v4077 = vunpack.c.l.b16 %v3893
        %v4078 = vunpack.c.h.b16 %v3893
        %v4079 = vunpack.c.l.b16 %v3894
        %v4080 = vunpack.c.h.b16 %v3894
        %v4081 = vunpack.c.l.b16 %v3895
        %v4082 = vunpack.c.h.b16 %v3895
        %v4083 = vunpack.c.l.b16 %v3896
        %v4084 = vunpack.c.h.b16 %v3896
        %v4085 = vpack.c.b16 %v4023, %v4021
        %v4086 = vpack.c.b16 %v4024, %v4022
        %v4087 = vpack.c.b16 %v4027, %v4025
        %v4088 = vpack.c.b16 %v4028, %v4026
        %v4089 = vpack.c.b16 %v4031, %v4029
        %v4090 = vpack.c.b16 %v4032, %v4030
        %v4091 = vpack.c.b16 %v4035, %v4033
        %v4092 = vpack.c.b16 %v4036, %v4034
        %v4093 = vpack.c.b16 %v4039, %v4037
        %v4094 = vpack.c.b16 %v4040, %v4038
        %v4095 = vpack.c.b16 %v4043, %v4041
        %v4096 = vpack.c.b16 %v4044, %v4042
        %v4097 = vpack.c.b16 %v4047, %v4045
        %v4098 = vpack.c.b16 %v4048, %v4046
        %v4099 = vpack.c.b16 %v4051, %v4049
        %v4100 = vpack.c.b16 %v4052, %v4050
        %v4101 = vpack.c.b16 %v4055, %v4053
        %v4102 = vpack.c.b16 %v4056, %v4054
        %v4103 = vpack.c.b16 %v4059, %v4057
        %v4104 = vpack.c.b16 %v4060, %v4058
        %v4105 = vpack.c.b16 %v4063, %v4061
        %v4106 = vpack.c.b16 %v4064, %v4062
        %v4107 = vpack.c.b16 %v4067, %v4065
        %v4108 = vpack.c.b16 %v4068, %v4066
        %v4109 = vpack.c.b16 %v4071, %v4069
        %v4110 = vpack.c.b16 %v4072, %v4070
        %v4111 = vpack.c.b16 %v4075, %v4073
        %v4112 = vpack.c.b16 %v4076, %v4074
        %v4113 = vpack.c.b16 %v4079, %v4077
        %v4114 = vpack.c.b16 %v4080, %v4078
        %v4115 = vpack.c.b16 %v4083, %v4081
        %v4116 = vpack.c.b16 %v4084, %v4082
        %4149 = vmatprep.subr.bf16.mxu0 %v4100
        %4150 = vmatpush1.bf16.msra.mxu0 %v4099
        %4151 = vmatprep.subr.bf16.mxu0 %v4098
        %4152 = vmatpush1.bf16.msra.mxu0 %v4097
        %4153 = vmatprep.subr.bf16.mxu0 %v4096
        %4154 = vmatpush1.bf16.msra.mxu0 %v4095
        %4155 = vmatprep.subr.bf16.mxu0 %v4094
        %4156 = vmatpush1.bf16.msra.mxu0 %v4093
        %4157 = vmatprep.subr.bf16.mxu0 %v4092
        %4158 = vmatpush1.bf16.msra.mxu0 %v4091
        %4159 = vmatprep.subr.bf16.mxu0 %v4090
        %4160 = vmatpush1.bf16.msra.mxu0 %v4089
        %4161 = vmatprep.subr.bf16.mxu0 %v4088
        %4162 = vmatpush1.bf16.msra.mxu0 %v4087
        %4163 = vmatprep.subr.bf16.mxu0 %v4086
        %4164 = vmatpush1.bf16.msra.mxu0 %v4085
        %4165 = vmatprep.subr.bf16.mxu0 %v4116
        %4166 = vmatpush2.bf16.msra.mxu0 %v4115
        %4167 = vmatprep.subr.bf16.mxu0 %v4114
        %4168 = vmatpush2.bf16.msra.mxu0 %v4113
        %4169 = vmatprep.subr.bf16.mxu0 %v4112
        %4170 = vmatpush2.bf16.msra.mxu0 %v4111
        %4171 = vmatprep.subr.bf16.mxu0 %v4110
        %4172 = vmatpush2.bf16.msra.mxu0 %v4109
        %4173 = vmatprep.subr.bf16.mxu0 %v4108
        %4174 = vmatpush2.bf16.msra.mxu0 %v4107
        %4175 = vmatprep.subr.bf16.mxu0 %v4106
        %4176 = vmatpush2.bf16.msra.mxu0 %v4105
        %4177 = vmatprep.subr.bf16.mxu0 %v4104
        %4178 = vmatpush2.bf16.msra.mxu0 %v4103
        %4179 = vmatprep.subr.bf16.mxu0 %v4102
        %4180 = vmatpush2.bf16.msra.mxu0 %v4101
        %4181 = vmatprep.mubr.bf16.mxu0 %v3958
        %4182 = vmatmul.mubr.bf16.gmra.mxu0 %v3957
        %v4183 = vpop.f32.mrf.mxu0
        %v4184 = vadd.f32 %v3902, %v4183
        %v4185 = vpop.f32.mrf.mxu0
        %v4186 = vadd.f32 %v3906, %v4185
        %v4187 = vpop.f32.mrf.mxu0
        %v4188 = vadd.f32 %v3902, %v4187
        %v4189 = vpop.f32.mrf.mxu0
        %v4190 = vadd.f32 %v3906, %v4189
        %4191 = vmatprep.mubr.bf16.mxu0 %v3960
        %4192 = vmatmul.mubr.bf16.gmra.mxu0 %v3959
        %v4193 = vpop.f32.mrf.mxu0
        %v4194 = vadd.f32 %v3902, %v4193
        %v4195 = vpop.f32.mrf.mxu0
        %v4196 = vadd.f32 %v3906, %v4195
        %v4197 = vpop.f32.mrf.mxu0
        %v4198 = vadd.f32 %v3902, %v4197
        %v4199 = vpop.f32.mrf.mxu0
        %v4200 = vadd.f32 %v3906, %v4199
        %4201 = vmatprep.mubr.bf16.mxu0 %v3962
        %4202 = vmatmul.mubr.bf16.gmra.mxu0 %v3961
        %v4203 = vpop.f32.mrf.mxu0
        %v4204 = vadd.f32 %v3902, %v4203
        %v4205 = vpop.f32.mrf.mxu0
        %v4206 = vadd.f32 %v3906, %v4205
        %v4207 = vpop.f32.mrf.mxu0
        %v4208 = vadd.f32 %v3902, %v4207
        %v4209 = vpop.f32.mrf.mxu0
        %v4210 = vadd.f32 %v3906, %v4209
        %4211 = vmatprep.mubr.bf16.mxu0 %v3964
        %4212 = vmatmul.mubr.bf16.gmra.mxu0 %v3963
        %v4213 = vpop.f32.mrf.mxu0
        %v4214 = vadd.f32 %v3902, %v4213
        %v4215 = vpop.f32.mrf.mxu0
        %v4216 = vadd.f32 %v3906, %v4215
        %v4217 = vpop.f32.mrf.mxu0
        %v4218 = vadd.f32 %v3902, %v4217
        %v4219 = vpop.f32.mrf.mxu0
        %v4220 = vadd.f32 %v3906, %v4219
        %4221 = vmatprep.mubr.bf16.mxu0 %v3966
        %4222 = vmatmul.mubr.bf16.gmra.mxu0 %v3965
        %v4223 = vpop.f32.mrf.mxu0
        %v4224 = vadd.f32 %v3902, %v4223
        %v4225 = vpop.f32.mrf.mxu0
        %v4226 = vadd.f32 %v3906, %v4225
        %v4227 = vpop.f32.mrf.mxu0
        %v4228 = vadd.f32 %v3902, %v4227
        %v4229 = vpop.f32.mrf.mxu0
        %v4230 = vadd.f32 %v3906, %v4229
        %4231 = vmatprep.mubr.bf16.mxu0 %v3968
        %4232 = vmatmul.mubr.bf16.gmra.mxu0 %v3967
        %v4233 = vpop.f32.mrf.mxu0
        %v4234 = vadd.f32 %v3902, %v4233
        %v4235 = vpop.f32.mrf.mxu0
        %v4236 = vadd.f32 %v3906, %v4235
        %v4237 = vpop.f32.mrf.mxu0
        %v4238 = vadd.f32 %v3902, %v4237
        %v4239 = vpop.f32.mrf.mxu0
        %v4240 = vadd.f32 %v3906, %v4239
        %4241 = vmatprep.mubr.bf16.mxu0 %v3970
        %4242 = vmatmul.mubr.bf16.gmra.mxu0 %v3969
        %v4243 = vpop.f32.mrf.mxu0
        %v4244 = vadd.f32 %v3902, %v4243
        %v4245 = vpop.f32.mrf.mxu0
        %v4246 = vadd.f32 %v3906, %v4245
        %v4247 = vpop.f32.mrf.mxu0
        %v4248 = vadd.f32 %v3902, %v4247
        %v4249 = vpop.f32.mrf.mxu0
        %v4250 = vadd.f32 %v3906, %v4249
        %4251 = vmatprep.mubr.bf16.mxu0 %v3972
        %4252 = vmatmul.mubr.bf16.gmra.mxu0 %v3971
        %v4253 = vpop.f32.mrf.mxu0
        %v4254 = vadd.f32 %v3902, %v4253
        %v4255 = vpop.f32.mrf.mxu0
        %v4256 = vadd.f32 %v3906, %v4255
        %v4257 = vpop.f32.mrf.mxu0
        %v4258 = vadd.f32 %v3902, %v4257
        %v4259 = vpop.f32.mrf.mxu0
        %v4260 = vadd.f32 %v3906, %v4259
        %4261 = vdwg.mxu0
        %v4262 = vld [vmem:[%s834] sm:$0x3]
        %v4264 = vlaneseq
        %v4265 = vshrl.u32 %v4264, 7
        %v4266 = vsub.s32 0, %v4265
        %v4267 = vrot.slane %v4262, %v4266
        %v4268 = vlaneseq
        %v4269 = vshrl.u32 %v4268, 7
        %v4270 = vsub.s32 1, %v4269
        %v4271 = vrot.slane %v4262, %v4270
        %v4274 = vmul.f32 %v4184, %v4267
        %v4275 = vmul.f32 %v4186, %v4271
        %v4276 = vmul.f32 %v4188, %v4267
        %v4277 = vmul.f32 %v4190, %v4271
        %v4278 = vmul.f32 %v4194, %v4267
        %v4279 = vmul.f32 %v4196, %v4271
        %v4280 = vmul.f32 %v4198, %v4267
        %v4281 = vmul.f32 %v4200, %v4271
        %v4282 = vmul.f32 %v4204, %v4267
        %v4283 = vmul.f32 %v4206, %v4271
        %v4284 = vmul.f32 %v4208, %v4267
        %v4285 = vmul.f32 %v4210, %v4271
        %v4286 = vmul.f32 %v4214, %v4267
        %v4287 = vmul.f32 %v4216, %v4271
        %v4288 = vmul.f32 %v4218, %v4267
        %v4289 = vmul.f32 %v4220, %v4271
        %v4290 = vmul.f32 %v4224, %v4267
        %v4291 = vmul.f32 %v4226, %v4271
        %v4292 = vmul.f32 %v4228, %v4267
        %v4293 = vmul.f32 %v4230, %v4271
        %v4294 = vmul.f32 %v4234, %v4267
        %v4295 = vmul.f32 %v4236, %v4271
        %v4296 = vmul.f32 %v4238, %v4267
        %v4297 = vmul.f32 %v4240, %v4271
        %v4298 = vmul.f32 %v4244, %v4267
        %v4299 = vmul.f32 %v4246, %v4271
        %v4300 = vmul.f32 %v4248, %v4267
        %v4301 = vmul.f32 %v4250, %v4271
        %v4302 = vmul.f32 %v4254, %v4267
        %v4303 = vmul.f32 %v4256, %v4271
        %v4304 = vmul.f32 %v4258, %v4267
        %v4305 = vmul.f32 %v4260, %v4271
        %v4306 = vadd.f32 %v1064, %v4274
        %v4307 = vadd.f32 %v1065, %v4275
        %v4308 = vadd.f32 %v1066, %v4276
        %v4309 = vadd.f32 %v1067, %v4277
        %v4310 = vadd.f32 %v1068, %v4278
        %v4311 = vadd.f32 %v1069, %v4279
        %v4312 = vadd.f32 %v1070, %v4280
        %v4313 = vadd.f32 %v1071, %v4281
        %v4314 = vadd.f32 %v1072, %v4282
        %v4315 = vadd.f32 %v1073, %v4283
        %v4316 = vadd.f32 %v1074, %v4284
        %v4317 = vadd.f32 %v1075, %v4285
        %v4318 = vadd.f32 %v1076, %v4286
        %v4319 = vadd.f32 %v1077, %v4287
        %v4320 = vadd.f32 %v1078, %v4288
        %v4321 = vadd.f32 %v1079, %v4289
        %v4322 = vadd.f32 %v1080, %v4290
        %v4323 = vadd.f32 %v1081, %v4291
        %v4324 = vadd.f32 %v1082, %v4292
        %v4325 = vadd.f32 %v1083, %v4293
        %v4326 = vadd.f32 %v1084, %v4294
        %v4327 = vadd.f32 %v1085, %v4295
        %v4328 = vadd.f32 %v1086, %v4296
        %v4329 = vadd.f32 %v1087, %v4297
        %v4330 = vadd.f32 %v1088, %v4298
        %v4331 = vadd.f32 %v1089, %v4299
        %v4332 = vadd.f32 %v1090, %v4300
        %v4333 = vadd.f32 %v1091, %v4301
        %v4334 = vadd.f32 %v1092, %v4302
        %v4335 = vadd.f32 %v1093, %v4303
        %v4336 = vadd.f32 %v1094, %v4304
        %v4337 = vadd.f32 %v1095, %v4305
        %v4338 = vld [vmem:[%s843] sm:$0x3]
        %v4339 = vmul.f32 %v4306, %v4306
        %v4340 = vmul.f32 %v4307, %v4307
        %v4341 = vmul.f32 %v4308, %v4308
        %v4342 = vmul.f32 %v4309, %v4309
        %v4343 = vmul.f32 %v4310, %v4310
        %v4344 = vmul.f32 %v4311, %v4311
        %v4345 = vmul.f32 %v4312, %v4312
        %v4346 = vmul.f32 %v4313, %v4313
        %v4347 = vmul.f32 %v4314, %v4314
        %v4348 = vmul.f32 %v4315, %v4315
        %v4349 = vmul.f32 %v4316, %v4316
        %v4350 = vmul.f32 %v4317, %v4317
        %v4351 = vmul.f32 %v4318, %v4318
        %v4352 = vmul.f32 %v4319, %v4319
        %v4353 = vmul.f32 %v4320, %v4320
        %v4354 = vmul.f32 %v4321, %v4321
        %v4355 = vmul.f32 %v4322, %v4322
        %v4356 = vmul.f32 %v4323, %v4323
        %v4357 = vmul.f32 %v4324, %v4324
        %v4358 = vmul.f32 %v4325, %v4325
        %v4359 = vmul.f32 %v4326, %v4326
        %v4360 = vmul.f32 %v4327, %v4327
        %v4361 = vmul.f32 %v4328, %v4328
        %v4362 = vmul.f32 %v4329, %v4329
        %v4363 = vmul.f32 %v4330, %v4330
        %v4364 = vmul.f32 %v4331, %v4331
        %v4365 = vmul.f32 %v4332, %v4332
        %v4366 = vmul.f32 %v4333, %v4333
        %v4367 = vmul.f32 %v4334, %v4334
        %v4368 = vmul.f32 %v4335, %v4335
        %v4369 = vmul.f32 %v4336, %v4336
        %v4370 = vmul.f32 %v4337, %v4337
        %v4371 = vadd.f32 %v4339, %v4340
        %4372 = vadd.xlane.f32.xlu0 %v4371
        %v4373 = vpop.xlane.xlu0 %4372
        %v4374 = vadd.f32 %v4341, %v4342
        %4375 = vadd.xlane.f32.xlu0 %v4374
        %v4376 = vpop.xlane.xlu0 %4375
        %v4377 = vadd.f32 %v4343, %v4344
        %4378 = vadd.xlane.f32.xlu0 %v4377
        %v4379 = vpop.xlane.xlu0 %4378
        %v4380 = vadd.f32 %v4345, %v4346
        %4381 = vadd.xlane.f32.xlu0 %v4380
        %v4382 = vpop.xlane.xlu0 %4381
        %v4383 = vadd.f32 %v4347, %v4348
        %4384 = vadd.xlane.f32.xlu0 %v4383
        %v4385 = vpop.xlane.xlu0 %4384
        %v4386 = vadd.f32 %v4349, %v4350
        %4387 = vadd.xlane.f32.xlu0 %v4386
        %v4388 = vpop.xlane.xlu0 %4387
        %v4389 = vadd.f32 %v4351, %v4352
        %4390 = vadd.xlane.f32.xlu0 %v4389
        %v4391 = vpop.xlane.xlu0 %4390
        %v4392 = vadd.f32 %v4353, %v4354
        %4393 = vadd.xlane.f32.xlu0 %v4392
        %v4394 = vpop.xlane.xlu0 %4393
        %v4395 = vadd.f32 %v4355, %v4356
        %4396 = vadd.xlane.f32.xlu0 %v4395
        %v4397 = vpop.xlane.xlu0 %4396
        %v4398 = vadd.f32 %v4357, %v4358
        %4399 = vadd.xlane.f32.xlu0 %v4398
        %v4400 = vpop.xlane.xlu0 %4399
        %v4401 = vadd.f32 %v4359, %v4360
        %4402 = vadd.xlane.f32.xlu0 %v4401
        %v4403 = vpop.xlane.xlu0 %4402
        %v4404 = vadd.f32 %v4361, %v4362
        %4405 = vadd.xlane.f32.xlu0 %v4404
        %v4406 = vpop.xlane.xlu0 %4405
        %v4407 = vadd.f32 %v4363, %v4364
        %4408 = vadd.xlane.f32.xlu0 %v4407
        %v4409 = vpop.xlane.xlu0 %4408
        %v4410 = vadd.f32 %v4365, %v4366
        %4411 = vadd.xlane.f32.xlu0 %v4410
        %v4412 = vpop.xlane.xlu0 %4411
        %v4413 = vadd.f32 %v4367, %v4368
        %4414 = vadd.xlane.f32.xlu0 %v4413
        %v4415 = vpop.xlane.xlu0 %4414
        %v4416 = vadd.f32 %v4369, %v4370
        %4417 = vadd.xlane.f32.xlu0 %v4416
        %v4418 = vpop.xlane.xlu0 %4417
        %v4419 = vmul.f32 %v4373, %v1177
        %v4420 = vmul.f32 %v4376, %v1177
        %v4421 = vmul.f32 %v4379, %v1177
        %v4422 = vmul.f32 %v4382, %v1177
        %v4423 = vmul.f32 %v4385, %v1177
        %v4424 = vmul.f32 %v4388, %v1177
        %v4425 = vmul.f32 %v4391, %v1177
        %v4426 = vmul.f32 %v4394, %v1177
        %v4427 = vmul.f32 %v4397, %v1177
        %v4428 = vmul.f32 %v4400, %v1177
        %v4429 = vmul.f32 %v4403, %v1177
        %v4430 = vmul.f32 %v4406, %v1177
        %v4431 = vmul.f32 %v4409, %v1177
        %v4432 = vmul.f32 %v4412, %v1177
        %v4433 = vmul.f32 %v4415, %v1177
        %v4434 = vmul.f32 %v4418, %v1177
        %v4435 = vadd.f32 %v4419, 1e-06
        %v4436 = vadd.f32 %v4420, 1e-06
        %v4437 = vadd.f32 %v4421, 1e-06
        %v4438 = vadd.f32 %v4422, 1e-06
        %v4439 = vadd.f32 %v4423, 1e-06
        %v4440 = vadd.f32 %v4424, 1e-06
        %v4441 = vadd.f32 %v4425, 1e-06
        %v4442 = vadd.f32 %v4426, 1e-06
        %v4443 = vadd.f32 %v4427, 1e-06
        %v4444 = vadd.f32 %v4428, 1e-06
        %v4445 = vadd.f32 %v4429, 1e-06
        %v4446 = vadd.f32 %v4430, 1e-06
        %v4447 = vadd.f32 %v4431, 1e-06
        %v4448 = vadd.f32 %v4432, 1e-06
        %v4449 = vadd.f32 %v4433, 1e-06
        %v4450 = vadd.f32 %v4434, 1e-06
        %v4451 = vrsqrt.pop %v4435
        %v4452 = vrsqrt.pop %v4436
        %v4453 = vrsqrt.pop %v4437
        %v4454 = vrsqrt.pop %v4438
        %v4455 = vrsqrt.pop %v4439
        %v4456 = vrsqrt.pop %v4440
        %v4457 = vrsqrt.pop %v4441
        %v4458 = vrsqrt.pop %v4442
        %v4459 = vrsqrt.pop %v4443
        %v4460 = vrsqrt.pop %v4444
        %v4461 = vrsqrt.pop %v4445
        %v4462 = vrsqrt.pop %v4446
        %v4463 = vrsqrt.pop %v4447
        %v4464 = vrsqrt.pop %v4448
        %v4465 = vrsqrt.pop %v4449
        %v4466 = vrsqrt.pop %v4450
        %v4467 = vmul.f32 %v4306, %v4451
        %v4468 = vmul.f32 %v4307, %v4451
        %v4469 = vmul.f32 %v4308, %v4452
        %v4470 = vmul.f32 %v4309, %v4452
        %v4471 = vmul.f32 %v4310, %v4453
        %v4472 = vmul.f32 %v4311, %v4453
        %v4473 = vmul.f32 %v4312, %v4454
        %v4474 = vmul.f32 %v4313, %v4454
        %v4475 = vmul.f32 %v4314, %v4455
        %v4476 = vmul.f32 %v4315, %v4455
        %v4477 = vmul.f32 %v4316, %v4456
        %v4478 = vmul.f32 %v4317, %v4456
        %v4479 = vmul.f32 %v4318, %v4457
        %v4480 = vmul.f32 %v4319, %v4457
        %v4481 = vmul.f32 %v4320, %v4458
        %v4482 = vmul.f32 %v4321, %v4458
        %v4483 = vmul.f32 %v4322, %v4459
        %v4484 = vmul.f32 %v4323, %v4459
        %v4485 = vmul.f32 %v4324, %v4460
        %v4486 = vmul.f32 %v4325, %v4460
        %v4487 = vmul.f32 %v4326, %v4461
        %v4488 = vmul.f32 %v4327, %v4461
        %v4489 = vmul.f32 %v4328, %v4462
        %v4490 = vmul.f32 %v4329, %v4462
        %v4491 = vmul.f32 %v4330, %v4463
        %v4492 = vmul.f32 %v4331, %v4463
        %v4493 = vmul.f32 %v4332, %v4464
        %v4494 = vmul.f32 %v4333, %v4464
        %v4495 = vmul.f32 %v4334, %v4465
        %v4496 = vmul.f32 %v4335, %v4465
        %v4497 = vmul.f32 %v4336, %v4466
        %v4498 = vmul.f32 %v4337, %v4466
        %v4500 = vlaneseq
        %v4501 = vshrl.u32 %v4500, 7
        %v4502 = vsub.s32 0, %v4501
        %v4503 = vrot.slane %v4338, %v4502
        %v4504 = vlaneseq
        %v4505 = vshrl.u32 %v4504, 7
        %v4506 = vsub.s32 1, %v4505
        %v4507 = vrot.slane %v4338, %v4506
        %v4510 = vmul.f32 %v4467, %v4503
        %v4511 = vmul.f32 %v4468, %v4507
        %v4512 = vmul.f32 %v4469, %v4503
        %v4513 = vmul.f32 %v4470, %v4507
        %v4514 = vmul.f32 %v4471, %v4503
        %v4515 = vmul.f32 %v4472, %v4507
        %v4516 = vmul.f32 %v4473, %v4503
        %v4517 = vmul.f32 %v4474, %v4507
        %v4518 = vmul.f32 %v4475, %v4503
        %v4519 = vmul.f32 %v4476, %v4507
        %v4520 = vmul.f32 %v4477, %v4503
        %v4521 = vmul.f32 %v4478, %v4507
        %v4522 = vmul.f32 %v4479, %v4503
        %v4523 = vmul.f32 %v4480, %v4507
        %v4524 = vmul.f32 %v4481, %v4503
        %v4525 = vmul.f32 %v4482, %v4507
        %v4526 = vmul.f32 %v4483, %v4503
        %v4527 = vmul.f32 %v4484, %v4507
        %v4528 = vmul.f32 %v4485, %v4503
        %v4529 = vmul.f32 %v4486, %v4507
        %v4530 = vmul.f32 %v4487, %v4503
        %v4531 = vmul.f32 %v4488, %v4507
        %v4532 = vmul.f32 %v4489, %v4503
        %v4533 = vmul.f32 %v4490, %v4507
        %v4534 = vmul.f32 %v4491, %v4503
        %v4535 = vmul.f32 %v4492, %v4507
        %v4536 = vmul.f32 %v4493, %v4503
        %v4537 = vmul.f32 %v4494, %v4507
        %v4538 = vmul.f32 %v4495, %v4503
        %v4539 = vmul.f32 %v4496, %v4507
        %v4540 = vmul.f32 %v4497, %v4503
        %v4541 = vmul.f32 %v4498, %v4507
        %v4542 = vpack.c.bf16 %v4512, %v4510
        %v4543 = vpack.c.bf16 %v4513, %v4511
        %v4544 = vpack.c.bf16 %v4516, %v4514
        %v4545 = vpack.c.bf16 %v4517, %v4515
        %v4546 = vpack.c.bf16 %v4520, %v4518
        %v4547 = vpack.c.bf16 %v4521, %v4519
        %v4548 = vpack.c.bf16 %v4524, %v4522
        %v4549 = vpack.c.bf16 %v4525, %v4523
        %v4550 = vpack.c.bf16 %v4528, %v4526
        %v4551 = vpack.c.bf16 %v4529, %v4527
        %v4552 = vpack.c.bf16 %v4532, %v4530
        %v4553 = vpack.c.bf16 %v4533, %v4531
        %v4554 = vpack.c.bf16 %v4536, %v4534
        %v4555 = vpack.c.bf16 %v4537, %v4535
        %v4556 = vpack.c.bf16 %v4540, %v4538
        %v4557 = vpack.c.bf16 %v4541, %v4539
        %v4558 = vld [vmem:[%s852] sm:$0xff]
        %v4559 = vld [vmem:[%s852 + $0x8] sm:$0xff]
        %v4560 = vld [vmem:[%s852 + $0x10] sm:$0xff]
        %v4561 = vld [vmem:[%s852 + $0x18] sm:$0xff]
        %v4562 = vld [vmem:[%s852 + $0x20] sm:$0xff]
        %v4563 = vld [vmem:[%s852 + $0x28] sm:$0xff]
        %v4564 = vld [vmem:[%s852 + $0x30] sm:$0xff]
        %v4565 = vld [vmem:[%s852 + $0x38] sm:$0xff]
        %v4566 = vld [vmem:[%s852 + $0x40] sm:$0xff]
        %v4567 = vld [vmem:[%s852 + $0x48] sm:$0xff]
        %v4568 = vld [vmem:[%s852 + $0x50] sm:$0xff]
        %v4569 = vld [vmem:[%s852 + $0x58] sm:$0xff]
        %v4570 = vld [vmem:[%s852 + $0x60] sm:$0xff]
        %v4571 = vld [vmem:[%s852 + $0x68] sm:$0xff]
        %v4572 = vld [vmem:[%s852 + $0x70] sm:$0xff]
        %v4573 = vld [vmem:[%s852 + $0x78] sm:$0xff]
        %v4574 = vld [vmem:[%s852 + $0x80] sm:$0xff]
        %v4575 = vld [vmem:[%s852 + $0x88] sm:$0xff]
        %v4576 = vld [vmem:[%s852 + $0x90] sm:$0xff]
        %v4577 = vld [vmem:[%s852 + $0x98] sm:$0xff]
        %v4578 = vld [vmem:[%s852 + $0xa0] sm:$0xff]
        %v4579 = vld [vmem:[%s852 + $0xa8] sm:$0xff]
        %v4580 = vld [vmem:[%s852 + $0xb0] sm:$0xff]
        %v4581 = vld [vmem:[%s852 + $0xb8] sm:$0xff]
        %v4582 = vld [vmem:[%s852 + $0xc0] sm:$0xff]
        %v4583 = vld [vmem:[%s852 + $0xc8] sm:$0xff]
        %v4584 = vld [vmem:[%s852 + $0xd0] sm:$0xff]
        %v4585 = vld [vmem:[%s852 + $0xd8] sm:$0xff]
        %v4586 = vld [vmem:[%s852 + $0xe0] sm:$0xff]
        %v4587 = vld [vmem:[%s852 + $0xe8] sm:$0xff]
        %v4588 = vld [vmem:[%s852 + $0xf0] sm:$0xff]
        %v4589 = vld [vmem:[%s852 + $0xf8] sm:$0xff]
        %v4590 = vld [vmem:[%s852 + $0x100] sm:$0xff]
        %v4591 = vld [vmem:[%s852 + $0x108] sm:$0xff]
        %v4592 = vld [vmem:[%s852 + $0x110] sm:$0xff]
        %v4593 = vld [vmem:[%s852 + $0x118] sm:$0xff]
        %v4594 = vld [vmem:[%s852 + $0x120] sm:$0xff]
        %v4595 = vld [vmem:[%s852 + $0x128] sm:$0xff]
        %v4596 = vld [vmem:[%s852 + $0x130] sm:$0xff]
        %v4597 = vld [vmem:[%s852 + $0x138] sm:$0xff]
        %v4598 = vld [vmem:[%s852 + $0x140] sm:$0xff]
        %v4599 = vld [vmem:[%s852 + $0x148] sm:$0xff]
        %v4600 = vld [vmem:[%s852 + $0x150] sm:$0xff]
        %v4601 = vld [vmem:[%s852 + $0x158] sm:$0xff]
        %v4602 = vld [vmem:[%s852 + $0x160] sm:$0xff]
        %v4603 = vld [vmem:[%s852 + $0x168] sm:$0xff]
        %v4604 = vld [vmem:[%s852 + $0x170] sm:$0xff]
        %v4605 = vld [vmem:[%s852 + $0x178] sm:$0xff]
        %v4606 = vld [vmem:[%s852 + $0x180] sm:$0xff]
        %v4607 = vld [vmem:[%s852 + $0x188] sm:$0xff]
        %v4608 = vld [vmem:[%s852 + $0x190] sm:$0xff]
        %v4609 = vld [vmem:[%s852 + $0x198] sm:$0xff]
        %v4610 = vld [vmem:[%s852 + $0x1a0] sm:$0xff]
        %v4611 = vld [vmem:[%s852 + $0x1a8] sm:$0xff]
        %v4612 = vld [vmem:[%s852 + $0x1b0] sm:$0xff]
        %v4613 = vld [vmem:[%s852 + $0x1b8] sm:$0xff]
        %v4614 = vld [vmem:[%s852 + $0x1c0] sm:$0xff]
        %v4615 = vld [vmem:[%s852 + $0x1c8] sm:$0xff]
        %v4616 = vld [vmem:[%s852 + $0x1d0] sm:$0xff]
        %v4617 = vld [vmem:[%s852 + $0x1d8] sm:$0xff]
        %v4618 = vld [vmem:[%s852 + $0x1e0] sm:$0xff]
        %v4619 = vld [vmem:[%s852 + $0x1e8] sm:$0xff]
        %v4620 = vld [vmem:[%s852 + $0x1f0] sm:$0xff]
        %v4621 = vld [vmem:[%s852 + $0x1f8] sm:$0xff]
        %v4622 = vld [vmem:[%s861] sm:$0xf]
        %v4624 = vlaneseq
        %v4625 = vshrl.u32 %v4624, 7
        %v4626 = vsub.s32 0, %v4625
        %v4627 = vrot.slane %v4622, %v4626
        %v4628 = vlaneseq
        %v4629 = vshrl.u32 %v4628, 7
        %v4630 = vsub.s32 1, %v4629
        %v4631 = vrot.slane %v4622, %v4630
        %v4632 = vlaneseq
        %v4633 = vshrl.u32 %v4632, 7
        %v4634 = vsub.s32 2, %v4633
        %v4635 = vrot.slane %v4622, %v4634
        %v4636 = vlaneseq
        %v4637 = vshrl.u32 %v4636, 7
        %v4638 = vsub.s32 3, %v4637
        %v4639 = vrot.slane %v4622, %v4638
        %v4708 = vunpack.c.l.b16 %v4558
        %v4709 = vunpack.c.h.b16 %v4558
        %v4710 = vunpack.c.l.b16 %v4559
        %v4711 = vunpack.c.h.b16 %v4559
        %v4712 = vunpack.c.l.b16 %v4560
        %v4713 = vunpack.c.h.b16 %v4560
        %v4714 = vunpack.c.l.b16 %v4561
        %v4715 = vunpack.c.h.b16 %v4561
        %v4716 = vunpack.c.l.b16 %v4562
        %v4717 = vunpack.c.h.b16 %v4562
        %v4718 = vunpack.c.l.b16 %v4563
        %v4719 = vunpack.c.h.b16 %v4563
        %v4720 = vunpack.c.l.b16 %v4564
        %v4721 = vunpack.c.h.b16 %v4564
        %v4722 = vunpack.c.l.b16 %v4565
        %v4723 = vunpack.c.h.b16 %v4565
        %v4724 = vunpack.c.l.b16 %v4566
        %v4725 = vunpack.c.h.b16 %v4566
        %v4726 = vunpack.c.l.b16 %v4567
        %v4727 = vunpack.c.h.b16 %v4567
        %v4728 = vunpack.c.l.b16 %v4568
        %v4729 = vunpack.c.h.b16 %v4568
        %v4730 = vunpack.c.l.b16 %v4569
        %v4731 = vunpack.c.h.b16 %v4569
        %v4732 = vunpack.c.l.b16 %v4570
        %v4733 = vunpack.c.h.b16 %v4570
        %v4734 = vunpack.c.l.b16 %v4571
        %v4735 = vunpack.c.h.b16 %v4571
        %v4736 = vunpack.c.l.b16 %v4572
        %v4737 = vunpack.c.h.b16 %v4572
        %v4738 = vunpack.c.l.b16 %v4573
        %v4739 = vunpack.c.h.b16 %v4573
        %v4740 = vunpack.c.l.b16 %v4574
        %v4741 = vunpack.c.h.b16 %v4574
        %v4742 = vunpack.c.l.b16 %v4575
        %v4743 = vunpack.c.h.b16 %v4575
        %v4744 = vunpack.c.l.b16 %v4576
        %v4745 = vunpack.c.h.b16 %v4576
        %v4746 = vunpack.c.l.b16 %v4577
        %v4747 = vunpack.c.h.b16 %v4577
        %v4748 = vunpack.c.l.b16 %v4578
        %v4749 = vunpack.c.h.b16 %v4578
        %v4750 = vunpack.c.l.b16 %v4579
        %v4751 = vunpack.c.h.b16 %v4579
        %v4752 = vunpack.c.l.b16 %v4580
        %v4753 = vunpack.c.h.b16 %v4580
        %v4754 = vunpack.c.l.b16 %v4581
        %v4755 = vunpack.c.h.b16 %v4581
        %v4756 = vunpack.c.l.b16 %v4582
        %v4757 = vunpack.c.h.b16 %v4582
        %v4758 = vunpack.c.l.b16 %v4583
        %v4759 = vunpack.c.h.b16 %v4583
        %v4760 = vunpack.c.l.b16 %v4584
        %v4761 = vunpack.c.h.b16 %v4584
        %v4762 = vunpack.c.l.b16 %v4585
        %v4763 = vunpack.c.h.b16 %v4585
        %v4764 = vunpack.c.l.b16 %v4586
        %v4765 = vunpack.c.h.b16 %v4586
        %v4766 = vunpack.c.l.b16 %v4587
        %v4767 = vunpack.c.h.b16 %v4587
        %v4768 = vunpack.c.l.b16 %v4588
        %v4769 = vunpack.c.h.b16 %v4588
        %v4770 = vunpack.c.l.b16 %v4589
        %v4771 = vunpack.c.h.b16 %v4589
        %v4772 = vunpack.c.l.b16 %v4590
        %v4773 = vunpack.c.h.b16 %v4590
        %v4774 = vunpack.c.l.b16 %v4591
        %v4775 = vunpack.c.h.b16 %v4591
        %v4776 = vunpack.c.l.b16 %v4592
        %v4777 = vunpack.c.h.b16 %v4592
        %v4778 = vunpack.c.l.b16 %v4593
        %v4779 = vunpack.c.h.b16 %v4593
        %v4780 = vunpack.c.l.b16 %v4594
        %v4781 = vunpack.c.h.b16 %v4594
        %v4782 = vunpack.c.l.b16 %v4595
        %v4783 = vunpack.c.h.b16 %v4595
        %v4784 = vunpack.c.l.b16 %v4596
        %v4785 = vunpack.c.h.b16 %v4596
        %v4786 = vunpack.c.l.b16 %v4597
        %v4787 = vunpack.c.h.b16 %v4597
        %v4788 = vunpack.c.l.b16 %v4598
        %v4789 = vunpack.c.h.b16 %v4598
        %v4790 = vunpack.c.l.b16 %v4599
        %v4791 = vunpack.c.h.b16 %v4599
        %v4792 = vunpack.c.l.b16 %v4600
        %v4793 = vunpack.c.h.b16 %v4600
        %v4794 = vunpack.c.l.b16 %v4601
        %v4795 = vunpack.c.h.b16 %v4601
        %v4796 = vunpack.c.l.b16 %v4602
        %v4797 = vunpack.c.h.b16 %v4602
        %v4798 = vunpack.c.l.b16 %v4603
        %v4799 = vunpack.c.h.b16 %v4603
        %v4800 = vunpack.c.l.b16 %v4604
        %v4801 = vunpack.c.h.b16 %v4604
        %v4802 = vunpack.c.l.b16 %v4605
        %v4803 = vunpack.c.h.b16 %v4605
        %v4804 = vunpack.c.l.b16 %v4606
        %v4805 = vunpack.c.h.b16 %v4606
        %v4806 = vunpack.c.l.b16 %v4607
        %v4807 = vunpack.c.h.b16 %v4607
        %v4808 = vunpack.c.l.b16 %v4608
        %v4809 = vunpack.c.h.b16 %v4608
        %v4810 = vunpack.c.l.b16 %v4609
        %v4811 = vunpack.c.h.b16 %v4609
        %v4812 = vunpack.c.l.b16 %v4610
        %v4813 = vunpack.c.h.b16 %v4610
        %v4814 = vunpack.c.l.b16 %v4611
        %v4815 = vunpack.c.h.b16 %v4611
        %v4816 = vunpack.c.l.b16 %v4612
        %v4817 = vunpack.c.h.b16 %v4612
        %v4818 = vunpack.c.l.b16 %v4613
        %v4819 = vunpack.c.h.b16 %v4613
        %v4820 = vunpack.c.l.b16 %v4614
        %v4821 = vunpack.c.h.b16 %v4614
        %v4822 = vunpack.c.l.b16 %v4615
        %v4823 = vunpack.c.h.b16 %v4615
        %v4824 = vunpack.c.l.b16 %v4616
        %v4825 = vunpack.c.h.b16 %v4616
        %v4826 = vunpack.c.l.b16 %v4617
        %v4827 = vunpack.c.h.b16 %v4617
        %v4828 = vunpack.c.l.b16 %v4618
        %v4829 = vunpack.c.h.b16 %v4618
        %v4830 = vunpack.c.l.b16 %v4619
        %v4831 = vunpack.c.h.b16 %v4619
        %v4832 = vunpack.c.l.b16 %v4620
        %v4833 = vunpack.c.h.b16 %v4620
        %v4834 = vunpack.c.l.b16 %v4621
        %v4835 = vunpack.c.h.b16 %v4621
        %v4836 = vpack.c.b16 %v4712, %v4708
        %v4837 = vpack.c.b16 %v4713, %v4709
        %v4838 = vpack.c.b16 %v4714, %v4710
        %v4839 = vpack.c.b16 %v4715, %v4711
        %v4840 = vpack.c.b16 %v4720, %v4716
        %v4841 = vpack.c.b16 %v4721, %v4717
        %v4842 = vpack.c.b16 %v4722, %v4718
        %v4843 = vpack.c.b16 %v4723, %v4719
        %v4844 = vpack.c.b16 %v4728, %v4724
        %v4845 = vpack.c.b16 %v4729, %v4725
        %v4846 = vpack.c.b16 %v4730, %v4726
        %v4847 = vpack.c.b16 %v4731, %v4727
        %v4848 = vpack.c.b16 %v4736, %v4732
        %v4849 = vpack.c.b16 %v4737, %v4733
        %v4850 = vpack.c.b16 %v4738, %v4734
        %v4851 = vpack.c.b16 %v4739, %v4735
        %v4852 = vpack.c.b16 %v4744, %v4740
        %v4853 = vpack.c.b16 %v4745, %v4741
        %v4854 = vpack.c.b16 %v4746, %v4742
        %v4855 = vpack.c.b16 %v4747, %v4743
        %v4856 = vpack.c.b16 %v4752, %v4748
        %v4857 = vpack.c.b16 %v4753, %v4749
        %v4858 = vpack.c.b16 %v4754, %v4750
        %v4859 = vpack.c.b16 %v4755, %v4751
        %v4860 = vpack.c.b16 %v4760, %v4756
        %v4861 = vpack.c.b16 %v4761, %v4757
        %v4862 = vpack.c.b16 %v4762, %v4758
        %v4863 = vpack.c.b16 %v4763, %v4759
        %v4864 = vpack.c.b16 %v4768, %v4764
        %v4865 = vpack.c.b16 %v4769, %v4765
        %v4866 = vpack.c.b16 %v4770, %v4766
        %v4867 = vpack.c.b16 %v4771, %v4767
        %v4868 = vpack.c.b16 %v4776, %v4772
        %v4869 = vpack.c.b16 %v4777, %v4773
        %v4870 = vpack.c.b16 %v4778, %v4774
        %v4871 = vpack.c.b16 %v4779, %v4775
        %v4872 = vpack.c.b16 %v4784, %v4780
        %v4873 = vpack.c.b16 %v4785, %v4781
        %v4874 = vpack.c.b16 %v4786, %v4782
        %v4875 = vpack.c.b16 %v4787, %v4783
        %v4876 = vpack.c.b16 %v4792, %v4788
        %v4877 = vpack.c.b16 %v4793, %v4789
        %v4878 = vpack.c.b16 %v4794, %v4790
        %v4879 = vpack.c.b16 %v4795, %v4791
        %v4880 = vpack.c.b16 %v4800, %v4796
        %v4881 = vpack.c.b16 %v4801, %v4797
        %v4882 = vpack.c.b16 %v4802, %v4798
        %v4883 = vpack.c.b16 %v4803, %v4799
        %v4884 = vpack.c.b16 %v4808, %v4804
        %v4885 = vpack.c.b16 %v4809, %v4805
        %v4886 = vpack.c.b16 %v4810, %v4806
        %v4887 = vpack.c.b16 %v4811, %v4807
        %v4888 = vpack.c.b16 %v4816, %v4812
        %v4889 = vpack.c.b16 %v4817, %v4813
        %v4890 = vpack.c.b16 %v4818, %v4814
        %v4891 = vpack.c.b16 %v4819, %v4815
        %v4892 = vpack.c.b16 %v4824, %v4820
        %v4893 = vpack.c.b16 %v4825, %v4821
        %v4894 = vpack.c.b16 %v4826, %v4822
        %v4895 = vpack.c.b16 %v4827, %v4823
        %v4896 = vpack.c.b16 %v4832, %v4828
        %v4897 = vpack.c.b16 %v4833, %v4829
        %v4898 = vpack.c.b16 %v4834, %v4830
        %v4899 = vpack.c.b16 %v4835, %v4831
        %4964 = vmatprep.subr.bf16.mxu0 %v4865
        %4965 = vmatpush1.bf16.msra.mxu0 %v4864
        %4966 = vmatprep.subr.bf16.mxu0 %v4861
        %4967 = vmatpush1.bf16.msra.mxu0 %v4860
        %4968 = vmatprep.subr.bf16.mxu0 %v4857
        %4969 = vmatpush1.bf16.msra.mxu0 %v4856
        %4970 = vmatprep.subr.bf16.mxu0 %v4853
        %4971 = vmatpush1.bf16.msra.mxu0 %v4852
        %4972 = vmatprep.subr.bf16.mxu0 %v4849
        %4973 = vmatpush1.bf16.msra.mxu0 %v4848
        %4974 = vmatprep.subr.bf16.mxu0 %v4845
        %4975 = vmatpush1.bf16.msra.mxu0 %v4844
        %4976 = vmatprep.subr.bf16.mxu0 %v4841
        %4977 = vmatpush1.bf16.msra.mxu0 %v4840
        %4978 = vmatprep.subr.bf16.mxu0 %v4837
        %4979 = vmatpush1.bf16.msra.mxu0 %v4836
        %4980 = vmatprep.subr.bf16.mxu0 %v4897
        %4981 = vmatpush2.bf16.msra.mxu0 %v4896
        %4982 = vmatprep.subr.bf16.mxu0 %v4893
        %4983 = vmatpush2.bf16.msra.mxu0 %v4892
        %4984 = vmatprep.subr.bf16.mxu0 %v4889
        %4985 = vmatpush2.bf16.msra.mxu0 %v4888
        %4986 = vmatprep.subr.bf16.mxu0 %v4885
        %4987 = vmatpush2.bf16.msra.mxu0 %v4884
        %4988 = vmatprep.subr.bf16.mxu0 %v4881
        %4989 = vmatpush2.bf16.msra.mxu0 %v4880
        %4990 = vmatprep.subr.bf16.mxu0 %v4877
        %4991 = vmatpush2.bf16.msra.mxu0 %v4876
        %4992 = vmatprep.subr.bf16.mxu0 %v4873
        %4993 = vmatpush2.bf16.msra.mxu0 %v4872
        %4994 = vmatprep.subr.bf16.mxu0 %v4869
        %4995 = vmatpush2.bf16.msra.mxu0 %v4868
        %4996 = vmatprep.mubr.bf16.mxu0 %v4543
        %4997 = vmatmul.mubr.bf16.gmra.mxu0 %v4542
        %v4998 = vpop.f32.mrf.mxu0
        %v4999 = vadd.f32 %v4627, %v4998
        %v5000 = vpop.f32.mrf.mxu0
        %v5001 = vadd.f32 %v4631, %v5000
        %v5002 = vpop.f32.mrf.mxu0
        %v5003 = vadd.f32 %v4627, %v5002
        %v5004 = vpop.f32.mrf.mxu0
        %v5005 = vadd.f32 %v4631, %v5004
        %5006 = vmatprep.mubr.bf16.mxu0 %v4545
        %5007 = vmatmul.mubr.bf16.gmra.mxu0 %v4544
        %v5008 = vpop.f32.mrf.mxu0
        %v5009 = vadd.f32 %v4627, %v5008
        %v5010 = vpop.f32.mrf.mxu0
        %v5011 = vadd.f32 %v4631, %v5010
        %v5012 = vpop.f32.mrf.mxu0
        %v5013 = vadd.f32 %v4627, %v5012
        %v5014 = vpop.f32.mrf.mxu0
        %v5015 = vadd.f32 %v4631, %v5014
        %5016 = vmatprep.mubr.bf16.mxu0 %v4547
        %5017 = vmatmul.mubr.bf16.gmra.mxu0 %v4546
        %v5018 = vpop.f32.mrf.mxu0
        %v5019 = vadd.f32 %v4627, %v5018
        %v5020 = vpop.f32.mrf.mxu0
        %v5021 = vadd.f32 %v4631, %v5020
        %v5022 = vpop.f32.mrf.mxu0
        %v5023 = vadd.f32 %v4627, %v5022
        %v5024 = vpop.f32.mrf.mxu0
        %v5025 = vadd.f32 %v4631, %v5024
        %5026 = vmatprep.mubr.bf16.mxu0 %v4549
        %5027 = vmatmul.mubr.bf16.gmra.mxu0 %v4548
        %v5028 = vpop.f32.mrf.mxu0
        %v5029 = vadd.f32 %v4627, %v5028
        %v5030 = vpop.f32.mrf.mxu0
        %v5031 = vadd.f32 %v4631, %v5030
        %v5032 = vpop.f32.mrf.mxu0
        %v5033 = vadd.f32 %v4627, %v5032
        %v5034 = vpop.f32.mrf.mxu0
        %v5035 = vadd.f32 %v4631, %v5034
        %5036 = vmatprep.mubr.bf16.mxu0 %v4551
        %5037 = vmatmul.mubr.bf16.gmra.mxu0 %v4550
        %v5038 = vpop.f32.mrf.mxu0
        %v5039 = vadd.f32 %v4627, %v5038
        %v5040 = vpop.f32.mrf.mxu0
        %v5041 = vadd.f32 %v4631, %v5040
        %v5042 = vpop.f32.mrf.mxu0
        %v5043 = vadd.f32 %v4627, %v5042
        %v5044 = vpop.f32.mrf.mxu0
        %v5045 = vadd.f32 %v4631, %v5044
        %5046 = vmatprep.mubr.bf16.mxu0 %v4553
        %5047 = vmatmul.mubr.bf16.gmra.mxu0 %v4552
        %v5048 = vpop.f32.mrf.mxu0
        %v5049 = vadd.f32 %v4627, %v5048
        %v5050 = vpop.f32.mrf.mxu0
        %v5051 = vadd.f32 %v4631, %v5050
        %v5052 = vpop.f32.mrf.mxu0
        %v5053 = vadd.f32 %v4627, %v5052
        %v5054 = vpop.f32.mrf.mxu0
        %v5055 = vadd.f32 %v4631, %v5054
        %5056 = vmatprep.mubr.bf16.mxu0 %v4555
        %5057 = vmatmul.mubr.bf16.gmra.mxu0 %v4554
        %v5058 = vpop.f32.mrf.mxu0
        %v5059 = vadd.f32 %v4627, %v5058
        %v5060 = vpop.f32.mrf.mxu0
        %v5061 = vadd.f32 %v4631, %v5060
        %v5062 = vpop.f32.mrf.mxu0
        %v5063 = vadd.f32 %v4627, %v5062
        %v5064 = vpop.f32.mrf.mxu0
        %v5065 = vadd.f32 %v4631, %v5064
        %5066 = vmatprep.mubr.bf16.mxu0 %v4557
        %5067 = vmatmul.mubr.bf16.gmra.mxu0 %v4556
        %v5068 = vpop.f32.mrf.mxu0
        %v5069 = vadd.f32 %v4627, %v5068
        %v5070 = vpop.f32.mrf.mxu0
        %v5071 = vadd.f32 %v4631, %v5070
        %v5072 = vpop.f32.mrf.mxu0
        %v5073 = vadd.f32 %v4627, %v5072
        %v5074 = vpop.f32.mrf.mxu0
        %v5075 = vadd.f32 %v4631, %v5074
        %5076 = vdwg.mxu0
        %5077 = vmatprep.subr.bf16.mxu0 %v4867
        %5078 = vmatpush1.bf16.msra.mxu0 %v4866
        %5079 = vmatprep.subr.bf16.mxu0 %v4863
        %5080 = vmatpush1.bf16.msra.mxu0 %v4862
        %5081 = vmatprep.subr.bf16.mxu0 %v4859
        %5082 = vmatpush1.bf16.msra.mxu0 %v4858
        %5083 = vmatprep.subr.bf16.mxu0 %v4855
        %5084 = vmatpush1.bf16.msra.mxu0 %v4854
        %5085 = vmatprep.subr.bf16.mxu0 %v4851
        %5086 = vmatpush1.bf16.msra.mxu0 %v4850
        %5087 = vmatprep.subr.bf16.mxu0 %v4847
        %5088 = vmatpush1.bf16.msra.mxu0 %v4846
        %5089 = vmatprep.subr.bf16.mxu0 %v4843
        %5090 = vmatpush1.bf16.msra.mxu0 %v4842
        %5091 = vmatprep.subr.bf16.mxu0 %v4839
        %5092 = vmatpush1.bf16.msra.mxu0 %v4838
        %5093 = vmatprep.subr.bf16.mxu0 %v4899
        %5094 = vmatpush2.bf16.msra.mxu0 %v4898
        %5095 = vmatprep.subr.bf16.mxu0 %v4895
        %5096 = vmatpush2.bf16.msra.mxu0 %v4894
        %5097 = vmatprep.subr.bf16.mxu0 %v4891
        %5098 = vmatpush2.bf16.msra.mxu0 %v4890
        %5099 = vmatprep.subr.bf16.mxu0 %v4887
        %5100 = vmatpush2.bf16.msra.mxu0 %v4886
        %5101 = vmatprep.subr.bf16.mxu0 %v4883
        %5102 = vmatpush2.bf16.msra.mxu0 %v4882
        %5103 = vmatprep.subr.bf16.mxu0 %v4879
        %5104 = vmatpush2.bf16.msra.mxu0 %v4878
        %5105 = vmatprep.subr.bf16.mxu0 %v4875
        %5106 = vmatpush2.bf16.msra.mxu0 %v4874
        %5107 = vmatprep.subr.bf16.mxu0 %v4871
        %5108 = vmatpush2.bf16.msra.mxu0 %v4870
        %5109 = vmatprep.mubr.bf16.mxu0 %v4543
        %5110 = vmatmul.mubr.bf16.gmra.mxu0 %v4542
        %v5111 = vpop.f32.mrf.mxu0
        %v5112 = vadd.f32 %v4635, %v5111
        %v5113 = vpop.f32.mrf.mxu0
        %v5114 = vadd.f32 %v4639, %v5113
        %v5115 = vpop.f32.mrf.mxu0
        %v5116 = vadd.f32 %v4635, %v5115
        %v5117 = vpop.f32.mrf.mxu0
        %v5118 = vadd.f32 %v4639, %v5117
        %5119 = vmatprep.mubr.bf16.mxu0 %v4545
        %5120 = vmatmul.mubr.bf16.gmra.mxu0 %v4544
        %v5121 = vpop.f32.mrf.mxu0
        %v5122 = vadd.f32 %v4635, %v5121
        %v5123 = vpop.f32.mrf.mxu0
        %v5124 = vadd.f32 %v4639, %v5123
        %v5125 = vpop.f32.mrf.mxu0
        %v5126 = vadd.f32 %v4635, %v5125
        %v5127 = vpop.f32.mrf.mxu0
        %v5128 = vadd.f32 %v4639, %v5127
        %5129 = vmatprep.mubr.bf16.mxu0 %v4547
        %5130 = vmatmul.mubr.bf16.gmra.mxu0 %v4546
        %v5131 = vpop.f32.mrf.mxu0
        %v5132 = vadd.f32 %v4635, %v5131
        %v5133 = vpop.f32.mrf.mxu0
        %v5134 = vadd.f32 %v4639, %v5133
        %v5135 = vpop.f32.mrf.mxu0
        %v5136 = vadd.f32 %v4635, %v5135
        %v5137 = vpop.f32.mrf.mxu0
        %v5138 = vadd.f32 %v4639, %v5137
        %5139 = vmatprep.mubr.bf16.mxu0 %v4549
        %5140 = vmatmul.mubr.bf16.gmra.mxu0 %v4548
        %v5141 = vpop.f32.mrf.mxu0
        %v5142 = vadd.f32 %v4635, %v5141
        %v5143 = vpop.f32.mrf.mxu0
        %v5144 = vadd.f32 %v4639, %v5143
        %v5145 = vpop.f32.mrf.mxu0
        %v5146 = vadd.f32 %v4635, %v5145
        %v5147 = vpop.f32.mrf.mxu0
        %v5148 = vadd.f32 %v4639, %v5147
        %5149 = vmatprep.mubr.bf16.mxu0 %v4551
        %5150 = vmatmul.mubr.bf16.gmra.mxu0 %v4550
        %v5151 = vpop.f32.mrf.mxu0
        %v5152 = vadd.f32 %v4635, %v5151
        %v5153 = vpop.f32.mrf.mxu0
        %v5154 = vadd.f32 %v4639, %v5153
        %v5155 = vpop.f32.mrf.mxu0
        %v5156 = vadd.f32 %v4635, %v5155
        %v5157 = vpop.f32.mrf.mxu0
        %v5158 = vadd.f32 %v4639, %v5157
        %5159 = vmatprep.mubr.bf16.mxu0 %v4553
        %5160 = vmatmul.mubr.bf16.gmra.mxu0 %v4552
        %v5161 = vpop.f32.mrf.mxu0
        %v5162 = vadd.f32 %v4635, %v5161
        %v5163 = vpop.f32.mrf.mxu0
        %v5164 = vadd.f32 %v4639, %v5163
        %v5165 = vpop.f32.mrf.mxu0
        %v5166 = vadd.f32 %v4635, %v5165
        %v5167 = vpop.f32.mrf.mxu0
        %v5168 = vadd.f32 %v4639, %v5167
        %5169 = vmatprep.mubr.bf16.mxu0 %v4555
        %5170 = vmatmul.mubr.bf16.gmra.mxu0 %v4554
        %v5171 = vpop.f32.mrf.mxu0
        %v5172 = vadd.f32 %v4635, %v5171
        %v5173 = vpop.f32.mrf.mxu0
        %v5174 = vadd.f32 %v4639, %v5173
        %v5175 = vpop.f32.mrf.mxu0
        %v5176 = vadd.f32 %v4635, %v5175
        %v5177 = vpop.f32.mrf.mxu0
        %v5178 = vadd.f32 %v4639, %v5177
        %5179 = vmatprep.mubr.bf16.mxu0 %v4557
        %5180 = vmatmul.mubr.bf16.gmra.mxu0 %v4556
        %v5181 = vpop.f32.mrf.mxu0
        %v5182 = vadd.f32 %v4635, %v5181
        %v5183 = vpop.f32.mrf.mxu0
        %v5184 = vadd.f32 %v4639, %v5183
        %v5185 = vpop.f32.mrf.mxu0
        %v5186 = vadd.f32 %v4635, %v5185
        %v5187 = vpop.f32.mrf.mxu0
        %v5188 = vadd.f32 %v4639, %v5187
        %5189 = vdwg.mxu0
        %v5190 = vmul.f32 %v4999, %v4999
        %v5191 = vmul.f32 %v5001, %v5001
        %v5192 = vmul.f32 %v5112, %v5112
        %v5193 = vmul.f32 %v5114, %v5114
        %v5194 = vmul.f32 %v5003, %v5003
        %v5195 = vmul.f32 %v5005, %v5005
        %v5196 = vmul.f32 %v5116, %v5116
        %v5197 = vmul.f32 %v5118, %v5118
        %v5198 = vmul.f32 %v5009, %v5009
        %v5199 = vmul.f32 %v5011, %v5011
        %v5200 = vmul.f32 %v5122, %v5122
        %v5201 = vmul.f32 %v5124, %v5124
        %v5202 = vmul.f32 %v5013, %v5013
        %v5203 = vmul.f32 %v5015, %v5015
        %v5204 = vmul.f32 %v5126, %v5126
        %v5205 = vmul.f32 %v5128, %v5128
        %v5206 = vmul.f32 %v5019, %v5019
        %v5207 = vmul.f32 %v5021, %v5021
        %v5208 = vmul.f32 %v5132, %v5132
        %v5209 = vmul.f32 %v5134, %v5134
        %v5210 = vmul.f32 %v5023, %v5023
        %v5211 = vmul.f32 %v5025, %v5025
        %v5212 = vmul.f32 %v5136, %v5136
        %v5213 = vmul.f32 %v5138, %v5138
        %v5214 = vmul.f32 %v5029, %v5029
        %v5215 = vmul.f32 %v5031, %v5031
        %v5216 = vmul.f32 %v5142, %v5142
        %v5217 = vmul.f32 %v5144, %v5144
        %v5218 = vmul.f32 %v5033, %v5033
        %v5219 = vmul.f32 %v5035, %v5035
        %v5220 = vmul.f32 %v5146, %v5146
        %v5221 = vmul.f32 %v5148, %v5148
        %v5222 = vmul.f32 %v5039, %v5039
        %v5223 = vmul.f32 %v5041, %v5041
        %v5224 = vmul.f32 %v5152, %v5152
        %v5225 = vmul.f32 %v5154, %v5154
        %v5226 = vmul.f32 %v5043, %v5043
        %v5227 = vmul.f32 %v5045, %v5045
        %v5228 = vmul.f32 %v5156, %v5156
        %v5229 = vmul.f32 %v5158, %v5158
        %v5230 = vmul.f32 %v5049, %v5049
        %v5231 = vmul.f32 %v5051, %v5051
        %v5232 = vmul.f32 %v5162, %v5162
        %v5233 = vmul.f32 %v5164, %v5164
        %v5234 = vmul.f32 %v5053, %v5053
        %v5235 = vmul.f32 %v5055, %v5055
        %v5236 = vmul.f32 %v5166, %v5166
        %v5237 = vmul.f32 %v5168, %v5168
        %v5238 = vmul.f32 %v5059, %v5059
        %v5239 = vmul.f32 %v5061, %v5061
        %v5240 = vmul.f32 %v5172, %v5172
        %v5241 = vmul.f32 %v5174, %v5174
        %v5242 = vmul.f32 %v5063, %v5063
        %v5243 = vmul.f32 %v5065, %v5065
        %v5244 = vmul.f32 %v5176, %v5176
        %v5245 = vmul.f32 %v5178, %v5178
        %v5246 = vmul.f32 %v5069, %v5069
        %v5247 = vmul.f32 %v5071, %v5071
        %v5248 = vmul.f32 %v5182, %v5182
        %v5249 = vmul.f32 %v5184, %v5184
        %v5250 = vmul.f32 %v5073, %v5073
        %v5251 = vmul.f32 %v5075, %v5075
        %v5252 = vmul.f32 %v5186, %v5186
        %v5253 = vmul.f32 %v5188, %v5188
        %v5254 = vmul.f32 %v4999, %v5190
        %v5255 = vmul.f32 %v5001, %v5191
        %v5256 = vmul.f32 %v5112, %v5192
        %v5257 = vmul.f32 %v5114, %v5193
        %v5258 = vmul.f32 %v5003, %v5194
        %v5259 = vmul.f32 %v5005, %v5195
        %v5260 = vmul.f32 %v5116, %v5196
        %v5261 = vmul.f32 %v5118, %v5197
        %v5262 = vmul.f32 %v5009, %v5198
        %v5263 = vmul.f32 %v5011, %v5199
        %v5264 = vmul.f32 %v5122, %v5200
        %v5265 = vmul.f32 %v5124, %v5201
        %v5266 = vmul.f32 %v5013, %v5202
        %v5267 = vmul.f32 %v5015, %v5203
        %v5268 = vmul.f32 %v5126, %v5204
        %v5269 = vmul.f32 %v5128, %v5205
        %v5270 = vmul.f32 %v5019, %v5206
        %v5271 = vmul.f32 %v5021, %v5207
        %v5272 = vmul.f32 %v5132, %v5208
        %v5273 = vmul.f32 %v5134, %v5209
        %v5274 = vmul.f32 %v5023, %v5210
        %v5275 = vmul.f32 %v5025, %v5211
        %v5276 = vmul.f32 %v5136, %v5212
        %v5277 = vmul.f32 %v5138, %v5213
        %v5278 = vmul.f32 %v5029, %v5214
        %v5279 = vmul.f32 %v5031, %v5215
        %v5280 = vmul.f32 %v5142, %v5216
        %v5281 = vmul.f32 %v5144, %v5217
        %v5282 = vmul.f32 %v5033, %v5218
        %v5283 = vmul.f32 %v5035, %v5219
        %v5284 = vmul.f32 %v5146, %v5220
        %v5285 = vmul.f32 %v5148, %v5221
        %v5286 = vmul.f32 %v5039, %v5222
        %v5287 = vmul.f32 %v5041, %v5223
        %v5288 = vmul.f32 %v5152, %v5224
        %v5289 = vmul.f32 %v5154, %v5225
        %v5290 = vmul.f32 %v5043, %v5226
        %v5291 = vmul.f32 %v5045, %v5227
        %v5292 = vmul.f32 %v5156, %v5228
        %v5293 = vmul.f32 %v5158, %v5229
        %v5294 = vmul.f32 %v5049, %v5230
        %v5295 = vmul.f32 %v5051, %v5231
        %v5296 = vmul.f32 %v5162, %v5232
        %v5297 = vmul.f32 %v5164, %v5233
        %v5298 = vmul.f32 %v5053, %v5234
        %v5299 = vmul.f32 %v5055, %v5235
        %v5300 = vmul.f32 %v5166, %v5236
        %v5301 = vmul.f32 %v5168, %v5237
        %v5302 = vmul.f32 %v5059, %v5238
        %v5303 = vmul.f32 %v5061, %v5239
        %v5304 = vmul.f32 %v5172, %v5240
        %v5305 = vmul.f32 %v5174, %v5241
        %v5306 = vmul.f32 %v5063, %v5242
        %v5307 = vmul.f32 %v5065, %v5243
        %v5308 = vmul.f32 %v5176, %v5244
        %v5309 = vmul.f32 %v5178, %v5245
        %v5310 = vmul.f32 %v5069, %v5246
        %v5311 = vmul.f32 %v5071, %v5247
        %v5312 = vmul.f32 %v5182, %v5248
        %v5313 = vmul.f32 %v5184, %v5249
        %v5314 = vmul.f32 %v5073, %v5250
        %v5315 = vmul.f32 %v5075, %v5251
        %v5316 = vmul.f32 %v5186, %v5252
        %v5317 = vmul.f32 %v5188, %v5253
        %v5318 = vmul.f32 %v5254, 0.044715
        %v5319 = vmul.f32 %v5255, 0.044715
        %v5320 = vmul.f32 %v5256, 0.044715
        %v5321 = vmul.f32 %v5257, 0.044715
        %v5322 = vmul.f32 %v5258, 0.044715
        %v5323 = vmul.f32 %v5259, 0.044715
        %v5324 = vmul.f32 %v5260, 0.044715
        %v5325 = vmul.f32 %v5261, 0.044715
        %v5326 = vmul.f32 %v5262, 0.044715
        %v5327 = vmul.f32 %v5263, 0.044715
        %v5328 = vmul.f32 %v5264, 0.044715
        %v5329 = vmul.f32 %v5265, 0.044715
        %v5330 = vmul.f32 %v5266, 0.044715
        %v5331 = vmul.f32 %v5267, 0.044715
        %v5332 = vmul.f32 %v5268, 0.044715
        %v5333 = vmul.f32 %v5269, 0.044715
        %v5334 = vmul.f32 %v5270, 0.044715
        %v5335 = vmul.f32 %v5271, 0.044715
        %v5336 = vmul.f32 %v5272, 0.044715
        %v5337 = vmul.f32 %v5273, 0.044715
        %v5338 = vmul.f32 %v5274, 0.044715
        %v5339 = vmul.f32 %v5275, 0.044715
        %v5340 = vmul.f32 %v5276, 0.044715
        %v5341 = vmul.f32 %v5277, 0.044715
        %v5342 = vmul.f32 %v5278, 0.044715
        %v5343 = vmul.f32 %v5279, 0.044715
        %v5344 = vmul.f32 %v5280, 0.044715
        %v5345 = vmul.f32 %v5281, 0.044715
        %v5346 = vmul.f32 %v5282, 0.044715
        %v5347 = vmul.f32 %v5283, 0.044715
        %v5348 = vmul.f32 %v5284, 0.044715
        %v5349 = vmul.f32 %v5285, 0.044715
        %v5350 = vmul.f32 %v5286, 0.044715
        %v5351 = vmul.f32 %v5287, 0.044715
        %v5352 = vmul.f32 %v5288, 0.044715
        %v5353 = vmul.f32 %v5289, 0.044715
        %v5354 = vmul.f32 %v5290, 0.044715
        %v5355 = vmul.f32 %v5291, 0.044715
        %v5356 = vmul.f32 %v5292, 0.044715
        %v5357 = vmul.f32 %v5293, 0.044715
        %v5358 = vmul.f32 %v5294, 0.044715
        %v5359 = vmul.f32 %v5295, 0.044715
        %v5360 = vmul.f32 %v5296, 0.044715
        %v5361 = vmul.f32 %v5297, 0.044715
        %v5362 = vmul.f32 %v5298, 0.044715
        %v5363 = vmul.f32 %v5299, 0.044715
        %v5364 = vmul.f32 %v5300, 0.044715
        %v5365 = vmul.f32 %v5301, 0.044715
        %v5366 = vmul.f32 %v5302, 0.044715
        %v5367 = vmul.f32 %v5303, 0.044715
        %v5368 = vmul.f32 %v5304, 0.044715
        %v5369 = vmul.f32 %v5305, 0.044715
        %v5370 = vmul.f32 %v5306, 0.044715
        %v5371 = vmul.f32 %v5307, 0.044715
        %v5372 = vmul.f32 %v5308, 0.044715
        %v5373 = vmul.f32 %v5309, 0.044715
        %v5374 = vmul.f32 %v5310, 0.044715
        %v5375 = vmul.f32 %v5311, 0.044715
        %v5376 = vmul.f32 %v5312, 0.044715
        %v5377 = vmul.f32 %v5313, 0.044715
        %v5378 = vmul.f32 %v5314, 0.044715
        %v5379 = vmul.f32 %v5315, 0.044715
        %v5380 = vmul.f32 %v5316, 0.044715
        %v5381 = vmul.f32 %v5317, 0.044715
        %v5382 = vadd.f32 %v4999, %v5318
        %v5383 = vadd.f32 %v5001, %v5319
        %v5384 = vadd.f32 %v5112, %v5320
        %v5385 = vadd.f32 %v5114, %v5321
        %v5386 = vadd.f32 %v5003, %v5322
        %v5387 = vadd.f32 %v5005, %v5323
        %v5388 = vadd.f32 %v5116, %v5324
        %v5389 = vadd.f32 %v5118, %v5325
        %v5390 = vadd.f32 %v5009, %v5326
        %v5391 = vadd.f32 %v5011, %v5327
        %v5392 = vadd.f32 %v5122, %v5328
        %v5393 = vadd.f32 %v5124, %v5329
        %v5394 = vadd.f32 %v5013, %v5330
        %v5395 = vadd.f32 %v5015, %v5331
        %v5396 = vadd.f32 %v5126, %v5332
        %v5397 = vadd.f32 %v5128, %v5333
        %v5398 = vadd.f32 %v5019, %v5334
        %v5399 = vadd.f32 %v5021, %v5335
        %v5400 = vadd.f32 %v5132, %v5336
        %v5401 = vadd.f32 %v5134, %v5337
        %v5402 = vadd.f32 %v5023, %v5338
        %v5403 = vadd.f32 %v5025, %v5339
        %v5404 = vadd.f32 %v5136, %v5340
        %v5405 = vadd.f32 %v5138, %v5341
        %v5406 = vadd.f32 %v5029, %v5342
        %v5407 = vadd.f32 %v5031, %v5343
        %v5408 = vadd.f32 %v5142, %v5344
        %v5409 = vadd.f32 %v5144, %v5345
        %v5410 = vadd.f32 %v5033, %v5346
        %v5411 = vadd.f32 %v5035, %v5347
        %v5412 = vadd.f32 %v5146, %v5348
        %v5413 = vadd.f32 %v5148, %v5349
        %v5414 = vadd.f32 %v5039, %v5350
        %v5415 = vadd.f32 %v5041, %v5351
        %v5416 = vadd.f32 %v5152, %v5352
        %v5417 = vadd.f32 %v5154, %v5353
        %v5418 = vadd.f32 %v5043, %v5354
        %v5419 = vadd.f32 %v5045, %v5355
        %v5420 = vadd.f32 %v5156, %v5356
        %v5421 = vadd.f32 %v5158, %v5357
        %v5422 = vadd.f32 %v5049, %v5358
        %v5423 = vadd.f32 %v5051, %v5359
        %v5424 = vadd.f32 %v5162, %v5360
        %v5425 = vadd.f32 %v5164, %v5361
        %v5426 = vadd.f32 %v5053, %v5362
        %v5427 = vadd.f32 %v5055, %v5363
        %v5428 = vadd.f32 %v5166, %v5364
        %v5429 = vadd.f32 %v5168, %v5365
        %v5430 = vadd.f32 %v5059, %v5366
        %v5431 = vadd.f32 %v5061, %v5367
        %v5432 = vadd.f32 %v5172, %v5368
        %v5433 = vadd.f32 %v5174, %v5369
        %v5434 = vadd.f32 %v5063, %v5370
        %v5435 = vadd.f32 %v5065, %v5371
        %v5436 = vadd.f32 %v5176, %v5372
        %v5437 = vadd.f32 %v5178, %v5373
        %v5438 = vadd.f32 %v5069, %v5374
        %v5439 = vadd.f32 %v5071, %v5375
        %v5440 = vadd.f32 %v5182, %v5376
        %v5441 = vadd.f32 %v5184, %v5377
        %v5442 = vadd.f32 %v5073, %v5378
        %v5443 = vadd.f32 %v5075, %v5379
        %v5444 = vadd.f32 %v5186, %v5380
        %v5445 = vadd.f32 %v5188, %v5381
        %v5446 = vmul.f32 %v5382, 0.7978846
        %v5447 = vmul.f32 %v5383, 0.7978846
        %v5448 = vmul.f32 %v5384, 0.7978846
        %v5449 = vmul.f32 %v5385, 0.7978846
        %v5450 = vmul.f32 %v5386, 0.7978846
        %v5451 = vmul.f32 %v5387, 0.7978846
        %v5452 = vmul.f32 %v5388, 0.7978846
        %v5453 = vmul.f32 %v5389, 0.7978846
        %v5454 = vmul.f32 %v5390, 0.7978846
        %v5455 = vmul.f32 %v5391, 0.7978846
        %v5456 = vmul.f32 %v5392, 0.7978846
        %v5457 = vmul.f32 %v5393, 0.7978846
        %v5458 = vmul.f32 %v5394, 0.7978846
        %v5459 = vmul.f32 %v5395, 0.7978846
        %v5460 = vmul.f32 %v5396, 0.7978846
        %v5461 = vmul.f32 %v5397, 0.7978846
        %v5462 = vmul.f32 %v5398, 0.7978846
        %v5463 = vmul.f32 %v5399, 0.7978846
        %v5464 = vmul.f32 %v5400, 0.7978846
        %v5465 = vmul.f32 %v5401, 0.7978846
        %v5466 = vmul.f32 %v5402, 0.7978846
        %v5467 = vmul.f32 %v5403, 0.7978846
        %v5468 = vmul.f32 %v5404, 0.7978846
        %v5469 = vmul.f32 %v5405, 0.7978846
        %v5470 = vmul.f32 %v5406, 0.7978846
        %v5471 = vmul.f32 %v5407, 0.7978846
        %v5472 = vmul.f32 %v5408, 0.7978846
        %v5473 = vmul.f32 %v5409, 0.7978846
        %v5474 = vmul.f32 %v5410, 0.7978846
        %v5475 = vmul.f32 %v5411, 0.7978846
        %v5476 = vmul.f32 %v5412, 0.7978846
        %v5477 = vmul.f32 %v5413, 0.7978846
        %v5478 = vmul.f32 %v5414, 0.7978846
        %v5479 = vmul.f32 %v5415, 0.7978846
        %v5480 = vmul.f32 %v5416, 0.7978846
        %v5481 = vmul.f32 %v5417, 0.7978846
        %v5482 = vmul.f32 %v5418, 0.7978846
        %v5483 = vmul.f32 %v5419, 0.7978846
        %v5484 = vmul.f32 %v5420, 0.7978846
        %v5485 = vmul.f32 %v5421, 0.7978846
        %v5486 = vmul.f32 %v5422, 0.7978846
        %v5487 = vmul.f32 %v5423, 0.7978846
        %v5488 = vmul.f32 %v5424, 0.7978846
        %v5489 = vmul.f32 %v5425, 0.7978846
        %v5490 = vmul.f32 %v5426, 0.7978846
        %v5491 = vmul.f32 %v5427, 0.7978846
        %v5492 = vmul.f32 %v5428, 0.7978846
        %v5493 = vmul.f32 %v5429, 0.7978846
        %v5494 = vmul.f32 %v5430, 0.7978846
        %v5495 = vmul.f32 %v5431, 0.7978846
        %v5496 = vmul.f32 %v5432, 0.7978846
        %v5497 = vmul.f32 %v5433, 0.7978846
        %v5498 = vmul.f32 %v5434, 0.7978846
        %v5499 = vmul.f32 %v5435, 0.7978846
        %v5500 = vmul.f32 %v5436, 0.7978846
        %v5501 = vmul.f32 %v5437, 0.7978846
        %v5502 = vmul.f32 %v5438, 0.7978846
        %v5503 = vmul.f32 %v5439, 0.7978846
        %v5504 = vmul.f32 %v5440, 0.7978846
        %v5505 = vmul.f32 %v5441, 0.7978846
        %v5506 = vmul.f32 %v5442, 0.7978846
        %v5507 = vmul.f32 %v5443, 0.7978846
        %v5508 = vmul.f32 %v5444, 0.7978846
        %v5509 = vmul.f32 %v5445, 0.7978846
        %v5510 = vtanh.pop %v5446
        %v5511 = vtanh.pop %v5447
        %v5512 = vtanh.pop %v5448
        %v5513 = vtanh.pop %v5449
        %v5514 = vtanh.pop %v5450
        %v5515 = vtanh.pop %v5451
        %v5516 = vtanh.pop %v5452
        %v5517 = vtanh.pop %v5453
        %v5518 = vtanh.pop %v5454
        %v5519 = vtanh.pop %v5455
        %v5520 = vtanh.pop %v5456
        %v5521 = vtanh.pop %v5457
        %v5522 = vtanh.pop %v5458
        %v5523 = vtanh.pop %v5459
        %v5524 = vtanh.pop %v5460
        %v5525 = vtanh.pop %v5461
        %v5526 = vtanh.pop %v5462
        %v5527 = vtanh.pop %v5463
        %v5528 = vtanh.pop %v5464
        %v5529 = vtanh.pop %v5465
        %v5530 = vtanh.pop %v5466
        %v5531 = vtanh.pop %v5467
        %v5532 = vtanh.pop %v5468
        %v5533 = vtanh.pop %v5469
        %v5534 = vtanh.pop %v5470
        %v5535 = vtanh.pop %v5471
        %v5536 = vtanh.pop %v5472
        %v5537 = vtanh.pop %v5473
        %v5538 = vtanh.pop %v5474
        %v5539 = vtanh.pop %v5475
        %v5540 = vtanh.pop %v5476
        %v5541 = vtanh.pop %v5477
        %v5542 = vtanh.pop %v5478
        %v5543 = vtanh.pop %v5479
        %v5544 = vtanh.pop %v5480
        %v5545 = vtanh.pop %v5481
        %v5546 = vtanh.pop %v5482
        %v5547 = vtanh.pop %v5483
        %v5548 = vtanh.pop %v5484
        %v5549 = vtanh.pop %v5485
        %v5550 = vtanh.pop %v5486
        %v5551 = vtanh.pop %v5487
        %v5552 = vtanh.pop %v5488
        %v5553 = vtanh.pop %v5489
        %v5554 = vtanh.pop %v5490
        %v5555 = vtanh.pop %v5491
        %v5556 = vtanh.pop %v5492
        %v5557 = vtanh.pop %v5493
        %v5558 = vtanh.pop %v5494
        %v5559 = vtanh.pop %v5495
        %v5560 = vtanh.pop %v5496
        %v5561 = vtanh.pop %v5497
        %v5562 = vtanh.pop %v5498
        %v5563 = vtanh.pop %v5499
        %v5564 = vtanh.pop %v5500
        %v5565 = vtanh.pop %v5501
        %v5566 = vtanh.pop %v5502
        %v5567 = vtanh.pop %v5503
        %v5568 = vtanh.pop %v5504
        %v5569 = vtanh.pop %v5505
        %v5570 = vtanh.pop %v5506
        %v5571 = vtanh.pop %v5507
        %v5572 = vtanh.pop %v5508
        %v5573 = vtanh.pop %v5509
        %v5574 = vadd.f32 %v5510, 1.0
        %v5575 = vadd.f32 %v5511, 1.0
        %v5576 = vadd.f32 %v5512, 1.0
        %v5577 = vadd.f32 %v5513, 1.0
        %v5578 = vadd.f32 %v5514, 1.0
        %v5579 = vadd.f32 %v5515, 1.0
        %v5580 = vadd.f32 %v5516, 1.0
        %v5581 = vadd.f32 %v5517, 1.0
        %v5582 = vadd.f32 %v5518, 1.0
        %v5583 = vadd.f32 %v5519, 1.0
        %v5584 = vadd.f32 %v5520, 1.0
        %v5585 = vadd.f32 %v5521, 1.0
        %v5586 = vadd.f32 %v5522, 1.0
        %v5587 = vadd.f32 %v5523, 1.0
        %v5588 = vadd.f32 %v5524, 1.0
        %v5589 = vadd.f32 %v5525, 1.0
        %v5590 = vadd.f32 %v5526, 1.0
        %v5591 = vadd.f32 %v5527, 1.0
        %v5592 = vadd.f32 %v5528, 1.0
        %v5593 = vadd.f32 %v5529, 1.0
        %v5594 = vadd.f32 %v5530, 1.0
        %v5595 = vadd.f32 %v5531, 1.0
        %v5596 = vadd.f32 %v5532, 1.0
        %v5597 = vadd.f32 %v5533, 1.0
        %v5598 = vadd.f32 %v5534, 1.0
        %v5599 = vadd.f32 %v5535, 1.0
        %v5600 = vadd.f32 %v5536, 1.0
        %v5601 = vadd.f32 %v5537, 1.0
        %v5602 = vadd.f32 %v5538, 1.0
        %v5603 = vadd.f32 %v5539, 1.0
        %v5604 = vadd.f32 %v5540, 1.0
        %v5605 = vadd.f32 %v5541, 1.0
        %v5606 = vadd.f32 %v5542, 1.0
        %v5607 = vadd.f32 %v5543, 1.0
        %v5608 = vadd.f32 %v5544, 1.0
        %v5609 = vadd.f32 %v5545, 1.0
        %v5610 = vadd.f32 %v5546, 1.0
        %v5611 = vadd.f32 %v5547, 1.0
        %v5612 = vadd.f32 %v5548, 1.0
        %v5613 = vadd.f32 %v5549, 1.0
        %v5614 = vadd.f32 %v5550, 1.0
        %v5615 = vadd.f32 %v5551, 1.0
        %v5616 = vadd.f32 %v5552, 1.0
        %v5617 = vadd.f32 %v5553, 1.0
        %v5618 = vadd.f32 %v5554, 1.0
        %v5619 = vadd.f32 %v5555, 1.0
        %v5620 = vadd.f32 %v5556, 1.0
        %v5621 = vadd.f32 %v5557, 1.0
        %v5622 = vadd.f32 %v5558, 1.0
        %v5623 = vadd.f32 %v5559, 1.0
        %v5624 = vadd.f32 %v5560, 1.0
        %v5625 = vadd.f32 %v5561, 1.0
        %v5626 = vadd.f32 %v5562, 1.0
        %v5627 = vadd.f32 %v5563, 1.0
        %v5628 = vadd.f32 %v5564, 1.0
        %v5629 = vadd.f32 %v5565, 1.0
        %v5630 = vadd.f32 %v5566, 1.0
        %v5631 = vadd.f32 %v5567, 1.0
        %v5632 = vadd.f32 %v5568, 1.0
        %v5633 = vadd.f32 %v5569, 1.0
        %v5634 = vadd.f32 %v5570, 1.0
        %v5635 = vadd.f32 %v5571, 1.0
        %v5636 = vadd.f32 %v5572, 1.0
        %v5637 = vadd.f32 %v5573, 1.0
        %v5638 = vmul.f32 %v5574, 0.5
        %v5639 = vmul.f32 %v5575, 0.5
        %v5640 = vmul.f32 %v5576, 0.5
        %v5641 = vmul.f32 %v5577, 0.5
        %v5642 = vmul.f32 %v5578, 0.5
        %v5643 = vmul.f32 %v5579, 0.5
        %v5644 = vmul.f32 %v5580, 0.5
        %v5645 = vmul.f32 %v5581, 0.5
        %v5646 = vmul.f32 %v5582, 0.5
        %v5647 = vmul.f32 %v5583, 0.5
        %v5648 = vmul.f32 %v5584, 0.5
        %v5649 = vmul.f32 %v5585, 0.5
        %v5650 = vmul.f32 %v5586, 0.5
        %v5651 = vmul.f32 %v5587, 0.5
        %v5652 = vmul.f32 %v5588, 0.5
        %v5653 = vmul.f32 %v5589, 0.5
        %v5654 = vmul.f32 %v5590, 0.5
        %v5655 = vmul.f32 %v5591, 0.5
        %v5656 = vmul.f32 %v5592, 0.5
        %v5657 = vmul.f32 %v5593, 0.5
        %v5658 = vmul.f32 %v5594, 0.5
        %v5659 = vmul.f32 %v5595, 0.5
        %v5660 = vmul.f32 %v5596, 0.5
        %v5661 = vmul.f32 %v5597, 0.5
        %v5662 = vmul.f32 %v5598, 0.5
        %v5663 = vmul.f32 %v5599, 0.5
        %v5664 = vmul.f32 %v5600, 0.5
        %v5665 = vmul.f32 %v5601, 0.5
        %v5666 = vmul.f32 %v5602, 0.5
        %v5667 = vmul.f32 %v5603, 0.5
        %v5668 = vmul.f32 %v5604, 0.5
        %v5669 = vmul.f32 %v5605, 0.5
        %v5670 = vmul.f32 %v5606, 0.5
        %v5671 = vmul.f32 %v5607, 0.5
        %v5672 = vmul.f32 %v5608, 0.5
        %v5673 = vmul.f32 %v5609, 0.5
        %v5674 = vmul.f32 %v5610, 0.5
        %v5675 = vmul.f32 %v5611, 0.5
        %v5676 = vmul.f32 %v5612, 0.5
        %v5677 = vmul.f32 %v5613, 0.5
        %v5678 = vmul.f32 %v5614, 0.5
        %v5679 = vmul.f32 %v5615, 0.5
        %v5680 = vmul.f32 %v5616, 0.5
        %v5681 = vmul.f32 %v5617, 0.5
        %v5682 = vmul.f32 %v5618, 0.5
        %v5683 = vmul.f32 %v5619, 0.5
        %v5684 = vmul.f32 %v5620, 0.5
        %v5685 = vmul.f32 %v5621, 0.5
        %v5686 = vmul.f32 %v5622, 0.5
        %v5687 = vmul.f32 %v5623, 0.5
        %v5688 = vmul.f32 %v5624, 0.5
        %v5689 = vmul.f32 %v5625, 0.5
        %v5690 = vmul.f32 %v5626, 0.5
        %v5691 = vmul.f32 %v5627, 0.5
        %v5692 = vmul.f32 %v5628, 0.5
        %v5693 = vmul.f32 %v5629, 0.5
        %v5694 = vmul.f32 %v5630, 0.5
        %v5695 = vmul.f32 %v5631, 0.5
        %v5696 = vmul.f32 %v5632, 0.5
        %v5697 = vmul.f32 %v5633, 0.5
        %v5698 = vmul.f32 %v5634, 0.5
        %v5699 = vmul.f32 %v5635, 0.5
        %v5700 = vmul.f32 %v5636, 0.5
        %v5701 = vmul.f32 %v5637, 0.5
        %v5702 = vmul.f32 %v4999, %v5638
        %v5703 = vmul.f32 %v5001, %v5639
        %v5704 = vmul.f32 %v5112, %v5640
        %v5705 = vmul.f32 %v5114, %v5641
        %v5706 = vmul.f32 %v5003, %v5642
        %v5707 = vmul.f32 %v5005, %v5643
        %v5708 = vmul.f32 %v5116, %v5644
        %v5709 = vmul.f32 %v5118, %v5645
        %v5710 = vmul.f32 %v5009, %v5646
        %v5711 = vmul.f32 %v5011, %v5647
        %v5712 = vmul.f32 %v5122, %v5648
        %v5713 = vmul.f32 %v5124, %v5649
        %v5714 = vmul.f32 %v5013, %v5650
        %v5715 = vmul.f32 %v5015, %v5651
        %v5716 = vmul.f32 %v5126, %v5652
        %v5717 = vmul.f32 %v5128, %v5653
        %v5718 = vmul.f32 %v5019, %v5654
        %v5719 = vmul.f32 %v5021, %v5655
        %v5720 = vmul.f32 %v5132, %v5656
        %v5721 = vmul.f32 %v5134, %v5657
        %v5722 = vmul.f32 %v5023, %v5658
        %v5723 = vmul.f32 %v5025, %v5659
        %v5724 = vmul.f32 %v5136, %v5660
        %v5725 = vmul.f32 %v5138, %v5661
        %v5726 = vmul.f32 %v5029, %v5662
        %v5727 = vmul.f32 %v5031, %v5663
        %v5728 = vmul.f32 %v5142, %v5664
        %v5729 = vmul.f32 %v5144, %v5665
        %v5730 = vmul.f32 %v5033, %v5666
        %v5731 = vmul.f32 %v5035, %v5667
        %v5732 = vmul.f32 %v5146, %v5668
        %v5733 = vmul.f32 %v5148, %v5669
        %v5734 = vmul.f32 %v5039, %v5670
        %v5735 = vmul.f32 %v5041, %v5671
        %v5736 = vmul.f32 %v5152, %v5672
        %v5737 = vmul.f32 %v5154, %v5673
        %v5738 = vmul.f32 %v5043, %v5674
        %v5739 = vmul.f32 %v5045, %v5675
        %v5740 = vmul.f32 %v5156, %v5676
        %v5741 = vmul.f32 %v5158, %v5677
        %v5742 = vmul.f32 %v5049, %v5678
        %v5743 = vmul.f32 %v5051, %v5679
        %v5744 = vmul.f32 %v5162, %v5680
        %v5745 = vmul.f32 %v5164, %v5681
        %v5746 = vmul.f32 %v5053, %v5682
        %v5747 = vmul.f32 %v5055, %v5683
        %v5748 = vmul.f32 %v5166, %v5684
        %v5749 = vmul.f32 %v5168, %v5685
        %v5750 = vmul.f32 %v5059, %v5686
        %v5751 = vmul.f32 %v5061, %v5687
        %v5752 = vmul.f32 %v5172, %v5688
        %v5753 = vmul.f32 %v5174, %v5689
        %v5754 = vmul.f32 %v5063, %v5690
        %v5755 = vmul.f32 %v5065, %v5691
        %v5756 = vmul.f32 %v5176, %v5692
        %v5757 = vmul.f32 %v5178, %v5693
        %v5758 = vmul.f32 %v5069, %v5694
        %v5759 = vmul.f32 %v5071, %v5695
        %v5760 = vmul.f32 %v5182, %v5696
        %v5761 = vmul.f32 %v5184, %v5697
        %v5762 = vmul.f32 %v5073, %v5698
        %v5763 = vmul.f32 %v5075, %v5699
        %v5764 = vmul.f32 %v5186, %v5700
        %v5765 = vmul.f32 %v5188, %v5701
        %v5766 = vpack.c.bf16 %v5706, %v5702
        %v5767 = vpack.c.bf16 %v5707, %v5703
        %v5768 = vpack.c.bf16 %v5708, %v5704
        %v5769 = vpack.c.bf16 %v5709, %v5705
        %v5770 = vpack.c.bf16 %v5714, %v5710
        %v5771 = vpack.c.bf16 %v5715, %v5711
        %v5772 = vpack.c.bf16 %v5716, %v5712
        %v5773 = vpack.c.bf16 %v5717, %v5713
        %v5774 = vpack.c.bf16 %v5722, %v5718
        %v5775 = vpack.c.bf16 %v5723, %v5719
        %v5776 = vpack.c.bf16 %v5724, %v5720
        %v5777 = vpack.c.bf16 %v5725, %v5721
        %v5778 = vpack.c.bf16 %v5730, %v5726
        %v5779 = vpack.c.bf16 %v5731, %v5727
        %v5780 = vpack.c.bf16 %v5732, %v5728
        %v5781 = vpack.c.bf16 %v5733, %v5729
        %v5782 = vpack.c.bf16 %v5738, %v5734
        %v5783 = vpack.c.bf16 %v5739, %v5735
        %v5784 = vpack.c.bf16 %v5740, %v5736
        %v5785 = vpack.c.bf16 %v5741, %v5737
        %v5786 = vpack.c.bf16 %v5746, %v5742
        %v5787 = vpack.c.bf16 %v5747, %v5743
        %v5788 = vpack.c.bf16 %v5748, %v5744
        %v5789 = vpack.c.bf16 %v5749, %v5745
        %v5790 = vpack.c.bf16 %v5754, %v5750
        %v5791 = vpack.c.bf16 %v5755, %v5751
        %v5792 = vpack.c.bf16 %v5756, %v5752
        %v5793 = vpack.c.bf16 %v5757, %v5753
        %v5794 = vpack.c.bf16 %v5762, %v5758
        %v5795 = vpack.c.bf16 %v5763, %v5759
        %v5796 = vpack.c.bf16 %v5764, %v5760
        %v5797 = vpack.c.bf16 %v5765, %v5761
        %v5798 = vld [vmem:[%s870] sm:$0xff]
        %v5799 = vld [vmem:[%s870 + $0x8] sm:$0xff]
        %v5800 = vld [vmem:[%s870 + $0x10] sm:$0xff]
        %v5801 = vld [vmem:[%s870 + $0x18] sm:$0xff]
        %v5802 = vld [vmem:[%s870 + $0x20] sm:$0xff]
        %v5803 = vld [vmem:[%s870 + $0x28] sm:$0xff]
        %v5804 = vld [vmem:[%s870 + $0x30] sm:$0xff]
        %v5805 = vld [vmem:[%s870 + $0x38] sm:$0xff]
        %v5806 = vld [vmem:[%s870 + $0x40] sm:$0xff]
        %v5807 = vld [vmem:[%s870 + $0x48] sm:$0xff]
        %v5808 = vld [vmem:[%s870 + $0x50] sm:$0xff]
        %v5809 = vld [vmem:[%s870 + $0x58] sm:$0xff]
        %v5810 = vld [vmem:[%s870 + $0x60] sm:$0xff]
        %v5811 = vld [vmem:[%s870 + $0x68] sm:$0xff]
        %v5812 = vld [vmem:[%s870 + $0x70] sm:$0xff]
        %v5813 = vld [vmem:[%s870 + $0x78] sm:$0xff]
        %v5814 = vld [vmem:[%s870 + $0x80] sm:$0xff]
        %v5815 = vld [vmem:[%s870 + $0x88] sm:$0xff]
        %v5816 = vld [vmem:[%s870 + $0x90] sm:$0xff]
        %v5817 = vld [vmem:[%s870 + $0x98] sm:$0xff]
        %v5818 = vld [vmem:[%s870 + $0xa0] sm:$0xff]
        %v5819 = vld [vmem:[%s870 + $0xa8] sm:$0xff]
        %v5820 = vld [vmem:[%s870 + $0xb0] sm:$0xff]
        %v5821 = vld [vmem:[%s870 + $0xb8] sm:$0xff]
        %v5822 = vld [vmem:[%s870 + $0xc0] sm:$0xff]
        %v5823 = vld [vmem:[%s870 + $0xc8] sm:$0xff]
        %v5824 = vld [vmem:[%s870 + $0xd0] sm:$0xff]
        %v5825 = vld [vmem:[%s870 + $0xd8] sm:$0xff]
        %v5826 = vld [vmem:[%s870 + $0xe0] sm:$0xff]
        %v5827 = vld [vmem:[%s870 + $0xe8] sm:$0xff]
        %v5828 = vld [vmem:[%s870 + $0xf0] sm:$0xff]
        %v5829 = vld [vmem:[%s870 + $0xf8] sm:$0xff]
        %v5830 = vld [vmem:[%s870 + $0x100] sm:$0xff]
        %v5831 = vld [vmem:[%s870 + $0x108] sm:$0xff]
        %v5832 = vld [vmem:[%s870 + $0x110] sm:$0xff]
        %v5833 = vld [vmem:[%s870 + $0x118] sm:$0xff]
        %v5834 = vld [vmem:[%s870 + $0x120] sm:$0xff]
        %v5835 = vld [vmem:[%s870 + $0x128] sm:$0xff]
        %v5836 = vld [vmem:[%s870 + $0x130] sm:$0xff]
        %v5837 = vld [vmem:[%s870 + $0x138] sm:$0xff]
        %v5838 = vld [vmem:[%s870 + $0x140] sm:$0xff]
        %v5839 = vld [vmem:[%s870 + $0x148] sm:$0xff]
        %v5840 = vld [vmem:[%s870 + $0x150] sm:$0xff]
        %v5841 = vld [vmem:[%s870 + $0x158] sm:$0xff]
        %v5842 = vld [vmem:[%s870 + $0x160] sm:$0xff]
        %v5843 = vld [vmem:[%s870 + $0x168] sm:$0xff]
        %v5844 = vld [vmem:[%s870 + $0x170] sm:$0xff]
        %v5845 = vld [vmem:[%s870 + $0x178] sm:$0xff]
        %v5846 = vld [vmem:[%s870 + $0x180] sm:$0xff]
        %v5847 = vld [vmem:[%s870 + $0x188] sm:$0xff]
        %v5848 = vld [vmem:[%s870 + $0x190] sm:$0xff]
        %v5849 = vld [vmem:[%s870 + $0x198] sm:$0xff]
        %v5850 = vld [vmem:[%s870 + $0x1a0] sm:$0xff]
        %v5851 = vld [vmem:[%s870 + $0x1a8] sm:$0xff]
        %v5852 = vld [vmem:[%s870 + $0x1b0] sm:$0xff]
        %v5853 = vld [vmem:[%s870 + $0x1b8] sm:$0xff]
        %v5854 = vld [vmem:[%s870 + $0x1c0] sm:$0xff]
        %v5855 = vld [vmem:[%s870 + $0x1c8] sm:$0xff]
        %v5856 = vld [vmem:[%s870 + $0x1d0] sm:$0xff]
        %v5857 = vld [vmem:[%s870 + $0x1d8] sm:$0xff]
        %v5858 = vld [vmem:[%s870 + $0x1e0] sm:$0xff]
        %v5859 = vld [vmem:[%s870 + $0x1e8] sm:$0xff]
        %v5860 = vld [vmem:[%s870 + $0x1f0] sm:$0xff]
        %v5861 = vld [vmem:[%s870 + $0x1f8] sm:$0xff]
        %v5862 = vld [vmem:[%s879] sm:$0x3]
        %v5864 = vlaneseq
        %v5865 = vshrl.u32 %v5864, 7
        %v5866 = vsub.s32 0, %v5865
        %v5867 = vrot.slane %v5862, %v5866
        %v5868 = vlaneseq
        %v5869 = vshrl.u32 %v5868, 7
        %v5870 = vsub.s32 1, %v5869
        %v5871 = vrot.slane %v5862, %v5870
        %v5938 = vunpack.c.l.b16 %v5798
        %v5939 = vunpack.c.h.b16 %v5798
        %v5940 = vunpack.c.l.b16 %v5799
        %v5941 = vunpack.c.h.b16 %v5799
        %v5942 = vunpack.c.l.b16 %v5800
        %v5943 = vunpack.c.h.b16 %v5800
        %v5944 = vunpack.c.l.b16 %v5801
        %v5945 = vunpack.c.h.b16 %v5801
        %v5946 = vunpack.c.l.b16 %v5802
        %v5947 = vunpack.c.h.b16 %v5802
        %v5948 = vunpack.c.l.b16 %v5803
        %v5949 = vunpack.c.h.b16 %v5803
        %v5950 = vunpack.c.l.b16 %v5804
        %v5951 = vunpack.c.h.b16 %v5804
        %v5952 = vunpack.c.l.b16 %v5805
        %v5953 = vunpack.c.h.b16 %v5805
        %v5954 = vunpack.c.l.b16 %v5806
        %v5955 = vunpack.c.h.b16 %v5806
        %v5956 = vunpack.c.l.b16 %v5807
        %v5957 = vunpack.c.h.b16 %v5807
        %v5958 = vunpack.c.l.b16 %v5808
        %v5959 = vunpack.c.h.b16 %v5808
        %v5960 = vunpack.c.l.b16 %v5809
        %v5961 = vunpack.c.h.b16 %v5809
        %v5962 = vunpack.c.l.b16 %v5810
        %v5963 = vunpack.c.h.b16 %v5810
        %v5964 = vunpack.c.l.b16 %v5811
        %v5965 = vunpack.c.h.b16 %v5811
        %v5966 = vunpack.c.l.b16 %v5812
        %v5967 = vunpack.c.h.b16 %v5812
        %v5968 = vunpack.c.l.b16 %v5813
        %v5969 = vunpack.c.h.b16 %v5813
        %v5970 = vunpack.c.l.b16 %v5814
        %v5971 = vunpack.c.h.b16 %v5814
        %v5972 = vunpack.c.l.b16 %v5815
        %v5973 = vunpack.c.h.b16 %v5815
        %v5974 = vunpack.c.l.b16 %v5816
        %v5975 = vunpack.c.h.b16 %v5816
        %v5976 = vunpack.c.l.b16 %v5817
        %v5977 = vunpack.c.h.b16 %v5817
        %v5978 = vunpack.c.l.b16 %v5818
        %v5979 = vunpack.c.h.b16 %v5818
        %v5980 = vunpack.c.l.b16 %v5819
        %v5981 = vunpack.c.h.b16 %v5819
        %v5982 = vunpack.c.l.b16 %v5820
        %v5983 = vunpack.c.h.b16 %v5820
        %v5984 = vunpack.c.l.b16 %v5821
        %v5985 = vunpack.c.h.b16 %v5821
        %v5986 = vunpack.c.l.b16 %v5822
        %v5987 = vunpack.c.h.b16 %v5822
        %v5988 = vunpack.c.l.b16 %v5823
        %v5989 = vunpack.c.h.b16 %v5823
        %v5990 = vunpack.c.l.b16 %v5824
        %v5991 = vunpack.c.h.b16 %v5824
        %v5992 = vunpack.c.l.b16 %v5825
        %v5993 = vunpack.c.h.b16 %v5825
        %v5994 = vunpack.c.l.b16 %v5826
        %v5995 = vunpack.c.h.b16 %v5826
        %v5996 = vunpack.c.l.b16 %v5827
        %v5997 = vunpack.c.h.b16 %v5827
        %v5998 = vunpack.c.l.b16 %v5828
        %v5999 = vunpack.c.h.b16 %v5828
        %v6000 = vunpack.c.l.b16 %v5829
        %v6001 = vunpack.c.h.b16 %v5829
        %v6002 = vunpack.c.l.b16 %v5830
        %v6003 = vunpack.c.h.b16 %v5830
        %v6004 = vunpack.c.l.b16 %v5831
        %v6005 = vunpack.c.h.b16 %v5831
        %v6006 = vunpack.c.l.b16 %v5832
        %v6007 = vunpack.c.h.b16 %v5832
        %v6008 = vunpack.c.l.b16 %v5833
        %v6009 = vunpack.c.h.b16 %v5833
        %v6010 = vunpack.c.l.b16 %v5834
        %v6011 = vunpack.c.h.b16 %v5834
        %v6012 = vunpack.c.l.b16 %v5835
        %v6013 = vunpack.c.h.b16 %v5835
        %v6014 = vunpack.c.l.b16 %v5836
        %v6015 = vunpack.c.h.b16 %v5836
        %v6016 = vunpack.c.l.b16 %v5837
        %v6017 = vunpack.c.h.b16 %v5837
        %v6018 = vunpack.c.l.b16 %v5838
        %v6019 = vunpack.c.h.b16 %v5838
        %v6020 = vunpack.c.l.b16 %v5839
        %v6021 = vunpack.c.h.b16 %v5839
        %v6022 = vunpack.c.l.b16 %v5840
        %v6023 = vunpack.c.h.b16 %v5840
        %v6024 = vunpack.c.l.b16 %v5841
        %v6025 = vunpack.c.h.b16 %v5841
        %v6026 = vunpack.c.l.b16 %v5842
        %v6027 = vunpack.c.h.b16 %v5842
        %v6028 = vunpack.c.l.b16 %v5843
        %v6029 = vunpack.c.h.b16 %v5843
        %v6030 = vunpack.c.l.b16 %v5844
        %v6031 = vunpack.c.h.b16 %v5844
        %v6032 = vunpack.c.l.b16 %v5845
        %v6033 = vunpack.c.h.b16 %v5845
        %v6034 = vunpack.c.l.b16 %v5846
        %v6035 = vunpack.c.h.b16 %v5846
        %v6036 = vunpack.c.l.b16 %v5847
        %v6037 = vunpack.c.h.b16 %v5847
        %v6038 = vunpack.c.l.b16 %v5848
        %v6039 = vunpack.c.h.b16 %v5848
        %v6040 = vunpack.c.l.b16 %v5849
        %v6041 = vunpack.c.h.b16 %v5849
        %v6042 = vunpack.c.l.b16 %v5850
        %v6043 = vunpack.c.h.b16 %v5850
        %v6044 = vunpack.c.l.b16 %v5851
        %v6045 = vunpack.c.h.b16 %v5851
        %v6046 = vunpack.c.l.b16 %v5852
        %v6047 = vunpack.c.h.b16 %v5852
        %v6048 = vunpack.c.l.b16 %v5853
        %v6049 = vunpack.c.h.b16 %v5853
        %v6050 = vunpack.c.l.b16 %v5854
        %v6051 = vunpack.c.h.b16 %v5854
        %v6052 = vunpack.c.l.b16 %v5855
        %v6053 = vunpack.c.h.b16 %v5855
        %v6054 = vunpack.c.l.b16 %v5856
        %v6055 = vunpack.c.h.b16 %v5856
        %v6056 = vunpack.c.l.b16 %v5857
        %v6057 = vunpack.c.h.b16 %v5857
        %v6058 = vunpack.c.l.b16 %v5858
        %v6059 = vunpack.c.h.b16 %v5858
        %v6060 = vunpack.c.l.b16 %v5859
        %v6061 = vunpack.c.h.b16 %v5859
        %v6062 = vunpack.c.l.b16 %v5860
        %v6063 = vunpack.c.h.b16 %v5860
        %v6064 = vunpack.c.l.b16 %v5861
        %v6065 = vunpack.c.h.b16 %v5861
        %v6066 = vpack.c.b16 %v5940, %v5938
        %v6067 = vpack.c.b16 %v5941, %v5939
        %v6068 = vpack.c.b16 %v5944, %v5942
        %v6069 = vpack.c.b16 %v5945, %v5943
        %v6070 = vpack.c.b16 %v5948, %v5946
        %v6071 = vpack.c.b16 %v5949, %v5947
        %v6072 = vpack.c.b16 %v5952, %v5950
        %v6073 = vpack.c.b16 %v5953, %v5951
        %v6074 = vpack.c.b16 %v5956, %v5954
        %v6075 = vpack.c.b16 %v5957, %v5955
        %v6076 = vpack.c.b16 %v5960, %v5958
        %v6077 = vpack.c.b16 %v5961, %v5959
        %v6078 = vpack.c.b16 %v5964, %v5962
        %v6079 = vpack.c.b16 %v5965, %v5963
        %v6080 = vpack.c.b16 %v5968, %v5966
        %v6081 = vpack.c.b16 %v5969, %v5967
        %v6082 = vpack.c.b16 %v5972, %v5970
        %v6083 = vpack.c.b16 %v5973, %v5971
        %v6084 = vpack.c.b16 %v5976, %v5974
        %v6085 = vpack.c.b16 %v5977, %v5975
        %v6086 = vpack.c.b16 %v5980, %v5978
        %v6087 = vpack.c.b16 %v5981, %v5979
        %v6088 = vpack.c.b16 %v5984, %v5982
        %v6089 = vpack.c.b16 %v5985, %v5983
        %v6090 = vpack.c.b16 %v5988, %v5986
        %v6091 = vpack.c.b16 %v5989, %v5987
        %v6092 = vpack.c.b16 %v5992, %v5990
        %v6093 = vpack.c.b16 %v5993, %v5991
        %v6094 = vpack.c.b16 %v5996, %v5994
        %v6095 = vpack.c.b16 %v5997, %v5995
        %v6096 = vpack.c.b16 %v6000, %v5998
        %v6097 = vpack.c.b16 %v6001, %v5999
        %v6098 = vpack.c.b16 %v6004, %v6002
        %v6099 = vpack.c.b16 %v6005, %v6003
        %v6100 = vpack.c.b16 %v6008, %v6006
        %v6101 = vpack.c.b16 %v6009, %v6007
        %v6102 = vpack.c.b16 %v6012, %v6010
        %v6103 = vpack.c.b16 %v6013, %v6011
        %v6104 = vpack.c.b16 %v6016, %v6014
        %v6105 = vpack.c.b16 %v6017, %v6015
        %v6106 = vpack.c.b16 %v6020, %v6018
        %v6107 = vpack.c.b16 %v6021, %v6019
        %v6108 = vpack.c.b16 %v6024, %v6022
        %v6109 = vpack.c.b16 %v6025, %v6023
        %v6110 = vpack.c.b16 %v6028, %v6026
        %v6111 = vpack.c.b16 %v6029, %v6027
        %v6112 = vpack.c.b16 %v6032, %v6030
        %v6113 = vpack.c.b16 %v6033, %v6031
        %v6114 = vpack.c.b16 %v6036, %v6034
        %v6115 = vpack.c.b16 %v6037, %v6035
        %v6116 = vpack.c.b16 %v6040, %v6038
        %v6117 = vpack.c.b16 %v6041, %v6039
        %v6118 = vpack.c.b16 %v6044, %v6042
        %v6119 = vpack.c.b16 %v6045, %v6043
        %v6120 = vpack.c.b16 %v6048, %v6046
        %v6121 = vpack.c.b16 %v6049, %v6047
        %v6122 = vpack.c.b16 %v6052, %v6050
        %v6123 = vpack.c.b16 %v6053, %v6051
        %v6124 = vpack.c.b16 %v6056, %v6054
        %v6125 = vpack.c.b16 %v6057, %v6055
        %v6126 = vpack.c.b16 %v6060, %v6058
        %v6127 = vpack.c.b16 %v6061, %v6059
        %v6128 = vpack.c.b16 %v6064, %v6062
        %v6129 = vpack.c.b16 %v6065, %v6063
        %6194 = vmatprep.subr.bf16.mxu0 %v6081
        %6195 = vmatpush1.bf16.msra.mxu0 %v6080
        %6196 = vmatprep.subr.bf16.mxu0 %v6079
        %6197 = vmatpush1.bf16.msra.mxu0 %v6078
        %6198 = vmatprep.subr.bf16.mxu0 %v6077
        %6199 = vmatpush1.bf16.msra.mxu0 %v6076
        %6200 = vmatprep.subr.bf16.mxu0 %v6075
        %6201 = vmatpush1.bf16.msra.mxu0 %v6074
        %6202 = vmatprep.subr.bf16.mxu0 %v6073
        %6203 = vmatpush1.bf16.msra.mxu0 %v6072
        %6204 = vmatprep.subr.bf16.mxu0 %v6071
        %6205 = vmatpush1.bf16.msra.mxu0 %v6070
        %6206 = vmatprep.subr.bf16.mxu0 %v6069
        %6207 = vmatpush1.bf16.msra.mxu0 %v6068
        %6208 = vmatprep.subr.bf16.mxu0 %v6067
        %6209 = vmatpush1.bf16.msra.mxu0 %v6066
        %6210 = vmatprep.subr.bf16.mxu0 %v6097
        %6211 = vmatpush2.bf16.msra.mxu0 %v6096
        %6212 = vmatprep.subr.bf16.mxu0 %v6095
        %6213 = vmatpush2.bf16.msra.mxu0 %v6094
        %6214 = vmatprep.subr.bf16.mxu0 %v6093
        %6215 = vmatpush2.bf16.msra.mxu0 %v6092
        %6216 = vmatprep.subr.bf16.mxu0 %v6091
        %6217 = vmatpush2.bf16.msra.mxu0 %v6090
        %6218 = vmatprep.subr.bf16.mxu0 %v6089
        %6219 = vmatpush2.bf16.msra.mxu0 %v6088
        %6220 = vmatprep.subr.bf16.mxu0 %v6087
        %6221 = vmatpush2.bf16.msra.mxu0 %v6086
        %6222 = vmatprep.subr.bf16.mxu0 %v6085
        %6223 = vmatpush2.bf16.msra.mxu0 %v6084
        %6224 = vmatprep.subr.bf16.mxu0 %v6083
        %6225 = vmatpush2.bf16.msra.mxu0 %v6082
        %6226 = vmatprep.mubr.bf16.mxu0 %v5767
        %6227 = vmatmul.mubr.bf16.gmra.mxu0 %v5766
        %v6228 = vpop.f32.mrf.mxu0
        %v6229 = vadd.f32 %v5867, %v6228
        %v6230 = vpop.f32.mrf.mxu0
        %v6231 = vadd.f32 %v5871, %v6230
        %v6232 = vpop.f32.mrf.mxu0
        %v6233 = vadd.f32 %v5867, %v6232
        %v6234 = vpop.f32.mrf.mxu0
        %v6235 = vadd.f32 %v5871, %v6234
        %6236 = vmatprep.mubr.bf16.mxu0 %v5771
        %6237 = vmatmul.mubr.bf16.gmra.mxu0 %v5770
        %v6238 = vpop.f32.mrf.mxu0
        %v6239 = vadd.f32 %v5867, %v6238
        %v6240 = vpop.f32.mrf.mxu0
        %v6241 = vadd.f32 %v5871, %v6240
        %v6242 = vpop.f32.mrf.mxu0
        %v6243 = vadd.f32 %v5867, %v6242
        %v6244 = vpop.f32.mrf.mxu0
        %v6245 = vadd.f32 %v5871, %v6244
        %6246 = vmatprep.mubr.bf16.mxu0 %v5775
        %6247 = vmatmul.mubr.bf16.gmra.mxu0 %v5774
        %v6248 = vpop.f32.mrf.mxu0
        %v6249 = vadd.f32 %v5867, %v6248
        %v6250 = vpop.f32.mrf.mxu0
        %v6251 = vadd.f32 %v5871, %v6250
        %v6252 = vpop.f32.mrf.mxu0
        %v6253 = vadd.f32 %v5867, %v6252
        %v6254 = vpop.f32.mrf.mxu0
        %v6255 = vadd.f32 %v5871, %v6254
        %6256 = vmatprep.mubr.bf16.mxu0 %v5779
        %6257 = vmatmul.mubr.bf16.gmra.mxu0 %v5778
        %v6258 = vpop.f32.mrf.mxu0
        %v6259 = vadd.f32 %v5867, %v6258
        %v6260 = vpop.f32.mrf.mxu0
        %v6261 = vadd.f32 %v5871, %v6260
        %v6262 = vpop.f32.mrf.mxu0
        %v6263 = vadd.f32 %v5867, %v6262
        %v6264 = vpop.f32.mrf.mxu0
        %v6265 = vadd.f32 %v5871, %v6264
        %6266 = vmatprep.mubr.bf16.mxu0 %v5783
        %6267 = vmatmul.mubr.bf16.gmra.mxu0 %v5782
        %v6268 = vpop.f32.mrf.mxu0
        %v6269 = vadd.f32 %v5867, %v6268
        %v6270 = vpop.f32.mrf.mxu0
        %v6271 = vadd.f32 %v5871, %v6270
        %v6272 = vpop.f32.mrf.mxu0
        %v6273 = vadd.f32 %v5867, %v6272
        %v6274 = vpop.f32.mrf.mxu0
        %v6275 = vadd.f32 %v5871, %v6274
        %6276 = vmatprep.mubr.bf16.mxu0 %v5787
        %6277 = vmatmul.mubr.bf16.gmra.mxu0 %v5786
        %v6278 = vpop.f32.mrf.mxu0
        %v6279 = vadd.f32 %v5867, %v6278
        %v6280 = vpop.f32.mrf.mxu0
        %v6281 = vadd.f32 %v5871, %v6280
        %v6282 = vpop.f32.mrf.mxu0
        %v6283 = vadd.f32 %v5867, %v6282
        %v6284 = vpop.f32.mrf.mxu0
        %v6285 = vadd.f32 %v5871, %v6284
        %6286 = vmatprep.mubr.bf16.mxu0 %v5791
        %6287 = vmatmul.mubr.bf16.gmra.mxu0 %v5790
        %v6288 = vpop.f32.mrf.mxu0
        %v6289 = vadd.f32 %v5867, %v6288
        %v6290 = vpop.f32.mrf.mxu0
        %v6291 = vadd.f32 %v5871, %v6290
        %v6292 = vpop.f32.mrf.mxu0
        %v6293 = vadd.f32 %v5867, %v6292
        %v6294 = vpop.f32.mrf.mxu0
        %v6295 = vadd.f32 %v5871, %v6294
        %6296 = vmatprep.mubr.bf16.mxu0 %v5795
        %6297 = vmatmul.mubr.bf16.gmra.mxu0 %v5794
        %v6298 = vpop.f32.mrf.mxu0
        %v6299 = vadd.f32 %v5867, %v6298
        %v6300 = vpop.f32.mrf.mxu0
        %v6301 = vadd.f32 %v5871, %v6300
        %v6302 = vpop.f32.mrf.mxu0
        %v6303 = vadd.f32 %v5867, %v6302
        %v6304 = vpop.f32.mrf.mxu0
        %v6305 = vadd.f32 %v5871, %v6304
        %6306 = vdwg.mxu0
        %6307 = vmatprep.subr.bf16.mxu0 %v6113
        %6308 = vmatpush1.bf16.msra.mxu0 %v6112
        %6309 = vmatprep.subr.bf16.mxu0 %v6111
        %6310 = vmatpush1.bf16.msra.mxu0 %v6110
        %6311 = vmatprep.subr.bf16.mxu0 %v6109
        %6312 = vmatpush1.bf16.msra.mxu0 %v6108
        %6313 = vmatprep.subr.bf16.mxu0 %v6107
        %6314 = vmatpush1.bf16.msra.mxu0 %v6106
        %6315 = vmatprep.subr.bf16.mxu0 %v6105
        %6316 = vmatpush1.bf16.msra.mxu0 %v6104
        %6317 = vmatprep.subr.bf16.mxu0 %v6103
        %6318 = vmatpush1.bf16.msra.mxu0 %v6102
        %6319 = vmatprep.subr.bf16.mxu0 %v6101
        %6320 = vmatpush1.bf16.msra.mxu0 %v6100
        %6321 = vmatprep.subr.bf16.mxu0 %v6099
        %6322 = vmatpush1.bf16.msra.mxu0 %v6098
        %6323 = vmatprep.subr.bf16.mxu0 %v6129
        %6324 = vmatpush2.bf16.msra.mxu0 %v6128
        %6325 = vmatprep.subr.bf16.mxu0 %v6127
        %6326 = vmatpush2.bf16.msra.mxu0 %v6126
        %6327 = vmatprep.subr.bf16.mxu0 %v6125
        %6328 = vmatpush2.bf16.msra.mxu0 %v6124
        %6329 = vmatprep.subr.bf16.mxu0 %v6123
        %6330 = vmatpush2.bf16.msra.mxu0 %v6122
        %6331 = vmatprep.subr.bf16.mxu0 %v6121
        %6332 = vmatpush2.bf16.msra.mxu0 %v6120
        %6333 = vmatprep.subr.bf16.mxu0 %v6119
        %6334 = vmatpush2.bf16.msra.mxu0 %v6118
        %6335 = vmatprep.subr.bf16.mxu0 %v6117
        %6336 = vmatpush2.bf16.msra.mxu0 %v6116
        %6337 = vmatprep.subr.bf16.mxu0 %v6115
        %6338 = vmatpush2.bf16.msra.mxu0 %v6114
        %6339 = vmatprep.mubr.bf16.mxu0 %v5769
        %6340 = vmatmul.mubr.bf16.gmra.mxu0 %v5768
        %v6341 = vpop.f32.mrf.mxu0
        %v6342 = vadd.f32 %v6229, %v6341
        %v6343 = vpop.f32.mrf.mxu0
        %v6344 = vadd.f32 %v6231, %v6343
        %v6345 = vpop.f32.mrf.mxu0
        %v6346 = vadd.f32 %v6233, %v6345
        %v6347 = vpop.f32.mrf.mxu0
        %v6348 = vadd.f32 %v6235, %v6347
        %6349 = vmatprep.mubr.bf16.mxu0 %v5773
        %6350 = vmatmul.mubr.bf16.gmra.mxu0 %v5772
        %v6351 = vpop.f32.mrf.mxu0
        %v6352 = vadd.f32 %v6239, %v6351
        %v6353 = vpop.f32.mrf.mxu0
        %v6354 = vadd.f32 %v6241, %v6353
        %v6355 = vpop.f32.mrf.mxu0
        %v6356 = vadd.f32 %v6243, %v6355
        %v6357 = vpop.f32.mrf.mxu0
        %v6358 = vadd.f32 %v6245, %v6357
        %6359 = vmatprep.mubr.bf16.mxu0 %v5777
        %6360 = vmatmul.mubr.bf16.gmra.mxu0 %v5776
        %v6361 = vpop.f32.mrf.mxu0
        %v6362 = vadd.f32 %v6249, %v6361
        %v6363 = vpop.f32.mrf.mxu0
        %v6364 = vadd.f32 %v6251, %v6363
        %v6365 = vpop.f32.mrf.mxu0
        %v6366 = vadd.f32 %v6253, %v6365
        %v6367 = vpop.f32.mrf.mxu0
        %v6368 = vadd.f32 %v6255, %v6367
        %6369 = vmatprep.mubr.bf16.mxu0 %v5781
        %6370 = vmatmul.mubr.bf16.gmra.mxu0 %v5780
        %v6371 = vpop.f32.mrf.mxu0
        %v6372 = vadd.f32 %v6259, %v6371
        %v6373 = vpop.f32.mrf.mxu0
        %v6374 = vadd.f32 %v6261, %v6373
        %v6375 = vpop.f32.mrf.mxu0
        %v6376 = vadd.f32 %v6263, %v6375
        %v6377 = vpop.f32.mrf.mxu0
        %v6378 = vadd.f32 %v6265, %v6377
        %6379 = vmatprep.mubr.bf16.mxu0 %v5785
        %6380 = vmatmul.mubr.bf16.gmra.mxu0 %v5784
        %v6381 = vpop.f32.mrf.mxu0
        %v6382 = vadd.f32 %v6269, %v6381
        %v6383 = vpop.f32.mrf.mxu0
        %v6384 = vadd.f32 %v6271, %v6383
        %v6385 = vpop.f32.mrf.mxu0
        %v6386 = vadd.f32 %v6273, %v6385
        %v6387 = vpop.f32.mrf.mxu0
        %v6388 = vadd.f32 %v6275, %v6387
        %6389 = vmatprep.mubr.bf16.mxu0 %v5789
        %6390 = vmatmul.mubr.bf16.gmra.mxu0 %v5788
        %v6391 = vpop.f32.mrf.mxu0
        %v6392 = vadd.f32 %v6279, %v6391
        %v6393 = vpop.f32.mrf.mxu0
        %v6394 = vadd.f32 %v6281, %v6393
        %v6395 = vpop.f32.mrf.mxu0
        %v6396 = vadd.f32 %v6283, %v6395
        %v6397 = vpop.f32.mrf.mxu0
        %v6398 = vadd.f32 %v6285, %v6397
        %6399 = vmatprep.mubr.bf16.mxu0 %v5793
        %6400 = vmatmul.mubr.bf16.gmra.mxu0 %v5792
        %v6401 = vpop.f32.mrf.mxu0
        %v6402 = vadd.f32 %v6289, %v6401
        %v6403 = vpop.f32.mrf.mxu0
        %v6404 = vadd.f32 %v6291, %v6403
        %v6405 = vpop.f32.mrf.mxu0
        %v6406 = vadd.f32 %v6293, %v6405
        %v6407 = vpop.f32.mrf.mxu0
        %v6408 = vadd.f32 %v6295, %v6407
        %6409 = vmatprep.mubr.bf16.mxu0 %v5797
        %6410 = vmatmul.mubr.bf16.gmra.mxu0 %v5796
        %v6411 = vpop.f32.mrf.mxu0
        %v6412 = vadd.f32 %v6299, %v6411
        %v6413 = vpop.f32.mrf.mxu0
        %v6414 = vadd.f32 %v6301, %v6413
        %v6415 = vpop.f32.mrf.mxu0
        %v6416 = vadd.f32 %v6303, %v6415
        %v6417 = vpop.f32.mrf.mxu0
        %v6418 = vadd.f32 %v6305, %v6417
        %6419 = vdwg.mxu0
        %v6420 = vld [vmem:[%s888] sm:$0x3]
        %v6422 = vlaneseq
        %v6423 = vshrl.u32 %v6422, 7
        %v6424 = vsub.s32 0, %v6423
        %v6425 = vrot.slane %v6420, %v6424
        %v6426 = vlaneseq
        %v6427 = vshrl.u32 %v6426, 7
        %v6428 = vsub.s32 1, %v6427
        %v6429 = vrot.slane %v6420, %v6428
        %v6432 = vmul.f32 %v6342, %v6425
        %v6433 = vmul.f32 %v6344, %v6429
        %v6434 = vmul.f32 %v6346, %v6425
        %v6435 = vmul.f32 %v6348, %v6429
        %v6436 = vmul.f32 %v6352, %v6425
        %v6437 = vmul.f32 %v6354, %v6429
        %v6438 = vmul.f32 %v6356, %v6425
        %v6439 = vmul.f32 %v6358, %v6429
        %v6440 = vmul.f32 %v6362, %v6425
        %v6441 = vmul.f32 %v6364, %v6429
        %v6442 = vmul.f32 %v6366, %v6425
        %v6443 = vmul.f32 %v6368, %v6429
        %v6444 = vmul.f32 %v6372, %v6425
        %v6445 = vmul.f32 %v6374, %v6429
        %v6446 = vmul.f32 %v6376, %v6425
        %v6447 = vmul.f32 %v6378, %v6429
        %v6448 = vmul.f32 %v6382, %v6425
        %v6449 = vmul.f32 %v6384, %v6429
        %v6450 = vmul.f32 %v6386, %v6425
        %v6451 = vmul.f32 %v6388, %v6429
        %v6452 = vmul.f32 %v6392, %v6425
        %v6453 = vmul.f32 %v6394, %v6429
        %v6454 = vmul.f32 %v6396, %v6425
        %v6455 = vmul.f32 %v6398, %v6429
        %v6456 = vmul.f32 %v6402, %v6425
        %v6457 = vmul.f32 %v6404, %v6429
        %v6458 = vmul.f32 %v6406, %v6425
        %v6459 = vmul.f32 %v6408, %v6429
        %v6460 = vmul.f32 %v6412, %v6425
        %v6461 = vmul.f32 %v6414, %v6429
        %v6462 = vmul.f32 %v6416, %v6425
        %v6463 = vmul.f32 %v6418, %v6429
        %v6464 = vadd.f32 %v4306, %v6432
        %v6465 = vadd.f32 %v4307, %v6433
        %v6466 = vadd.f32 %v4308, %v6434
        %v6467 = vadd.f32 %v4309, %v6435
        %v6468 = vadd.f32 %v4310, %v6436
        %v6469 = vadd.f32 %v4311, %v6437
        %v6470 = vadd.f32 %v4312, %v6438
        %v6471 = vadd.f32 %v4313, %v6439
        %v6472 = vadd.f32 %v4314, %v6440
        %v6473 = vadd.f32 %v4315, %v6441
        %v6474 = vadd.f32 %v4316, %v6442
        %v6475 = vadd.f32 %v4317, %v6443
        %v6476 = vadd.f32 %v4318, %v6444
        %v6477 = vadd.f32 %v4319, %v6445
        %v6478 = vadd.f32 %v4320, %v6446
        %v6479 = vadd.f32 %v4321, %v6447
        %v6480 = vadd.f32 %v4322, %v6448
        %v6481 = vadd.f32 %v4323, %v6449
        %v6482 = vadd.f32 %v4324, %v6450
        %v6483 = vadd.f32 %v4325, %v6451
        %v6484 = vadd.f32 %v4326, %v6452
        %v6485 = vadd.f32 %v4327, %v6453
        %v6486 = vadd.f32 %v4328, %v6454
        %v6487 = vadd.f32 %v4329, %v6455
        %v6488 = vadd.f32 %v4330, %v6456
        %v6489 = vadd.f32 %v4331, %v6457
        %v6490 = vadd.f32 %v4332, %v6458
        %v6491 = vadd.f32 %v4333, %v6459
        %v6492 = vadd.f32 %v4334, %v6460
        %v6493 = vadd.f32 %v4335, %v6461
        %v6494 = vadd.f32 %v4336, %v6462
        %v6495 = vadd.f32 %v4337, %v6463
        %6496 = vst [vmem:[#allocation27] sm:$0xff] %v6464
        %6497 = vst [vmem:[#allocation27 + $0x8] sm:$0xff] %v6465
        %6498 = vst [vmem:[#allocation27 + $0x10] sm:$0xff] %v6466
        %6499 = vst [vmem:[#allocation27 + $0x18] sm:$0xff] %v6467
        %6500 = vst [vmem:[#allocation27 + $0x20] sm:$0xff] %v6468
        %6501 = vst [vmem:[#allocation27 + $0x28] sm:$0xff] %v6469
        %6502 = vst [vmem:[#allocation27 + $0x30] sm:$0xff] %v6470
        %6503 = vst [vmem:[#allocation27 + $0x38] sm:$0xff] %v6471
        %6504 = vst [vmem:[#allocation27 + $0x40] sm:$0xff] %v6472
        %6505 = vst [vmem:[#allocation27 + $0x48] sm:$0xff] %v6473
        %6506 = vst [vmem:[#allocation27 + $0x50] sm:$0xff] %v6474
        %6507 = vst [vmem:[#allocation27 + $0x58] sm:$0xff] %v6475
        %6508 = vst [vmem:[#allocation27 + $0x60] sm:$0xff] %v6476
        %6509 = vst [vmem:[#allocation27 + $0x68] sm:$0xff] %v6477
        %6510 = vst [vmem:[#allocation27 + $0x70] sm:$0xff] %v6478
        %6511 = vst [vmem:[#allocation27 + $0x78] sm:$0xff] %v6479
        %6512 = vst [vmem:[#allocation27 + $0x80] sm:$0xff] %v6480
        %6513 = vst [vmem:[#allocation27 + $0x88] sm:$0xff] %v6481
        %6514 = vst [vmem:[#allocation27 + $0x90] sm:$0xff] %v6482
        %6515 = vst [vmem:[#allocation27 + $0x98] sm:$0xff] %v6483
        %6516 = vst [vmem:[#allocation27 + $0xa0] sm:$0xff] %v6484
        %6517 = vst [vmem:[#allocation27 + $0xa8] sm:$0xff] %v6485
        %6518 = vst [vmem:[#allocation27 + $0xb0] sm:$0xff] %v6486
        %6519 = vst [vmem:[#allocation27 + $0xb8] sm:$0xff] %v6487
        %6520 = vst [vmem:[#allocation27 + $0xc0] sm:$0xff] %v6488
        %6521 = vst [vmem:[#allocation27 + $0xc8] sm:$0xff] %v6489
        %6522 = vst [vmem:[#allocation27 + $0xd0] sm:$0xff] %v6490
        %6523 = vst [vmem:[#allocation27 + $0xd8] sm:$0xff] %v6491
        %6524 = vst [vmem:[#allocation27 + $0xe0] sm:$0xff] %v6492
        %6525 = vst [vmem:[#allocation27 + $0xe8] sm:$0xff] %v6493
        %6526 = vst [vmem:[#allocation27 + $0xf0] sm:$0xff] %v6494
        %6527 = vst [vmem:[#allocation27 + $0xf8] sm:$0xff] %v6495
        // Predicated region
        $region145: #{tpu_custom_call.1} parent=79 // pred_check
          %p6528 = pneg %p447
        $region146: #{tpu_custom_call.1} parent=79 // pred_check_branch
          %6530 = sbr.rel (%p6528) target = $region148
        $region147: #{tpu_custom_call.1} parent=79 // pred_region
          %s6532 = ssub.s32 4096, 4096
          %6533 = vsyncadd [#allocation5], %s6532
          %s6534 = sshll.u32 [#allocation27], 4
          %s6535 = int_to_ptr.vmem [resolvable:$true] %s6534
          %6540 = dma.vmem_to_hbm [thread:$0]  %s6535, 4096, %s15, [#allocation5], 256, 256, 16
        $region148: #{tpu_custom_call.1} parent=79 // pred_fallthru
          _
        // Predicated region
        $region149: #{tpu_custom_call.1} parent=79 // pred_check
          %p6541 = pneg %p447
        $region150: #{tpu_custom_call.1} parent=79 // pred_check_branch
          %6543 = sbr.rel (%p6541) target = $region152
        $region151: #{tpu_custom_call.1} parent=79 // pred_region
          %6544 = dma.done [#allocation5], 4096
        $region152: #{tpu_custom_call.1} parent=79 // pred_fallthru
          _
      $region80: #{tpu_custom_call.1} parent=5 // pred_fallthru
        _
      %p6545 = scmp.le.s32.totalorder 2, %s44
      // Predicated region
      $region153: #{tpu_custom_call.1} parent=5 // pred_check
        %p6546 = pneg %p6545
      $region154: #{tpu_custom_call.1} parent=5 // pred_check_branch
        %6548 = sbr.rel (%p6546) target = $region156
      $region155: #{tpu_custom_call.1} parent=5 // pred_region
        %s6549 = ssub.s32 %s44, 2
      $region156: #{tpu_custom_call.1} parent=5 // pred_fallthru
        _
    $region6: #{tpu_custom_call.1} parent=1 // loop_footer
      %s48 = sadd.s32 1, %s44
    $region7: #{tpu_custom_call.1} parent=1 // loop_footer_branch
      %43 = sbr.rel target = $region3
    $region8: #{tpu_custom_call.1} parent=1 // loop_exit
      _
    %6550 = vsyncpa [#allocation4], 1
    %s6551 = scalar_lea.sflag [#allocation4], 1
    %6552 = vsyncpa %s6551, 1
    %6553 = vsyncpa [#allocation7], 1
    %s6554 = scalar_lea.sflag [#allocation7], 1
    %6555 = vsyncpa %s6554, 1
    %6556 = vsyncpa [#allocation10], 1
    %s6557 = scalar_lea.sflag [#allocation10], 1
    %6558 = vsyncpa %s6557, 1
    %6559 = vsyncpa [#allocation13], 1
    %s6560 = scalar_lea.sflag [#allocation13], 1
    %6561 = vsyncpa %s6560, 1
    %6562 = vsyncpa [#allocation16], 1
    %s6563 = scalar_lea.sflag [#allocation16], 1
    %6564 = vsyncpa %s6563, 1
    %6565 = vsyncpa [#allocation19], 1
    %s6566 = scalar_lea.sflag [#allocation19], 1
    %6567 = vsyncpa %s6566, 1
    %6568 = vsyncpa [#allocation22], 1
    %s6569 = scalar_lea.sflag [#allocation22], 1
    %6570 = vsyncpa %s6569, 1
    %6571 = vsyncpa [#allocation25], 1
    %s6572 = scalar_lea.sflag [#allocation25], 1
    %6573 = vsyncpa %s6572, 1
    %6574 = vsyncpa [#allocation5], 1
    %s6575 = scalar_lea.sflag [#allocation5], 1
    %6576 = vsyncpa %s6575, 1

</llo_original>
